<compile_context>
chip_gen: v7x
topology: tpu7x:2x2x1
jax: 0.10.0
libtpu: 0.0.40
codegen_flags: <defaults>
</compile_context>

<pallas_src>
import functools

import jax
import jax.numpy as jnp
from jax.experimental import pallas as pl
from jax.experimental.pallas import tpu as pltpu

# ----------------------------- config ---------------------------------------
START_ID = 1
STOP_ID = 2

VOCAB_SIZE = 16
EMBEDDING_SIZE = 8
ENC_HIDDEN_SIZE = 16
ATT_EMBEDDING_SIZE = 8
DEC_HIDDEN_SIZE = ENC_HIDDEN_SIZE + ATT_EMBEDDING_SIZE  # concat(z, l) is the GRU hidden
NUM_ATTS = 4
MAX_DECODE_STEP = 6
BER_PROB = 0.5

BATCH = 2
SRC_MAX_LEN = 8

LANE = 128   # every gate / hidden / vocab block padded to one lane-width
B_PAD = 8    # f32 sublane tile: batch rows padded 2 -> 8

_VMEM = pl.BlockSpec(memory_space=pltpu.MemorySpace.VMEM)


# ----------------------------- fused kernel ----------------------------------
def _gru_step(gi, gh, h):
    """gi/gh: [B_PAD, 3*LANE] lane-aligned blocks [r | z | n]; torch GRU exact."""
    r = jax.nn.sigmoid(gi[:, 0 * LANE:1 * LANE] + gh[:, 0 * LANE:1 * LANE])
    z = jax.nn.sigmoid(gi[:, 1 * LANE:2 * LANE] + gh[:, 1 * LANE:2 * LANE])
    n = jnp.tanh(gi[:, 2 * LANE:3 * LANE] + r * gh[:, 2 * LANE:3 * LANE])
    return (1.0 - z) * n + z * h


def _generator_kernel(
    # data inputs
    gi_enc1_ref,   # [T1, B_PAD, 3*LANE] f32   src gi = emb(src)@W_ih_e + b_ih_e
    len1_ref,      # [B_PAD, LANE] int32        src_len (lane-broadcast)
    gi_go_ref,     # [B_PAD, 3*LANE] f32        gi of the GO token (decoder)
    ly_ref,        # [B_PAD, LANE] f32          trg attribute emb at lanes [16:24]
    lx_ref,        # [B_PAD, LANE] f32          src attribute emb at lanes [16:24]
    gate_ref,      # [B_PAD, LANE] f32          Bernoulli gate at lanes [0:16]
    gi_decx_ref,   # [T4, B_PAD, 3*LANE] f32    teacher-forced decoder gi sequence
    # weights (bf16 MXU operands, f32 biases)
    whh_enc_ref,   # [LANE, 3*LANE] bf16
    bhh_enc_ref,   # [B_PAD, 3*LANE] f32
    whh_dec_ref,   # [LANE, 3*LANE] bf16
    bhh_dec_ref,   # [B_PAD, 3*LANE] f32
    enc_tab_ref,   # [LANE, 3*LANE] bf16        rows v: emb[v]@W_ih_e + b_ih_e
    dec_tab_ref,   # [LANE, 3*LANE] bf16        rows v: emb[v]@W_ih_d + b_ih_d
    lw_ref,        # [LANE, LANE] bf16          vocab projection
    lb_ref,        # [B_PAD, LANE] f32          vocab bias; padded lanes = -1e30
    # outputs
    hid_y_ref,     # [T2, B_PAD, LANE] f32      free-decode hiddens
    trg_ref,       # [B_PAD, LANE] int32        trg_len (lane-broadcast)
    hid_x_ref,     # [T4, B_PAD, LANE] f32      teacher-decode hiddens
    log_x_ref,     # [T4, B_PAD, LANE] f32      recon logits
    *, T1, T2, T4):
    f32 = jnp.float32
    bf16 = jnp.bfloat16

    # ---- loop-invariant reads, hoisted ----
    bhh_e = bhh_enc_ref[...]
    bhh_d = bhh_dec_ref[...]
    lb = lb_ref[...]
    len1 = len1_ref[...]
    lane = jax.lax.broadcasted_iota(jnp.int32, (B_PAD, LANE), 1)

    # ================= phase 1: encoder over src (pack_padded emulation) =====
    h = jnp.zeros((B_PAD, LANE), f32)
    for t in range(T1):                       # static -> fully unrolled
        gi = gi_enc1_ref[t]
        gh = jnp.dot(h.astype(bf16), whh_enc_ref[...],
                     preferred_element_type=f32) + bhh_e
        h_new = _gru_step(gi, gh, h)
        h = jnp.where(t < len1, h_new, h)     # freeze once t >= seq_len
    z_x = h                                   # lanes [0:16] valid, rest 0

    # ================= phase 2: free-running decode (greedy) =================
    h = z_x + ly_ref[...]                     # concat(z_x, l_y) in lanes [0:24]
    gi = gi_go_ref[...]
    onehots = []
    seen = jnp.zeros((B_PAD, 1), jnp.int32)
    first_eos = jnp.full((B_PAD, 1), T2 - 1, jnp.int32)
    for t in range(T2):
        gh = jnp.dot(h.astype(bf16), whh_dec_ref[...],
                     preferred_element_type=f32) + bhh_d
        h = _gru_step(gi, gh, h)
        hid_y_ref[t] = h
        logit = jnp.dot(h.astype(bf16), lw_ref[...],
                        preferred_element_type=f32) + lb
        # softmax+argmax == argmax of logits; first-occurrence tie-break.
        m = jnp.max(logit, axis=1, keepdims=True)
        first = jnp.min(jnp.where(logit == m, lane, LANE), axis=1, keepdims=True)
        oh = jnp.where(lane == first, 1.0, 0.0).astype(bf16)
        onehots.append(oh)
        # first-EOS tracking (get_first_eos_idx semantics)
        is_stop = (first == STOP_ID).astype(jnp.int32)
        new_hit = is_stop * (1 - seen)
        first_eos = first_eos * (1 - new_hit) + t * new_hit
        seen = jnp.maximum(seen, is_stop)
        if t + 1 < T2:
            # next gi = emb(sampled) @ W_ih + b_ih, fused into one matmul
            gi = jnp.dot(oh, dec_tab_ref[...], preferred_element_type=f32)

    feos_full = first_eos + jnp.zeros((B_PAD, LANE), jnp.int32)   # lane-broadcast
    trg_ref[...] = feos_full + 1

    # ================= phase 3: encoder over sampled_ys (trg_len masking) ====
    h2 = jnp.zeros((B_PAD, LANE), f32)
    for t in range(T2):
        gi = jnp.dot(onehots[t], enc_tab_ref[...], preferred_element_type=f32)
        gh = jnp.dot(h2.astype(bf16), whh_enc_ref[...],
                     preferred_element_type=f32) + bhh_e
        h2_new = _gru_step(gi, gh, h2)
        h2 = jnp.where(t <= feos_full, h2_new, h2)   # t < trg_len
    z_y = h2

    # ================= phase 4: Bernoulli mix + teacher-forced decode ========
    g = gate_ref[...]
    h = g * z_x + (1.0 - g) * z_y + lx_ref[...]      # concat(z_xy, l_x)
    for t in range(T4):
        gi = gi_decx_ref[t]
        gh = jnp.dot(h.astype(bf16), whh_dec_ref[...],
                     preferred_element_type=f32) + bhh_d
        h = _gru_step(gi, gh, h)
        hid_x_ref[t] = h
        log_x_ref[t] = jnp.dot(h.astype(bf16), lw_ref[...],
                               preferred_element_type=f32) + lb


def generator_pallas(gi_enc1, len1, gi_go, ly, lx, gate, gi_decx,
                     whh_enc, bhh_enc, whh_dec, bhh_dec,
                     enc_tab, dec_tab, lw, lb, *, T1, T2, T4):
    kernel = functools.partial(_generator_kernel, T1=T1, T2=T2, T4=T4)
    return pl.pallas_call(
        kernel,
        out_shape=(
            jax.ShapeDtypeStruct((T2, B_PAD, LANE), jnp.float32),   # hiddens_y
            jax.ShapeDtypeStruct((B_PAD, LANE), jnp.int32),         # trg_len
            jax.ShapeDtypeStruct((T4, B_PAD, LANE), jnp.float32),   # hiddens_x
            jax.ShapeDtypeStruct((T4, B_PAD, LANE), jnp.float32),   # recon logits
        ),
        in_specs=[_VMEM] * 15,
        out_specs=(_VMEM, _VMEM, _VMEM, _VMEM),
    )(gi_enc1, len1, gi_go, ly, lx, gate, gi_decx,
      whh_enc, bhh_enc, whh_dec, bhh_dec, enc_tab, dec_tab, lw, lb)


# ----------------------------- padding / prep helpers -------------------------
def _gi_table(emb, w_ih, b_ih, H):
    """Precompose emb @ W_ih + b_ih into [V, 3*LANE] lane-aligned gate blocks."""
    gi = emb @ w_ih + b_ih[None, :]                       # [V, 3H]
    out = jnp.zeros((VOCAB_SIZE, 3 * LANE), jnp.float32)
    for g in range(3):
        out = out.at[:, g * LANE:g * LANE + H].set(gi[:, g * H:(g + 1) * H])
    return out


def _pad_whh(w_hh, b_hh, H):
    """W_hh -> [LANE, 3*LANE] bf16 (h in lanes [0:H]); b_hh -> [B_PAD, 3*LANE] f32."""
    wf = jnp.zeros((LANE, 3 * LANE), jnp.float32)
    bf = jnp.zeros((3 * LANE,), jnp.float32)
    for g in range(3):
        wf = wf.at[:H, g * LANE:g * LANE + H].set(w_hh[:, g * H:(g + 1) * H])
        bf = bf.at[g * LANE:g * LANE + H].set(b_hh[g * H:(g + 1) * H])
    return wf.astype(jnp.bfloat16), jnp.broadcast_to(bf[None, :], (B_PAD, 3 * LANE))


def prepare_padded_params(p):
    """Build lane/sublane padded, pre-fused / pre-composed parameters once."""
    enc_gi = _gi_table(p["embedding"], p["enc_w_ih"], p["enc_b_ih"], ENC_HIDDEN_SIZE)
    dec_gi = _gi_table(p["embedding"], p["dec_w_ih"], p["dec_b_ih"], DEC_HIDDEN_SIZE)
    enc_tab = jnp.zeros((LANE, 3 * LANE), jnp.float32).at[:VOCAB_SIZE].set(enc_gi)
    dec_tab = jnp.zeros((LANE, 3 * LANE), jnp.float32).at[:VOCAB_SIZE].set(dec_gi)
    gi_go = jnp.broadcast_to(dec_gi[START_ID][None, :], (B_PAD, 3 * LANE))

    whh_enc, bhh_enc = _pad_whh(p["enc_w_hh"], p["enc_b_hh"], ENC_HIDDEN_SIZE)
    whh_dec, bhh_dec = _pad_whh(p["dec_w_hh"], p["dec_b_hh"], DEC_HIDDEN_SIZE)

    lw = jnp.zeros((LANE, LANE), jnp.float32).at[
        :DEC_HIDDEN_SIZE, :VOCAB_SIZE].set(p["lin_w"])
    lb = jnp.full((LANE,), -1e30, jnp.float32).at[:VOCAB_SIZE].set(p["lin_b"])
    lb = jnp.broadcast_to(lb[None, :], (B_PAD, LANE))

    return {
        "att_embedding": p["att_embedding"],
        "enc_gi_tab": enc_gi,                 # f32, gathered outside for known tokens
        "dec_gi_tab": dec_gi,
        "enc_tab_pad": enc_tab.astype(jnp.bfloat16),   # bf16, one-hot matmul in-kernel
        "dec_tab_pad": dec_tab.astype(jnp.bfloat16),
        "gi_go": gi_go,
        "whh_enc": whh_enc, "bhh_enc": bhh_enc,
        "whh_dec": whh_dec, "bhh_dec": bhh_dec,
        "lin_w_pad": lw.astype(jnp.bfloat16), "lin_b_pad": lb,
    }


def _pad_gi_seq(g_bt):
    """[B, T, 3*LANE] -> [T, B_PAD, 3*LANE]."""
    g = jnp.transpose(g_bt, (1, 0, 2))
    T, B, _ = g.shape
    out = jnp.zeros((T, B_PAD, 3 * LANE), jnp.float32)
    return out.at[:, :B, :].set(g)


def _pad_len(seq_len):
    B = seq_len.shape[0]
    out = jnp.zeros((B_PAD, LANE), jnp.int32)
    return out.at[:B, :].set(seq_len[:, None].astype(jnp.int32))


def _pad_att(l):
    B = l.shape[0]
    out = jnp.zeros((B_PAD, LANE), jnp.float32)
    return out.at[:B, ENC_HIDDEN_SIZE:ENC_HIDDEN_SIZE + ATT_EMBEDDING_SIZE].set(l)


# ----------------------------- full forward ----------------------------------
def generator_forward(pp, gate_key, src_inputs, src_len, src_attr, trg_attr):
    B, src_max_len = src_inputs.shape
    T1, T2, T4 = src_max_len, MAX_DECODE_STEP, src_max_len - 1

    # One-shot glue: gathers + padding (input-gate projection already pre-composed)
    gi_enc1 = _pad_gi_seq(jnp.take(pp["enc_gi_tab"], src_inputs, axis=0))
    len1 = _pad_len(src_len)
    ly = _pad_att(jnp.take(pp["att_embedding"], trg_attr, axis=0))
    lx = _pad_att(jnp.take(pp["att_embedding"], src_attr, axis=0))

    # TODO(synk): torch.distributions.Bernoulli sampling stays as host-side JAX RNG;
    # the gate mask is passed to the fused kernel as a precomputed input.
    gate_b = jax.random.bernoulli(gate_key, BER_PROB,
                                  (B, ENC_HIDDEN_SIZE)).astype(jnp.float32)
    gate = jnp.zeros((B_PAD, LANE), jnp.float32).at[:B, :ENC_HIDDEN_SIZE].set(gate_b)

    go_token = jnp.full((B, 1), START_ID, dtype=jnp.int32)
    go_x = jnp.concatenate([go_token, src_inputs], axis=1)[:, :T4]
    gi_decx = _pad_gi_seq(jnp.take(pp["dec_gi_tab"], go_x, axis=0))

    hid_y, trg, hid_x, log_x = generator_pallas(
        gi_enc1, len1, pp["gi_go"], ly, lx, gate, gi_decx,
        pp["whh_enc"], pp["bhh_enc"], pp["whh_dec"], pp["bhh_dec"],
        pp["enc_tab_pad"], pp["dec_tab_pad"], pp["lin_w_pad"], pp["lin_b_pad"],
        T1=T1, T2=T2, T4=T4)

    trg_len = trg[:B, 0]
    hiddens_y = jnp.transpose(hid_y[:, :B, :DEC_HIDDEN_SIZE], (1, 0, 2))
    hiddens_x = jnp.transpose(hid_x[:, :B, :DEC_HIDDEN_SIZE], (1, 0, 2))
    recon_logits = jnp.transpose(log_x[:, :B, :VOCAB_SIZE],
                                 (1, 0, 2)).reshape(B * T4, VOCAB_SIZE)
    return recon_logits, hiddens_x, hiddens_y, trg_len


# ----------------------------- parameter init -------------------------------
def init_params(key):
    ks = jax.random.split(key, 12)
    s = 0.1
    return {
        # encoder.embedding (shared with decoder.embedding — weight tying)
        "embedding": s * jax.random.normal(ks[0], (VOCAB_SIZE, EMBEDDING_SIZE), jnp.float32),
        "att_embedding": s * jax.random.normal(ks[1], (NUM_ATTS, ATT_EMBEDDING_SIZE), jnp.float32),
        # encoder GRU (weights stored [in, 3H], gate order r,z,n as in torch)
        "enc_w_ih": s * jax.random.normal(ks[2], (EMBEDDING_SIZE, 3 * ENC_HIDDEN_SIZE), jnp.float32),
        "enc_w_hh": s * jax.random.normal(ks[3], (ENC_HIDDEN_SIZE, 3 * ENC_HIDDEN_SIZE), jnp.float32),
        "enc_b_ih": s * jax.random.normal(ks[4], (3 * ENC_HIDDEN_SIZE,), jnp.float32),
        "enc_b_hh": s * jax.random.normal(ks[5], (3 * ENC_HIDDEN_SIZE,), jnp.float32),
        # decoder GRU
        "dec_w_ih": s * jax.random.normal(ks[6], (EMBEDDING_SIZE, 3 * DEC_HIDDEN_SIZE), jnp.float32),
        "dec_w_hh": s * jax.random.normal(ks[7], (DEC_HIDDEN_SIZE, 3 * DEC_HIDDEN_SIZE), jnp.float32),
        "dec_b_ih": s * jax.random.normal(ks[8], (3 * DEC_HIDDEN_SIZE,), jnp.float32),
        "dec_b_hh": s * jax.random.normal(ks[9], (3 * DEC_HIDDEN_SIZE,), jnp.float32),
        # decoder.linear (stored [H, V])
        "lin_w": s * jax.random.normal(ks[10], (DEC_HIDDEN_SIZE, VOCAB_SIZE), jnp.float32),
        "lin_b": s * jax.random.normal(ks[11], (VOCAB_SIZE,), jnp.float32),
    }


# ----------------------------- main ------------------------------------------
if __name__ == "__main__":
    root = jax.random.PRNGKey(0)
    k_param, k_inp, k_len, k_attr, k_gate = jax.random.split(root, 5)

    params = init_params(k_param)
    padded_params = prepare_padded_params(params)   # one-time fusion/pre-composition

    src_inputs = jax.random.randint(k_inp, (BATCH, SRC_MAX_LEN), 3, VOCAB_SIZE, dtype=jnp.int32)
    src_len = jnp.array([SRC_MAX_LEN, SRC_MAX_LEN - 3], dtype=jnp.int32)
    src_attr = jax.random.randint(k_attr, (BATCH,), 0, NUM_ATTS, dtype=jnp.int32)
    trg_attr = (src_attr + 1) % NUM_ATTS

    fwd = jax.jit(functools.partial(generator_forward, padded_params, k_gate))
    recon_logits, hiddens_x, hiddens_y, trg_len = fwd(src_inputs, src_len, src_attr, trg_attr)
    jax.block_until_ready((recon_logits, hiddens_x, hiddens_y, trg_len))

    assert recon_logits.shape == (BATCH * (SRC_MAX_LEN - 1), VOCAB_SIZE)
    assert hiddens_x.shape == (BATCH, SRC_MAX_LEN - 1, DEC_HIDDEN_SIZE)
    assert hiddens_y.shape == (BATCH, MAX_DECODE_STEP, DEC_HIDDEN_SIZE)
    assert trg_len.shape == (BATCH,)
    assert bool(jnp.all(jnp.isfinite(recon_logits)))
    assert bool(jnp.all((trg_len >= 1) & (trg_len <= MAX_DECODE_STEP)))
    print("KERNEL_OK")
</pallas_src>

<mosaic_0001>
module attributes {stable_mosaic.version = 11 : i64} {
  func.func @_generator_kernel(%arg0: memref<8x8x384xf32, #tpu.memory_space<vmem>>, %arg1: memref<8x128xi32, #tpu.memory_space<vmem>>, %arg2: memref<8x384xf32, #tpu.memory_space<vmem>>, %arg3: memref<8x128xf32, #tpu.memory_space<vmem>>, %arg4: memref<8x128xf32, #tpu.memory_space<vmem>>, %arg5: memref<8x128xf32, #tpu.memory_space<vmem>>, %arg6: memref<7x8x384xf32, #tpu.memory_space<vmem>>, %arg7: memref<128x384xbf16, #tpu.memory_space<vmem>>, %arg8: memref<8x384xf32, #tpu.memory_space<vmem>>, %arg9: memref<128x384xbf16, #tpu.memory_space<vmem>>, %arg10: memref<8x384xf32, #tpu.memory_space<vmem>>, %arg11: memref<128x384xbf16, #tpu.memory_space<vmem>>, %arg12: memref<128x384xbf16, #tpu.memory_space<vmem>>, %arg13: memref<128x128xbf16, #tpu.memory_space<vmem>>, %arg14: memref<8x128xf32, #tpu.memory_space<vmem>>, %arg15: memref<6x8x128xf32, #tpu.memory_space<vmem>>, %arg16: memref<8x128xi32, #tpu.memory_space<vmem>>, %arg17: memref<7x8x128xf32, #tpu.memory_space<vmem>>, %arg18: memref<7x8x128xf32, #tpu.memory_space<vmem>>) attributes {dimension_semantics = [], scalar_prefetch = 0 : i64, scratch_operands = 0 : i64, tpu.core_type = #tpu.core_type<tc>} {
    %c0 = arith.constant 0 : index
    %c0_0 = arith.constant 0 : index
    %0 = vector.load %arg8[%c0, %c0_0] : memref<8x384xf32, #tpu.memory_space<vmem>>, vector<8x384xf32>
    %c0_1 = arith.constant 0 : index
    %c0_2 = arith.constant 0 : index
    %1 = vector.load %arg10[%c0_1, %c0_2] : memref<8x384xf32, #tpu.memory_space<vmem>>, vector<8x384xf32>
    %c0_3 = arith.constant 0 : index
    %c0_4 = arith.constant 0 : index
    %2 = vector.load %arg14[%c0_3, %c0_4] : memref<8x128xf32, #tpu.memory_space<vmem>>, vector<8x128xf32>
    %c0_5 = arith.constant 0 : index
    %c0_6 = arith.constant 0 : index
    %3 = vector.load %arg1[%c0_5, %c0_6] : memref<8x128xi32, #tpu.memory_space<vmem>>, vector<8x128xi32>
    %4 = tpu.iota {dimensions = array<i32: 1>} : vector<8x128xi32>
    %cst = arith.constant 0.000000e+00 : f32
    %5 = vector.broadcast %cst : f32 to vector<8x128xf32>
    %c0_7 = arith.constant 0 : index
    %c0_8 = arith.constant 0 : index
    %c0_9 = arith.constant 0 : index
    %6 = vector.load %arg0[%c0_7, %c0_8, %c0_9] : memref<8x8x384xf32, #tpu.memory_space<vmem>>, vector<1x8x384xf32>
    %7 = vector.shape_cast %6 : vector<1x8x384xf32> to vector<8x384xf32>
    %8 = arith.truncf %5 : vector<8x128xf32> to vector<8x128xbf16>
    %c0_10 = arith.constant 0 : index
    %c0_11 = arith.constant 0 : index
    %9 = vector.load %arg7[%c0_10, %c0_11] : memref<128x384xbf16, #tpu.memory_space<vmem>>, vector<128x384xbf16>
    %cst_12 = arith.constant dense<0.000000e+00> : vector<8x384xf32>
    %10 = tpu.matmul %8, %9, %cst_12 {dimension_numbers = #tpu.dot_dimension_numbers<[1], [0], [0], [1], [0, 0, 1, 1], [], []>} : vector<8x128xbf16>, vector<128x384xbf16>, vector<8x384xf32> -> vector<8x384xf32>
    %11 = arith.addf %10, %0 : vector<8x384xf32>
    %12 = vector.extract_strided_slice %7 {offsets = [0, 0], sizes = [8, 128], strides = [1, 1]} : vector<8x384xf32> to vector<8x128xf32>
    %13 = vector.extract_strided_slice %11 {offsets = [0, 0], sizes = [8, 128], strides = [1, 1]} : vector<8x384xf32> to vector<8x128xf32>
    %14 = arith.addf %12, %13 : vector<8x128xf32>
    %15 = arith.negf %14 : vector<8x128xf32>
    %16 = math.exp %15 : vector<8x128xf32>
    %cst_13 = arith.constant 1.000000e+00 : f32
    %17 = vector.broadcast %cst_13 : f32 to vector<8x128xf32>
    %18 = arith.addf %17, %16 : vector<8x128xf32>
    %19 = arith.divf %17, %18 : vector<8x128xf32>
    %20 = vector.extract_strided_slice %7 {offsets = [0, 128], sizes = [8, 128], strides = [1, 1]} : vector<8x384xf32> to vector<8x128xf32>
    %21 = vector.extract_strided_slice %11 {offsets = [0, 128], sizes = [8, 128], strides = [1, 1]} : vector<8x384xf32> to vector<8x128xf32>
    %22 = arith.addf %20, %21 : vector<8x128xf32>
    %23 = arith.negf %22 : vector<8x128xf32>
    %24 = math.exp %23 : vector<8x128xf32>
    %cst_14 = arith.constant 1.000000e+00 : f32
    %25 = vector.broadcast %cst_14 : f32 to vector<8x128xf32>
    %26 = arith.addf %25, %24 : vector<8x128xf32>
    %27 = arith.divf %25, %26 : vector<8x128xf32>
    %28 = vector.extract_strided_slice %7 {offsets = [0, 256], sizes = [8, 128], strides = [1, 1]} : vector<8x384xf32> to vector<8x128xf32>
    %29 = vector.extract_strided_slice %11 {offsets = [0, 256], sizes = [8, 128], strides = [1, 1]} : vector<8x384xf32> to vector<8x128xf32>
    %30 = arith.mulf %19, %29 : vector<8x128xf32>
    %31 = arith.addf %28, %30 : vector<8x128xf32>
    %32 = math.tanh %31 : vector<8x128xf32>
    %cst_15 = arith.constant 1.000000e+00 : f32
    %33 = vector.broadcast %cst_15 : f32 to vector<8x128xf32>
    %34 = arith.subf %33, %27 : vector<8x128xf32>
    %35 = arith.mulf %34, %32 : vector<8x128xf32>
    %36 = arith.mulf %27, %5 : vector<8x128xf32>
    %37 = arith.addf %35, %36 : vector<8x128xf32>
    %c0_i32 = arith.constant 0 : i32
    %38 = vector.broadcast %c0_i32 : i32 to vector<8x128xi32>
    %39 = arith.cmpi sgt, %3, %38 : vector<8x128xi32>
    %40 = arith.select %39, %37, %5 : vector<8x128xi1>, vector<8x128xf32>
    %c1 = arith.constant 1 : index
    %c0_16 = arith.constant 0 : index
    %c0_17 = arith.constant 0 : index
    %41 = vector.load %arg0[%c1, %c0_16, %c0_17] : memref<8x8x384xf32, #tpu.memory_space<vmem>>, vector<1x8x384xf32>
    %42 = vector.shape_cast %41 : vector<1x8x384xf32> to vector<8x384xf32>
    %43 = arith.truncf %40 : vector<8x128xf32> to vector<8x128xbf16>
    %c0_18 = arith.constant 0 : index
    %c0_19 = arith.constant 0 : index
    %44 = vector.load %arg7[%c0_18, %c0_19] : memref<128x384xbf16, #tpu.memory_space<vmem>>, vector<128x384xbf16>
    %cst_20 = arith.constant dense<0.000000e+00> : vector<8x384xf32>
    %45 = tpu.matmul %43, %44, %cst_20 {dimension_numbers = #tpu.dot_dimension_numbers<[1], [0], [0], [1], [0, 0, 1, 1], [], []>} : vector<8x128xbf16>, vector<128x384xbf16>, vector<8x384xf32> -> vector<8x384xf32>
    %46 = arith.addf %45, %0 : vector<8x384xf32>
    %47 = vector.extract_strided_slice %42 {offsets = [0, 0], sizes = [8, 128], strides = [1, 1]} : vector<8x384xf32> to vector<8x128xf32>
    %48 = vector.extract_strided_slice %46 {offsets = [0, 0], sizes = [8, 128], strides = [1, 1]} : vector<8x384xf32> to vector<8x128xf32>
    %49 = arith.addf %47, %48 : vector<8x128xf32>
    %50 = arith.negf %49 : vector<8x128xf32>
    %51 = math.exp %50 : vector<8x128xf32>
    %cst_21 = arith.constant 1.000000e+00 : f32
    %52 = vector.broadcast %cst_21 : f32 to vector<8x128xf32>
    %53 = arith.addf %52, %51 : vector<8x128xf32>
    %54 = arith.divf %52, %53 : vector<8x128xf32>
    %55 = vector.extract_strided_slice %42 {offsets = [0, 128], sizes = [8, 128], strides = [1, 1]} : vector<8x384xf32> to vector<8x128xf32>
    %56 = vector.extract_strided_slice %46 {offsets = [0, 128], sizes = [8, 128], strides = [1, 1]} : vector<8x384xf32> to vector<8x128xf32>
    %57 = arith.addf %55, %56 : vector<8x128xf32>
    %58 = arith.negf %57 : vector<8x128xf32>
    %59 = math.exp %58 : vector<8x128xf32>
    %cst_22 = arith.constant 1.000000e+00 : f32
    %60 = vector.broadcast %cst_22 : f32 to vector<8x128xf32>
    %61 = arith.addf %60, %59 : vector<8x128xf32>
    %62 = arith.divf %60, %61 : vector<8x128xf32>
    %63 = vector.extract_strided_slice %42 {offsets = [0, 256], sizes = [8, 128], strides = [1, 1]} : vector<8x384xf32> to vector<8x128xf32>
    %64 = vector.extract_strided_slice %46 {offsets = [0, 256], sizes = [8, 128], strides = [1, 1]} : vector<8x384xf32> to vector<8x128xf32>
    %65 = arith.mulf %54, %64 : vector<8x128xf32>
    %66 = arith.addf %63, %65 : vector<8x128xf32>
    %67 = math.tanh %66 : vector<8x128xf32>
    %cst_23 = arith.constant 1.000000e+00 : f32
    %68 = vector.broadcast %cst_23 : f32 to vector<8x128xf32>
    %69 = arith.subf %68, %62 : vector<8x128xf32>
    %70 = arith.mulf %69, %67 : vector<8x128xf32>
    %71 = arith.mulf %62, %40 : vector<8x128xf32>
    %72 = arith.addf %70, %71 : vector<8x128xf32>
    %c1_i32 = arith.constant 1 : i32
    %73 = vector.broadcast %c1_i32 : i32 to vector<8x128xi32>
    %74 = arith.cmpi sgt, %3, %73 : vector<8x128xi32>
    %75 = arith.select %74, %72, %40 : vector<8x128xi1>, vector<8x128xf32>
    %c2 = arith.constant 2 : index
    %c0_24 = arith.constant 0 : index
    %c0_25 = arith.constant 0 : index
    %76 = vector.load %arg0[%c2, %c0_24, %c0_25] : memref<8x8x384xf32, #tpu.memory_space<vmem>>, vector<1x8x384xf32>
    %77 = vector.shape_cast %76 : vector<1x8x384xf32> to vector<8x384xf32>
    %78 = arith.truncf %75 : vector<8x128xf32> to vector<8x128xbf16>
    %c0_26 = arith.constant 0 : index
    %c0_27 = arith.constant 0 : index
    %79 = vector.load %arg7[%c0_26, %c0_27] : memref<128x384xbf16, #tpu.memory_space<vmem>>, vector<128x384xbf16>
    %cst_28 = arith.constant dense<0.000000e+00> : vector<8x384xf32>
    %80 = tpu.matmul %78, %79, %cst_28 {dimension_numbers = #tpu.dot_dimension_numbers<[1], [0], [0], [1], [0, 0, 1, 1], [], []>} : vector<8x128xbf16>, vector<128x384xbf16>, vector<8x384xf32> -> vector<8x384xf32>
    %81 = arith.addf %80, %0 : vector<8x384xf32>
    %82 = vector.extract_strided_slice %77 {offsets = [0, 0], sizes = [8, 128], strides = [1, 1]} : vector<8x384xf32> to vector<8x128xf32>
    %83 = vector.extract_strided_slice %81 {offsets = [0, 0], sizes = [8, 128], strides = [1, 1]} : vector<8x384xf32> to vector<8x128xf32>
    %84 = arith.addf %82, %83 : vector<8x128xf32>
    %85 = arith.negf %84 : vector<8x128xf32>
    %86 = math.exp %85 : vector<8x128xf32>
    %cst_29 = arith.constant 1.000000e+00 : f32
    %87 = vector.broadcast %cst_29 : f32 to vector<8x128xf32>
    %88 = arith.addf %87, %86 : vector<8x128xf32>
    %89 = arith.divf %87, %88 : vector<8x128xf32>
    %90 = vector.extract_strided_slice %77 {offsets = [0, 128], sizes = [8, 128], strides = [1, 1]} : vector<8x384xf32> to vector<8x128xf32>
    %91 = vector.extract_strided_slice %81 {offsets = [0, 128], sizes = [8, 128], strides = [1, 1]} : vector<8x384xf32> to vector<8x128xf32>
    %92 = arith.addf %90, %91 : vector<8x128xf32>
    %93 = arith.negf %92 : vector<8x128xf32>
    %94 = math.exp %93 : vector<8x128xf32>
    %cst_30 = arith.constant 1.000000e+00 : f32
    %95 = vector.broadcast %cst_30 : f32 to vector<8x128xf32>
    %96 = arith.addf %95, %94 : vector<8x128xf32>
    %97 = arith.divf %95, %96 : vector<8x128xf32>
    %98 = vector.extract_strided_slice %77 {offsets = [0, 256], sizes = [8, 128], strides = [1, 1]} : vector<8x384xf32> to vector<8x128xf32>
    %99 = vector.extract_strided_slice %81 {offsets = [0, 256], sizes = [8, 128], strides = [1, 1]} : vector<8x384xf32> to vector<8x128xf32>
    %100 = arith.mulf %89, %99 : vector<8x128xf32>
    %101 = arith.addf %98, %100 : vector<8x128xf32>
    %102 = math.tanh %101 : vector<8x128xf32>
    %cst_31 = arith.constant 1.000000e+00 : f32
    %103 = vector.broadcast %cst_31 : f32 to vector<8x128xf32>
    %104 = arith.subf %103, %97 : vector<8x128xf32>
    %105 = arith.mulf %104, %102 : vector<8x128xf32>
    %106 = arith.mulf %97, %75 : vector<8x128xf32>
    %107 = arith.addf %105, %106 : vector<8x128xf32>
    %c2_i32 = arith.constant 2 : i32
    %108 = vector.broadcast %c2_i32 : i32 to vector<8x128xi32>
    %109 = arith.cmpi sgt, %3, %108 : vector<8x128xi32>
    %110 = arith.select %109, %107, %75 : vector<8x128xi1>, vector<8x128xf32>
    %c3 = arith.constant 3 : index
    %c0_32 = arith.constant 0 : index
    %c0_33 = arith.constant 0 : index
    %111 = vector.load %arg0[%c3, %c0_32, %c0_33] : memref<8x8x384xf32, #tpu.memory_space<vmem>>, vector<1x8x384xf32>
    %112 = vector.shape_cast %111 : vector<1x8x384xf32> to vector<8x384xf32>
    %113 = arith.truncf %110 : vector<8x128xf32> to vector<8x128xbf16>
    %c0_34 = arith.constant 0 : index
    %c0_35 = arith.constant 0 : index
    %114 = vector.load %arg7[%c0_34, %c0_35] : memref<128x384xbf16, #tpu.memory_space<vmem>>, vector<128x384xbf16>
    %cst_36 = arith.constant dense<0.000000e+00> : vector<8x384xf32>
    %115 = tpu.matmul %113, %114, %cst_36 {dimension_numbers = #tpu.dot_dimension_numbers<[1], [0], [0], [1], [0, 0, 1, 1], [], []>} : vector<8x128xbf16>, vector<128x384xbf16>, vector<8x384xf32> -> vector<8x384xf32>
    %116 = arith.addf %115, %0 : vector<8x384xf32>
    %117 = vector.extract_strided_slice %112 {offsets = [0, 0], sizes = [8, 128], strides = [1, 1]} : vector<8x384xf32> to vector<8x128xf32>
    %118 = vector.extract_strided_slice %116 {offsets = [0, 0], sizes = [8, 128], strides = [1, 1]} : vector<8x384xf32> to vector<8x128xf32>
    %119 = arith.addf %117, %118 : vector<8x128xf32>
    %120 = arith.negf %119 : vector<8x128xf32>
    %121 = math.exp %120 : vector<8x128xf32>
    %cst_37 = arith.constant 1.000000e+00 : f32
    %122 = vector.broadcast %cst_37 : f32 to vector<8x128xf32>
    %123 = arith.addf %122, %121 : vector<8x128xf32>
    %124 = arith.divf %122, %123 : vector<8x128xf32>
    %125 = vector.extract_strided_slice %112 {offsets = [0, 128], sizes = [8, 128], strides = [1, 1]} : vector<8x384xf32> to vector<8x128xf32>
    %126 = vector.extract_strided_slice %116 {offsets = [0, 128], sizes = [8, 128], strides = [1, 1]} : vector<8x384xf32> to vector<8x128xf32>
    %127 = arith.addf %125, %126 : vector<8x128xf32>
    %128 = arith.negf %127 : vector<8x128xf32>
    %129 = math.exp %128 : vector<8x128xf32>
    %cst_38 = arith.constant 1.000000e+00 : f32
    %130 = vector.broadcast %cst_38 : f32 to vector<8x128xf32>
    %131 = arith.addf %130, %129 : vector<8x128xf32>
    %132 = arith.divf %130, %131 : vector<8x128xf32>
    %133 = vector.extract_strided_slice %112 {offsets = [0, 256], sizes = [8, 128], strides = [1, 1]} : vector<8x384xf32> to vector<8x128xf32>
    %134 = vector.extract_strided_slice %116 {offsets = [0, 256], sizes = [8, 128], strides = [1, 1]} : vector<8x384xf32> to vector<8x128xf32>
    %135 = arith.mulf %124, %134 : vector<8x128xf32>
    %136 = arith.addf %133, %135 : vector<8x128xf32>
    %137 = math.tanh %136 : vector<8x128xf32>
    %cst_39 = arith.constant 1.000000e+00 : f32
    %138 = vector.broadcast %cst_39 : f32 to vector<8x128xf32>
    %139 = arith.subf %138, %132 : vector<8x128xf32>
    %140 = arith.mulf %139, %137 : vector<8x128xf32>
    %141 = arith.mulf %132, %110 : vector<8x128xf32>
    %142 = arith.addf %140, %141 : vector<8x128xf32>
    %c3_i32 = arith.constant 3 : i32
    %143 = vector.broadcast %c3_i32 : i32 to vector<8x128xi32>
    %144 = arith.cmpi sgt, %3, %143 : vector<8x128xi32>
    %145 = arith.select %144, %142, %110 : vector<8x128xi1>, vector<8x128xf32>
    %c4 = arith.constant 4 : index
    %c0_40 = arith.constant 0 : index
    %c0_41 = arith.constant 0 : index
    %146 = vector.load %arg0[%c4, %c0_40, %c0_41] : memref<8x8x384xf32, #tpu.memory_space<vmem>>, vector<1x8x384xf32>
    %147 = vector.shape_cast %146 : vector<1x8x384xf32> to vector<8x384xf32>
    %148 = arith.truncf %145 : vector<8x128xf32> to vector<8x128xbf16>
    %c0_42 = arith.constant 0 : index
    %c0_43 = arith.constant 0 : index
    %149 = vector.load %arg7[%c0_42, %c0_43] : memref<128x384xbf16, #tpu.memory_space<vmem>>, vector<128x384xbf16>
    %cst_44 = arith.constant dense<0.000000e+00> : vector<8x384xf32>
    %150 = tpu.matmul %148, %149, %cst_44 {dimension_numbers = #tpu.dot_dimension_numbers<[1], [0], [0], [1], [0, 0, 1, 1], [], []>} : vector<8x128xbf16>, vector<128x384xbf16>, vector<8x384xf32> -> vector<8x384xf32>
    %151 = arith.addf %150, %0 : vector<8x384xf32>
    %152 = vector.extract_strided_slice %147 {offsets = [0, 0], sizes = [8, 128], strides = [1, 1]} : vector<8x384xf32> to vector<8x128xf32>
    %153 = vector.extract_strided_slice %151 {offsets = [0, 0], sizes = [8, 128], strides = [1, 1]} : vector<8x384xf32> to vector<8x128xf32>
    %154 = arith.addf %152, %153 : vector<8x128xf32>
    %155 = arith.negf %154 : vector<8x128xf32>
    %156 = math.exp %155 : vector<8x128xf32>
    %cst_45 = arith.constant 1.000000e+00 : f32
    %157 = vector.broadcast %cst_45 : f32 to vector<8x128xf32>
    %158 = arith.addf %157, %156 : vector<8x128xf32>
    %159 = arith.divf %157, %158 : vector<8x128xf32>
    %160 = vector.extract_strided_slice %147 {offsets = [0, 128], sizes = [8, 128], strides = [1, 1]} : vector<8x384xf32> to vector<8x128xf32>
    %161 = vector.extract_strided_slice %151 {offsets = [0, 128], sizes = [8, 128], strides = [1, 1]} : vector<8x384xf32> to vector<8x128xf32>
    %162 = arith.addf %160, %161 : vector<8x128xf32>
    %163 = arith.negf %162 : vector<8x128xf32>
    %164 = math.exp %163 : vector<8x128xf32>
    %cst_46 = arith.constant 1.000000e+00 : f32
    %165 = vector.broadcast %cst_46 : f32 to vector<8x128xf32>
    %166 = arith.addf %165, %164 : vector<8x128xf32>
    %167 = arith.divf %165, %166 : vector<8x128xf32>
    %168 = vector.extract_strided_slice %147 {offsets = [0, 256], sizes = [8, 128], strides = [1, 1]} : vector<8x384xf32> to vector<8x128xf32>
    %169 = vector.extract_strided_slice %151 {offsets = [0, 256], sizes = [8, 128], strides = [1, 1]} : vector<8x384xf32> to vector<8x128xf32>
    %170 = arith.mulf %159, %169 : vector<8x128xf32>
    %171 = arith.addf %168, %170 : vector<8x128xf32>
    %172 = math.tanh %171 : vector<8x128xf32>
    %cst_47 = arith.constant 1.000000e+00 : f32
    %173 = vector.broadcast %cst_47 : f32 to vector<8x128xf32>
    %174 = arith.subf %173, %167 : vector<8x128xf32>
    %175 = arith.mulf %174, %172 : vector<8x128xf32>
    %176 = arith.mulf %167, %145 : vector<8x128xf32>
    %177 = arith.addf %175, %176 : vector<8x128xf32>
    %c4_i32 = arith.constant 4 : i32
    %178 = vector.broadcast %c4_i32 : i32 to vector<8x128xi32>
    %179 = arith.cmpi sgt, %3, %178 : vector<8x128xi32>
    %180 = arith.select %179, %177, %145 : vector<8x128xi1>, vector<8x128xf32>
    %c5 = arith.constant 5 : index
    %c0_48 = arith.constant 0 : index
    %c0_49 = arith.constant 0 : index
    %181 = vector.load %arg0[%c5, %c0_48, %c0_49] : memref<8x8x384xf32, #tpu.memory_space<vmem>>, vector<1x8x384xf32>
    %182 = vector.shape_cast %181 : vector<1x8x384xf32> to vector<8x384xf32>
    %183 = arith.truncf %180 : vector<8x128xf32> to vector<8x128xbf16>
    %c0_50 = arith.constant 0 : index
    %c0_51 = arith.constant 0 : index
    %184 = vector.load %arg7[%c0_50, %c0_51] : memref<128x384xbf16, #tpu.memory_space<vmem>>, vector<128x384xbf16>
    %cst_52 = arith.constant dense<0.000000e+00> : vector<8x384xf32>
    %185 = tpu.matmul %183, %184, %cst_52 {dimension_numbers = #tpu.dot_dimension_numbers<[1], [0], [0], [1], [0, 0, 1, 1], [], []>} : vector<8x128xbf16>, vector<128x384xbf16>, vector<8x384xf32> -> vector<8x384xf32>
    %186 = arith.addf %185, %0 : vector<8x384xf32>
    %187 = vector.extract_strided_slice %182 {offsets = [0, 0], sizes = [8, 128], strides = [1, 1]} : vector<8x384xf32> to vector<8x128xf32>
    %188 = vector.extract_strided_slice %186 {offsets = [0, 0], sizes = [8, 128], strides = [1, 1]} : vector<8x384xf32> to vector<8x128xf32>
    %189 = arith.addf %187, %188 : vector<8x128xf32>
    %190 = arith.negf %189 : vector<8x128xf32>
    %191 = math.exp %190 : vector<8x128xf32>
    %cst_53 = arith.constant 1.000000e+00 : f32
    %192 = vector.broadcast %cst_53 : f32 to vector<8x128xf32>
    %193 = arith.addf %192, %191 : vector<8x128xf32>
    %194 = arith.divf %192, %193 : vector<8x128xf32>
    %195 = vector.extract_strided_slice %182 {offsets = [0, 128], sizes = [8, 128], strides = [1, 1]} : vector<8x384xf32> to vector<8x128xf32>
    %196 = vector.extract_strided_slice %186 {offsets = [0, 128], sizes = [8, 128], strides = [1, 1]} : vector<8x384xf32> to vector<8x128xf32>
    %197 = arith.addf %195, %196 : vector<8x128xf32>
    %198 = arith.negf %197 : vector<8x128xf32>
    %199 = math.exp %198 : vector<8x128xf32>
    %cst_54 = arith.constant 1.000000e+00 : f32
    %200 = vector.broadcast %cst_54 : f32 to vector<8x128xf32>
    %201 = arith.addf %200, %199 : vector<8x128xf32>
    %202 = arith.divf %200, %201 : vector<8x128xf32>
    %203 = vector.extract_strided_slice %182 {offsets = [0, 256], sizes = [8, 128], strides = [1, 1]} : vector<8x384xf32> to vector<8x128xf32>
    %204 = vector.extract_strided_slice %186 {offsets = [0, 256], sizes = [8, 128], strides = [1, 1]} : vector<8x384xf32> to vector<8x128xf32>
    %205 = arith.mulf %194, %204 : vector<8x128xf32>
    %206 = arith.addf %203, %205 : vector<8x128xf32>
    %207 = math.tanh %206 : vector<8x128xf32>
    %cst_55 = arith.constant 1.000000e+00 : f32
    %208 = vector.broadcast %cst_55 : f32 to vector<8x128xf32>
    %209 = arith.subf %208, %202 : vector<8x128xf32>
    %210 = arith.mulf %209, %207 : vector<8x128xf32>
    %211 = arith.mulf %202, %180 : vector<8x128xf32>
    %212 = arith.addf %210, %211 : vector<8x128xf32>
    %c5_i32 = arith.constant 5 : i32
    %213 = vector.broadcast %c5_i32 : i32 to vector<8x128xi32>
    %214 = arith.cmpi sgt, %3, %213 : vector<8x128xi32>
    %215 = arith.select %214, %212, %180 : vector<8x128xi1>, vector<8x128xf32>
    %c6 = arith.constant 6 : index
    %c0_56 = arith.constant 0 : index
    %c0_57 = arith.constant 0 : index
    %216 = vector.load %arg0[%c6, %c0_56, %c0_57] : memref<8x8x384xf32, #tpu.memory_space<vmem>>, vector<1x8x384xf32>
    %217 = vector.shape_cast %216 : vector<1x8x384xf32> to vector<8x384xf32>
    %218 = arith.truncf %215 : vector<8x128xf32> to vector<8x128xbf16>
    %c0_58 = arith.constant 0 : index
    %c0_59 = arith.constant 0 : index
    %219 = vector.load %arg7[%c0_58, %c0_59] : memref<128x384xbf16, #tpu.memory_space<vmem>>, vector<128x384xbf16>
    %cst_60 = arith.constant dense<0.000000e+00> : vector<8x384xf32>
    %220 = tpu.matmul %218, %219, %cst_60 {dimension_numbers = #tpu.dot_dimension_numbers<[1], [0], [0], [1], [0, 0, 1, 1], [], []>} : vector<8x128xbf16>, vector<128x384xbf16>, vector<8x384xf32> -> vector<8x384xf32>
    %221 = arith.addf %220, %0 : vector<8x384xf32>
    %222 = vector.extract_strided_slice %217 {offsets = [0, 0], sizes = [8, 128], strides = [1, 1]} : vector<8x384xf32> to vector<8x128xf32>
    %223 = vector.extract_strided_slice %221 {offsets = [0, 0], sizes = [8, 128], strides = [1, 1]} : vector<8x384xf32> to vector<8x128xf32>
    %224 = arith.addf %222, %223 : vector<8x128xf32>
    %225 = arith.negf %224 : vector<8x128xf32>
    %226 = math.exp %225 : vector<8x128xf32>
    %cst_61 = arith.constant 1.000000e+00 : f32
    %227 = vector.broadcast %cst_61 : f32 to vector<8x128xf32>
    %228 = arith.addf %227, %226 : vector<8x128xf32>
    %229 = arith.divf %227, %228 : vector<8x128xf32>
    %230 = vector.extract_strided_slice %217 {offsets = [0, 128], sizes = [8, 128], strides = [1, 1]} : vector<8x384xf32> to vector<8x128xf32>
    %231 = vector.extract_strided_slice %221 {offsets = [0, 128], sizes = [8, 128], strides = [1, 1]} : vector<8x384xf32> to vector<8x128xf32>
    %232 = arith.addf %230, %231 : vector<8x128xf32>
    %233 = arith.negf %232 : vector<8x128xf32>
    %234 = math.exp %233 : vector<8x128xf32>
    %cst_62 = arith.constant 1.000000e+00 : f32
    %235 = vector.broadcast %cst_62 : f32 to vector<8x128xf32>
    %236 = arith.addf %235, %234 : vector<8x128xf32>
    %237 = arith.divf %235, %236 : vector<8x128xf32>
    %238 = vector.extract_strided_slice %217 {offsets = [0, 256], sizes = [8, 128], strides = [1, 1]} : vector<8x384xf32> to vector<8x128xf32>
    %239 = vector.extract_strided_slice %221 {offsets = [0, 256], sizes = [8, 128], strides = [1, 1]} : vector<8x384xf32> to vector<8x128xf32>
    %240 = arith.mulf %229, %239 : vector<8x128xf32>
    %241 = arith.addf %238, %240 : vector<8x128xf32>
    %242 = math.tanh %241 : vector<8x128xf32>
    %cst_63 = arith.constant 1.000000e+00 : f32
    %243 = vector.broadcast %cst_63 : f32 to vector<8x128xf32>
    %244 = arith.subf %243, %237 : vector<8x128xf32>
    %245 = arith.mulf %244, %242 : vector<8x128xf32>
    %246 = arith.mulf %237, %215 : vector<8x128xf32>
    %247 = arith.addf %245, %246 : vector<8x128xf32>
    %c6_i32 = arith.constant 6 : i32
    %248 = vector.broadcast %c6_i32 : i32 to vector<8x128xi32>
    %249 = arith.cmpi sgt, %3, %248 : vector<8x128xi32>
    %250 = arith.select %249, %247, %215 : vector<8x128xi1>, vector<8x128xf32>
    %c7 = arith.constant 7 : index
    %c0_64 = arith.constant 0 : index
    %c0_65 = arith.constant 0 : index
    %251 = vector.load %arg0[%c7, %c0_64, %c0_65] : memref<8x8x384xf32, #tpu.memory_space<vmem>>, vector<1x8x384xf32>
    %252 = vector.shape_cast %251 : vector<1x8x384xf32> to vector<8x384xf32>
    %253 = arith.truncf %250 : vector<8x128xf32> to vector<8x128xbf16>
    %c0_66 = arith.constant 0 : index
    %c0_67 = arith.constant 0 : index
    %254 = vector.load %arg7[%c0_66, %c0_67] : memref<128x384xbf16, #tpu.memory_space<vmem>>, vector<128x384xbf16>
    %cst_68 = arith.constant dense<0.000000e+00> : vector<8x384xf32>
    %255 = tpu.matmul %253, %254, %cst_68 {dimension_numbers = #tpu.dot_dimension_numbers<[1], [0], [0], [1], [0, 0, 1, 1], [], []>} : vector<8x128xbf16>, vector<128x384xbf16>, vector<8x384xf32> -> vector<8x384xf32>
    %256 = arith.addf %255, %0 : vector<8x384xf32>
    %257 = vector.extract_strided_slice %252 {offsets = [0, 0], sizes = [8, 128], strides = [1, 1]} : vector<8x384xf32> to vector<8x128xf32>
    %258 = vector.extract_strided_slice %256 {offsets = [0, 0], sizes = [8, 128], strides = [1, 1]} : vector<8x384xf32> to vector<8x128xf32>
    %259 = arith.addf %257, %258 : vector<8x128xf32>
    %260 = arith.negf %259 : vector<8x128xf32>
    %261 = math.exp %260 : vector<8x128xf32>
    %cst_69 = arith.constant 1.000000e+00 : f32
    %262 = vector.broadcast %cst_69 : f32 to vector<8x128xf32>
    %263 = arith.addf %262, %261 : vector<8x128xf32>
    %264 = arith.divf %262, %263 : vector<8x128xf32>
    %265 = vector.extract_strided_slice %252 {offsets = [0, 128], sizes = [8, 128], strides = [1, 1]} : vector<8x384xf32> to vector<8x128xf32>
    %266 = vector.extract_strided_slice %256 {offsets = [0, 128], sizes = [8, 128], strides = [1, 1]} : vector<8x384xf32> to vector<8x128xf32>
    %267 = arith.addf %265, %266 : vector<8x128xf32>
    %268 = arith.negf %267 : vector<8x128xf32>
    %269 = math.exp %268 : vector<8x128xf32>
    %cst_70 = arith.constant 1.000000e+00 : f32
    %270 = vector.broadcast %cst_70 : f32 to vector<8x128xf32>
    %271 = arith.addf %270, %269 : vector<8x128xf32>
    %272 = arith.divf %270, %271 : vector<8x128xf32>
    %273 = vector.extract_strided_slice %252 {offsets = [0, 256], sizes = [8, 128], strides = [1, 1]} : vector<8x384xf32> to vector<8x128xf32>
    %274 = vector.extract_strided_slice %256 {offsets = [0, 256], sizes = [8, 128], strides = [1, 1]} : vector<8x384xf32> to vector<8x128xf32>
    %275 = arith.mulf %264, %274 : vector<8x128xf32>
    %276 = arith.addf %273, %275 : vector<8x128xf32>
    %277 = math.tanh %276 : vector<8x128xf32>
    %cst_71 = arith.constant 1.000000e+00 : f32
    %278 = vector.broadcast %cst_71 : f32 to vector<8x128xf32>
    %279 = arith.subf %278, %272 : vector<8x128xf32>
    %280 = arith.mulf %279, %277 : vector<8x128xf32>
    %281 = arith.mulf %272, %250 : vector<8x128xf32>
    %282 = arith.addf %280, %281 : vector<8x128xf32>
    %c7_i32 = arith.constant 7 : i32
    %283 = vector.broadcast %c7_i32 : i32 to vector<8x128xi32>
    %284 = arith.cmpi sgt, %3, %283 : vector<8x128xi32>
    %285 = arith.select %284, %282, %250 : vector<8x128xi1>, vector<8x128xf32>
    %c0_72 = arith.constant 0 : index
    %c0_73 = arith.constant 0 : index
    %286 = vector.load %arg3[%c0_72, %c0_73] : memref<8x128xf32, #tpu.memory_space<vmem>>, vector<8x128xf32>
    %287 = arith.addf %285, %286 : vector<8x128xf32>
    %c0_74 = arith.constant 0 : index
    %c0_75 = arith.constant 0 : index
    %288 = vector.load %arg2[%c0_74, %c0_75] : memref<8x384xf32, #tpu.memory_space<vmem>>, vector<8x384xf32>
    %c0_i32_76 = arith.constant 0 : i32
    %289 = vector.broadcast %c0_i32_76 : i32 to vector<8x1xi32>
    %c5_i32_77 = arith.constant 5 : i32
    %290 = vector.broadcast %c5_i32_77 : i32 to vector<8x1xi32>
    %291 = arith.truncf %287 : vector<8x128xf32> to vector<8x128xbf16>
    %c0_78 = arith.constant 0 : index
    %c0_79 = arith.constant 0 : index
    %292 = vector.load %arg9[%c0_78, %c0_79] : memref<128x384xbf16, #tpu.memory_space<vmem>>, vector<128x384xbf16>
    %cst_80 = arith.constant dense<0.000000e+00> : vector<8x384xf32>
    %293 = tpu.matmul %291, %292, %cst_80 {dimension_numbers = #tpu.dot_dimension_numbers<[1], [0], [0], [1], [0, 0, 1, 1], [], []>} : vector<8x128xbf16>, vector<128x384xbf16>, vector<8x384xf32> -> vector<8x384xf32>
    %294 = arith.addf %293, %1 : vector<8x384xf32>
    %295 = vector.extract_strided_slice %288 {offsets = [0, 0], sizes = [8, 128], strides = [1, 1]} : vector<8x384xf32> to vector<8x128xf32>
    %296 = vector.extract_strided_slice %294 {offsets = [0, 0], sizes = [8, 128], strides = [1, 1]} : vector<8x384xf32> to vector<8x128xf32>
    %297 = arith.addf %295, %296 : vector<8x128xf32>
    %298 = arith.negf %297 : vector<8x128xf32>
    %299 = math.exp %298 : vector<8x128xf32>
    %cst_81 = arith.constant 1.000000e+00 : f32
    %300 = vector.broadcast %cst_81 : f32 to vector<8x128xf32>
    %301 = arith.addf %300, %299 : vector<8x128xf32>
    %302 = arith.divf %300, %301 : vector<8x128xf32>
    %303 = vector.extract_strided_slice %288 {offsets = [0, 128], sizes = [8, 128], strides = [1, 1]} : vector<8x384xf32> to vector<8x128xf32>
    %304 = vector.extract_strided_slice %294 {offsets = [0, 128], sizes = [8, 128], strides = [1, 1]} : vector<8x384xf32> to vector<8x128xf32>
    %305 = arith.addf %303, %304 : vector<8x128xf32>
    %306 = arith.negf %305 : vector<8x128xf32>
    %307 = math.exp %306 : vector<8x128xf32>
    %cst_82 = arith.constant 1.000000e+00 : f32
    %308 = vector.broadcast %cst_82 : f32 to vector<8x128xf32>
    %309 = arith.addf %308, %307 : vector<8x128xf32>
    %310 = arith.divf %308, %309 : vector<8x128xf32>
    %311 = vector.extract_strided_slice %288 {offsets = [0, 256], sizes = [8, 128], strides = [1, 1]} : vector<8x384xf32> to vector<8x128xf32>
    %312 = vector.extract_strided_slice %294 {offsets = [0, 256], sizes = [8, 128], strides = [1, 1]} : vector<8x384xf32> to vector<8x128xf32>
    %313 = arith.mulf %302, %312 : vector<8x128xf32>
    %314 = arith.addf %311, %313 : vector<8x128xf32>
    %315 = math.tanh %314 : vector<8x128xf32>
    %cst_83 = arith.constant 1.000000e+00 : f32
    %316 = vector.broadcast %cst_83 : f32 to vector<8x128xf32>
    %317 = arith.subf %316, %310 : vector<8x128xf32>
    %318 = arith.mulf %317, %315 : vector<8x128xf32>
    %319 = arith.mulf %310, %287 : vector<8x128xf32>
    %320 = arith.addf %318, %319 : vector<8x128xf32>
    %c0_84 = arith.constant 0 : index
    %c0_85 = arith.constant 0 : index
    %c0_86 = arith.constant 0 : index
    %321 = vector.load %arg15[%c0_84, %c0_85, %c0_86] : memref<6x8x128xf32, #tpu.memory_space<vmem>>, vector<1x8x128xf32>
    %322 = vector.shape_cast %321 : vector<1x8x128xf32> to vector<8x128xf32>
    %323 = vector.shape_cast %320 : vector<8x128xf32> to vector<1x8x128xf32>
    tpu.vector_store %arg15[%c0_84, %c0_85, %c0_86], %323 {strides = array<i32>} : memref<6x8x128xf32, #tpu.memory_space<vmem>>, vector<1x8x128xf32>,
    %324 = arith.truncf %320 : vector<8x128xf32> to vector<8x128xbf16>
    %c0_87 = arith.constant 0 : index
    %c0_88 = arith.constant 0 : index
    %325 = vector.load %arg13[%c0_87, %c0_88] : memref<128x128xbf16, #tpu.memory_space<vmem>>, vector<128x128xbf16>
    %cst_89 = arith.constant dense<0.000000e+00> : vector<8x128xf32>
    %326 = tpu.matmul %324, %325, %cst_89 {dimension_numbers = #tpu.dot_dimension_numbers<[1], [0], [0], [1], [0, 0, 1, 1], [], []>} : vector<8x128xbf16>, vector<128x128xbf16>, vector<8x128xf32> -> vector<8x128xf32>
    %327 = arith.addf %326, %2 : vector<8x128xf32>
    %cst_90 = arith.constant dense<0xFF800000> : vector<8xf32>
    %328 = vector.multi_reduction <maximumf>, %327, %cst_90 [1] : vector<8x128xf32> to vector<8xf32>
    %329 = vector.shape_cast %328 : vector<8xf32> to vector<8x1xf32>
    %330 = vector.broadcast %329 : vector<8x1xf32> to vector<8x128xf32>
    %331 = arith.cmpf oeq, %327, %330 : vector<8x128xf32>
    %c128_i32 = arith.constant 128 : i32
    %332 = vector.broadcast %c128_i32 : i32 to vector<8x128xi32>
    %333 = arith.select %331, %4, %332 : vector<8x128xi1>, vector<8x128xi32>
    %cst_91 = arith.constant dense<2147483647> : vector<8xi32>
    %334 = vector.multi_reduction <minsi>, %333, %cst_91 [1] : vector<8x128xi32> to vector<8xi32>
    %335 = vector.shape_cast %334 : vector<8xi32> to vector<8x1xi32>
    %336 = vector.broadcast %335 : vector<8x1xi32> to vector<8x128xi32>
    %337 = arith.cmpi eq, %4, %336 : vector<8x128xi32>
    %cst_92 = arith.constant 1.000000e+00 : f32
    %cst_93 = arith.constant 0.000000e+00 : f32
    %338 = vector.broadcast %cst_92 : f32 to vector<8x128xf32>
    %339 = vector.broadcast %cst_93 : f32 to vector<8x128xf32>
    %340 = arith.select %337, %338, %339 : vector<8x128xi1>, vector<8x128xf32>
    %341 = arith.truncf %340 : vector<8x128xf32> to vector<8x128xbf16>
    %c2_i32_94 = arith.constant 2 : i32
    %342 = vector.broadcast %c2_i32_94 : i32 to vector<8x1xi32>
    %343 = arith.cmpi eq, %335, %342 : vector<8x1xi32>
    %344 = arith.extui %343 : vector<8x1xi1> to vector<8x1xi32>
    %c1_i32_95 = arith.constant 1 : i32
    %345 = vector.broadcast %c1_i32_95 : i32 to vector<8x1xi32>
    %346 = arith.subi %345, %289 : vector<8x1xi32>
    %347 = arith.muli %344, %346 : vector<8x1xi32>
    %c1_i32_96 = arith.constant 1 : i32
    %348 = vector.broadcast %c1_i32_96 : i32 to vector<8x1xi32>
    %349 = arith.subi %348, %347 : vector<8x1xi32>
    %350 = arith.muli %290, %349 : vector<8x1xi32>
    %c0_i32_97 = arith.constant 0 : i32
    %351 = vector.broadcast %c0_i32_97 : i32 to vector<8x1xi32>
    %352 = arith.muli %351, %347 : vector<8x1xi32>
    %353 = arith.addi %350, %352 : vector<8x1xi32>
    %354 = arith.maxsi %289, %344 : vector<8x1xi32>
    %c0_98 = arith.constant 0 : index
    %c0_99 = arith.constant 0 : index
    %355 = vector.load %arg12[%c0_98, %c0_99] : memref<128x384xbf16, #tpu.memory_space<vmem>>, vector<128x384xbf16>
    %cst_100 = arith.constant dense<0.000000e+00> : vector<8x384xf32>
    %356 = tpu.matmul %341, %355, %cst_100 {dimension_numbers = #tpu.dot_dimension_numbers<[1], [0], [0], [1], [0, 0, 1, 1], [], []>} : vector<8x128xbf16>, vector<128x384xbf16>, vector<8x384xf32> -> vector<8x384xf32>
    %357 = arith.truncf %320 : vector<8x128xf32> to vector<8x128xbf16>
    %c0_101 = arith.constant 0 : index
    %c0_102 = arith.constant 0 : index
    %358 = vector.load %arg9[%c0_101, %c0_102] : memref<128x384xbf16, #tpu.memory_space<vmem>>, vector<128x384xbf16>
    %cst_103 = arith.constant dense<0.000000e+00> : vector<8x384xf32>
    %359 = tpu.matmul %357, %358, %cst_103 {dimension_numbers = #tpu.dot_dimension_numbers<[1], [0], [0], [1], [0, 0, 1, 1], [], []>} : vector<8x128xbf16>, vector<128x384xbf16>, vector<8x384xf32> -> vector<8x384xf32>
    %360 = arith.addf %359, %1 : vector<8x384xf32>
    %361 = vector.extract_strided_slice %356 {offsets = [0, 0], sizes = [8, 128], strides = [1, 1]} : vector<8x384xf32> to vector<8x128xf32>
    %362 = vector.extract_strided_slice %360 {offsets = [0, 0], sizes = [8, 128], strides = [1, 1]} : vector<8x384xf32> to vector<8x128xf32>
    %363 = arith.addf %361, %362 : vector<8x128xf32>
    %364 = arith.negf %363 : vector<8x128xf32>
    %365 = math.exp %364 : vector<8x128xf32>
    %cst_104 = arith.constant 1.000000e+00 : f32
    %366 = vector.broadcast %cst_104 : f32 to vector<8x128xf32>
    %367 = arith.addf %366, %365 : vector<8x128xf32>
    %368 = arith.divf %366, %367 : vector<8x128xf32>
    %369 = vector.extract_strided_slice %356 {offsets = [0, 128], sizes = [8, 128], strides = [1, 1]} : vector<8x384xf32> to vector<8x128xf32>
    %370 = vector.extract_strided_slice %360 {offsets = [0, 128], sizes = [8, 128], strides = [1, 1]} : vector<8x384xf32> to vector<8x128xf32>
    %371 = arith.addf %369, %370 : vector<8x128xf32>
    %372 = arith.negf %371 : vector<8x128xf32>
    %373 = math.exp %372 : vector<8x128xf32>
    %cst_105 = arith.constant 1.000000e+00 : f32
    %374 = vector.broadcast %cst_105 : f32 to vector<8x128xf32>
    %375 = arith.addf %374, %373 : vector<8x128xf32>
    %376 = arith.divf %374, %375 : vector<8x128xf32>
    %377 = vector.extract_strided_slice %356 {offsets = [0, 256], sizes = [8, 128], strides = [1, 1]} : vector<8x384xf32> to vector<8x128xf32>
    %378 = vector.extract_strided_slice %360 {offsets = [0, 256], sizes = [8, 128], strides = [1, 1]} : vector<8x384xf32> to vector<8x128xf32>
    %379 = arith.mulf %368, %378 : vector<8x128xf32>
    %380 = arith.addf %377, %379 : vector<8x128xf32>
    %381 = math.tanh %380 : vector<8x128xf32>
    %cst_106 = arith.constant 1.000000e+00 : f32
    %382 = vector.broadcast %cst_106 : f32 to vector<8x128xf32>
    %383 = arith.subf %382, %376 : vector<8x128xf32>
    %384 = arith.mulf %383, %381 : vector<8x128xf32>
    %385 = arith.mulf %376, %320 : vector<8x128xf32>
    %386 = arith.addf %384, %385 : vector<8x128xf32>
    %c1_107 = arith.constant 1 : index
    %c0_108 = arith.constant 0 : index
    %c0_109 = arith.constant 0 : index
    %387 = vector.load %arg15[%c1_107, %c0_108, %c0_109] : memref<6x8x128xf32, #tpu.memory_space<vmem>>, vector<1x8x128xf32>
    %388 = vector.shape_cast %387 : vector<1x8x128xf32> to vector<8x128xf32>
    %389 = vector.shape_cast %386 : vector<8x128xf32> to vector<1x8x128xf32>
    tpu.vector_store %arg15[%c1_107, %c0_108, %c0_109], %389 {strides = array<i32>} : memref<6x8x128xf32, #tpu.memory_space<vmem>>, vector<1x8x128xf32>,
    %390 = arith.truncf %386 : vector<8x128xf32> to vector<8x128xbf16>
    %c0_110 = arith.constant 0 : index
    %c0_111 = arith.constant 0 : index
    %391 = vector.load %arg13[%c0_110, %c0_111] : memref<128x128xbf16, #tpu.memory_space<vmem>>, vector<128x128xbf16>
    %cst_112 = arith.constant dense<0.000000e+00> : vector<8x128xf32>
    %392 = tpu.matmul %390, %391, %cst_112 {dimension_numbers = #tpu.dot_dimension_numbers<[1], [0], [0], [1], [0, 0, 1, 1], [], []>} : vector<8x128xbf16>, vector<128x128xbf16>, vector<8x128xf32> -> vector<8x128xf32>
    %393 = arith.addf %392, %2 : vector<8x128xf32>
    %cst_113 = arith.constant dense<0xFF800000> : vector<8xf32>
    %394 = vector.multi_reduction <maximumf>, %393, %cst_113 [1] : vector<8x128xf32> to vector<8xf32>
    %395 = vector.shape_cast %394 : vector<8xf32> to vector<8x1xf32>
    %396 = vector.broadcast %395 : vector<8x1xf32> to vector<8x128xf32>
    %397 = arith.cmpf oeq, %393, %396 : vector<8x128xf32>
    %c128_i32_114 = arith.constant 128 : i32
    %398 = vector.broadcast %c128_i32_114 : i32 to vector<8x128xi32>
    %399 = arith.select %397, %4, %398 : vector<8x128xi1>, vector<8x128xi32>
    %cst_115 = arith.constant dense<2147483647> : vector<8xi32>
    %400 = vector.multi_reduction <minsi>, %399, %cst_115 [1] : vector<8x128xi32> to vector<8xi32>
    %401 = vector.shape_cast %400 : vector<8xi32> to vector<8x1xi32>
    %402 = vector.broadcast %401 : vector<8x1xi32> to vector<8x128xi32>
    %403 = arith.cmpi eq, %4, %402 : vector<8x128xi32>
    %cst_116 = arith.constant 1.000000e+00 : f32
    %cst_117 = arith.constant 0.000000e+00 : f32
    %404 = vector.broadcast %cst_116 : f32 to vector<8x128xf32>
    %405 = vector.broadcast %cst_117 : f32 to vector<8x128xf32>
    %406 = arith.select %403, %404, %405 : vector<8x128xi1>, vector<8x128xf32>
    %407 = arith.truncf %406 : vector<8x128xf32> to vector<8x128xbf16>
    %c2_i32_118 = arith.constant 2 : i32
    %408 = vector.broadcast %c2_i32_118 : i32 to vector<8x1xi32>
    %409 = arith.cmpi eq, %401, %408 : vector<8x1xi32>
    %410 = arith.extui %409 : vector<8x1xi1> to vector<8x1xi32>
    %c1_i32_119 = arith.constant 1 : i32
    %411 = vector.broadcast %c1_i32_119 : i32 to vector<8x1xi32>
    %412 = arith.subi %411, %354 : vector<8x1xi32>
    %413 = arith.muli %410, %412 : vector<8x1xi32>
    %c1_i32_120 = arith.constant 1 : i32
    %414 = vector.broadcast %c1_i32_120 : i32 to vector<8x1xi32>
    %415 = arith.subi %414, %413 : vector<8x1xi32>
    %416 = arith.muli %353, %415 : vector<8x1xi32>
    %c1_i32_121 = arith.constant 1 : i32
    %417 = vector.broadcast %c1_i32_121 : i32 to vector<8x1xi32>
    %418 = arith.muli %417, %413 : vector<8x1xi32>
    %419 = arith.addi %416, %418 : vector<8x1xi32>
    %420 = arith.maxsi %354, %410 : vector<8x1xi32>
    %c0_122 = arith.constant 0 : index
    %c0_123 = arith.constant 0 : index
    %421 = vector.load %arg12[%c0_122, %c0_123] : memref<128x384xbf16, #tpu.memory_space<vmem>>, vector<128x384xbf16>
    %cst_124 = arith.constant dense<0.000000e+00> : vector<8x384xf32>
    %422 = tpu.matmul %407, %421, %cst_124 {dimension_numbers = #tpu.dot_dimension_numbers<[1], [0], [0], [1], [0, 0, 1, 1], [], []>} : vector<8x128xbf16>, vector<128x384xbf16>, vector<8x384xf32> -> vector<8x384xf32>
    %423 = arith.truncf %386 : vector<8x128xf32> to vector<8x128xbf16>
    %c0_125 = arith.constant 0 : index
    %c0_126 = arith.constant 0 : index
    %424 = vector.load %arg9[%c0_125, %c0_126] : memref<128x384xbf16, #tpu.memory_space<vmem>>, vector<128x384xbf16>
    %cst_127 = arith.constant dense<0.000000e+00> : vector<8x384xf32>
    %425 = tpu.matmul %423, %424, %cst_127 {dimension_numbers = #tpu.dot_dimension_numbers<[1], [0], [0], [1], [0, 0, 1, 1], [], []>} : vector<8x128xbf16>, vector<128x384xbf16>, vector<8x384xf32> -> vector<8x384xf32>
    %426 = arith.addf %425, %1 : vector<8x384xf32>
    %427 = vector.extract_strided_slice %422 {offsets = [0, 0], sizes = [8, 128], strides = [1, 1]} : vector<8x384xf32> to vector<8x128xf32>
    %428 = vector.extract_strided_slice %426 {offsets = [0, 0], sizes = [8, 128], strides = [1, 1]} : vector<8x384xf32> to vector<8x128xf32>
    %429 = arith.addf %427, %428 : vector<8x128xf32>
    %430 = arith.negf %429 : vector<8x128xf32>
    %431 = math.exp %430 : vector<8x128xf32>
    %cst_128 = arith.constant 1.000000e+00 : f32
    %432 = vector.broadcast %cst_128 : f32 to vector<8x128xf32>
    %433 = arith.addf %432, %431 : vector<8x128xf32>
    %434 = arith.divf %432, %433 : vector<8x128xf32>
    %435 = vector.extract_strided_slice %422 {offsets = [0, 128], sizes = [8, 128], strides = [1, 1]} : vector<8x384xf32> to vector<8x128xf32>
    %436 = vector.extract_strided_slice %426 {offsets = [0, 128], sizes = [8, 128], strides = [1, 1]} : vector<8x384xf32> to vector<8x128xf32>
    %437 = arith.addf %435, %436 : vector<8x128xf32>
    %438 = arith.negf %437 : vector<8x128xf32>
    %439 = math.exp %438 : vector<8x128xf32>
    %cst_129 = arith.constant 1.000000e+00 : f32
    %440 = vector.broadcast %cst_129 : f32 to vector<8x128xf32>
    %441 = arith.addf %440, %439 : vector<8x128xf32>
    %442 = arith.divf %440, %441 : vector<8x128xf32>
    %443 = vector.extract_strided_slice %422 {offsets = [0, 256], sizes = [8, 128], strides = [1, 1]} : vector<8x384xf32> to vector<8x128xf32>
    %444 = vector.extract_strided_slice %426 {offsets = [0, 256], sizes = [8, 128], strides = [1, 1]} : vector<8x384xf32> to vector<8x128xf32>
    %445 = arith.mulf %434, %444 : vector<8x128xf32>
    %446 = arith.addf %443, %445 : vector<8x128xf32>
    %447 = math.tanh %446 : vector<8x128xf32>
    %cst_130 = arith.constant 1.000000e+00 : f32
    %448 = vector.broadcast %cst_130 : f32 to vector<8x128xf32>
    %449 = arith.subf %448, %442 : vector<8x128xf32>
    %450 = arith.mulf %449, %447 : vector<8x128xf32>
    %451 = arith.mulf %442, %386 : vector<8x128xf32>
    %452 = arith.addf %450, %451 : vector<8x128xf32>
    %c2_131 = arith.constant 2 : index
    %c0_132 = arith.constant 0 : index
    %c0_133 = arith.constant 0 : index
    %453 = vector.load %arg15[%c2_131, %c0_132, %c0_133] : memref<6x8x128xf32, #tpu.memory_space<vmem>>, vector<1x8x128xf32>
    %454 = vector.shape_cast %453 : vector<1x8x128xf32> to vector<8x128xf32>
    %455 = vector.shape_cast %452 : vector<8x128xf32> to vector<1x8x128xf32>
    tpu.vector_store %arg15[%c2_131, %c0_132, %c0_133], %455 {strides = array<i32>} : memref<6x8x128xf32, #tpu.memory_space<vmem>>, vector<1x8x128xf32>,
    %456 = arith.truncf %452 : vector<8x128xf32> to vector<8x128xbf16>
    %c0_134 = arith.constant 0 : index
    %c0_135 = arith.constant 0 : index
    %457 = vector.load %arg13[%c0_134, %c0_135] : memref<128x128xbf16, #tpu.memory_space<vmem>>, vector<128x128xbf16>
    %cst_136 = arith.constant dense<0.000000e+00> : vector<8x128xf32>
    %458 = tpu.matmul %456, %457, %cst_136 {dimension_numbers = #tpu.dot_dimension_numbers<[1], [0], [0], [1], [0, 0, 1, 1], [], []>} : vector<8x128xbf16>, vector<128x128xbf16>, vector<8x128xf32> -> vector<8x128xf32>
    %459 = arith.addf %458, %2 : vector<8x128xf32>
    %cst_137 = arith.constant dense<0xFF800000> : vector<8xf32>
    %460 = vector.multi_reduction <maximumf>, %459, %cst_137 [1] : vector<8x128xf32> to vector<8xf32>
    %461 = vector.shape_cast %460 : vector<8xf32> to vector<8x1xf32>
    %462 = vector.broadcast %461 : vector<8x1xf32> to vector<8x128xf32>
    %463 = arith.cmpf oeq, %459, %462 : vector<8x128xf32>
    %c128_i32_138 = arith.constant 128 : i32
    %464 = vector.broadcast %c128_i32_138 : i32 to vector<8x128xi32>
    %465 = arith.select %463, %4, %464 : vector<8x128xi1>, vector<8x128xi32>
    %cst_139 = arith.constant dense<2147483647> : vector<8xi32>
    %466 = vector.multi_reduction <minsi>, %465, %cst_139 [1] : vector<8x128xi32> to vector<8xi32>
    %467 = vector.shape_cast %466 : vector<8xi32> to vector<8x1xi32>
    %468 = vector.broadcast %467 : vector<8x1xi32> to vector<8x128xi32>
    %469 = arith.cmpi eq, %4, %468 : vector<8x128xi32>
    %cst_140 = arith.constant 1.000000e+00 : f32
    %cst_141 = arith.constant 0.000000e+00 : f32
    %470 = vector.broadcast %cst_140 : f32 to vector<8x128xf32>
    %471 = vector.broadcast %cst_141 : f32 to vector<8x128xf32>
    %472 = arith.select %469, %470, %471 : vector<8x128xi1>, vector<8x128xf32>
    %473 = arith.truncf %472 : vector<8x128xf32> to vector<8x128xbf16>
    %c2_i32_142 = arith.constant 2 : i32
    %474 = vector.broadcast %c2_i32_142 : i32 to vector<8x1xi32>
    %475 = arith.cmpi eq, %467, %474 : vector<8x1xi32>
    %476 = arith.extui %475 : vector<8x1xi1> to vector<8x1xi32>
    %c1_i32_143 = arith.constant 1 : i32
    %477 = vector.broadcast %c1_i32_143 : i32 to vector<8x1xi32>
    %478 = arith.subi %477, %420 : vector<8x1xi32>
    %479 = arith.muli %476, %478 : vector<8x1xi32>
    %c1_i32_144 = arith.constant 1 : i32
    %480 = vector.broadcast %c1_i32_144 : i32 to vector<8x1xi32>
    %481 = arith.subi %480, %479 : vector<8x1xi32>
    %482 = arith.muli %419, %481 : vector<8x1xi32>
    %c2_i32_145 = arith.constant 2 : i32
    %483 = vector.broadcast %c2_i32_145 : i32 to vector<8x1xi32>
    %484 = arith.muli %483, %479 : vector<8x1xi32>
    %485 = arith.addi %482, %484 : vector<8x1xi32>
    %486 = arith.maxsi %420, %476 : vector<8x1xi32>
    %c0_146 = arith.constant 0 : index
    %c0_147 = arith.constant 0 : index
    %487 = vector.load %arg12[%c0_146, %c0_147] : memref<128x384xbf16, #tpu.memory_space<vmem>>, vector<128x384xbf16>
    %cst_148 = arith.constant dense<0.000000e+00> : vector<8x384xf32>
    %488 = tpu.matmul %473, %487, %cst_148 {dimension_numbers = #tpu.dot_dimension_numbers<[1], [0], [0], [1], [0, 0, 1, 1], [], []>} : vector<8x128xbf16>, vector<128x384xbf16>, vector<8x384xf32> -> vector<8x384xf32>
    %489 = arith.truncf %452 : vector<8x128xf32> to vector<8x128xbf16>
    %c0_149 = arith.constant 0 : index
    %c0_150 = arith.constant 0 : index
    %490 = vector.load %arg9[%c0_149, %c0_150] : memref<128x384xbf16, #tpu.memory_space<vmem>>, vector<128x384xbf16>
    %cst_151 = arith.constant dense<0.000000e+00> : vector<8x384xf32>
    %491 = tpu.matmul %489, %490, %cst_151 {dimension_numbers = #tpu.dot_dimension_numbers<[1], [0], [0], [1], [0, 0, 1, 1], [], []>} : vector<8x128xbf16>, vector<128x384xbf16>, vector<8x384xf32> -> vector<8x384xf32>
    %492 = arith.addf %491, %1 : vector<8x384xf32>
    %493 = vector.extract_strided_slice %488 {offsets = [0, 0], sizes = [8, 128], strides = [1, 1]} : vector<8x384xf32> to vector<8x128xf32>
    %494 = vector.extract_strided_slice %492 {offsets = [0, 0], sizes = [8, 128], strides = [1, 1]} : vector<8x384xf32> to vector<8x128xf32>
    %495 = arith.addf %493, %494 : vector<8x128xf32>
    %496 = arith.negf %495 : vector<8x128xf32>
    %497 = math.exp %496 : vector<8x128xf32>
    %cst_152 = arith.constant 1.000000e+00 : f32
    %498 = vector.broadcast %cst_152 : f32 to vector<8x128xf32>
    %499 = arith.addf %498, %497 : vector<8x128xf32>
    %500 = arith.divf %498, %499 : vector<8x128xf32>
    %501 = vector.extract_strided_slice %488 {offsets = [0, 128], sizes = [8, 128], strides = [1, 1]} : vector<8x384xf32> to vector<8x128xf32>
    %502 = vector.extract_strided_slice %492 {offsets = [0, 128], sizes = [8, 128], strides = [1, 1]} : vector<8x384xf32> to vector<8x128xf32>
    %503 = arith.addf %501, %502 : vector<8x128xf32>
    %504 = arith.negf %503 : vector<8x128xf32>
    %505 = math.exp %504 : vector<8x128xf32>
    %cst_153 = arith.constant 1.000000e+00 : f32
    %506 = vector.broadcast %cst_153 : f32 to vector<8x128xf32>
    %507 = arith.addf %506, %505 : vector<8x128xf32>
    %508 = arith.divf %506, %507 : vector<8x128xf32>
    %509 = vector.extract_strided_slice %488 {offsets = [0, 256], sizes = [8, 128], strides = [1, 1]} : vector<8x384xf32> to vector<8x128xf32>
    %510 = vector.extract_strided_slice %492 {offsets = [0, 256], sizes = [8, 128], strides = [1, 1]} : vector<8x384xf32> to vector<8x128xf32>
    %511 = arith.mulf %500, %510 : vector<8x128xf32>
    %512 = arith.addf %509, %511 : vector<8x128xf32>
    %513 = math.tanh %512 : vector<8x128xf32>
    %cst_154 = arith.constant 1.000000e+00 : f32
    %514 = vector.broadcast %cst_154 : f32 to vector<8x128xf32>
    %515 = arith.subf %514, %508 : vector<8x128xf32>
    %516 = arith.mulf %515, %513 : vector<8x128xf32>
    %517 = arith.mulf %508, %452 : vector<8x128xf32>
    %518 = arith.addf %516, %517 : vector<8x128xf32>
    %c3_155 = arith.constant 3 : index
    %c0_156 = arith.constant 0 : index
    %c0_157 = arith.constant 0 : index
    %519 = vector.load %arg15[%c3_155, %c0_156, %c0_157] : memref<6x8x128xf32, #tpu.memory_space<vmem>>, vector<1x8x128xf32>
    %520 = vector.shape_cast %519 : vector<1x8x128xf32> to vector<8x128xf32>
    %521 = vector.shape_cast %518 : vector<8x128xf32> to vector<1x8x128xf32>
    tpu.vector_store %arg15[%c3_155, %c0_156, %c0_157], %521 {strides = array<i32>} : memref<6x8x128xf32, #tpu.memory_space<vmem>>, vector<1x8x128xf32>,
    %522 = arith.truncf %518 : vector<8x128xf32> to vector<8x128xbf16>
    %c0_158 = arith.constant 0 : index
    %c0_159 = arith.constant 0 : index
    %523 = vector.load %arg13[%c0_158, %c0_159] : memref<128x128xbf16, #tpu.memory_space<vmem>>, vector<128x128xbf16>
    %cst_160 = arith.constant dense<0.000000e+00> : vector<8x128xf32>
    %524 = tpu.matmul %522, %523, %cst_160 {dimension_numbers = #tpu.dot_dimension_numbers<[1], [0], [0], [1], [0, 0, 1, 1], [], []>} : vector<8x128xbf16>, vector<128x128xbf16>, vector<8x128xf32> -> vector<8x128xf32>
    %525 = arith.addf %524, %2 : vector<8x128xf32>
    %cst_161 = arith.constant dense<0xFF800000> : vector<8xf32>
    %526 = vector.multi_reduction <maximumf>, %525, %cst_161 [1] : vector<8x128xf32> to vector<8xf32>
    %527 = vector.shape_cast %526 : vector<8xf32> to vector<8x1xf32>
    %528 = vector.broadcast %527 : vector<8x1xf32> to vector<8x128xf32>
    %529 = arith.cmpf oeq, %525, %528 : vector<8x128xf32>
    %c128_i32_162 = arith.constant 128 : i32
    %530 = vector.broadcast %c128_i32_162 : i32 to vector<8x128xi32>
    %531 = arith.select %529, %4, %530 : vector<8x128xi1>, vector<8x128xi32>
    %cst_163 = arith.constant dense<2147483647> : vector<8xi32>
    %532 = vector.multi_reduction <minsi>, %531, %cst_163 [1] : vector<8x128xi32> to vector<8xi32>
    %533 = vector.shape_cast %532 : vector<8xi32> to vector<8x1xi32>
    %534 = vector.broadcast %533 : vector<8x1xi32> to vector<8x128xi32>
    %535 = arith.cmpi eq, %4, %534 : vector<8x128xi32>
    %cst_164 = arith.constant 1.000000e+00 : f32
    %cst_165 = arith.constant 0.000000e+00 : f32
    %536 = vector.broadcast %cst_164 : f32 to vector<8x128xf32>
    %537 = vector.broadcast %cst_165 : f32 to vector<8x128xf32>
    %538 = arith.select %535, %536, %537 : vector<8x128xi1>, vector<8x128xf32>
    %539 = arith.truncf %538 : vector<8x128xf32> to vector<8x128xbf16>
    %c2_i32_166 = arith.constant 2 : i32
    %540 = vector.broadcast %c2_i32_166 : i32 to vector<8x1xi32>
    %541 = arith.cmpi eq, %533, %540 : vector<8x1xi32>
    %542 = arith.extui %541 : vector<8x1xi1> to vector<8x1xi32>
    %c1_i32_167 = arith.constant 1 : i32
    %543 = vector.broadcast %c1_i32_167 : i32 to vector<8x1xi32>
    %544 = arith.subi %543, %486 : vector<8x1xi32>
    %545 = arith.muli %542, %544 : vector<8x1xi32>
    %c1_i32_168 = arith.constant 1 : i32
    %546 = vector.broadcast %c1_i32_168 : i32 to vector<8x1xi32>
    %547 = arith.subi %546, %545 : vector<8x1xi32>
    %548 = arith.muli %485, %547 : vector<8x1xi32>
    %c3_i32_169 = arith.constant 3 : i32
    %549 = vector.broadcast %c3_i32_169 : i32 to vector<8x1xi32>
    %550 = arith.muli %549, %545 : vector<8x1xi32>
    %551 = arith.addi %548, %550 : vector<8x1xi32>
    %552 = arith.maxsi %486, %542 : vector<8x1xi32>
    %c0_170 = arith.constant 0 : index
    %c0_171 = arith.constant 0 : index
    %553 = vector.load %arg12[%c0_170, %c0_171] : memref<128x384xbf16, #tpu.memory_space<vmem>>, vector<128x384xbf16>
    %cst_172 = arith.constant dense<0.000000e+00> : vector<8x384xf32>
    %554 = tpu.matmul %539, %553, %cst_172 {dimension_numbers = #tpu.dot_dimension_numbers<[1], [0], [0], [1], [0, 0, 1, 1], [], []>} : vector<8x128xbf16>, vector<128x384xbf16>, vector<8x384xf32> -> vector<8x384xf32>
    %555 = arith.truncf %518 : vector<8x128xf32> to vector<8x128xbf16>
    %c0_173 = arith.constant 0 : index
    %c0_174 = arith.constant 0 : index
    %556 = vector.load %arg9[%c0_173, %c0_174] : memref<128x384xbf16, #tpu.memory_space<vmem>>, vector<128x384xbf16>
    %cst_175 = arith.constant dense<0.000000e+00> : vector<8x384xf32>
    %557 = tpu.matmul %555, %556, %cst_175 {dimension_numbers = #tpu.dot_dimension_numbers<[1], [0], [0], [1], [0, 0, 1, 1], [], []>} : vector<8x128xbf16>, vector<128x384xbf16>, vector<8x384xf32> -> vector<8x384xf32>
    %558 = arith.addf %557, %1 : vector<8x384xf32>
    %559 = vector.extract_strided_slice %554 {offsets = [0, 0], sizes = [8, 128], strides = [1, 1]} : vector<8x384xf32> to vector<8x128xf32>
    %560 = vector.extract_strided_slice %558 {offsets = [0, 0], sizes = [8, 128], strides = [1, 1]} : vector<8x384xf32> to vector<8x128xf32>
    %561 = arith.addf %559, %560 : vector<8x128xf32>
    %562 = arith.negf %561 : vector<8x128xf32>
    %563 = math.exp %562 : vector<8x128xf32>
    %cst_176 = arith.constant 1.000000e+00 : f32
    %564 = vector.broadcast %cst_176 : f32 to vector<8x128xf32>
    %565 = arith.addf %564, %563 : vector<8x128xf32>
    %566 = arith.divf %564, %565 : vector<8x128xf32>
    %567 = vector.extract_strided_slice %554 {offsets = [0, 128], sizes = [8, 128], strides = [1, 1]} : vector<8x384xf32> to vector<8x128xf32>
    %568 = vector.extract_strided_slice %558 {offsets = [0, 128], sizes = [8, 128], strides = [1, 1]} : vector<8x384xf32> to vector<8x128xf32>
    %569 = arith.addf %567, %568 : vector<8x128xf32>
    %570 = arith.negf %569 : vector<8x128xf32>
    %571 = math.exp %570 : vector<8x128xf32>
    %cst_177 = arith.constant 1.000000e+00 : f32
    %572 = vector.broadcast %cst_177 : f32 to vector<8x128xf32>
    %573 = arith.addf %572, %571 : vector<8x128xf32>
    %574 = arith.divf %572, %573 : vector<8x128xf32>
    %575 = vector.extract_strided_slice %554 {offsets = [0, 256], sizes = [8, 128], strides = [1, 1]} : vector<8x384xf32> to vector<8x128xf32>
    %576 = vector.extract_strided_slice %558 {offsets = [0, 256], sizes = [8, 128], strides = [1, 1]} : vector<8x384xf32> to vector<8x128xf32>
    %577 = arith.mulf %566, %576 : vector<8x128xf32>
    %578 = arith.addf %575, %577 : vector<8x128xf32>
    %579 = math.tanh %578 : vector<8x128xf32>
    %cst_178 = arith.constant 1.000000e+00 : f32
    %580 = vector.broadcast %cst_178 : f32 to vector<8x128xf32>
    %581 = arith.subf %580, %574 : vector<8x128xf32>
    %582 = arith.mulf %581, %579 : vector<8x128xf32>
    %583 = arith.mulf %574, %518 : vector<8x128xf32>
    %584 = arith.addf %582, %583 : vector<8x128xf32>
    %c4_179 = arith.constant 4 : index
    %c0_180 = arith.constant 0 : index
    %c0_181 = arith.constant 0 : index
    %585 = vector.load %arg15[%c4_179, %c0_180, %c0_181] : memref<6x8x128xf32, #tpu.memory_space<vmem>>, vector<1x8x128xf32>
    %586 = vector.shape_cast %585 : vector<1x8x128xf32> to vector<8x128xf32>
    %587 = vector.shape_cast %584 : vector<8x128xf32> to vector<1x8x128xf32>
    tpu.vector_store %arg15[%c4_179, %c0_180, %c0_181], %587 {strides = array<i32>} : memref<6x8x128xf32, #tpu.memory_space<vmem>>, vector<1x8x128xf32>,
    %588 = arith.truncf %584 : vector<8x128xf32> to vector<8x128xbf16>
    %c0_182 = arith.constant 0 : index
    %c0_183 = arith.constant 0 : index
    %589 = vector.load %arg13[%c0_182, %c0_183] : memref<128x128xbf16, #tpu.memory_space<vmem>>, vector<128x128xbf16>
    %cst_184 = arith.constant dense<0.000000e+00> : vector<8x128xf32>
    %590 = tpu.matmul %588, %589, %cst_184 {dimension_numbers = #tpu.dot_dimension_numbers<[1], [0], [0], [1], [0, 0, 1, 1], [], []>} : vector<8x128xbf16>, vector<128x128xbf16>, vector<8x128xf32> -> vector<8x128xf32>
    %591 = arith.addf %590, %2 : vector<8x128xf32>
    %cst_185 = arith.constant dense<0xFF800000> : vector<8xf32>
    %592 = vector.multi_reduction <maximumf>, %591, %cst_185 [1] : vector<8x128xf32> to vector<8xf32>
    %593 = vector.shape_cast %592 : vector<8xf32> to vector<8x1xf32>
    %594 = vector.broadcast %593 : vector<8x1xf32> to vector<8x128xf32>
    %595 = arith.cmpf oeq, %591, %594 : vector<8x128xf32>
    %c128_i32_186 = arith.constant 128 : i32
    %596 = vector.broadcast %c128_i32_186 : i32 to vector<8x128xi32>
    %597 = arith.select %595, %4, %596 : vector<8x128xi1>, vector<8x128xi32>
    %cst_187 = arith.constant dense<2147483647> : vector<8xi32>
    %598 = vector.multi_reduction <minsi>, %597, %cst_187 [1] : vector<8x128xi32> to vector<8xi32>
    %599 = vector.shape_cast %598 : vector<8xi32> to vector<8x1xi32>
    %600 = vector.broadcast %599 : vector<8x1xi32> to vector<8x128xi32>
    %601 = arith.cmpi eq, %4, %600 : vector<8x128xi32>
    %cst_188 = arith.constant 1.000000e+00 : f32
    %cst_189 = arith.constant 0.000000e+00 : f32
    %602 = vector.broadcast %cst_188 : f32 to vector<8x128xf32>
    %603 = vector.broadcast %cst_189 : f32 to vector<8x128xf32>
    %604 = arith.select %601, %602, %603 : vector<8x128xi1>, vector<8x128xf32>
    %605 = arith.truncf %604 : vector<8x128xf32> to vector<8x128xbf16>
    %c2_i32_190 = arith.constant 2 : i32
    %606 = vector.broadcast %c2_i32_190 : i32 to vector<8x1xi32>
    %607 = arith.cmpi eq, %599, %606 : vector<8x1xi32>
    %608 = arith.extui %607 : vector<8x1xi1> to vector<8x1xi32>
    %c1_i32_191 = arith.constant 1 : i32
    %609 = vector.broadcast %c1_i32_191 : i32 to vector<8x1xi32>
    %610 = arith.subi %609, %552 : vector<8x1xi32>
    %611 = arith.muli %608, %610 : vector<8x1xi32>
    %c1_i32_192 = arith.constant 1 : i32
    %612 = vector.broadcast %c1_i32_192 : i32 to vector<8x1xi32>
    %613 = arith.subi %612, %611 : vector<8x1xi32>
    %614 = arith.muli %551, %613 : vector<8x1xi32>
    %c4_i32_193 = arith.constant 4 : i32
    %615 = vector.broadcast %c4_i32_193 : i32 to vector<8x1xi32>
    %616 = arith.muli %615, %611 : vector<8x1xi32>
    %617 = arith.addi %614, %616 : vector<8x1xi32>
    %618 = arith.maxsi %552, %608 : vector<8x1xi32>
    %c0_194 = arith.constant 0 : index
    %c0_195 = arith.constant 0 : index
    %619 = vector.load %arg12[%c0_194, %c0_195] : memref<128x384xbf16, #tpu.memory_space<vmem>>, vector<128x384xbf16>
    %cst_196 = arith.constant dense<0.000000e+00> : vector<8x384xf32>
    %620 = tpu.matmul %605, %619, %cst_196 {dimension_numbers = #tpu.dot_dimension_numbers<[1], [0], [0], [1], [0, 0, 1, 1], [], []>} : vector<8x128xbf16>, vector<128x384xbf16>, vector<8x384xf32> -> vector<8x384xf32>
    %621 = arith.truncf %584 : vector<8x128xf32> to vector<8x128xbf16>
    %c0_197 = arith.constant 0 : index
    %c0_198 = arith.constant 0 : index
    %622 = vector.load %arg9[%c0_197, %c0_198] : memref<128x384xbf16, #tpu.memory_space<vmem>>, vector<128x384xbf16>
    %cst_199 = arith.constant dense<0.000000e+00> : vector<8x384xf32>
    %623 = tpu.matmul %621, %622, %cst_199 {dimension_numbers = #tpu.dot_dimension_numbers<[1], [0], [0], [1], [0, 0, 1, 1], [], []>} : vector<8x128xbf16>, vector<128x384xbf16>, vector<8x384xf32> -> vector<8x384xf32>
    %624 = arith.addf %623, %1 : vector<8x384xf32>
    %625 = vector.extract_strided_slice %620 {offsets = [0, 0], sizes = [8, 128], strides = [1, 1]} : vector<8x384xf32> to vector<8x128xf32>
    %626 = vector.extract_strided_slice %624 {offsets = [0, 0], sizes = [8, 128], strides = [1, 1]} : vector<8x384xf32> to vector<8x128xf32>
    %627 = arith.addf %625, %626 : vector<8x128xf32>
    %628 = arith.negf %627 : vector<8x128xf32>
    %629 = math.exp %628 : vector<8x128xf32>
    %cst_200 = arith.constant 1.000000e+00 : f32
    %630 = vector.broadcast %cst_200 : f32 to vector<8x128xf32>
    %631 = arith.addf %630, %629 : vector<8x128xf32>
    %632 = arith.divf %630, %631 : vector<8x128xf32>
    %633 = vector.extract_strided_slice %620 {offsets = [0, 128], sizes = [8, 128], strides = [1, 1]} : vector<8x384xf32> to vector<8x128xf32>
    %634 = vector.extract_strided_slice %624 {offsets = [0, 128], sizes = [8, 128], strides = [1, 1]} : vector<8x384xf32> to vector<8x128xf32>
    %635 = arith.addf %633, %634 : vector<8x128xf32>
    %636 = arith.negf %635 : vector<8x128xf32>
    %637 = math.exp %636 : vector<8x128xf32>
    %cst_201 = arith.constant 1.000000e+00 : f32
    %638 = vector.broadcast %cst_201 : f32 to vector<8x128xf32>
    %639 = arith.addf %638, %637 : vector<8x128xf32>
    %640 = arith.divf %638, %639 : vector<8x128xf32>
    %641 = vector.extract_strided_slice %620 {offsets = [0, 256], sizes = [8, 128], strides = [1, 1]} : vector<8x384xf32> to vector<8x128xf32>
    %642 = vector.extract_strided_slice %624 {offsets = [0, 256], sizes = [8, 128], strides = [1, 1]} : vector<8x384xf32> to vector<8x128xf32>
    %643 = arith.mulf %632, %642 : vector<8x128xf32>
    %644 = arith.addf %641, %643 : vector<8x128xf32>
    %645 = math.tanh %644 : vector<8x128xf32>
    %cst_202 = arith.constant 1.000000e+00 : f32
    %646 = vector.broadcast %cst_202 : f32 to vector<8x128xf32>
    %647 = arith.subf %646, %640 : vector<8x128xf32>
    %648 = arith.mulf %647, %645 : vector<8x128xf32>
    %649 = arith.mulf %640, %584 : vector<8x128xf32>
    %650 = arith.addf %648, %649 : vector<8x128xf32>
    %c5_203 = arith.constant 5 : index
    %c0_204 = arith.constant 0 : index
    %c0_205 = arith.constant 0 : index
    %651 = vector.load %arg15[%c5_203, %c0_204, %c0_205] : memref<6x8x128xf32, #tpu.memory_space<vmem>>, vector<1x8x128xf32>
    %652 = vector.shape_cast %651 : vector<1x8x128xf32> to vector<8x128xf32>
    %653 = vector.shape_cast %650 : vector<8x128xf32> to vector<1x8x128xf32>
    tpu.vector_store %arg15[%c5_203, %c0_204, %c0_205], %653 {strides = array<i32>} : memref<6x8x128xf32, #tpu.memory_space<vmem>>, vector<1x8x128xf32>,
    %654 = arith.truncf %650 : vector<8x128xf32> to vector<8x128xbf16>
    %c0_206 = arith.constant 0 : index
    %c0_207 = arith.constant 0 : index
    %655 = vector.load %arg13[%c0_206, %c0_207] : memref<128x128xbf16, #tpu.memory_space<vmem>>, vector<128x128xbf16>
    %cst_208 = arith.constant dense<0.000000e+00> : vector<8x128xf32>
    %656 = tpu.matmul %654, %655, %cst_208 {dimension_numbers = #tpu.dot_dimension_numbers<[1], [0], [0], [1], [0, 0, 1, 1], [], []>} : vector<8x128xbf16>, vector<128x128xbf16>, vector<8x128xf32> -> vector<8x128xf32>
    %657 = arith.addf %656, %2 : vector<8x128xf32>
    %cst_209 = arith.constant dense<0xFF800000> : vector<8xf32>
    %658 = vector.multi_reduction <maximumf>, %657, %cst_209 [1] : vector<8x128xf32> to vector<8xf32>
    %659 = vector.shape_cast %658 : vector<8xf32> to vector<8x1xf32>
    %660 = vector.broadcast %659 : vector<8x1xf32> to vector<8x128xf32>
    %661 = arith.cmpf oeq, %657, %660 : vector<8x128xf32>
    %c128_i32_210 = arith.constant 128 : i32
    %662 = vector.broadcast %c128_i32_210 : i32 to vector<8x128xi32>
    %663 = arith.select %661, %4, %662 : vector<8x128xi1>, vector<8x128xi32>
    %cst_211 = arith.constant dense<2147483647> : vector<8xi32>
    %664 = vector.multi_reduction <minsi>, %663, %cst_211 [1] : vector<8x128xi32> to vector<8xi32>
    %665 = vector.shape_cast %664 : vector<8xi32> to vector<8x1xi32>
    %666 = vector.broadcast %665 : vector<8x1xi32> to vector<8x128xi32>
    %667 = arith.cmpi eq, %4, %666 : vector<8x128xi32>
    %cst_212 = arith.constant 1.000000e+00 : f32
    %cst_213 = arith.constant 0.000000e+00 : f32
    %668 = vector.broadcast %cst_212 : f32 to vector<8x128xf32>
    %669 = vector.broadcast %cst_213 : f32 to vector<8x128xf32>
    %670 = arith.select %667, %668, %669 : vector<8x128xi1>, vector<8x128xf32>
    %671 = arith.truncf %670 : vector<8x128xf32> to vector<8x128xbf16>
    %c2_i32_214 = arith.constant 2 : i32
    %672 = vector.broadcast %c2_i32_214 : i32 to vector<8x1xi32>
    %673 = arith.cmpi eq, %665, %672 : vector<8x1xi32>
    %674 = arith.extui %673 : vector<8x1xi1> to vector<8x1xi32>
    %c1_i32_215 = arith.constant 1 : i32
    %675 = vector.broadcast %c1_i32_215 : i32 to vector<8x1xi32>
    %676 = arith.subi %675, %618 : vector<8x1xi32>
    %677 = arith.muli %674, %676 : vector<8x1xi32>
    %c1_i32_216 = arith.constant 1 : i32
    %678 = vector.broadcast %c1_i32_216 : i32 to vector<8x1xi32>
    %679 = arith.subi %678, %677 : vector<8x1xi32>
    %680 = arith.muli %617, %679 : vector<8x1xi32>
    %c5_i32_217 = arith.constant 5 : i32
    %681 = vector.broadcast %c5_i32_217 : i32 to vector<8x1xi32>
    %682 = arith.muli %681, %677 : vector<8x1xi32>
    %683 = arith.addi %680, %682 : vector<8x1xi32>
    %c0_i32_218 = arith.constant 0 : i32
    %684 = vector.broadcast %c0_i32_218 : i32 to vector<8x128xi32>
    %685 = vector.broadcast %683 : vector<8x1xi32> to vector<8x128xi32>
    %686 = arith.addi %685, %684 : vector<8x128xi32>
    %c1_i32_219 = arith.constant 1 : i32
    %687 = vector.broadcast %c1_i32_219 : i32 to vector<8x128xi32>
    %688 = arith.addi %686, %687 : vector<8x128xi32>
    %c0_220 = arith.constant 0 : index
    %c0_221 = arith.constant 0 : index
    %689 = vector.load %arg16[%c0_220, %c0_221] : memref<8x128xi32, #tpu.memory_space<vmem>>, vector<8x128xi32>
    tpu.vector_store %arg16[%c0_220, %c0_221], %688 {strides = array<i32>} : memref<8x128xi32, #tpu.memory_space<vmem>>, vector<8x128xi32>,
    %cst_222 = arith.constant 0.000000e+00 : f32
    %690 = vector.broadcast %cst_222 : f32 to vector<8x128xf32>
    %c0_223 = arith.constant 0 : index
    %c0_224 = arith.constant 0 : index
    %691 = vector.load %arg11[%c0_223, %c0_224] : memref<128x384xbf16, #tpu.memory_space<vmem>>, vector<128x384xbf16>
    %cst_225 = arith.constant dense<0.000000e+00> : vector<8x384xf32>
    %692 = tpu.matmul %341, %691, %cst_225 {dimension_numbers = #tpu.dot_dimension_numbers<[1], [0], [0], [1], [0, 0, 1, 1], [], []>} : vector<8x128xbf16>, vector<128x384xbf16>, vector<8x384xf32> -> vector<8x384xf32>
    %693 = arith.truncf %690 : vector<8x128xf32> to vector<8x128xbf16>
    %c0_226 = arith.constant 0 : index
    %c0_227 = arith.constant 0 : index
    %694 = vector.load %arg7[%c0_226, %c0_227] : memref<128x384xbf16, #tpu.memory_space<vmem>>, vector<128x384xbf16>
    %cst_228 = arith.constant dense<0.000000e+00> : vector<8x384xf32>
    %695 = tpu.matmul %693, %694, %cst_228 {dimension_numbers = #tpu.dot_dimension_numbers<[1], [0], [0], [1], [0, 0, 1, 1], [], []>} : vector<8x128xbf16>, vector<128x384xbf16>, vector<8x384xf32> -> vector<8x384xf32>
    %696 = arith.addf %695, %0 : vector<8x384xf32>
    %697 = vector.extract_strided_slice %692 {offsets = [0, 0], sizes = [8, 128], strides = [1, 1]} : vector<8x384xf32> to vector<8x128xf32>
    %698 = vector.extract_strided_slice %696 {offsets = [0, 0], sizes = [8, 128], strides = [1, 1]} : vector<8x384xf32> to vector<8x128xf32>
    %699 = arith.addf %697, %698 : vector<8x128xf32>
    %700 = arith.negf %699 : vector<8x128xf32>
    %701 = math.exp %700 : vector<8x128xf32>
    %cst_229 = arith.constant 1.000000e+00 : f32
    %702 = vector.broadcast %cst_229 : f32 to vector<8x128xf32>
    %703 = arith.addf %702, %701 : vector<8x128xf32>
    %704 = arith.divf %702, %703 : vector<8x128xf32>
    %705 = vector.extract_strided_slice %692 {offsets = [0, 128], sizes = [8, 128], strides = [1, 1]} : vector<8x384xf32> to vector<8x128xf32>
    %706 = vector.extract_strided_slice %696 {offsets = [0, 128], sizes = [8, 128], strides = [1, 1]} : vector<8x384xf32> to vector<8x128xf32>
    %707 = arith.addf %705, %706 : vector<8x128xf32>
    %708 = arith.negf %707 : vector<8x128xf32>
    %709 = math.exp %708 : vector<8x128xf32>
    %cst_230 = arith.constant 1.000000e+00 : f32
    %710 = vector.broadcast %cst_230 : f32 to vector<8x128xf32>
    %711 = arith.addf %710, %709 : vector<8x128xf32>
    %712 = arith.divf %710, %711 : vector<8x128xf32>
    %713 = vector.extract_strided_slice %692 {offsets = [0, 256], sizes = [8, 128], strides = [1, 1]} : vector<8x384xf32> to vector<8x128xf32>
    %714 = vector.extract_strided_slice %696 {offsets = [0, 256], sizes = [8, 128], strides = [1, 1]} : vector<8x384xf32> to vector<8x128xf32>
    %715 = arith.mulf %704, %714 : vector<8x128xf32>
    %716 = arith.addf %713, %715 : vector<8x128xf32>
    %717 = math.tanh %716 : vector<8x128xf32>
    %cst_231 = arith.constant 1.000000e+00 : f32
    %718 = vector.broadcast %cst_231 : f32 to vector<8x128xf32>
    %719 = arith.subf %718, %712 : vector<8x128xf32>
    %720 = arith.mulf %719, %717 : vector<8x128xf32>
    %721 = arith.mulf %712, %690 : vector<8x128xf32>
    %722 = arith.addf %720, %721 : vector<8x128xf32>
    %c0_i32_232 = arith.constant 0 : i32
    %723 = vector.broadcast %c0_i32_232 : i32 to vector<8x128xi32>
    %724 = arith.cmpi sge, %686, %723 : vector<8x128xi32>
    %725 = arith.select %724, %722, %690 : vector<8x128xi1>, vector<8x128xf32>
    %c0_233 = arith.constant 0 : index
    %c0_234 = arith.constant 0 : index
    %726 = vector.load %arg11[%c0_233, %c0_234] : memref<128x384xbf16, #tpu.memory_space<vmem>>, vector<128x384xbf16>
    %cst_235 = arith.constant dense<0.000000e+00> : vector<8x384xf32>
    %727 = tpu.matmul %407, %726, %cst_235 {dimension_numbers = #tpu.dot_dimension_numbers<[1], [0], [0], [1], [0, 0, 1, 1], [], []>} : vector<8x128xbf16>, vector<128x384xbf16>, vector<8x384xf32> -> vector<8x384xf32>
    %728 = arith.truncf %725 : vector<8x128xf32> to vector<8x128xbf16>
    %c0_236 = arith.constant 0 : index
    %c0_237 = arith.constant 0 : index
    %729 = vector.load %arg7[%c0_236, %c0_237] : memref<128x384xbf16, #tpu.memory_space<vmem>>, vector<128x384xbf16>
    %cst_238 = arith.constant dense<0.000000e+00> : vector<8x384xf32>
    %730 = tpu.matmul %728, %729, %cst_238 {dimension_numbers = #tpu.dot_dimension_numbers<[1], [0], [0], [1], [0, 0, 1, 1], [], []>} : vector<8x128xbf16>, vector<128x384xbf16>, vector<8x384xf32> -> vector<8x384xf32>
    %731 = arith.addf %730, %0 : vector<8x384xf32>
    %732 = vector.extract_strided_slice %727 {offsets = [0, 0], sizes = [8, 128], strides = [1, 1]} : vector<8x384xf32> to vector<8x128xf32>
    %733 = vector.extract_strided_slice %731 {offsets = [0, 0], sizes = [8, 128], strides = [1, 1]} : vector<8x384xf32> to vector<8x128xf32>
    %734 = arith.addf %732, %733 : vector<8x128xf32>
    %735 = arith.negf %734 : vector<8x128xf32>
    %736 = math.exp %735 : vector<8x128xf32>
    %cst_239 = arith.constant 1.000000e+00 : f32
    %737 = vector.broadcast %cst_239 : f32 to vector<8x128xf32>
    %738 = arith.addf %737, %736 : vector<8x128xf32>
    %739 = arith.divf %737, %738 : vector<8x128xf32>
    %740 = vector.extract_strided_slice %727 {offsets = [0, 128], sizes = [8, 128], strides = [1, 1]} : vector<8x384xf32> to vector<8x128xf32>
    %741 = vector.extract_strided_slice %731 {offsets = [0, 128], sizes = [8, 128], strides = [1, 1]} : vector<8x384xf32> to vector<8x128xf32>
    %742 = arith.addf %740, %741 : vector<8x128xf32>
    %743 = arith.negf %742 : vector<8x128xf32>
    %744 = math.exp %743 : vector<8x128xf32>
    %cst_240 = arith.constant 1.000000e+00 : f32
    %745 = vector.broadcast %cst_240 : f32 to vector<8x128xf32>
    %746 = arith.addf %745, %744 : vector<8x128xf32>
    %747 = arith.divf %745, %746 : vector<8x128xf32>
    %748 = vector.extract_strided_slice %727 {offsets = [0, 256], sizes = [8, 128], strides = [1, 1]} : vector<8x384xf32> to vector<8x128xf32>
    %749 = vector.extract_strided_slice %731 {offsets = [0, 256], sizes = [8, 128], strides = [1, 1]} : vector<8x384xf32> to vector<8x128xf32>
    %750 = arith.mulf %739, %749 : vector<8x128xf32>
    %751 = arith.addf %748, %750 : vector<8x128xf32>
    %752 = math.tanh %751 : vector<8x128xf32>
    %cst_241 = arith.constant 1.000000e+00 : f32
    %753 = vector.broadcast %cst_241 : f32 to vector<8x128xf32>
    %754 = arith.subf %753, %747 : vector<8x128xf32>
    %755 = arith.mulf %754, %752 : vector<8x128xf32>
    %756 = arith.mulf %747, %725 : vector<8x128xf32>
    %757 = arith.addf %755, %756 : vector<8x128xf32>
    %c1_i32_242 = arith.constant 1 : i32
    %758 = vector.broadcast %c1_i32_242 : i32 to vector<8x128xi32>
    %759 = arith.cmpi sge, %686, %758 : vector<8x128xi32>
    %760 = arith.select %759, %757, %725 : vector<8x128xi1>, vector<8x128xf32>
    %c0_243 = arith.constant 0 : index
    %c0_244 = arith.constant 0 : index
    %761 = vector.load %arg11[%c0_243, %c0_244] : memref<128x384xbf16, #tpu.memory_space<vmem>>, vector<128x384xbf16>
    %cst_245 = arith.constant dense<0.000000e+00> : vector<8x384xf32>
    %762 = tpu.matmul %473, %761, %cst_245 {dimension_numbers = #tpu.dot_dimension_numbers<[1], [0], [0], [1], [0, 0, 1, 1], [], []>} : vector<8x128xbf16>, vector<128x384xbf16>, vector<8x384xf32> -> vector<8x384xf32>
    %763 = arith.truncf %760 : vector<8x128xf32> to vector<8x128xbf16>
    %c0_246 = arith.constant 0 : index
    %c0_247 = arith.constant 0 : index
    %764 = vector.load %arg7[%c0_246, %c0_247] : memref<128x384xbf16, #tpu.memory_space<vmem>>, vector<128x384xbf16>
    %cst_248 = arith.constant dense<0.000000e+00> : vector<8x384xf32>
    %765 = tpu.matmul %763, %764, %cst_248 {dimension_numbers = #tpu.dot_dimension_numbers<[1], [0], [0], [1], [0, 0, 1, 1], [], []>} : vector<8x128xbf16>, vector<128x384xbf16>, vector<8x384xf32> -> vector<8x384xf32>
    %766 = arith.addf %765, %0 : vector<8x384xf32>
    %767 = vector.extract_strided_slice %762 {offsets = [0, 0], sizes = [8, 128], strides = [1, 1]} : vector<8x384xf32> to vector<8x128xf32>
    %768 = vector.extract_strided_slice %766 {offsets = [0, 0], sizes = [8, 128], strides = [1, 1]} : vector<8x384xf32> to vector<8x128xf32>
    %769 = arith.addf %767, %768 : vector<8x128xf32>
    %770 = arith.negf %769 : vector<8x128xf32>
    %771 = math.exp %770 : vector<8x128xf32>
    %cst_249 = arith.constant 1.000000e+00 : f32
    %772 = vector.broadcast %cst_249 : f32 to vector<8x128xf32>
    %773 = arith.addf %772, %771 : vector<8x128xf32>
    %774 = arith.divf %772, %773 : vector<8x128xf32>
    %775 = vector.extract_strided_slice %762 {offsets = [0, 128], sizes = [8, 128], strides = [1, 1]} : vector<8x384xf32> to vector<8x128xf32>
    %776 = vector.extract_strided_slice %766 {offsets = [0, 128], sizes = [8, 128], strides = [1, 1]} : vector<8x384xf32> to vector<8x128xf32>
    %777 = arith.addf %775, %776 : vector<8x128xf32>
    %778 = arith.negf %777 : vector<8x128xf32>
    %779 = math.exp %778 : vector<8x128xf32>
    %cst_250 = arith.constant 1.000000e+00 : f32
    %780 = vector.broadcast %cst_250 : f32 to vector<8x128xf32>
    %781 = arith.addf %780, %779 : vector<8x128xf32>
    %782 = arith.divf %780, %781 : vector<8x128xf32>
    %783 = vector.extract_strided_slice %762 {offsets = [0, 256], sizes = [8, 128], strides = [1, 1]} : vector<8x384xf32> to vector<8x128xf32>
    %784 = vector.extract_strided_slice %766 {offsets = [0, 256], sizes = [8, 128], strides = [1, 1]} : vector<8x384xf32> to vector<8x128xf32>
    %785 = arith.mulf %774, %784 : vector<8x128xf32>
    %786 = arith.addf %783, %785 : vector<8x128xf32>
    %787 = math.tanh %786 : vector<8x128xf32>
    %cst_251 = arith.constant 1.000000e+00 : f32
    %788 = vector.broadcast %cst_251 : f32 to vector<8x128xf32>
    %789 = arith.subf %788, %782 : vector<8x128xf32>
    %790 = arith.mulf %789, %787 : vector<8x128xf32>
    %791 = arith.mulf %782, %760 : vector<8x128xf32>
    %792 = arith.addf %790, %791 : vector<8x128xf32>
    %c2_i32_252 = arith.constant 2 : i32
    %793 = vector.broadcast %c2_i32_252 : i32 to vector<8x128xi32>
    %794 = arith.cmpi sge, %686, %793 : vector<8x128xi32>
    %795 = arith.select %794, %792, %760 : vector<8x128xi1>, vector<8x128xf32>
    %c0_253 = arith.constant 0 : index
    %c0_254 = arith.constant 0 : index
    %796 = vector.load %arg11[%c0_253, %c0_254] : memref<128x384xbf16, #tpu.memory_space<vmem>>, vector<128x384xbf16>
    %cst_255 = arith.constant dense<0.000000e+00> : vector<8x384xf32>
    %797 = tpu.matmul %539, %796, %cst_255 {dimension_numbers = #tpu.dot_dimension_numbers<[1], [0], [0], [1], [0, 0, 1, 1], [], []>} : vector<8x128xbf16>, vector<128x384xbf16>, vector<8x384xf32> -> vector<8x384xf32>
    %798 = arith.truncf %795 : vector<8x128xf32> to vector<8x128xbf16>
    %c0_256 = arith.constant 0 : index
    %c0_257 = arith.constant 0 : index
    %799 = vector.load %arg7[%c0_256, %c0_257] : memref<128x384xbf16, #tpu.memory_space<vmem>>, vector<128x384xbf16>
    %cst_258 = arith.constant dense<0.000000e+00> : vector<8x384xf32>
    %800 = tpu.matmul %798, %799, %cst_258 {dimension_numbers = #tpu.dot_dimension_numbers<[1], [0], [0], [1], [0, 0, 1, 1], [], []>} : vector<8x128xbf16>, vector<128x384xbf16>, vector<8x384xf32> -> vector<8x384xf32>
    %801 = arith.addf %800, %0 : vector<8x384xf32>
    %802 = vector.extract_strided_slice %797 {offsets = [0, 0], sizes = [8, 128], strides = [1, 1]} : vector<8x384xf32> to vector<8x128xf32>
    %803 = vector.extract_strided_slice %801 {offsets = [0, 0], sizes = [8, 128], strides = [1, 1]} : vector<8x384xf32> to vector<8x128xf32>
    %804 = arith.addf %802, %803 : vector<8x128xf32>
    %805 = arith.negf %804 : vector<8x128xf32>
    %806 = math.exp %805 : vector<8x128xf32>
    %cst_259 = arith.constant 1.000000e+00 : f32
    %807 = vector.broadcast %cst_259 : f32 to vector<8x128xf32>
    %808 = arith.addf %807, %806 : vector<8x128xf32>
    %809 = arith.divf %807, %808 : vector<8x128xf32>
    %810 = vector.extract_strided_slice %797 {offsets = [0, 128], sizes = [8, 128], strides = [1, 1]} : vector<8x384xf32> to vector<8x128xf32>
    %811 = vector.extract_strided_slice %801 {offsets = [0, 128], sizes = [8, 128], strides = [1, 1]} : vector<8x384xf32> to vector<8x128xf32>
    %812 = arith.addf %810, %811 : vector<8x128xf32>
    %813 = arith.negf %812 : vector<8x128xf32>
    %814 = math.exp %813 : vector<8x128xf32>
    %cst_260 = arith.constant 1.000000e+00 : f32
    %815 = vector.broadcast %cst_260 : f32 to vector<8x128xf32>
    %816 = arith.addf %815, %814 : vector<8x128xf32>
    %817 = arith.divf %815, %816 : vector<8x128xf32>
    %818 = vector.extract_strided_slice %797 {offsets = [0, 256], sizes = [8, 128], strides = [1, 1]} : vector<8x384xf32> to vector<8x128xf32>
    %819 = vector.extract_strided_slice %801 {offsets = [0, 256], sizes = [8, 128], strides = [1, 1]} : vector<8x384xf32> to vector<8x128xf32>
    %820 = arith.mulf %809, %819 : vector<8x128xf32>
    %821 = arith.addf %818, %820 : vector<8x128xf32>
    %822 = math.tanh %821 : vector<8x128xf32>
    %cst_261 = arith.constant 1.000000e+00 : f32
    %823 = vector.broadcast %cst_261 : f32 to vector<8x128xf32>
    %824 = arith.subf %823, %817 : vector<8x128xf32>
    %825 = arith.mulf %824, %822 : vector<8x128xf32>
    %826 = arith.mulf %817, %795 : vector<8x128xf32>
    %827 = arith.addf %825, %826 : vector<8x128xf32>
    %c3_i32_262 = arith.constant 3 : i32
    %828 = vector.broadcast %c3_i32_262 : i32 to vector<8x128xi32>
    %829 = arith.cmpi sge, %686, %828 : vector<8x128xi32>
    %830 = arith.select %829, %827, %795 : vector<8x128xi1>, vector<8x128xf32>
    %c0_263 = arith.constant 0 : index
    %c0_264 = arith.constant 0 : index
    %831 = vector.load %arg11[%c0_263, %c0_264] : memref<128x384xbf16, #tpu.memory_space<vmem>>, vector<128x384xbf16>
    %cst_265 = arith.constant dense<0.000000e+00> : vector<8x384xf32>
    %832 = tpu.matmul %605, %831, %cst_265 {dimension_numbers = #tpu.dot_dimension_numbers<[1], [0], [0], [1], [0, 0, 1, 1], [], []>} : vector<8x128xbf16>, vector<128x384xbf16>, vector<8x384xf32> -> vector<8x384xf32>
    %833 = arith.truncf %830 : vector<8x128xf32> to vector<8x128xbf16>
    %c0_266 = arith.constant 0 : index
    %c0_267 = arith.constant 0 : index
    %834 = vector.load %arg7[%c0_266, %c0_267] : memref<128x384xbf16, #tpu.memory_space<vmem>>, vector<128x384xbf16>
    %cst_268 = arith.constant dense<0.000000e+00> : vector<8x384xf32>
    %835 = tpu.matmul %833, %834, %cst_268 {dimension_numbers = #tpu.dot_dimension_numbers<[1], [0], [0], [1], [0, 0, 1, 1], [], []>} : vector<8x128xbf16>, vector<128x384xbf16>, vector<8x384xf32> -> vector<8x384xf32>
    %836 = arith.addf %835, %0 : vector<8x384xf32>
    %837 = vector.extract_strided_slice %832 {offsets = [0, 0], sizes = [8, 128], strides = [1, 1]} : vector<8x384xf32> to vector<8x128xf32>
    %838 = vector.extract_strided_slice %836 {offsets = [0, 0], sizes = [8, 128], strides = [1, 1]} : vector<8x384xf32> to vector<8x128xf32>
    %839 = arith.addf %837, %838 : vector<8x128xf32>
    %840 = arith.negf %839 : vector<8x128xf32>
    %841 = math.exp %840 : vector<8x128xf32>
    %cst_269 = arith.constant 1.000000e+00 : f32
    %842 = vector.broadcast %cst_269 : f32 to vector<8x128xf32>
    %843 = arith.addf %842, %841 : vector<8x128xf32>
    %844 = arith.divf %842, %843 : vector<8x128xf32>
    %845 = vector.extract_strided_slice %832 {offsets = [0, 128], sizes = [8, 128], strides = [1, 1]} : vector<8x384xf32> to vector<8x128xf32>
    %846 = vector.extract_strided_slice %836 {offsets = [0, 128], sizes = [8, 128], strides = [1, 1]} : vector<8x384xf32> to vector<8x128xf32>
    %847 = arith.addf %845, %846 : vector<8x128xf32>
    %848 = arith.negf %847 : vector<8x128xf32>
    %849 = math.exp %848 : vector<8x128xf32>
    %cst_270 = arith.constant 1.000000e+00 : f32
    %850 = vector.broadcast %cst_270 : f32 to vector<8x128xf32>
    %851 = arith.addf %850, %849 : vector<8x128xf32>
    %852 = arith.divf %850, %851 : vector<8x128xf32>
    %853 = vector.extract_strided_slice %832 {offsets = [0, 256], sizes = [8, 128], strides = [1, 1]} : vector<8x384xf32> to vector<8x128xf32>
    %854 = vector.extract_strided_slice %836 {offsets = [0, 256], sizes = [8, 128], strides = [1, 1]} : vector<8x384xf32> to vector<8x128xf32>
    %855 = arith.mulf %844, %854 : vector<8x128xf32>
    %856 = arith.addf %853, %855 : vector<8x128xf32>
    %857 = math.tanh %856 : vector<8x128xf32>
    %cst_271 = arith.constant 1.000000e+00 : f32
    %858 = vector.broadcast %cst_271 : f32 to vector<8x128xf32>
    %859 = arith.subf %858, %852 : vector<8x128xf32>
    %860 = arith.mulf %859, %857 : vector<8x128xf32>
    %861 = arith.mulf %852, %830 : vector<8x128xf32>
    %862 = arith.addf %860, %861 : vector<8x128xf32>
    %c4_i32_272 = arith.constant 4 : i32
    %863 = vector.broadcast %c4_i32_272 : i32 to vector<8x128xi32>
    %864 = arith.cmpi sge, %686, %863 : vector<8x128xi32>
    %865 = arith.select %864, %862, %830 : vector<8x128xi1>, vector<8x128xf32>
    %c0_273 = arith.constant 0 : index
    %c0_274 = arith.constant 0 : index
    %866 = vector.load %arg11[%c0_273, %c0_274] : memref<128x384xbf16, #tpu.memory_space<vmem>>, vector<128x384xbf16>
    %cst_275 = arith.constant dense<0.000000e+00> : vector<8x384xf32>
    %867 = tpu.matmul %671, %866, %cst_275 {dimension_numbers = #tpu.dot_dimension_numbers<[1], [0], [0], [1], [0, 0, 1, 1], [], []>} : vector<8x128xbf16>, vector<128x384xbf16>, vector<8x384xf32> -> vector<8x384xf32>
    %868 = arith.truncf %865 : vector<8x128xf32> to vector<8x128xbf16>
    %c0_276 = arith.constant 0 : index
    %c0_277 = arith.constant 0 : index
    %869 = vector.load %arg7[%c0_276, %c0_277] : memref<128x384xbf16, #tpu.memory_space<vmem>>, vector<128x384xbf16>
    %cst_278 = arith.constant dense<0.000000e+00> : vector<8x384xf32>
    %870 = tpu.matmul %868, %869, %cst_278 {dimension_numbers = #tpu.dot_dimension_numbers<[1], [0], [0], [1], [0, 0, 1, 1], [], []>} : vector<8x128xbf16>, vector<128x384xbf16>, vector<8x384xf32> -> vector<8x384xf32>
    %871 = arith.addf %870, %0 : vector<8x384xf32>
    %872 = vector.extract_strided_slice %867 {offsets = [0, 0], sizes = [8, 128], strides = [1, 1]} : vector<8x384xf32> to vector<8x128xf32>
    %873 = vector.extract_strided_slice %871 {offsets = [0, 0], sizes = [8, 128], strides = [1, 1]} : vector<8x384xf32> to vector<8x128xf32>
    %874 = arith.addf %872, %873 : vector<8x128xf32>
    %875 = arith.negf %874 : vector<8x128xf32>
    %876 = math.exp %875 : vector<8x128xf32>
    %cst_279 = arith.constant 1.000000e+00 : f32
    %877 = vector.broadcast %cst_279 : f32 to vector<8x128xf32>
    %878 = arith.addf %877, %876 : vector<8x128xf32>
    %879 = arith.divf %877, %878 : vector<8x128xf32>
    %880 = vector.extract_strided_slice %867 {offsets = [0, 128], sizes = [8, 128], strides = [1, 1]} : vector<8x384xf32> to vector<8x128xf32>
    %881 = vector.extract_strided_slice %871 {offsets = [0, 128], sizes = [8, 128], strides = [1, 1]} : vector<8x384xf32> to vector<8x128xf32>
    %882 = arith.addf %880, %881 : vector<8x128xf32>
    %883 = arith.negf %882 : vector<8x128xf32>
    %884 = math.exp %883 : vector<8x128xf32>
    %cst_280 = arith.constant 1.000000e+00 : f32
    %885 = vector.broadcast %cst_280 : f32 to vector<8x128xf32>
    %886 = arith.addf %885, %884 : vector<8x128xf32>
    %887 = arith.divf %885, %886 : vector<8x128xf32>
    %888 = vector.extract_strided_slice %867 {offsets = [0, 256], sizes = [8, 128], strides = [1, 1]} : vector<8x384xf32> to vector<8x128xf32>
    %889 = vector.extract_strided_slice %871 {offsets = [0, 256], sizes = [8, 128], strides = [1, 1]} : vector<8x384xf32> to vector<8x128xf32>
    %890 = arith.mulf %879, %889 : vector<8x128xf32>
    %891 = arith.addf %888, %890 : vector<8x128xf32>
    %892 = math.tanh %891 : vector<8x128xf32>
    %cst_281 = arith.constant 1.000000e+00 : f32
    %893 = vector.broadcast %cst_281 : f32 to vector<8x128xf32>
    %894 = arith.subf %893, %887 : vector<8x128xf32>
    %895 = arith.mulf %894, %892 : vector<8x128xf32>
    %896 = arith.mulf %887, %865 : vector<8x128xf32>
    %897 = arith.addf %895, %896 : vector<8x128xf32>
    %c5_i32_282 = arith.constant 5 : i32
    %898 = vector.broadcast %c5_i32_282 : i32 to vector<8x128xi32>
    %899 = arith.cmpi sge, %686, %898 : vector<8x128xi32>
    %900 = arith.select %899, %897, %865 : vector<8x128xi1>, vector<8x128xf32>
    %c0_283 = arith.constant 0 : index
    %c0_284 = arith.constant 0 : index
    %901 = vector.load %arg5[%c0_283, %c0_284] : memref<8x128xf32, #tpu.memory_space<vmem>>, vector<8x128xf32>
    %902 = arith.mulf %901, %285 : vector<8x128xf32>
    %cst_285 = arith.constant 1.000000e+00 : f32
    %903 = vector.broadcast %cst_285 : f32 to vector<8x128xf32>
    %904 = arith.subf %903, %901 : vector<8x128xf32>
    %905 = arith.mulf %904, %900 : vector<8x128xf32>
    %906 = arith.addf %902, %905 : vector<8x128xf32>
    %c0_286 = arith.constant 0 : index
    %c0_287 = arith.constant 0 : index
    %907 = vector.load %arg4[%c0_286, %c0_287] : memref<8x128xf32, #tpu.memory_space<vmem>>, vector<8x128xf32>
    %908 = arith.addf %906, %907 : vector<8x128xf32>
    %c0_288 = arith.constant 0 : index
    %c0_289 = arith.constant 0 : index
    %c0_290 = arith.constant 0 : index
    %909 = vector.load %arg6[%c0_288, %c0_289, %c0_290] : memref<7x8x384xf32, #tpu.memory_space<vmem>>, vector<1x8x384xf32>
    %910 = vector.shape_cast %909 : vector<1x8x384xf32> to vector<8x384xf32>
    %911 = arith.truncf %908 : vector<8x128xf32> to vector<8x128xbf16>
    %c0_291 = arith.constant 0 : index
    %c0_292 = arith.constant 0 : index
    %912 = vector.load %arg9[%c0_291, %c0_292] : memref<128x384xbf16, #tpu.memory_space<vmem>>, vector<128x384xbf16>
    %cst_293 = arith.constant dense<0.000000e+00> : vector<8x384xf32>
    %913 = tpu.matmul %911, %912, %cst_293 {dimension_numbers = #tpu.dot_dimension_numbers<[1], [0], [0], [1], [0, 0, 1, 1], [], []>} : vector<8x128xbf16>, vector<128x384xbf16>, vector<8x384xf32> -> vector<8x384xf32>
    %914 = arith.addf %913, %1 : vector<8x384xf32>
    %915 = vector.extract_strided_slice %910 {offsets = [0, 0], sizes = [8, 128], strides = [1, 1]} : vector<8x384xf32> to vector<8x128xf32>
    %916 = vector.extract_strided_slice %914 {offsets = [0, 0], sizes = [8, 128], strides = [1, 1]} : vector<8x384xf32> to vector<8x128xf32>
    %917 = arith.addf %915, %916 : vector<8x128xf32>
    %918 = arith.negf %917 : vector<8x128xf32>
    %919 = math.exp %918 : vector<8x128xf32>
    %cst_294 = arith.constant 1.000000e+00 : f32
    %920 = vector.broadcast %cst_294 : f32 to vector<8x128xf32>
    %921 = arith.addf %920, %919 : vector<8x128xf32>
    %922 = arith.divf %920, %921 : vector<8x128xf32>
    %923 = vector.extract_strided_slice %910 {offsets = [0, 128], sizes = [8, 128], strides = [1, 1]} : vector<8x384xf32> to vector<8x128xf32>
    %924 = vector.extract_strided_slice %914 {offsets = [0, 128], sizes = [8, 128], strides = [1, 1]} : vector<8x384xf32> to vector<8x128xf32>
    %925 = arith.addf %923, %924 : vector<8x128xf32>
    %926 = arith.negf %925 : vector<8x128xf32>
    %927 = math.exp %926 : vector<8x128xf32>
    %cst_295 = arith.constant 1.000000e+00 : f32
    %928 = vector.broadcast %cst_295 : f32 to vector<8x128xf32>
    %929 = arith.addf %928, %927 : vector<8x128xf32>
    %930 = arith.divf %928, %929 : vector<8x128xf32>
    %931 = vector.extract_strided_slice %910 {offsets = [0, 256], sizes = [8, 128], strides = [1, 1]} : vector<8x384xf32> to vector<8x128xf32>
    %932 = vector.extract_strided_slice %914 {offsets = [0, 256], sizes = [8, 128], strides = [1, 1]} : vector<8x384xf32> to vector<8x128xf32>
    %933 = arith.mulf %922, %932 : vector<8x128xf32>
    %934 = arith.addf %931, %933 : vector<8x128xf32>
    %935 = math.tanh %934 : vector<8x128xf32>
    %cst_296 = arith.constant 1.000000e+00 : f32
    %936 = vector.broadcast %cst_296 : f32 to vector<8x128xf32>
    %937 = arith.subf %936, %930 : vector<8x128xf32>
    %938 = arith.mulf %937, %935 : vector<8x128xf32>
    %939 = arith.mulf %930, %908 : vector<8x128xf32>
    %940 = arith.addf %938, %939 : vector<8x128xf32>
    %c0_297 = arith.constant 0 : index
    %c0_298 = arith.constant 0 : index
    %c0_299 = arith.constant 0 : index
    %941 = vector.load %arg17[%c0_297, %c0_298, %c0_299] : memref<7x8x128xf32, #tpu.memory_space<vmem>>, vector<1x8x128xf32>
    %942 = vector.shape_cast %941 : vector<1x8x128xf32> to vector<8x128xf32>
    %943 = vector.shape_cast %940 : vector<8x128xf32> to vector<1x8x128xf32>
    tpu.vector_store %arg17[%c0_297, %c0_298, %c0_299], %943 {strides = array<i32>} : memref<7x8x128xf32, #tpu.memory_space<vmem>>, vector<1x8x128xf32>,
    %944 = arith.truncf %940 : vector<8x128xf32> to vector<8x128xbf16>
    %c0_300 = arith.constant 0 : index
    %c0_301 = arith.constant 0 : index
    %945 = vector.load %arg13[%c0_300, %c0_301] : memref<128x128xbf16, #tpu.memory_space<vmem>>, vector<128x128xbf16>
    %cst_302 = arith.constant dense<0.000000e+00> : vector<8x128xf32>
    %946 = tpu.matmul %944, %945, %cst_302 {dimension_numbers = #tpu.dot_dimension_numbers<[1], [0], [0], [1], [0, 0, 1, 1], [], []>} : vector<8x128xbf16>, vector<128x128xbf16>, vector<8x128xf32> -> vector<8x128xf32>
    %947 = arith.addf %946, %2 : vector<8x128xf32>
    %c0_303 = arith.constant 0 : index
    %c0_304 = arith.constant 0 : index
    %c0_305 = arith.constant 0 : index
    %948 = vector.load %arg18[%c0_303, %c0_304, %c0_305] : memref<7x8x128xf32, #tpu.memory_space<vmem>>, vector<1x8x128xf32>
    %949 = vector.shape_cast %948 : vector<1x8x128xf32> to vector<8x128xf32>
    %950 = vector.shape_cast %947 : vector<8x128xf32> to vector<1x8x128xf32>
    tpu.vector_store %arg18[%c0_303, %c0_304, %c0_305], %950 {strides = array<i32>} : memref<7x8x128xf32, #tpu.memory_space<vmem>>, vector<1x8x128xf32>,
    %c1_306 = arith.constant 1 : index
    %c0_307 = arith.constant 0 : index
    %c0_308 = arith.constant 0 : index
    %951 = vector.load %arg6[%c1_306, %c0_307, %c0_308] : memref<7x8x384xf32, #tpu.memory_space<vmem>>, vector<1x8x384xf32>
    %952 = vector.shape_cast %951 : vector<1x8x384xf32> to vector<8x384xf32>
    %953 = arith.truncf %940 : vector<8x128xf32> to vector<8x128xbf16>
    %c0_309 = arith.constant 0 : index
    %c0_310 = arith.constant 0 : index
    %954 = vector.load %arg9[%c0_309, %c0_310] : memref<128x384xbf16, #tpu.memory_space<vmem>>, vector<128x384xbf16>
    %cst_311 = arith.constant dense<0.000000e+00> : vector<8x384xf32>
    %955 = tpu.matmul %953, %954, %cst_311 {dimension_numbers = #tpu.dot_dimension_numbers<[1], [0], [0], [1], [0, 0, 1, 1], [], []>} : vector<8x128xbf16>, vector<128x384xbf16>, vector<8x384xf32> -> vector<8x384xf32>
    %956 = arith.addf %955, %1 : vector<8x384xf32>
    %957 = vector.extract_strided_slice %952 {offsets = [0, 0], sizes = [8, 128], strides = [1, 1]} : vector<8x384xf32> to vector<8x128xf32>
    %958 = vector.extract_strided_slice %956 {offsets = [0, 0], sizes = [8, 128], strides = [1, 1]} : vector<8x384xf32> to vector<8x128xf32>
    %959 = arith.addf %957, %958 : vector<8x128xf32>
    %960 = arith.negf %959 : vector<8x128xf32>
    %961 = math.exp %960 : vector<8x128xf32>
    %cst_312 = arith.constant 1.000000e+00 : f32
    %962 = vector.broadcast %cst_312 : f32 to vector<8x128xf32>
    %963 = arith.addf %962, %961 : vector<8x128xf32>
    %964 = arith.divf %962, %963 : vector<8x128xf32>
    %965 = vector.extract_strided_slice %952 {offsets = [0, 128], sizes = [8, 128], strides = [1, 1]} : vector<8x384xf32> to vector<8x128xf32>
    %966 = vector.extract_strided_slice %956 {offsets = [0, 128], sizes = [8, 128], strides = [1, 1]} : vector<8x384xf32> to vector<8x128xf32>
    %967 = arith.addf %965, %966 : vector<8x128xf32>
    %968 = arith.negf %967 : vector<8x128xf32>
    %969 = math.exp %968 : vector<8x128xf32>
    %cst_313 = arith.constant 1.000000e+00 : f32
    %970 = vector.broadcast %cst_313 : f32 to vector<8x128xf32>
    %971 = arith.addf %970, %969 : vector<8x128xf32>
    %972 = arith.divf %970, %971 : vector<8x128xf32>
    %973 = vector.extract_strided_slice %952 {offsets = [0, 256], sizes = [8, 128], strides = [1, 1]} : vector<8x384xf32> to vector<8x128xf32>
    %974 = vector.extract_strided_slice %956 {offsets = [0, 256], sizes = [8, 128], strides = [1, 1]} : vector<8x384xf32> to vector<8x128xf32>
    %975 = arith.mulf %964, %974 : vector<8x128xf32>
    %976 = arith.addf %973, %975 : vector<8x128xf32>
    %977 = math.tanh %976 : vector<8x128xf32>
    %cst_314 = arith.constant 1.000000e+00 : f32
    %978 = vector.broadcast %cst_314 : f32 to vector<8x128xf32>
    %979 = arith.subf %978, %972 : vector<8x128xf32>
    %980 = arith.mulf %979, %977 : vector<8x128xf32>
    %981 = arith.mulf %972, %940 : vector<8x128xf32>
    %982 = arith.addf %980, %981 : vector<8x128xf32>
    %c1_315 = arith.constant 1 : index
    %c0_316 = arith.constant 0 : index
    %c0_317 = arith.constant 0 : index
    %983 = vector.load %arg17[%c1_315, %c0_316, %c0_317] : memref<7x8x128xf32, #tpu.memory_space<vmem>>, vector<1x8x128xf32>
    %984 = vector.shape_cast %983 : vector<1x8x128xf32> to vector<8x128xf32>
    %985 = vector.shape_cast %982 : vector<8x128xf32> to vector<1x8x128xf32>
    tpu.vector_store %arg17[%c1_315, %c0_316, %c0_317], %985 {strides = array<i32>} : memref<7x8x128xf32, #tpu.memory_space<vmem>>, vector<1x8x128xf32>,
    %986 = arith.truncf %982 : vector<8x128xf32> to vector<8x128xbf16>
    %c0_318 = arith.constant 0 : index
    %c0_319 = arith.constant 0 : index
    %987 = vector.load %arg13[%c0_318, %c0_319] : memref<128x128xbf16, #tpu.memory_space<vmem>>, vector<128x128xbf16>
    %cst_320 = arith.constant dense<0.000000e+00> : vector<8x128xf32>
    %988 = tpu.matmul %986, %987, %cst_320 {dimension_numbers = #tpu.dot_dimension_numbers<[1], [0], [0], [1], [0, 0, 1, 1], [], []>} : vector<8x128xbf16>, vector<128x128xbf16>, vector<8x128xf32> -> vector<8x128xf32>
    %989 = arith.addf %988, %2 : vector<8x128xf32>
    %c1_321 = arith.constant 1 : index
    %c0_322 = arith.constant 0 : index
    %c0_323 = arith.constant 0 : index
    %990 = vector.load %arg18[%c1_321, %c0_322, %c0_323] : memref<7x8x128xf32, #tpu.memory_space<vmem>>, vector<1x8x128xf32>
    %991 = vector.shape_cast %990 : vector<1x8x128xf32> to vector<8x128xf32>
    %992 = vector.shape_cast %989 : vector<8x128xf32> to vector<1x8x128xf32>
    tpu.vector_store %arg18[%c1_321, %c0_322, %c0_323], %992 {strides = array<i32>} : memref<7x8x128xf32, #tpu.memory_space<vmem>>, vector<1x8x128xf32>,
    %c2_324 = arith.constant 2 : index
    %c0_325 = arith.constant 0 : index
    %c0_326 = arith.constant 0 : index
    %993 = vector.load %arg6[%c2_324, %c0_325, %c0_326] : memref<7x8x384xf32, #tpu.memory_space<vmem>>, vector<1x8x384xf32>
    %994 = vector.shape_cast %993 : vector<1x8x384xf32> to vector<8x384xf32>
    %995 = arith.truncf %982 : vector<8x128xf32> to vector<8x128xbf16>
    %c0_327 = arith.constant 0 : index
    %c0_328 = arith.constant 0 : index
    %996 = vector.load %arg9[%c0_327, %c0_328] : memref<128x384xbf16, #tpu.memory_space<vmem>>, vector<128x384xbf16>
    %cst_329 = arith.constant dense<0.000000e+00> : vector<8x384xf32>
    %997 = tpu.matmul %995, %996, %cst_329 {dimension_numbers = #tpu.dot_dimension_numbers<[1], [0], [0], [1], [0, 0, 1, 1], [], []>} : vector<8x128xbf16>, vector<128x384xbf16>, vector<8x384xf32> -> vector<8x384xf32>
    %998 = arith.addf %997, %1 : vector<8x384xf32>
    %999 = vector.extract_strided_slice %994 {offsets = [0, 0], sizes = [8, 128], strides = [1, 1]} : vector<8x384xf32> to vector<8x128xf32>
    %1000 = vector.extract_strided_slice %998 {offsets = [0, 0], sizes = [8, 128], strides = [1, 1]} : vector<8x384xf32> to vector<8x128xf32>
    %1001 = arith.addf %999, %1000 : vector<8x128xf32>
    %1002 = arith.negf %1001 : vector<8x128xf32>
    %1003 = math.exp %1002 : vector<8x128xf32>
    %cst_330 = arith.constant 1.000000e+00 : f32
    %1004 = vector.broadcast %cst_330 : f32 to vector<8x128xf32>
    %1005 = arith.addf %1004, %1003 : vector<8x128xf32>
    %1006 = arith.divf %1004, %1005 : vector<8x128xf32>
    %1007 = vector.extract_strided_slice %994 {offsets = [0, 128], sizes = [8, 128], strides = [1, 1]} : vector<8x384xf32> to vector<8x128xf32>
    %1008 = vector.extract_strided_slice %998 {offsets = [0, 128], sizes = [8, 128], strides = [1, 1]} : vector<8x384xf32> to vector<8x128xf32>
    %1009 = arith.addf %1007, %1008 : vector<8x128xf32>
    %1010 = arith.negf %1009 : vector<8x128xf32>
    %1011 = math.exp %1010 : vector<8x128xf32>
    %cst_331 = arith.constant 1.000000e+00 : f32
    %1012 = vector.broadcast %cst_331 : f32 to vector<8x128xf32>
    %1013 = arith.addf %1012, %1011 : vector<8x128xf32>
    %1014 = arith.divf %1012, %1013 : vector<8x128xf32>
    %1015 = vector.extract_strided_slice %994 {offsets = [0, 256], sizes = [8, 128], strides = [1, 1]} : vector<8x384xf32> to vector<8x128xf32>
    %1016 = vector.extract_strided_slice %998 {offsets = [0, 256], sizes = [8, 128], strides = [1, 1]} : vector<8x384xf32> to vector<8x128xf32>
    %1017 = arith.mulf %1006, %1016 : vector<8x128xf32>
    %1018 = arith.addf %1015, %1017 : vector<8x128xf32>
    %1019 = math.tanh %1018 : vector<8x128xf32>
    %cst_332 = arith.constant 1.000000e+00 : f32
    %1020 = vector.broadcast %cst_332 : f32 to vector<8x128xf32>
    %1021 = arith.subf %1020, %1014 : vector<8x128xf32>
    %1022 = arith.mulf %1021, %1019 : vector<8x128xf32>
    %1023 = arith.mulf %1014, %982 : vector<8x128xf32>
    %1024 = arith.addf %1022, %1023 : vector<8x128xf32>
    %c2_333 = arith.constant 2 : index
    %c0_334 = arith.constant 0 : index
    %c0_335 = arith.constant 0 : index
    %1025 = vector.load %arg17[%c2_333, %c0_334, %c0_335] : memref<7x8x128xf32, #tpu.memory_space<vmem>>, vector<1x8x128xf32>
    %1026 = vector.shape_cast %1025 : vector<1x8x128xf32> to vector<8x128xf32>
    %1027 = vector.shape_cast %1024 : vector<8x128xf32> to vector<1x8x128xf32>
    tpu.vector_store %arg17[%c2_333, %c0_334, %c0_335], %1027 {strides = array<i32>} : memref<7x8x128xf32, #tpu.memory_space<vmem>>, vector<1x8x128xf32>,
    %1028 = arith.truncf %1024 : vector<8x128xf32> to vector<8x128xbf16>
    %c0_336 = arith.constant 0 : index
    %c0_337 = arith.constant 0 : index
    %1029 = vector.load %arg13[%c0_336, %c0_337] : memref<128x128xbf16, #tpu.memory_space<vmem>>, vector<128x128xbf16>
    %cst_338 = arith.constant dense<0.000000e+00> : vector<8x128xf32>
    %1030 = tpu.matmul %1028, %1029, %cst_338 {dimension_numbers = #tpu.dot_dimension_numbers<[1], [0], [0], [1], [0, 0, 1, 1], [], []>} : vector<8x128xbf16>, vector<128x128xbf16>, vector<8x128xf32> -> vector<8x128xf32>
    %1031 = arith.addf %1030, %2 : vector<8x128xf32>
    %c2_339 = arith.constant 2 : index
    %c0_340 = arith.constant 0 : index
    %c0_341 = arith.constant 0 : index
    %1032 = vector.load %arg18[%c2_339, %c0_340, %c0_341] : memref<7x8x128xf32, #tpu.memory_space<vmem>>, vector<1x8x128xf32>
    %1033 = vector.shape_cast %1032 : vector<1x8x128xf32> to vector<8x128xf32>
    %1034 = vector.shape_cast %1031 : vector<8x128xf32> to vector<1x8x128xf32>
    tpu.vector_store %arg18[%c2_339, %c0_340, %c0_341], %1034 {strides = array<i32>} : memref<7x8x128xf32, #tpu.memory_space<vmem>>, vector<1x8x128xf32>,
    %c3_342 = arith.constant 3 : index
    %c0_343 = arith.constant 0 : index
    %c0_344 = arith.constant 0 : index
    %1035 = vector.load %arg6[%c3_342, %c0_343, %c0_344] : memref<7x8x384xf32, #tpu.memory_space<vmem>>, vector<1x8x384xf32>
    %1036 = vector.shape_cast %1035 : vector<1x8x384xf32> to vector<8x384xf32>
    %1037 = arith.truncf %1024 : vector<8x128xf32> to vector<8x128xbf16>
    %c0_345 = arith.constant 0 : index
    %c0_346 = arith.constant 0 : index
    %1038 = vector.load %arg9[%c0_345, %c0_346] : memref<128x384xbf16, #tpu.memory_space<vmem>>, vector<128x384xbf16>
    %cst_347 = arith.constant dense<0.000000e+00> : vector<8x384xf32>
    %1039 = tpu.matmul %1037, %1038, %cst_347 {dimension_numbers = #tpu.dot_dimension_numbers<[1], [0], [0], [1], [0, 0, 1, 1], [], []>} : vector<8x128xbf16>, vector<128x384xbf16>, vector<8x384xf32> -> vector<8x384xf32>
    %1040 = arith.addf %1039, %1 : vector<8x384xf32>
    %1041 = vector.extract_strided_slice %1036 {offsets = [0, 0], sizes = [8, 128], strides = [1, 1]} : vector<8x384xf32> to vector<8x128xf32>
    %1042 = vector.extract_strided_slice %1040 {offsets = [0, 0], sizes = [8, 128], strides = [1, 1]} : vector<8x384xf32> to vector<8x128xf32>
    %1043 = arith.addf %1041, %1042 : vector<8x128xf32>
    %1044 = arith.negf %1043 : vector<8x128xf32>
    %1045 = math.exp %1044 : vector<8x128xf32>
    %cst_348 = arith.constant 1.000000e+00 : f32
    %1046 = vector.broadcast %cst_348 : f32 to vector<8x128xf32>
    %1047 = arith.addf %1046, %1045 : vector<8x128xf32>
    %1048 = arith.divf %1046, %1047 : vector<8x128xf32>
    %1049 = vector.extract_strided_slice %1036 {offsets = [0, 128], sizes = [8, 128], strides = [1, 1]} : vector<8x384xf32> to vector<8x128xf32>
    %1050 = vector.extract_strided_slice %1040 {offsets = [0, 128], sizes = [8, 128], strides = [1, 1]} : vector<8x384xf32> to vector<8x128xf32>
    %1051 = arith.addf %1049, %1050 : vector<8x128xf32>
    %1052 = arith.negf %1051 : vector<8x128xf32>
    %1053 = math.exp %1052 : vector<8x128xf32>
    %cst_349 = arith.constant 1.000000e+00 : f32
    %1054 = vector.broadcast %cst_349 : f32 to vector<8x128xf32>
    %1055 = arith.addf %1054, %1053 : vector<8x128xf32>
    %1056 = arith.divf %1054, %1055 : vector<8x128xf32>
    %1057 = vector.extract_strided_slice %1036 {offsets = [0, 256], sizes = [8, 128], strides = [1, 1]} : vector<8x384xf32> to vector<8x128xf32>
    %1058 = vector.extract_strided_slice %1040 {offsets = [0, 256], sizes = [8, 128], strides = [1, 1]} : vector<8x384xf32> to vector<8x128xf32>
    %1059 = arith.mulf %1048, %1058 : vector<8x128xf32>
    %1060 = arith.addf %1057, %1059 : vector<8x128xf32>
    %1061 = math.tanh %1060 : vector<8x128xf32>
    %cst_350 = arith.constant 1.000000e+00 : f32
    %1062 = vector.broadcast %cst_350 : f32 to vector<8x128xf32>
    %1063 = arith.subf %1062, %1056 : vector<8x128xf32>
    %1064 = arith.mulf %1063, %1061 : vector<8x128xf32>
    %1065 = arith.mulf %1056, %1024 : vector<8x128xf32>
    %1066 = arith.addf %1064, %1065 : vector<8x128xf32>
    %c3_351 = arith.constant 3 : index
    %c0_352 = arith.constant 0 : index
    %c0_353 = arith.constant 0 : index
    %1067 = vector.load %arg17[%c3_351, %c0_352, %c0_353] : memref<7x8x128xf32, #tpu.memory_space<vmem>>, vector<1x8x128xf32>
    %1068 = vector.shape_cast %1067 : vector<1x8x128xf32> to vector<8x128xf32>
    %1069 = vector.shape_cast %1066 : vector<8x128xf32> to vector<1x8x128xf32>
    tpu.vector_store %arg17[%c3_351, %c0_352, %c0_353], %1069 {strides = array<i32>} : memref<7x8x128xf32, #tpu.memory_space<vmem>>, vector<1x8x128xf32>,
    %1070 = arith.truncf %1066 : vector<8x128xf32> to vector<8x128xbf16>
    %c0_354 = arith.constant 0 : index
    %c0_355 = arith.constant 0 : index
    %1071 = vector.load %arg13[%c0_354, %c0_355] : memref<128x128xbf16, #tpu.memory_space<vmem>>, vector<128x128xbf16>
    %cst_356 = arith.constant dense<0.000000e+00> : vector<8x128xf32>
    %1072 = tpu.matmul %1070, %1071, %cst_356 {dimension_numbers = #tpu.dot_dimension_numbers<[1], [0], [0], [1], [0, 0, 1, 1], [], []>} : vector<8x128xbf16>, vector<128x128xbf16>, vector<8x128xf32> -> vector<8x128xf32>
    %1073 = arith.addf %1072, %2 : vector<8x128xf32>
    %c3_357 = arith.constant 3 : index
    %c0_358 = arith.constant 0 : index
    %c0_359 = arith.constant 0 : index
    %1074 = vector.load %arg18[%c3_357, %c0_358, %c0_359] : memref<7x8x128xf32, #tpu.memory_space<vmem>>, vector<1x8x128xf32>
    %1075 = vector.shape_cast %1074 : vector<1x8x128xf32> to vector<8x128xf32>
    %1076 = vector.shape_cast %1073 : vector<8x128xf32> to vector<1x8x128xf32>
    tpu.vector_store %arg18[%c3_357, %c0_358, %c0_359], %1076 {strides = array<i32>} : memref<7x8x128xf32, #tpu.memory_space<vmem>>, vector<1x8x128xf32>,
    %c4_360 = arith.constant 4 : index
    %c0_361 = arith.constant 0 : index
    %c0_362 = arith.constant 0 : index
    %1077 = vector.load %arg6[%c4_360, %c0_361, %c0_362] : memref<7x8x384xf32, #tpu.memory_space<vmem>>, vector<1x8x384xf32>
    %1078 = vector.shape_cast %1077 : vector<1x8x384xf32> to vector<8x384xf32>
    %1079 = arith.truncf %1066 : vector<8x128xf32> to vector<8x128xbf16>
    %c0_363 = arith.constant 0 : index
    %c0_364 = arith.constant 0 : index
    %1080 = vector.load %arg9[%c0_363, %c0_364] : memref<128x384xbf16, #tpu.memory_space<vmem>>, vector<128x384xbf16>
    %cst_365 = arith.constant dense<0.000000e+00> : vector<8x384xf32>
    %1081 = tpu.matmul %1079, %1080, %cst_365 {dimension_numbers = #tpu.dot_dimension_numbers<[1], [0], [0], [1], [0, 0, 1, 1], [], []>} : vector<8x128xbf16>, vector<128x384xbf16>, vector<8x384xf32> -> vector<8x384xf32>
    %1082 = arith.addf %1081, %1 : vector<8x384xf32>
    %1083 = vector.extract_strided_slice %1078 {offsets = [0, 0], sizes = [8, 128], strides = [1, 1]} : vector<8x384xf32> to vector<8x128xf32>
    %1084 = vector.extract_strided_slice %1082 {offsets = [0, 0], sizes = [8, 128], strides = [1, 1]} : vector<8x384xf32> to vector<8x128xf32>
    %1085 = arith.addf %1083, %1084 : vector<8x128xf32>
    %1086 = arith.negf %1085 : vector<8x128xf32>
    %1087 = math.exp %1086 : vector<8x128xf32>
    %cst_366 = arith.constant 1.000000e+00 : f32
    %1088 = vector.broadcast %cst_366 : f32 to vector<8x128xf32>
    %1089 = arith.addf %1088, %1087 : vector<8x128xf32>
    %1090 = arith.divf %1088, %1089 : vector<8x128xf32>
    %1091 = vector.extract_strided_slice %1078 {offsets = [0, 128], sizes = [8, 128], strides = [1, 1]} : vector<8x384xf32> to vector<8x128xf32>
    %1092 = vector.extract_strided_slice %1082 {offsets = [0, 128], sizes = [8, 128], strides = [1, 1]} : vector<8x384xf32> to vector<8x128xf32>
    %1093 = arith.addf %1091, %1092 : vector<8x128xf32>
    %1094 = arith.negf %1093 : vector<8x128xf32>
    %1095 = math.exp %1094 : vector<8x128xf32>
    %cst_367 = arith.constant 1.000000e+00 : f32
    %1096 = vector.broadcast %cst_367 : f32 to vector<8x128xf32>
    %1097 = arith.addf %1096, %1095 : vector<8x128xf32>
    %1098 = arith.divf %1096, %1097 : vector<8x128xf32>
    %1099 = vector.extract_strided_slice %1078 {offsets = [0, 256], sizes = [8, 128], strides = [1, 1]} : vector<8x384xf32> to vector<8x128xf32>
    %1100 = vector.extract_strided_slice %1082 {offsets = [0, 256], sizes = [8, 128], strides = [1, 1]} : vector<8x384xf32> to vector<8x128xf32>
    %1101 = arith.mulf %1090, %1100 : vector<8x128xf32>
    %1102 = arith.addf %1099, %1101 : vector<8x128xf32>
    %1103 = math.tanh %1102 : vector<8x128xf32>
    %cst_368 = arith.constant 1.000000e+00 : f32
    %1104 = vector.broadcast %cst_368 : f32 to vector<8x128xf32>
    %1105 = arith.subf %1104, %1098 : vector<8x128xf32>
    %1106 = arith.mulf %1105, %1103 : vector<8x128xf32>
    %1107 = arith.mulf %1098, %1066 : vector<8x128xf32>
    %1108 = arith.addf %1106, %1107 : vector<8x128xf32>
    %c4_369 = arith.constant 4 : index
    %c0_370 = arith.constant 0 : index
    %c0_371 = arith.constant 0 : index
    %1109 = vector.load %arg17[%c4_369, %c0_370, %c0_371] : memref<7x8x128xf32, #tpu.memory_space<vmem>>, vector<1x8x128xf32>
    %1110 = vector.shape_cast %1109 : vector<1x8x128xf32> to vector<8x128xf32>
    %1111 = vector.shape_cast %1108 : vector<8x128xf32> to vector<1x8x128xf32>
    tpu.vector_store %arg17[%c4_369, %c0_370, %c0_371], %1111 {strides = array<i32>} : memref<7x8x128xf32, #tpu.memory_space<vmem>>, vector<1x8x128xf32>,
    %1112 = arith.truncf %1108 : vector<8x128xf32> to vector<8x128xbf16>
    %c0_372 = arith.constant 0 : index
    %c0_373 = arith.constant 0 : index
    %1113 = vector.load %arg13[%c0_372, %c0_373] : memref<128x128xbf16, #tpu.memory_space<vmem>>, vector<128x128xbf16>
    %cst_374 = arith.constant dense<0.000000e+00> : vector<8x128xf32>
    %1114 = tpu.matmul %1112, %1113, %cst_374 {dimension_numbers = #tpu.dot_dimension_numbers<[1], [0], [0], [1], [0, 0, 1, 1], [], []>} : vector<8x128xbf16>, vector<128x128xbf16>, vector<8x128xf32> -> vector<8x128xf32>
    %1115 = arith.addf %1114, %2 : vector<8x128xf32>
    %c4_375 = arith.constant 4 : index
    %c0_376 = arith.constant 0 : index
    %c0_377 = arith.constant 0 : index
    %1116 = vector.load %arg18[%c4_375, %c0_376, %c0_377] : memref<7x8x128xf32, #tpu.memory_space<vmem>>, vector<1x8x128xf32>
    %1117 = vector.shape_cast %1116 : vector<1x8x128xf32> to vector<8x128xf32>
    %1118 = vector.shape_cast %1115 : vector<8x128xf32> to vector<1x8x128xf32>
    tpu.vector_store %arg18[%c4_375, %c0_376, %c0_377], %1118 {strides = array<i32>} : memref<7x8x128xf32, #tpu.memory_space<vmem>>, vector<1x8x128xf32>,
    %c5_378 = arith.constant 5 : index
    %c0_379 = arith.constant 0 : index
    %c0_380 = arith.constant 0 : index
    %1119 = vector.load %arg6[%c5_378, %c0_379, %c0_380] : memref<7x8x384xf32, #tpu.memory_space<vmem>>, vector<1x8x384xf32>
    %1120 = vector.shape_cast %1119 : vector<1x8x384xf32> to vector<8x384xf32>
    %1121 = arith.truncf %1108 : vector<8x128xf32> to vector<8x128xbf16>
    %c0_381 = arith.constant 0 : index
    %c0_382 = arith.constant 0 : index
    %1122 = vector.load %arg9[%c0_381, %c0_382] : memref<128x384xbf16, #tpu.memory_space<vmem>>, vector<128x384xbf16>
    %cst_383 = arith.constant dense<0.000000e+00> : vector<8x384xf32>
    %1123 = tpu.matmul %1121, %1122, %cst_383 {dimension_numbers = #tpu.dot_dimension_numbers<[1], [0], [0], [1], [0, 0, 1, 1], [], []>} : vector<8x128xbf16>, vector<128x384xbf16>, vector<8x384xf32> -> vector<8x384xf32>
    %1124 = arith.addf %1123, %1 : vector<8x384xf32>
    %1125 = vector.extract_strided_slice %1120 {offsets = [0, 0], sizes = [8, 128], strides = [1, 1]} : vector<8x384xf32> to vector<8x128xf32>
    %1126 = vector.extract_strided_slice %1124 {offsets = [0, 0], sizes = [8, 128], strides = [1, 1]} : vector<8x384xf32> to vector<8x128xf32>
    %1127 = arith.addf %1125, %1126 : vector<8x128xf32>
    %1128 = arith.negf %1127 : vector<8x128xf32>
    %1129 = math.exp %1128 : vector<8x128xf32>
    %cst_384 = arith.constant 1.000000e+00 : f32
    %1130 = vector.broadcast %cst_384 : f32 to vector<8x128xf32>
    %1131 = arith.addf %1130, %1129 : vector<8x128xf32>
    %1132 = arith.divf %1130, %1131 : vector<8x128xf32>
    %1133 = vector.extract_strided_slice %1120 {offsets = [0, 128], sizes = [8, 128], strides = [1, 1]} : vector<8x384xf32> to vector<8x128xf32>
    %1134 = vector.extract_strided_slice %1124 {offsets = [0, 128], sizes = [8, 128], strides = [1, 1]} : vector<8x384xf32> to vector<8x128xf32>
    %1135 = arith.addf %1133, %1134 : vector<8x128xf32>
    %1136 = arith.negf %1135 : vector<8x128xf32>
    %1137 = math.exp %1136 : vector<8x128xf32>
    %cst_385 = arith.constant 1.000000e+00 : f32
    %1138 = vector.broadcast %cst_385 : f32 to vector<8x128xf32>
    %1139 = arith.addf %1138, %1137 : vector<8x128xf32>
    %1140 = arith.divf %1138, %1139 : vector<8x128xf32>
    %1141 = vector.extract_strided_slice %1120 {offsets = [0, 256], sizes = [8, 128], strides = [1, 1]} : vector<8x384xf32> to vector<8x128xf32>
    %1142 = vector.extract_strided_slice %1124 {offsets = [0, 256], sizes = [8, 128], strides = [1, 1]} : vector<8x384xf32> to vector<8x128xf32>
    %1143 = arith.mulf %1132, %1142 : vector<8x128xf32>
    %1144 = arith.addf %1141, %1143 : vector<8x128xf32>
    %1145 = math.tanh %1144 : vector<8x128xf32>
    %cst_386 = arith.constant 1.000000e+00 : f32
    %1146 = vector.broadcast %cst_386 : f32 to vector<8x128xf32>
    %1147 = arith.subf %1146, %1140 : vector<8x128xf32>
    %1148 = arith.mulf %1147, %1145 : vector<8x128xf32>
    %1149 = arith.mulf %1140, %1108 : vector<8x128xf32>
    %1150 = arith.addf %1148, %1149 : vector<8x128xf32>
    %c5_387 = arith.constant 5 : index
    %c0_388 = arith.constant 0 : index
    %c0_389 = arith.constant 0 : index
    %1151 = vector.load %arg17[%c5_387, %c0_388, %c0_389] : memref<7x8x128xf32, #tpu.memory_space<vmem>>, vector<1x8x128xf32>
    %1152 = vector.shape_cast %1151 : vector<1x8x128xf32> to vector<8x128xf32>
    %1153 = vector.shape_cast %1150 : vector<8x128xf32> to vector<1x8x128xf32>
    tpu.vector_store %arg17[%c5_387, %c0_388, %c0_389], %1153 {strides = array<i32>} : memref<7x8x128xf32, #tpu.memory_space<vmem>>, vector<1x8x128xf32>,
    %1154 = arith.truncf %1150 : vector<8x128xf32> to vector<8x128xbf16>
    %c0_390 = arith.constant 0 : index
    %c0_391 = arith.constant 0 : index
    %1155 = vector.load %arg13[%c0_390, %c0_391] : memref<128x128xbf16, #tpu.memory_space<vmem>>, vector<128x128xbf16>
    %cst_392 = arith.constant dense<0.000000e+00> : vector<8x128xf32>
    %1156 = tpu.matmul %1154, %1155, %cst_392 {dimension_numbers = #tpu.dot_dimension_numbers<[1], [0], [0], [1], [0, 0, 1, 1], [], []>} : vector<8x128xbf16>, vector<128x128xbf16>, vector<8x128xf32> -> vector<8x128xf32>
    %1157 = arith.addf %1156, %2 : vector<8x128xf32>
    %c5_393 = arith.constant 5 : index
    %c0_394 = arith.constant 0 : index
    %c0_395 = arith.constant 0 : index
    %1158 = vector.load %arg18[%c5_393, %c0_394, %c0_395] : memref<7x8x128xf32, #tpu.memory_space<vmem>>, vector<1x8x128xf32>
    %1159 = vector.shape_cast %1158 : vector<1x8x128xf32> to vector<8x128xf32>
    %1160 = vector.shape_cast %1157 : vector<8x128xf32> to vector<1x8x128xf32>
    tpu.vector_store %arg18[%c5_393, %c0_394, %c0_395], %1160 {strides = array<i32>} : memref<7x8x128xf32, #tpu.memory_space<vmem>>, vector<1x8x128xf32>,
    %c6_396 = arith.constant 6 : index
    %c0_397 = arith.constant 0 : index
    %c0_398 = arith.constant 0 : index
    %1161 = vector.load %arg6[%c6_396, %c0_397, %c0_398] : memref<7x8x384xf32, #tpu.memory_space<vmem>>, vector<1x8x384xf32>
    %1162 = vector.shape_cast %1161 : vector<1x8x384xf32> to vector<8x384xf32>
    %1163 = arith.truncf %1150 : vector<8x128xf32> to vector<8x128xbf16>
    %c0_399 = arith.constant 0 : index
    %c0_400 = arith.constant 0 : index
    %1164 = vector.load %arg9[%c0_399, %c0_400] : memref<128x384xbf16, #tpu.memory_space<vmem>>, vector<128x384xbf16>
    %cst_401 = arith.constant dense<0.000000e+00> : vector<8x384xf32>
    %1165 = tpu.matmul %1163, %1164, %cst_401 {dimension_numbers = #tpu.dot_dimension_numbers<[1], [0], [0], [1], [0, 0, 1, 1], [], []>} : vector<8x128xbf16>, vector<128x384xbf16>, vector<8x384xf32> -> vector<8x384xf32>
    %1166 = arith.addf %1165, %1 : vector<8x384xf32>
    %1167 = vector.extract_strided_slice %1162 {offsets = [0, 0], sizes = [8, 128], strides = [1, 1]} : vector<8x384xf32> to vector<8x128xf32>
    %1168 = vector.extract_strided_slice %1166 {offsets = [0, 0], sizes = [8, 128], strides = [1, 1]} : vector<8x384xf32> to vector<8x128xf32>
    %1169 = arith.addf %1167, %1168 : vector<8x128xf32>
    %1170 = arith.negf %1169 : vector<8x128xf32>
    %1171 = math.exp %1170 : vector<8x128xf32>
    %cst_402 = arith.constant 1.000000e+00 : f32
    %1172 = vector.broadcast %cst_402 : f32 to vector<8x128xf32>
    %1173 = arith.addf %1172, %1171 : vector<8x128xf32>
    %1174 = arith.divf %1172, %1173 : vector<8x128xf32>
    %1175 = vector.extract_strided_slice %1162 {offsets = [0, 128], sizes = [8, 128], strides = [1, 1]} : vector<8x384xf32> to vector<8x128xf32>
    %1176 = vector.extract_strided_slice %1166 {offsets = [0, 128], sizes = [8, 128], strides = [1, 1]} : vector<8x384xf32> to vector<8x128xf32>
    %1177 = arith.addf %1175, %1176 : vector<8x128xf32>
    %1178 = arith.negf %1177 : vector<8x128xf32>
    %1179 = math.exp %1178 : vector<8x128xf32>
    %cst_403 = arith.constant 1.000000e+00 : f32
    %1180 = vector.broadcast %cst_403 : f32 to vector<8x128xf32>
    %1181 = arith.addf %1180, %1179 : vector<8x128xf32>
    %1182 = arith.divf %1180, %1181 : vector<8x128xf32>
    %1183 = vector.extract_strided_slice %1162 {offsets = [0, 256], sizes = [8, 128], strides = [1, 1]} : vector<8x384xf32> to vector<8x128xf32>
    %1184 = vector.extract_strided_slice %1166 {offsets = [0, 256], sizes = [8, 128], strides = [1, 1]} : vector<8x384xf32> to vector<8x128xf32>
    %1185 = arith.mulf %1174, %1184 : vector<8x128xf32>
    %1186 = arith.addf %1183, %1185 : vector<8x128xf32>
    %1187 = math.tanh %1186 : vector<8x128xf32>
    %cst_404 = arith.constant 1.000000e+00 : f32
    %1188 = vector.broadcast %cst_404 : f32 to vector<8x128xf32>
    %1189 = arith.subf %1188, %1182 : vector<8x128xf32>
    %1190 = arith.mulf %1189, %1187 : vector<8x128xf32>
    %1191 = arith.mulf %1182, %1150 : vector<8x128xf32>
    %1192 = arith.addf %1190, %1191 : vector<8x128xf32>
    %c6_405 = arith.constant 6 : index
    %c0_406 = arith.constant 0 : index
    %c0_407 = arith.constant 0 : index
    %1193 = vector.load %arg17[%c6_405, %c0_406, %c0_407] : memref<7x8x128xf32, #tpu.memory_space<vmem>>, vector<1x8x128xf32>
    %1194 = vector.shape_cast %1193 : vector<1x8x128xf32> to vector<8x128xf32>
    %1195 = vector.shape_cast %1192 : vector<8x128xf32> to vector<1x8x128xf32>
    tpu.vector_store %arg17[%c6_405, %c0_406, %c0_407], %1195 {strides = array<i32>} : memref<7x8x128xf32, #tpu.memory_space<vmem>>, vector<1x8x128xf32>,
    %1196 = arith.truncf %1192 : vector<8x128xf32> to vector<8x128xbf16>
    %c0_408 = arith.constant 0 : index
    %c0_409 = arith.constant 0 : index
    %1197 = vector.load %arg13[%c0_408, %c0_409] : memref<128x128xbf16, #tpu.memory_space<vmem>>, vector<128x128xbf16>
    %cst_410 = arith.constant dense<0.000000e+00> : vector<8x128xf32>
    %1198 = tpu.matmul %1196, %1197, %cst_410 {dimension_numbers = #tpu.dot_dimension_numbers<[1], [0], [0], [1], [0, 0, 1, 1], [], []>} : vector<8x128xbf16>, vector<128x128xbf16>, vector<8x128xf32> -> vector<8x128xf32>
    %1199 = arith.addf %1198, %2 : vector<8x128xf32>
    %c6_411 = arith.constant 6 : index
    %c0_412 = arith.constant 0 : index
    %c0_413 = arith.constant 0 : index
    %1200 = vector.load %arg18[%c6_411, %c0_412, %c0_413] : memref<7x8x128xf32, #tpu.memory_space<vmem>>, vector<1x8x128xf32>
    %1201 = vector.shape_cast %1200 : vector<1x8x128xf32> to vector<8x128xf32>
    %1202 = vector.shape_cast %1199 : vector<8x128xf32> to vector<1x8x128xf32>
    tpu.vector_store %arg18[%c6_411, %c0_412, %c0_413], %1202 {strides = array<i32>} : memref<7x8x128xf32, #tpu.memory_space<vmem>>, vector<1x8x128xf32>,
    return
  }
}

</mosaic_0001>

<llo_original>
// kernel: generator_forward.1
$region0: #{generator_forward.1}
  #allocation0 [shape = 'u32[]', space=smem, size = 0x4, offset = 0x4, fixed_abs, tag = 'smem constant byte address 0x4 - core index']
  #allocation1 [shape = 'u32[144,128]{1,0:T(1,128)}', space=vmem, size = 0x12000, scoped, tag = 'internal scratch']
  %s0 = inlined_call_operand.vmem [shape: f32[8,8,384], index: 0, kind: input, shape index: {}]
  %s1 = inlined_call_operand.vmem [shape: s32[8,128], index: 1, kind: input, shape index: {}]
  %s2 = inlined_call_operand.vmem [shape: f32[8,384], index: 2, kind: input, shape index: {}]
  %s3 = inlined_call_operand.vmem [shape: f32[8,128], index: 3, kind: input, shape index: {}]
  %s4 = inlined_call_operand.vmem [shape: f32[8,128], index: 4, kind: input, shape index: {}]
  %s5 = inlined_call_operand.vmem [shape: f32[8,128], index: 5, kind: input, shape index: {}]
  %s6 = inlined_call_operand.vmem [shape: f32[7,8,384], index: 6, kind: input, shape index: {}]
  %s7 = inlined_call_operand.vmem [shape: bf16[128,384], index: 7, kind: input, shape index: {}]
  %s8 = inlined_call_operand.vmem [shape: f32[8,384], index: 8, kind: input, shape index: {}]
  %s9 = inlined_call_operand.vmem [shape: bf16[128,384], index: 9, kind: input, shape index: {}]
  %s10 = inlined_call_operand.vmem [shape: f32[8,384], index: 10, kind: input, shape index: {}]
  %s11 = inlined_call_operand.vmem [shape: bf16[128,384], index: 11, kind: input, shape index: {}]
  %s12 = inlined_call_operand.vmem [shape: bf16[128,384], index: 12, kind: input, shape index: {}]
  %s13 = inlined_call_operand.vmem [shape: bf16[128,128], index: 13, kind: input, shape index: {}]
  %s14 = inlined_call_operand.vmem [shape: f32[8,128], index: 14, kind: input, shape index: {}]
  %s15 = inlined_call_operand.vmem [shape: f32[6,8,128], index: 15, kind: output, shape index: {0}]
  %s16 = inlined_call_operand.vmem [shape: s32[8,128], index: 16, kind: output, shape index: {1}]
  %s17 = inlined_call_operand.vmem [shape: f32[7,8,128], index: 17, kind: output, shape index: {2}]
  %s18 = inlined_call_operand.vmem [shape: f32[7,8,128], index: 18, kind: output, shape index: {3}]
  %19 = xla_tuple %s15, %s16, %s17, %s18
  %s20 = sld [smem:[#allocation0]]
  $region94: #{generator_forward.1} parent=0
    _
  %s22 = ssub.s32 1, %s20
  %s23 = scalar_select 0, %s22, %s20
  // Predicated region
  $region2: #{generator_forward.1} parent=0 // pred_check
    _
  $region3: #{generator_forward.1} parent=0 // pred_check_branch
    %25 = sbr.rel (0) target = $region5
  $region4: #{generator_forward.1} parent=0 // pred_region
    _
  $region5: #{generator_forward.1} parent=0 // pred_fallthru
    _
  // Predicated region
  $region6: #{generator_forward.1} parent=0 // pred_check
    _
  $region7: #{generator_forward.1} parent=0 // pred_check_branch
    %27 = sbr.rel (0) target = $region9
  $region8: #{generator_forward.1} parent=0 // pred_region
    _
  $region9: #{generator_forward.1} parent=0 // pred_fallthru
    _
  // Predicated region
  $region10: #{generator_forward.1} parent=0 // pred_check
    _
  $region11: #{generator_forward.1} parent=0 // pred_check_branch
    %29 = sbr.rel (0) target = $region13
  $region12: #{generator_forward.1} parent=0 // pred_region
    _
  $region13: #{generator_forward.1} parent=0 // pred_fallthru
    _
  // Predicated region
  $region14: #{generator_forward.1} parent=0 // pred_check
    _
  $region15: #{generator_forward.1} parent=0 // pred_check_branch
    %31 = sbr.rel (0) target = $region17
  $region16: #{generator_forward.1} parent=0 // pred_region
    _
  $region17: #{generator_forward.1} parent=0 // pred_fallthru
    _
  // Predicated region
  $region18: #{generator_forward.1} parent=0 // pred_check
    _
  $region19: #{generator_forward.1} parent=0 // pred_check_branch
    %33 = sbr.rel (0) target = $region21
  $region20: #{generator_forward.1} parent=0 // pred_region
    _
  $region21: #{generator_forward.1} parent=0 // pred_fallthru
    _
  // Predicated region
  $region22: #{generator_forward.1} parent=0 // pred_check
    _
  $region23: #{generator_forward.1} parent=0 // pred_check_branch
    %35 = sbr.rel (0) target = $region25
  $region24: #{generator_forward.1} parent=0 // pred_region
    _
  $region25: #{generator_forward.1} parent=0 // pred_fallthru
    _
  // Predicated region
  $region26: #{generator_forward.1} parent=0 // pred_check
    _
  $region27: #{generator_forward.1} parent=0 // pred_check_branch
    %37 = sbr.rel (0) target = $region29
  $region28: #{generator_forward.1} parent=0 // pred_region
    _
  $region29: #{generator_forward.1} parent=0 // pred_fallthru
    _
  // Predicated region
  $region30: #{generator_forward.1} parent=0 // pred_check
    _
  $region31: #{generator_forward.1} parent=0 // pred_check_branch
    %39 = sbr.rel (0) target = $region33
  $region32: #{generator_forward.1} parent=0 // pred_region
    _
  $region33: #{generator_forward.1} parent=0 // pred_fallthru
    _
  // Predicated region
  $region34: #{generator_forward.1} parent=0 // pred_check
    _
  $region35: #{generator_forward.1} parent=0 // pred_check_branch
    %41 = sbr.rel (0) target = $region37
  $region36: #{generator_forward.1} parent=0 // pred_region
    _
  $region37: #{generator_forward.1} parent=0 // pred_fallthru
    _
  // Predicated region
  $region38: #{generator_forward.1} parent=0 // pred_check
    _
  $region39: #{generator_forward.1} parent=0 // pred_check_branch
    %43 = sbr.rel (0) target = $region41
  $region40: #{generator_forward.1} parent=0 // pred_region
    _
  $region41: #{generator_forward.1} parent=0 // pred_fallthru
    _
  // Predicated region
  $region42: #{generator_forward.1} parent=0 // pred_check
    _
  $region43: #{generator_forward.1} parent=0 // pred_check_branch
    %45 = sbr.rel (0) target = $region45
  $region44: #{generator_forward.1} parent=0 // pred_region
    _
  $region45: #{generator_forward.1} parent=0 // pred_fallthru
    _
  // Predicated region
  $region46: #{generator_forward.1} parent=0 // pred_check
    _
  $region47: #{generator_forward.1} parent=0 // pred_check_branch
    %47 = sbr.rel (0) target = $region49
  $region48: #{generator_forward.1} parent=0 // pred_region
    _
  $region49: #{generator_forward.1} parent=0 // pred_fallthru
    _
  // Predicated region
  $region50: #{generator_forward.1} parent=0 // pred_check
    _
  $region51: #{generator_forward.1} parent=0 // pred_check_branch
    %49 = sbr.rel (0) target = $region53
  $region52: #{generator_forward.1} parent=0 // pred_region
    _
  $region53: #{generator_forward.1} parent=0 // pred_fallthru
    _
  // Predicated region
  $region54: #{generator_forward.1} parent=0 // pred_check
    _
  $region55: #{generator_forward.1} parent=0 // pred_check_branch
    %51 = sbr.rel (0) target = $region57
  $region56: #{generator_forward.1} parent=0 // pred_region
    _
  $region57: #{generator_forward.1} parent=0 // pred_fallthru
    _
  // Predicated region
  $region58: #{generator_forward.1} parent=0 // pred_check
    _
  $region59: #{generator_forward.1} parent=0 // pred_check_branch
    %53 = sbr.rel (0) target = $region61
  $region60: #{generator_forward.1} parent=0 // pred_region
    _
  $region61: #{generator_forward.1} parent=0 // pred_fallthru
    _
  %v55 = vld [vmem:[%s8] sm:$0xff]
  %v56 = vld [vmem:[%s8 + $0x8] sm:$0xff]
  %v57 = vld [vmem:[%s8 + $0x10] sm:$0xff]
  %v58 = vld [vmem:[%s10] sm:$0xff]
  %v59 = vld [vmem:[%s10 + $0x8] sm:$0xff]
  %v60 = vld [vmem:[%s10 + $0x10] sm:$0xff]
  %v61 = vld [vmem:[%s14] sm:$0xff]
  %v62 = vld [vmem:[%s1] sm:$0xff]
  %v63 = vlaneseq
  %v64 = vand.u32 %v63, 127
  %v65 = vld [vmem:[%s0] sm:$0xff]
  %v66 = vld [vmem:[%s0 + $0x8] sm:$0xff]
  %v67 = vld [vmem:[%s0 + $0x10] sm:$0xff]
  %v68 = vld [vmem:[%s7] sm:$0xff]
  %v69 = vld [vmem:[%s7 + $0x8] sm:$0xf]
  %v70 = vld [vmem:[%s7 + $0xc] sm:$0xff]
  %v71 = vld [vmem:[%s7 + $0x14] sm:$0xf]
  %v72 = vld [vmem:[%s7 + $0x18] sm:$0xff]
  %v73 = vld [vmem:[%s7 + $0x20] sm:$0xf]
  %v74 = vld [vmem:[%s7 + $0x24] sm:$0xff]
  %v75 = vld [vmem:[%s7 + $0x2c] sm:$0xf]
  %v76 = vld [vmem:[%s7 + $0x30] sm:$0xff]
  %v77 = vld [vmem:[%s7 + $0x38] sm:$0xf]
  %v78 = vld [vmem:[%s7 + $0x3c] sm:$0xff]
  %v79 = vld [vmem:[%s7 + $0x44] sm:$0xf]
  %v80 = vld [vmem:[%s7 + $0x48] sm:$0xff]
  %v81 = vld [vmem:[%s7 + $0x50] sm:$0xf]
  %v82 = vld [vmem:[%s7 + $0x54] sm:$0xff]
  %v83 = vld [vmem:[%s7 + $0x5c] sm:$0xf]
  %v84 = vld [vmem:[%s7 + $0x60] sm:$0xff]
  %v85 = vld [vmem:[%s7 + $0x68] sm:$0xf]
  %v86 = vld [vmem:[%s7 + $0x6c] sm:$0xff]
  %v87 = vld [vmem:[%s7 + $0x74] sm:$0xf]
  %v88 = vld [vmem:[%s7 + $0x78] sm:$0xff]
  %v89 = vld [vmem:[%s7 + $0x80] sm:$0xf]
  %v90 = vld [vmem:[%s7 + $0x84] sm:$0xff]
  %v91 = vld [vmem:[%s7 + $0x8c] sm:$0xf]
  %v92 = vld [vmem:[%s7 + $0x90] sm:$0xff]
  %v93 = vld [vmem:[%s7 + $0x98] sm:$0xf]
  %v94 = vld [vmem:[%s7 + $0x9c] sm:$0xff]
  %v95 = vld [vmem:[%s7 + $0xa4] sm:$0xf]
  %v96 = vld [vmem:[%s7 + $0xa8] sm:$0xff]
  %v97 = vld [vmem:[%s7 + $0xb0] sm:$0xf]
  %v98 = vld [vmem:[%s7 + $0xb4] sm:$0xff]
  %v99 = vld [vmem:[%s7 + $0xbc] sm:$0xf]
  %v132 = vunpack.c.l.b16 %v68
  %v133 = vunpack.c.h.b16 %v68
  %v134 = vunpack.c.l.b16 %v69
  %v135 = vunpack.c.l.b16 %v70
  %v136 = vunpack.c.h.b16 %v70
  %v137 = vunpack.c.l.b16 %v71
  %v138 = vunpack.c.l.b16 %v72
  %v139 = vunpack.c.h.b16 %v72
  %v140 = vunpack.c.l.b16 %v73
  %v141 = vunpack.c.l.b16 %v74
  %v142 = vunpack.c.h.b16 %v74
  %v143 = vunpack.c.l.b16 %v75
  %v144 = vunpack.c.l.b16 %v76
  %v145 = vunpack.c.h.b16 %v76
  %v146 = vunpack.c.l.b16 %v77
  %v147 = vunpack.c.l.b16 %v78
  %v148 = vunpack.c.h.b16 %v78
  %v149 = vunpack.c.l.b16 %v79
  %v150 = vunpack.c.l.b16 %v80
  %v151 = vunpack.c.h.b16 %v80
  %v152 = vunpack.c.l.b16 %v81
  %v153 = vunpack.c.l.b16 %v82
  %v154 = vunpack.c.h.b16 %v82
  %v155 = vunpack.c.l.b16 %v83
  %v156 = vunpack.c.l.b16 %v84
  %v157 = vunpack.c.h.b16 %v84
  %v158 = vunpack.c.l.b16 %v85
  %v159 = vunpack.c.l.b16 %v86
  %v160 = vunpack.c.h.b16 %v86
  %v161 = vunpack.c.l.b16 %v87
  %v162 = vunpack.c.l.b16 %v88
  %v163 = vunpack.c.h.b16 %v88
  %v164 = vunpack.c.l.b16 %v89
  %v165 = vunpack.c.l.b16 %v90
  %v166 = vunpack.c.h.b16 %v90
  %v167 = vunpack.c.l.b16 %v91
  %v168 = vunpack.c.l.b16 %v92
  %v169 = vunpack.c.h.b16 %v92
  %v170 = vunpack.c.l.b16 %v93
  %v171 = vunpack.c.l.b16 %v94
  %v172 = vunpack.c.h.b16 %v94
  %v173 = vunpack.c.l.b16 %v95
  %v174 = vunpack.c.l.b16 %v96
  %v175 = vunpack.c.h.b16 %v96
  %v176 = vunpack.c.l.b16 %v97
  %v177 = vunpack.c.l.b16 %v98
  %v178 = vunpack.c.h.b16 %v98
  %v179 = vunpack.c.l.b16 %v99
  %v180 = vpack.c.b16 %v135, %v132
  %v181 = vpack.c.b16 %v136, %v133
  %v182 = vpack.c.b16 %v137, %v134
  %v183 = vpack.c.b16 %v141, %v138
  %v184 = vpack.c.b16 %v142, %v139
  %v185 = vpack.c.b16 %v143, %v140
  %v186 = vpack.c.b16 %v147, %v144
  %v187 = vpack.c.b16 %v148, %v145
  %v188 = vpack.c.b16 %v149, %v146
  %v189 = vpack.c.b16 %v153, %v150
  %v190 = vpack.c.b16 %v154, %v151
  %v191 = vpack.c.b16 %v155, %v152
  %v192 = vpack.c.b16 %v159, %v156
  %v193 = vpack.c.b16 %v160, %v157
  %v194 = vpack.c.b16 %v161, %v158
  %v195 = vpack.c.b16 %v165, %v162
  %v196 = vpack.c.b16 %v166, %v163
  %v197 = vpack.c.b16 %v167, %v164
  %v198 = vpack.c.b16 %v171, %v168
  %v199 = vpack.c.b16 %v172, %v169
  %v200 = vpack.c.b16 %v173, %v170
  %v201 = vpack.c.b16 %v177, %v174
  %v202 = vpack.c.b16 %v178, %v175
  %v203 = vpack.c.b16 %v179, %v176
  %228 = vmatprep.subr.bf16.mxu0 %v181
  %229 = vmatpush1.bf16.msra.mxu0 %v180
  %230 = vmatprep.subr.bf16.mxu0 %v184
  %231 = vmatpush1.bf16.msra.mxu0 %v183
  %232 = vmatprep.subr.bf16.mxu0 %v187
  %233 = vmatpush1.bf16.msra.mxu0 %v186
  %234 = vmatprep.subr.bf16.mxu0 %v190
  %235 = vmatpush1.bf16.msra.mxu0 %v189
  %236 = vmatprep.subr.bf16.mxu0 %v193
  %237 = vmatpush1.bf16.msra.mxu0 %v192
  %238 = vmatprep.subr.bf16.mxu0 %v196
  %239 = vmatpush1.bf16.msra.mxu0 %v195
  %240 = vmatprep.subr.bf16.mxu0 %v199
  %241 = vmatpush1.bf16.msra.mxu0 %v198
  %242 = vmatprep.subr.bf16.mxu0 %v202
  %243 = vmatpush1.bf16.msra.mxu0 %v201
  %244 = vmatprep.subr.bf16.mxu0 0
  %245 = vmatpush1.bf16.msra.mxu0 0
  %246 = vmatprep.subr.bf16.mxu0 0
  %247 = vmatpush1.bf16.msra.mxu0 0
  %248 = vmatprep.subr.bf16.mxu0 0
  %249 = vmatpush1.bf16.msra.mxu0 0
  %250 = vmatprep.subr.bf16.mxu0 0
  %251 = vmatpush1.bf16.msra.mxu0 0
  %252 = vmatprep.subr.bf16.mxu0 0
  %253 = vmatpush1.bf16.msra.mxu0 0
  %254 = vmatprep.subr.bf16.mxu0 0
  %255 = vmatpush1.bf16.msra.mxu0 0
  %256 = vmatprep.subr.bf16.mxu0 0
  %257 = vmatpush1.bf16.msra.mxu0 0
  %258 = vmatprep.subr.bf16.mxu0 0
  %259 = vmatpush1.bf16.msra.mxu0 0
  %260 = vmatprep.mubr.bf16.mxu0 0
  %261 = vmatmul.mubr.bf16.gmra.mrb[0].mxu0 0
  %v262 = vpop.f32.mrb[0].mxu0
  %v263 = vadd.f32 %v55, %v262
  %v264 = vpop.f32.mrb[0].mxu0
  %v265 = vadd.f32 %v56, %v264
  %v266 = vpop.f32.mrb[0].mxu0
  %v267 = vpop.f32.mrb[0].mxu0
  %268 = vdwg.mxu0
  %269 = vmatprep.subr.bf16.mxu0 0
  %270 = vmatpush1.bf16.msra.mxu0 %v182
  %271 = vmatprep.subr.bf16.mxu0 0
  %272 = vmatpush1.bf16.msra.mxu0 %v185
  %273 = vmatprep.subr.bf16.mxu0 0
  %274 = vmatpush1.bf16.msra.mxu0 %v188
  %275 = vmatprep.subr.bf16.mxu0 0
  %276 = vmatpush1.bf16.msra.mxu0 %v191
  %277 = vmatprep.subr.bf16.mxu0 0
  %278 = vmatpush1.bf16.msra.mxu0 %v194
  %279 = vmatprep.subr.bf16.mxu0 0
  %280 = vmatpush1.bf16.msra.mxu0 %v197
  %281 = vmatprep.subr.bf16.mxu0 0
  %282 = vmatpush1.bf16.msra.mxu0 %v200
  %283 = vmatprep.subr.bf16.mxu0 0
  %284 = vmatpush1.bf16.msra.mxu0 %v203
  %285 = vmatprep.subr.bf16.mxu0 0
  %286 = vmatpush1.bf16.msra.mxu0 0
  %287 = vmatprep.subr.bf16.mxu0 0
  %288 = vmatpush1.bf16.msra.mxu0 0
  %289 = vmatprep.subr.bf16.mxu0 0
  %290 = vmatpush1.bf16.msra.mxu0 0
  %291 = vmatprep.subr.bf16.mxu0 0
  %292 = vmatpush1.bf16.msra.mxu0 0
  %293 = vmatprep.subr.bf16.mxu0 0
  %294 = vmatpush1.bf16.msra.mxu0 0
  %295 = vmatprep.subr.bf16.mxu0 0
  %296 = vmatpush1.bf16.msra.mxu0 0
  %297 = vmatprep.subr.bf16.mxu0 0
  %298 = vmatpush1.bf16.msra.mxu0 0
  %299 = vmatprep.subr.bf16.mxu0 0
  %300 = vmatpush1.bf16.msra.mxu0 0
  %301 = vmatprep.mubr.bf16.mxu0 0
  %302 = vmatmul.mubr.bf16.gmra.mrb[0].mxu0 0
  %v303 = vpop.f32.mrb[0].mxu0
  %v304 = vadd.f32 %v57, %v303
  %v305 = vpop.f32.mrb[0].mxu0
  %v306 = vpop.f32.mrb[0].mxu0
  %v307 = vpop.f32.mrb[0].mxu0
  %308 = vdwg.mxu0
  %v309 = vadd.f32 %v65, %v263
  %v310 = vxor.u32 %v309, 2147483648
  %v311 = vmul.f32 %v310, 1.442695
  %v312 = vpow.pop %v311
  %v313 = vadd.f32 %v312, 1.0
  %v314 = vrcp.pop %v313
  %v315 = vmul.f32 1.0, %v314
  %v316 = vadd.f32 %v66, %v265
  %v317 = vxor.u32 %v316, 2147483648
  %v318 = vmul.f32 %v317, 1.442695
  %v319 = vpow.pop %v318
  %v320 = vadd.f32 %v319, 1.0
  %v321 = vrcp.pop %v320
  %v322 = vmul.f32 1.0, %v321
  %v323 = vmul.f32 %v315, %v304
  %v324 = vadd.f32 %v67, %v323
  %v325 = vtanh.pop %v324
  %v326 = vsub.f32 1.0, %v322
  %v327 = vmul.f32 %v326, %v325
  %v328 = vmul.f32 %v322, 0.0
  %v329 = vadd.f32 %v327, %v328
  %vm330 = vcmp.gt.s32.totalorder %v62, 0
  %v331 = vsel %vm330, %v329, 0.0
  %s332 = scalar_lea.vmem %s0, 24
  %v333 = vld [vmem:[%s332] sm:$0xff]
  %v334 = vld [vmem:[%s332 + $0x8] sm:$0xff]
  %v335 = vld [vmem:[%s332 + $0x10] sm:$0xff]
  %v336 = vpack.c.bf16 %v331, %v331
  %337 = vmatprep.subr.bf16.mxu0 %v181
  %338 = vmatpush1.bf16.msra.mxu0 %v180
  %339 = vmatprep.subr.bf16.mxu0 %v184
  %340 = vmatpush1.bf16.msra.mxu0 %v183
  %341 = vmatprep.subr.bf16.mxu0 %v187
  %342 = vmatpush1.bf16.msra.mxu0 %v186
  %343 = vmatprep.subr.bf16.mxu0 %v190
  %344 = vmatpush1.bf16.msra.mxu0 %v189
  %345 = vmatprep.subr.bf16.mxu0 %v193
  %346 = vmatpush1.bf16.msra.mxu0 %v192
  %347 = vmatprep.subr.bf16.mxu0 %v196
  %348 = vmatpush1.bf16.msra.mxu0 %v195
  %349 = vmatprep.subr.bf16.mxu0 %v199
  %350 = vmatpush1.bf16.msra.mxu0 %v198
  %351 = vmatprep.subr.bf16.mxu0 %v202
  %352 = vmatpush1.bf16.msra.mxu0 %v201
  %353 = vmatprep.subr.bf16.mxu0 0
  %354 = vmatpush1.bf16.msra.mxu0 0
  %355 = vmatprep.subr.bf16.mxu0 0
  %356 = vmatpush1.bf16.msra.mxu0 0
  %357 = vmatprep.subr.bf16.mxu0 0
  %358 = vmatpush1.bf16.msra.mxu0 0
  %359 = vmatprep.subr.bf16.mxu0 0
  %360 = vmatpush1.bf16.msra.mxu0 0
  %361 = vmatprep.subr.bf16.mxu0 0
  %362 = vmatpush1.bf16.msra.mxu0 0
  %363 = vmatprep.subr.bf16.mxu0 0
  %364 = vmatpush1.bf16.msra.mxu0 0
  %365 = vmatprep.subr.bf16.mxu0 0
  %366 = vmatpush1.bf16.msra.mxu0 0
  %367 = vmatprep.subr.bf16.mxu0 0
  %368 = vmatpush1.bf16.msra.mxu0 0
  %369 = vmatprep.mubr.bf16.mxu0 0
  %370 = vmatmul.mubr.bf16.gmra.mrb[0].mxu0 %v336
  %v371 = vpop.f32.mrb[0].mxu0
  %v372 = vadd.f32 %v55, %v371
  %v373 = vpop.f32.mrb[0].mxu0
  %v374 = vadd.f32 %v56, %v373
  %v375 = vpop.f32.mrb[0].mxu0
  %v376 = vpop.f32.mrb[0].mxu0
  %377 = vdwg.mxu0
  %378 = vmatprep.subr.bf16.mxu0 0
  %379 = vmatpush1.bf16.msra.mxu0 %v182
  %380 = vmatprep.subr.bf16.mxu0 0
  %381 = vmatpush1.bf16.msra.mxu0 %v185
  %382 = vmatprep.subr.bf16.mxu0 0
  %383 = vmatpush1.bf16.msra.mxu0 %v188
  %384 = vmatprep.subr.bf16.mxu0 0
  %385 = vmatpush1.bf16.msra.mxu0 %v191
  %386 = vmatprep.subr.bf16.mxu0 0
  %387 = vmatpush1.bf16.msra.mxu0 %v194
  %388 = vmatprep.subr.bf16.mxu0 0
  %389 = vmatpush1.bf16.msra.mxu0 %v197
  %390 = vmatprep.subr.bf16.mxu0 0
  %391 = vmatpush1.bf16.msra.mxu0 %v200
  %392 = vmatprep.subr.bf16.mxu0 0
  %393 = vmatpush1.bf16.msra.mxu0 %v203
  %394 = vmatprep.subr.bf16.mxu0 0
  %395 = vmatpush1.bf16.msra.mxu0 0
  %396 = vmatprep.subr.bf16.mxu0 0
  %397 = vmatpush1.bf16.msra.mxu0 0
  %398 = vmatprep.subr.bf16.mxu0 0
  %399 = vmatpush1.bf16.msra.mxu0 0
  %400 = vmatprep.subr.bf16.mxu0 0
  %401 = vmatpush1.bf16.msra.mxu0 0
  %402 = vmatprep.subr.bf16.mxu0 0
  %403 = vmatpush1.bf16.msra.mxu0 0
  %404 = vmatprep.subr.bf16.mxu0 0
  %405 = vmatpush1.bf16.msra.mxu0 0
  %406 = vmatprep.subr.bf16.mxu0 0
  %407 = vmatpush1.bf16.msra.mxu0 0
  %408 = vmatprep.subr.bf16.mxu0 0
  %409 = vmatpush1.bf16.msra.mxu0 0
  %410 = vmatprep.mubr.bf16.mxu0 0
  %411 = vmatmul.mubr.bf16.gmra.mrb[0].mxu0 %v336
  %v412 = vpop.f32.mrb[0].mxu0
  %v413 = vadd.f32 %v57, %v412
  %v414 = vpop.f32.mrb[0].mxu0
  %v415 = vpop.f32.mrb[0].mxu0
  %v416 = vpop.f32.mrb[0].mxu0
  %417 = vdwg.mxu0
  %v418 = vadd.f32 %v333, %v372
  %v419 = vxor.u32 %v418, 2147483648
  %v420 = vmul.f32 %v419, 1.442695
  %v421 = vpow.pop %v420
  %v422 = vadd.f32 %v421, 1.0
  %v423 = vrcp.pop %v422
  %v424 = vmul.f32 1.0, %v423
  %v425 = vadd.f32 %v334, %v374
  %v426 = vxor.u32 %v425, 2147483648
  %v427 = vmul.f32 %v426, 1.442695
  %v428 = vpow.pop %v427
  %v429 = vadd.f32 %v428, 1.0
  %v430 = vrcp.pop %v429
  %v431 = vmul.f32 1.0, %v430
  %v432 = vmul.f32 %v424, %v413
  %v433 = vadd.f32 %v335, %v432
  %v434 = vtanh.pop %v433
  %v435 = vsub.f32 1.0, %v431
  %v436 = vmul.f32 %v435, %v434
  %v437 = vmul.f32 %v431, %v331
  %v438 = vadd.f32 %v436, %v437
  %vm439 = vcmp.gt.s32.totalorder %v62, 1
  %v440 = vsel %vm439, %v438, %v331
  %s441 = scalar_lea.vmem %s0, 48
  %v442 = vld [vmem:[%s441] sm:$0xff]
  %v443 = vld [vmem:[%s441 + $0x8] sm:$0xff]
  %v444 = vld [vmem:[%s441 + $0x10] sm:$0xff]
  %v445 = vpack.c.bf16 %v440, %v440
  %446 = vmatprep.subr.bf16.mxu0 %v181
  %447 = vmatpush1.bf16.msra.mxu0 %v180
  %448 = vmatprep.subr.bf16.mxu0 %v184
  %449 = vmatpush1.bf16.msra.mxu0 %v183
  %450 = vmatprep.subr.bf16.mxu0 %v187
  %451 = vmatpush1.bf16.msra.mxu0 %v186
  %452 = vmatprep.subr.bf16.mxu0 %v190
  %453 = vmatpush1.bf16.msra.mxu0 %v189
  %454 = vmatprep.subr.bf16.mxu0 %v193
  %455 = vmatpush1.bf16.msra.mxu0 %v192
  %456 = vmatprep.subr.bf16.mxu0 %v196
  %457 = vmatpush1.bf16.msra.mxu0 %v195
  %458 = vmatprep.subr.bf16.mxu0 %v199
  %459 = vmatpush1.bf16.msra.mxu0 %v198
  %460 = vmatprep.subr.bf16.mxu0 %v202
  %461 = vmatpush1.bf16.msra.mxu0 %v201
  %462 = vmatprep.subr.bf16.mxu0 0
  %463 = vmatpush1.bf16.msra.mxu0 0
  %464 = vmatprep.subr.bf16.mxu0 0
  %465 = vmatpush1.bf16.msra.mxu0 0
  %466 = vmatprep.subr.bf16.mxu0 0
  %467 = vmatpush1.bf16.msra.mxu0 0
  %468 = vmatprep.subr.bf16.mxu0 0
  %469 = vmatpush1.bf16.msra.mxu0 0
  %470 = vmatprep.subr.bf16.mxu0 0
  %471 = vmatpush1.bf16.msra.mxu0 0
  %472 = vmatprep.subr.bf16.mxu0 0
  %473 = vmatpush1.bf16.msra.mxu0 0
  %474 = vmatprep.subr.bf16.mxu0 0
  %475 = vmatpush1.bf16.msra.mxu0 0
  %476 = vmatprep.subr.bf16.mxu0 0
  %477 = vmatpush1.bf16.msra.mxu0 0
  %478 = vmatprep.mubr.bf16.mxu0 0
  %479 = vmatmul.mubr.bf16.gmra.mrb[0].mxu0 %v445
  %v480 = vpop.f32.mrb[0].mxu0
  %v481 = vadd.f32 %v55, %v480
  %v482 = vpop.f32.mrb[0].mxu0
  %v483 = vadd.f32 %v56, %v482
  %v484 = vpop.f32.mrb[0].mxu0
  %v485 = vpop.f32.mrb[0].mxu0
  %486 = vdwg.mxu0
  %487 = vmatprep.subr.bf16.mxu0 0
  %488 = vmatpush1.bf16.msra.mxu0 %v182
  %489 = vmatprep.subr.bf16.mxu0 0
  %490 = vmatpush1.bf16.msra.mxu0 %v185
  %491 = vmatprep.subr.bf16.mxu0 0
  %492 = vmatpush1.bf16.msra.mxu0 %v188
  %493 = vmatprep.subr.bf16.mxu0 0
  %494 = vmatpush1.bf16.msra.mxu0 %v191
  %495 = vmatprep.subr.bf16.mxu0 0
  %496 = vmatpush1.bf16.msra.mxu0 %v194
  %497 = vmatprep.subr.bf16.mxu0 0
  %498 = vmatpush1.bf16.msra.mxu0 %v197
  %499 = vmatprep.subr.bf16.mxu0 0
  %500 = vmatpush1.bf16.msra.mxu0 %v200
  %501 = vmatprep.subr.bf16.mxu0 0
  %502 = vmatpush1.bf16.msra.mxu0 %v203
  %503 = vmatprep.subr.bf16.mxu0 0
  %504 = vmatpush1.bf16.msra.mxu0 0
  %505 = vmatprep.subr.bf16.mxu0 0
  %506 = vmatpush1.bf16.msra.mxu0 0
  %507 = vmatprep.subr.bf16.mxu0 0
  %508 = vmatpush1.bf16.msra.mxu0 0
  %509 = vmatprep.subr.bf16.mxu0 0
  %510 = vmatpush1.bf16.msra.mxu0 0
  %511 = vmatprep.subr.bf16.mxu0 0
  %512 = vmatpush1.bf16.msra.mxu0 0
  %513 = vmatprep.subr.bf16.mxu0 0
  %514 = vmatpush1.bf16.msra.mxu0 0
  %515 = vmatprep.subr.bf16.mxu0 0
  %516 = vmatpush1.bf16.msra.mxu0 0
  %517 = vmatprep.subr.bf16.mxu0 0
  %518 = vmatpush1.bf16.msra.mxu0 0
  %519 = vmatprep.mubr.bf16.mxu0 0
  %520 = vmatmul.mubr.bf16.gmra.mrb[0].mxu0 %v445
  %v521 = vpop.f32.mrb[0].mxu0
  %v522 = vadd.f32 %v57, %v521
  %v523 = vpop.f32.mrb[0].mxu0
  %v524 = vpop.f32.mrb[0].mxu0
  %v525 = vpop.f32.mrb[0].mxu0
  %526 = vdwg.mxu0
  %v527 = vadd.f32 %v442, %v481
  %v528 = vxor.u32 %v527, 2147483648
  %v529 = vmul.f32 %v528, 1.442695
  %v530 = vpow.pop %v529
  %v531 = vadd.f32 %v530, 1.0
  %v532 = vrcp.pop %v531
  %v533 = vmul.f32 1.0, %v532
  %v534 = vadd.f32 %v443, %v483
  %v535 = vxor.u32 %v534, 2147483648
  %v536 = vmul.f32 %v535, 1.442695
  %v537 = vpow.pop %v536
  %v538 = vadd.f32 %v537, 1.0
  %v539 = vrcp.pop %v538
  %v540 = vmul.f32 1.0, %v539
  %v541 = vmul.f32 %v533, %v522
  %v542 = vadd.f32 %v444, %v541
  %v543 = vtanh.pop %v542
  %v544 = vsub.f32 1.0, %v540
  %v545 = vmul.f32 %v544, %v543
  %v546 = vmul.f32 %v540, %v440
  %v547 = vadd.f32 %v545, %v546
  %vm548 = vcmp.gt.s32.totalorder %v62, 2
  %v549 = vsel %vm548, %v547, %v440
  %s550 = scalar_lea.vmem %s0, 72
  %v551 = vld [vmem:[%s550] sm:$0xff]
  %v552 = vld [vmem:[%s550 + $0x8] sm:$0xff]
  %v553 = vld [vmem:[%s550 + $0x10] sm:$0xff]
  %v554 = vpack.c.bf16 %v549, %v549
  %555 = vmatprep.subr.bf16.mxu0 %v181
  %556 = vmatpush1.bf16.msra.mxu0 %v180
  %557 = vmatprep.subr.bf16.mxu0 %v184
  %558 = vmatpush1.bf16.msra.mxu0 %v183
  %559 = vmatprep.subr.bf16.mxu0 %v187
  %560 = vmatpush1.bf16.msra.mxu0 %v186
  %561 = vmatprep.subr.bf16.mxu0 %v190
  %562 = vmatpush1.bf16.msra.mxu0 %v189
  %563 = vmatprep.subr.bf16.mxu0 %v193
  %564 = vmatpush1.bf16.msra.mxu0 %v192
  %565 = vmatprep.subr.bf16.mxu0 %v196
  %566 = vmatpush1.bf16.msra.mxu0 %v195
  %567 = vmatprep.subr.bf16.mxu0 %v199
  %568 = vmatpush1.bf16.msra.mxu0 %v198
  %569 = vmatprep.subr.bf16.mxu0 %v202
  %570 = vmatpush1.bf16.msra.mxu0 %v201
  %571 = vmatprep.subr.bf16.mxu0 0
  %572 = vmatpush1.bf16.msra.mxu0 0
  %573 = vmatprep.subr.bf16.mxu0 0
  %574 = vmatpush1.bf16.msra.mxu0 0
  %575 = vmatprep.subr.bf16.mxu0 0
  %576 = vmatpush1.bf16.msra.mxu0 0
  %577 = vmatprep.subr.bf16.mxu0 0
  %578 = vmatpush1.bf16.msra.mxu0 0
  %579 = vmatprep.subr.bf16.mxu0 0
  %580 = vmatpush1.bf16.msra.mxu0 0
  %581 = vmatprep.subr.bf16.mxu0 0
  %582 = vmatpush1.bf16.msra.mxu0 0
  %583 = vmatprep.subr.bf16.mxu0 0
  %584 = vmatpush1.bf16.msra.mxu0 0
  %585 = vmatprep.subr.bf16.mxu0 0
  %586 = vmatpush1.bf16.msra.mxu0 0
  %587 = vmatprep.mubr.bf16.mxu0 0
  %588 = vmatmul.mubr.bf16.gmra.mrb[0].mxu0 %v554
  %v589 = vpop.f32.mrb[0].mxu0
  %v590 = vadd.f32 %v55, %v589
  %v591 = vpop.f32.mrb[0].mxu0
  %v592 = vadd.f32 %v56, %v591
  %v593 = vpop.f32.mrb[0].mxu0
  %v594 = vpop.f32.mrb[0].mxu0
  %595 = vdwg.mxu0
  %596 = vmatprep.subr.bf16.mxu0 0
  %597 = vmatpush1.bf16.msra.mxu0 %v182
  %598 = vmatprep.subr.bf16.mxu0 0
  %599 = vmatpush1.bf16.msra.mxu0 %v185
  %600 = vmatprep.subr.bf16.mxu0 0
  %601 = vmatpush1.bf16.msra.mxu0 %v188
  %602 = vmatprep.subr.bf16.mxu0 0
  %603 = vmatpush1.bf16.msra.mxu0 %v191
  %604 = vmatprep.subr.bf16.mxu0 0
  %605 = vmatpush1.bf16.msra.mxu0 %v194
  %606 = vmatprep.subr.bf16.mxu0 0
  %607 = vmatpush1.bf16.msra.mxu0 %v197
  %608 = vmatprep.subr.bf16.mxu0 0
  %609 = vmatpush1.bf16.msra.mxu0 %v200
  %610 = vmatprep.subr.bf16.mxu0 0
  %611 = vmatpush1.bf16.msra.mxu0 %v203
  %612 = vmatprep.subr.bf16.mxu0 0
  %613 = vmatpush1.bf16.msra.mxu0 0
  %614 = vmatprep.subr.bf16.mxu0 0
  %615 = vmatpush1.bf16.msra.mxu0 0
  %616 = vmatprep.subr.bf16.mxu0 0
  %617 = vmatpush1.bf16.msra.mxu0 0
  %618 = vmatprep.subr.bf16.mxu0 0
  %619 = vmatpush1.bf16.msra.mxu0 0
  %620 = vmatprep.subr.bf16.mxu0 0
  %621 = vmatpush1.bf16.msra.mxu0 0
  %622 = vmatprep.subr.bf16.mxu0 0
  %623 = vmatpush1.bf16.msra.mxu0 0
  %624 = vmatprep.subr.bf16.mxu0 0
  %625 = vmatpush1.bf16.msra.mxu0 0
  %626 = vmatprep.subr.bf16.mxu0 0
  %627 = vmatpush1.bf16.msra.mxu0 0
  %628 = vmatprep.mubr.bf16.mxu0 0
  %629 = vmatmul.mubr.bf16.gmra.mrb[0].mxu0 %v554
  %v630 = vpop.f32.mrb[0].mxu0
  %v631 = vadd.f32 %v57, %v630
  %v632 = vpop.f32.mrb[0].mxu0
  %v633 = vpop.f32.mrb[0].mxu0
  %v634 = vpop.f32.mrb[0].mxu0
  %635 = vdwg.mxu0
  %v636 = vadd.f32 %v551, %v590
  %v637 = vxor.u32 %v636, 2147483648
  %v638 = vmul.f32 %v637, 1.442695
  %v639 = vpow.pop %v638
  %v640 = vadd.f32 %v639, 1.0
  %v641 = vrcp.pop %v640
  %v642 = vmul.f32 1.0, %v641
  %v643 = vadd.f32 %v552, %v592
  %v644 = vxor.u32 %v643, 2147483648
  %v645 = vmul.f32 %v644, 1.442695
  %v646 = vpow.pop %v645
  %v647 = vadd.f32 %v646, 1.0
  %v648 = vrcp.pop %v647
  %v649 = vmul.f32 1.0, %v648
  %v650 = vmul.f32 %v642, %v631
  %v651 = vadd.f32 %v553, %v650
  %v652 = vtanh.pop %v651
  %v653 = vsub.f32 1.0, %v649
  %v654 = vmul.f32 %v653, %v652
  %v655 = vmul.f32 %v649, %v549
  %v656 = vadd.f32 %v654, %v655
  %vm657 = vcmp.gt.s32.totalorder %v62, 3
  %v658 = vsel %vm657, %v656, %v549
  %s659 = scalar_lea.vmem %s0, 96
  %v660 = vld [vmem:[%s659] sm:$0xff]
  %v661 = vld [vmem:[%s659 + $0x8] sm:$0xff]
  %v662 = vld [vmem:[%s659 + $0x10] sm:$0xff]
  %v663 = vpack.c.bf16 %v658, %v658
  %664 = vmatprep.subr.bf16.mxu0 %v181
  %665 = vmatpush1.bf16.msra.mxu0 %v180
  %666 = vmatprep.subr.bf16.mxu0 %v184
  %667 = vmatpush1.bf16.msra.mxu0 %v183
  %668 = vmatprep.subr.bf16.mxu0 %v187
  %669 = vmatpush1.bf16.msra.mxu0 %v186
  %670 = vmatprep.subr.bf16.mxu0 %v190
  %671 = vmatpush1.bf16.msra.mxu0 %v189
  %672 = vmatprep.subr.bf16.mxu0 %v193
  %673 = vmatpush1.bf16.msra.mxu0 %v192
  %674 = vmatprep.subr.bf16.mxu0 %v196
  %675 = vmatpush1.bf16.msra.mxu0 %v195
  %676 = vmatprep.subr.bf16.mxu0 %v199
  %677 = vmatpush1.bf16.msra.mxu0 %v198
  %678 = vmatprep.subr.bf16.mxu0 %v202
  %679 = vmatpush1.bf16.msra.mxu0 %v201
  %680 = vmatprep.subr.bf16.mxu0 0
  %681 = vmatpush1.bf16.msra.mxu0 0
  %682 = vmatprep.subr.bf16.mxu0 0
  %683 = vmatpush1.bf16.msra.mxu0 0
  %684 = vmatprep.subr.bf16.mxu0 0
  %685 = vmatpush1.bf16.msra.mxu0 0
  %686 = vmatprep.subr.bf16.mxu0 0
  %687 = vmatpush1.bf16.msra.mxu0 0
  %688 = vmatprep.subr.bf16.mxu0 0
  %689 = vmatpush1.bf16.msra.mxu0 0
  %690 = vmatprep.subr.bf16.mxu0 0
  %691 = vmatpush1.bf16.msra.mxu0 0
  %692 = vmatprep.subr.bf16.mxu0 0
  %693 = vmatpush1.bf16.msra.mxu0 0
  %694 = vmatprep.subr.bf16.mxu0 0
  %695 = vmatpush1.bf16.msra.mxu0 0
  %696 = vmatprep.mubr.bf16.mxu0 0
  %697 = vmatmul.mubr.bf16.gmra.mrb[0].mxu0 %v663
  %v698 = vpop.f32.mrb[0].mxu0
  %v699 = vadd.f32 %v55, %v698
  %v700 = vpop.f32.mrb[0].mxu0
  %v701 = vadd.f32 %v56, %v700
  %v702 = vpop.f32.mrb[0].mxu0
  %v703 = vpop.f32.mrb[0].mxu0
  %704 = vdwg.mxu0
  %705 = vmatprep.subr.bf16.mxu0 0
  %706 = vmatpush1.bf16.msra.mxu0 %v182
  %707 = vmatprep.subr.bf16.mxu0 0
  %708 = vmatpush1.bf16.msra.mxu0 %v185
  %709 = vmatprep.subr.bf16.mxu0 0
  %710 = vmatpush1.bf16.msra.mxu0 %v188
  %711 = vmatprep.subr.bf16.mxu0 0
  %712 = vmatpush1.bf16.msra.mxu0 %v191
  %713 = vmatprep.subr.bf16.mxu0 0
  %714 = vmatpush1.bf16.msra.mxu0 %v194
  %715 = vmatprep.subr.bf16.mxu0 0
  %716 = vmatpush1.bf16.msra.mxu0 %v197
  %717 = vmatprep.subr.bf16.mxu0 0
  %718 = vmatpush1.bf16.msra.mxu0 %v200
  %719 = vmatprep.subr.bf16.mxu0 0
  %720 = vmatpush1.bf16.msra.mxu0 %v203
  %721 = vmatprep.subr.bf16.mxu0 0
  %722 = vmatpush1.bf16.msra.mxu0 0
  %723 = vmatprep.subr.bf16.mxu0 0
  %724 = vmatpush1.bf16.msra.mxu0 0
  %725 = vmatprep.subr.bf16.mxu0 0
  %726 = vmatpush1.bf16.msra.mxu0 0
  %727 = vmatprep.subr.bf16.mxu0 0
  %728 = vmatpush1.bf16.msra.mxu0 0
  %729 = vmatprep.subr.bf16.mxu0 0
  %730 = vmatpush1.bf16.msra.mxu0 0
  %731 = vmatprep.subr.bf16.mxu0 0
  %732 = vmatpush1.bf16.msra.mxu0 0
  %733 = vmatprep.subr.bf16.mxu0 0
  %734 = vmatpush1.bf16.msra.mxu0 0
  %735 = vmatprep.subr.bf16.mxu0 0
  %736 = vmatpush1.bf16.msra.mxu0 0
  %737 = vmatprep.mubr.bf16.mxu0 0
  %738 = vmatmul.mubr.bf16.gmra.mrb[0].mxu0 %v663
  %v739 = vpop.f32.mrb[0].mxu0
  %v740 = vadd.f32 %v57, %v739
  %v741 = vpop.f32.mrb[0].mxu0
  %v742 = vpop.f32.mrb[0].mxu0
  %v743 = vpop.f32.mrb[0].mxu0
  %744 = vdwg.mxu0
  %v745 = vadd.f32 %v660, %v699
  %v746 = vxor.u32 %v745, 2147483648
  %v747 = vmul.f32 %v746, 1.442695
  %v748 = vpow.pop %v747
  %v749 = vadd.f32 %v748, 1.0
  %v750 = vrcp.pop %v749
  %v751 = vmul.f32 1.0, %v750
  %v752 = vadd.f32 %v661, %v701
  %v753 = vxor.u32 %v752, 2147483648
  %v754 = vmul.f32 %v753, 1.442695
  %v755 = vpow.pop %v754
  %v756 = vadd.f32 %v755, 1.0
  %v757 = vrcp.pop %v756
  %v758 = vmul.f32 1.0, %v757
  %v759 = vmul.f32 %v751, %v740
  %v760 = vadd.f32 %v662, %v759
  %v761 = vtanh.pop %v760
  %v762 = vsub.f32 1.0, %v758
  %v763 = vmul.f32 %v762, %v761
  %v764 = vmul.f32 %v758, %v658
  %v765 = vadd.f32 %v763, %v764
  %vm766 = vcmp.gt.s32.totalorder %v62, 4
  %v767 = vsel %vm766, %v765, %v658
  %s768 = scalar_lea.vmem %s0, 120
  %v769 = vld [vmem:[%s768] sm:$0xff]
  %v770 = vld [vmem:[%s768 + $0x8] sm:$0xff]
  %v771 = vld [vmem:[%s768 + $0x10] sm:$0xff]
  %v772 = vpack.c.bf16 %v767, %v767
  %773 = vmatprep.subr.bf16.mxu0 %v181
  %774 = vmatpush1.bf16.msra.mxu0 %v180
  %775 = vmatprep.subr.bf16.mxu0 %v184
  %776 = vmatpush1.bf16.msra.mxu0 %v183
  %777 = vmatprep.subr.bf16.mxu0 %v187
  %778 = vmatpush1.bf16.msra.mxu0 %v186
  %779 = vmatprep.subr.bf16.mxu0 %v190
  %780 = vmatpush1.bf16.msra.mxu0 %v189
  %781 = vmatprep.subr.bf16.mxu0 %v193
  %782 = vmatpush1.bf16.msra.mxu0 %v192
  %783 = vmatprep.subr.bf16.mxu0 %v196
  %784 = vmatpush1.bf16.msra.mxu0 %v195
  %785 = vmatprep.subr.bf16.mxu0 %v199
  %786 = vmatpush1.bf16.msra.mxu0 %v198
  %787 = vmatprep.subr.bf16.mxu0 %v202
  %788 = vmatpush1.bf16.msra.mxu0 %v201
  %789 = vmatprep.subr.bf16.mxu0 0
  %790 = vmatpush1.bf16.msra.mxu0 0
  %791 = vmatprep.subr.bf16.mxu0 0
  %792 = vmatpush1.bf16.msra.mxu0 0
  %793 = vmatprep.subr.bf16.mxu0 0
  %794 = vmatpush1.bf16.msra.mxu0 0
  %795 = vmatprep.subr.bf16.mxu0 0
  %796 = vmatpush1.bf16.msra.mxu0 0
  %797 = vmatprep.subr.bf16.mxu0 0
  %798 = vmatpush1.bf16.msra.mxu0 0
  %799 = vmatprep.subr.bf16.mxu0 0
  %800 = vmatpush1.bf16.msra.mxu0 0
  %801 = vmatprep.subr.bf16.mxu0 0
  %802 = vmatpush1.bf16.msra.mxu0 0
  %803 = vmatprep.subr.bf16.mxu0 0
  %804 = vmatpush1.bf16.msra.mxu0 0
  %805 = vmatprep.mubr.bf16.mxu0 0
  %806 = vmatmul.mubr.bf16.gmra.mrb[0].mxu0 %v772
  %v807 = vpop.f32.mrb[0].mxu0
  %v808 = vadd.f32 %v55, %v807
  %v809 = vpop.f32.mrb[0].mxu0
  %v810 = vadd.f32 %v56, %v809
  %v811 = vpop.f32.mrb[0].mxu0
  %v812 = vpop.f32.mrb[0].mxu0
  %813 = vdwg.mxu0
  %814 = vmatprep.subr.bf16.mxu0 0
  %815 = vmatpush1.bf16.msra.mxu0 %v182
  %816 = vmatprep.subr.bf16.mxu0 0
  %817 = vmatpush1.bf16.msra.mxu0 %v185
  %818 = vmatprep.subr.bf16.mxu0 0
  %819 = vmatpush1.bf16.msra.mxu0 %v188
  %820 = vmatprep.subr.bf16.mxu0 0
  %821 = vmatpush1.bf16.msra.mxu0 %v191
  %822 = vmatprep.subr.bf16.mxu0 0
  %823 = vmatpush1.bf16.msra.mxu0 %v194
  %824 = vmatprep.subr.bf16.mxu0 0
  %825 = vmatpush1.bf16.msra.mxu0 %v197
  %826 = vmatprep.subr.bf16.mxu0 0
  %827 = vmatpush1.bf16.msra.mxu0 %v200
  %828 = vmatprep.subr.bf16.mxu0 0
  %829 = vmatpush1.bf16.msra.mxu0 %v203
  %830 = vmatprep.subr.bf16.mxu0 0
  %831 = vmatpush1.bf16.msra.mxu0 0
  %832 = vmatprep.subr.bf16.mxu0 0
  %833 = vmatpush1.bf16.msra.mxu0 0
  %834 = vmatprep.subr.bf16.mxu0 0
  %835 = vmatpush1.bf16.msra.mxu0 0
  %836 = vmatprep.subr.bf16.mxu0 0
  %837 = vmatpush1.bf16.msra.mxu0 0
  %838 = vmatprep.subr.bf16.mxu0 0
  %839 = vmatpush1.bf16.msra.mxu0 0
  %840 = vmatprep.subr.bf16.mxu0 0
  %841 = vmatpush1.bf16.msra.mxu0 0
  %842 = vmatprep.subr.bf16.mxu0 0
  %843 = vmatpush1.bf16.msra.mxu0 0
  %844 = vmatprep.subr.bf16.mxu0 0
  %845 = vmatpush1.bf16.msra.mxu0 0
  %846 = vmatprep.mubr.bf16.mxu0 0
  %847 = vmatmul.mubr.bf16.gmra.mrb[0].mxu0 %v772
  %v848 = vpop.f32.mrb[0].mxu0
  %v849 = vadd.f32 %v57, %v848
  %v850 = vpop.f32.mrb[0].mxu0
  %v851 = vpop.f32.mrb[0].mxu0
  %v852 = vpop.f32.mrb[0].mxu0
  %853 = vdwg.mxu0
  %v854 = vadd.f32 %v769, %v808
  %v855 = vxor.u32 %v854, 2147483648
  %v856 = vmul.f32 %v855, 1.442695
  %v857 = vpow.pop %v856
  %v858 = vadd.f32 %v857, 1.0
  %v859 = vrcp.pop %v858
  %v860 = vmul.f32 1.0, %v859
  %v861 = vadd.f32 %v770, %v810
  %v862 = vxor.u32 %v861, 2147483648
  %v863 = vmul.f32 %v862, 1.442695
  %v864 = vpow.pop %v863
  %v865 = vadd.f32 %v864, 1.0
  %v866 = vrcp.pop %v865
  %v867 = vmul.f32 1.0, %v866
  %v868 = vmul.f32 %v860, %v849
  %v869 = vadd.f32 %v771, %v868
  %v870 = vtanh.pop %v869
  %v871 = vsub.f32 1.0, %v867
  %v872 = vmul.f32 %v871, %v870
  %v873 = vmul.f32 %v867, %v767
  %v874 = vadd.f32 %v872, %v873
  %vm875 = vcmp.gt.s32.totalorder %v62, 5
  %v876 = vsel %vm875, %v874, %v767
  %s877 = scalar_lea.vmem %s0, 144
  %v878 = vld [vmem:[%s877] sm:$0xff]
  %v879 = vld [vmem:[%s877 + $0x8] sm:$0xff]
  %v880 = vld [vmem:[%s877 + $0x10] sm:$0xff]
  %v881 = vpack.c.bf16 %v876, %v876
  %882 = vmatprep.subr.bf16.mxu0 %v181
  %883 = vmatpush1.bf16.msra.mxu0 %v180
  %884 = vmatprep.subr.bf16.mxu0 %v184
  %885 = vmatpush1.bf16.msra.mxu0 %v183
  %886 = vmatprep.subr.bf16.mxu0 %v187
  %887 = vmatpush1.bf16.msra.mxu0 %v186
  %888 = vmatprep.subr.bf16.mxu0 %v190
  %889 = vmatpush1.bf16.msra.mxu0 %v189
  %890 = vmatprep.subr.bf16.mxu0 %v193
  %891 = vmatpush1.bf16.msra.mxu0 %v192
  %892 = vmatprep.subr.bf16.mxu0 %v196
  %893 = vmatpush1.bf16.msra.mxu0 %v195
  %894 = vmatprep.subr.bf16.mxu0 %v199
  %895 = vmatpush1.bf16.msra.mxu0 %v198
  %896 = vmatprep.subr.bf16.mxu0 %v202
  %897 = vmatpush1.bf16.msra.mxu0 %v201
  %898 = vmatprep.subr.bf16.mxu0 0
  %899 = vmatpush1.bf16.msra.mxu0 0
  %900 = vmatprep.subr.bf16.mxu0 0
  %901 = vmatpush1.bf16.msra.mxu0 0
  %902 = vmatprep.subr.bf16.mxu0 0
  %903 = vmatpush1.bf16.msra.mxu0 0
  %904 = vmatprep.subr.bf16.mxu0 0
  %905 = vmatpush1.bf16.msra.mxu0 0
  %906 = vmatprep.subr.bf16.mxu0 0
  %907 = vmatpush1.bf16.msra.mxu0 0
  %908 = vmatprep.subr.bf16.mxu0 0
  %909 = vmatpush1.bf16.msra.mxu0 0
  %910 = vmatprep.subr.bf16.mxu0 0
  %911 = vmatpush1.bf16.msra.mxu0 0
  %912 = vmatprep.subr.bf16.mxu0 0
  %913 = vmatpush1.bf16.msra.mxu0 0
  %914 = vmatprep.mubr.bf16.mxu0 0
  %915 = vmatmul.mubr.bf16.gmra.mrb[0].mxu0 %v881
  %v916 = vpop.f32.mrb[0].mxu0
  %v917 = vadd.f32 %v55, %v916
  %v918 = vpop.f32.mrb[0].mxu0
  %v919 = vadd.f32 %v56, %v918
  %v920 = vpop.f32.mrb[0].mxu0
  %v921 = vpop.f32.mrb[0].mxu0
  %922 = vdwg.mxu0
  %923 = vmatprep.subr.bf16.mxu0 0
  %924 = vmatpush1.bf16.msra.mxu0 %v182
  %925 = vmatprep.subr.bf16.mxu0 0
  %926 = vmatpush1.bf16.msra.mxu0 %v185
  %927 = vmatprep.subr.bf16.mxu0 0
  %928 = vmatpush1.bf16.msra.mxu0 %v188
  %929 = vmatprep.subr.bf16.mxu0 0
  %930 = vmatpush1.bf16.msra.mxu0 %v191
  %931 = vmatprep.subr.bf16.mxu0 0
  %932 = vmatpush1.bf16.msra.mxu0 %v194
  %933 = vmatprep.subr.bf16.mxu0 0
  %934 = vmatpush1.bf16.msra.mxu0 %v197
  %935 = vmatprep.subr.bf16.mxu0 0
  %936 = vmatpush1.bf16.msra.mxu0 %v200
  %937 = vmatprep.subr.bf16.mxu0 0
  %938 = vmatpush1.bf16.msra.mxu0 %v203
  %939 = vmatprep.subr.bf16.mxu0 0
  %940 = vmatpush1.bf16.msra.mxu0 0
  %941 = vmatprep.subr.bf16.mxu0 0
  %942 = vmatpush1.bf16.msra.mxu0 0
  %943 = vmatprep.subr.bf16.mxu0 0
  %944 = vmatpush1.bf16.msra.mxu0 0
  %945 = vmatprep.subr.bf16.mxu0 0
  %946 = vmatpush1.bf16.msra.mxu0 0
  %947 = vmatprep.subr.bf16.mxu0 0
  %948 = vmatpush1.bf16.msra.mxu0 0
  %949 = vmatprep.subr.bf16.mxu0 0
  %950 = vmatpush1.bf16.msra.mxu0 0
  %951 = vmatprep.subr.bf16.mxu0 0
  %952 = vmatpush1.bf16.msra.mxu0 0
  %953 = vmatprep.subr.bf16.mxu0 0
  %954 = vmatpush1.bf16.msra.mxu0 0
  %955 = vmatprep.mubr.bf16.mxu0 0
  %956 = vmatmul.mubr.bf16.gmra.mrb[0].mxu0 %v881
  %v957 = vpop.f32.mrb[0].mxu0
  %v958 = vadd.f32 %v57, %v957
  %v959 = vpop.f32.mrb[0].mxu0
  %v960 = vpop.f32.mrb[0].mxu0
  %v961 = vpop.f32.mrb[0].mxu0
  %962 = vdwg.mxu0
  %v963 = vadd.f32 %v878, %v917
  %v964 = vxor.u32 %v963, 2147483648
  %v965 = vmul.f32 %v964, 1.442695
  %v966 = vpow.pop %v965
  %v967 = vadd.f32 %v966, 1.0
  %v968 = vrcp.pop %v967
  %v969 = vmul.f32 1.0, %v968
  %v970 = vadd.f32 %v879, %v919
  %v971 = vxor.u32 %v970, 2147483648
  %v972 = vmul.f32 %v971, 1.442695
  %v973 = vpow.pop %v972
  %v974 = vadd.f32 %v973, 1.0
  %v975 = vrcp.pop %v974
  %v976 = vmul.f32 1.0, %v975
  %v977 = vmul.f32 %v969, %v958
  %v978 = vadd.f32 %v880, %v977
  %v979 = vtanh.pop %v978
  %v980 = vsub.f32 1.0, %v976
  %v981 = vmul.f32 %v980, %v979
  %v982 = vmul.f32 %v976, %v876
  %v983 = vadd.f32 %v981, %v982
  %vm984 = vcmp.gt.s32.totalorder %v62, 6
  %v985 = vsel %vm984, %v983, %v876
  %s986 = scalar_lea.vmem %s0, 168
  %v987 = vld [vmem:[%s986] sm:$0xff]
  %v988 = vld [vmem:[%s986 + $0x8] sm:$0xff]
  %v989 = vld [vmem:[%s986 + $0x10] sm:$0xff]
  %v990 = vpack.c.bf16 %v985, %v985
  %991 = vmatprep.subr.bf16.mxu0 %v181
  %992 = vmatpush1.bf16.msra.mxu0 %v180
  %993 = vmatprep.subr.bf16.mxu0 %v184
  %994 = vmatpush1.bf16.msra.mxu0 %v183
  %995 = vmatprep.subr.bf16.mxu0 %v187
  %996 = vmatpush1.bf16.msra.mxu0 %v186
  %997 = vmatprep.subr.bf16.mxu0 %v190
  %998 = vmatpush1.bf16.msra.mxu0 %v189
  %999 = vmatprep.subr.bf16.mxu0 %v193
  %1000 = vmatpush1.bf16.msra.mxu0 %v192
  %1001 = vmatprep.subr.bf16.mxu0 %v196
  %1002 = vmatpush1.bf16.msra.mxu0 %v195
  %1003 = vmatprep.subr.bf16.mxu0 %v199
  %1004 = vmatpush1.bf16.msra.mxu0 %v198
  %1005 = vmatprep.subr.bf16.mxu0 %v202
  %1006 = vmatpush1.bf16.msra.mxu0 %v201
  %1007 = vmatprep.subr.bf16.mxu0 0
  %1008 = vmatpush1.bf16.msra.mxu0 0
  %1009 = vmatprep.subr.bf16.mxu0 0
  %1010 = vmatpush1.bf16.msra.mxu0 0
  %1011 = vmatprep.subr.bf16.mxu0 0
  %1012 = vmatpush1.bf16.msra.mxu0 0
  %1013 = vmatprep.subr.bf16.mxu0 0
  %1014 = vmatpush1.bf16.msra.mxu0 0
  %1015 = vmatprep.subr.bf16.mxu0 0
  %1016 = vmatpush1.bf16.msra.mxu0 0
  %1017 = vmatprep.subr.bf16.mxu0 0
  %1018 = vmatpush1.bf16.msra.mxu0 0
  %1019 = vmatprep.subr.bf16.mxu0 0
  %1020 = vmatpush1.bf16.msra.mxu0 0
  %1021 = vmatprep.subr.bf16.mxu0 0
  %1022 = vmatpush1.bf16.msra.mxu0 0
  %1023 = vmatprep.mubr.bf16.mxu0 0
  %1024 = vmatmul.mubr.bf16.gmra.mrb[0].mxu0 %v990
  %v1025 = vpop.f32.mrb[0].mxu0
  %v1026 = vadd.f32 %v55, %v1025
  %v1027 = vpop.f32.mrb[0].mxu0
  %v1028 = vadd.f32 %v56, %v1027
  %v1029 = vpop.f32.mrb[0].mxu0
  %v1030 = vpop.f32.mrb[0].mxu0
  %1031 = vdwg.mxu0
  %1032 = vmatprep.subr.bf16.mxu0 0
  %1033 = vmatpush1.bf16.msra.mxu0 %v182
  %1034 = vmatprep.subr.bf16.mxu0 0
  %1035 = vmatpush1.bf16.msra.mxu0 %v185
  %1036 = vmatprep.subr.bf16.mxu0 0
  %1037 = vmatpush1.bf16.msra.mxu0 %v188
  %1038 = vmatprep.subr.bf16.mxu0 0
  %1039 = vmatpush1.bf16.msra.mxu0 %v191
  %1040 = vmatprep.subr.bf16.mxu0 0
  %1041 = vmatpush1.bf16.msra.mxu0 %v194
  %1042 = vmatprep.subr.bf16.mxu0 0
  %1043 = vmatpush1.bf16.msra.mxu0 %v197
  %1044 = vmatprep.subr.bf16.mxu0 0
  %1045 = vmatpush1.bf16.msra.mxu0 %v200
  %1046 = vmatprep.subr.bf16.mxu0 0
  %1047 = vmatpush1.bf16.msra.mxu0 %v203
  %1048 = vmatprep.subr.bf16.mxu0 0
  %1049 = vmatpush1.bf16.msra.mxu0 0
  %1050 = vmatprep.subr.bf16.mxu0 0
  %1051 = vmatpush1.bf16.msra.mxu0 0
  %1052 = vmatprep.subr.bf16.mxu0 0
  %1053 = vmatpush1.bf16.msra.mxu0 0
  %1054 = vmatprep.subr.bf16.mxu0 0
  %1055 = vmatpush1.bf16.msra.mxu0 0
  %1056 = vmatprep.subr.bf16.mxu0 0
  %1057 = vmatpush1.bf16.msra.mxu0 0
  %1058 = vmatprep.subr.bf16.mxu0 0
  %1059 = vmatpush1.bf16.msra.mxu0 0
  %1060 = vmatprep.subr.bf16.mxu0 0
  %1061 = vmatpush1.bf16.msra.mxu0 0
  %1062 = vmatprep.subr.bf16.mxu0 0
  %1063 = vmatpush1.bf16.msra.mxu0 0
  %1064 = vmatprep.mubr.bf16.mxu0 0
  %1065 = vmatmul.mubr.bf16.gmra.mrb[0].mxu0 %v990
  %v1066 = vpop.f32.mrb[0].mxu0
  %v1067 = vadd.f32 %v57, %v1066
  %v1068 = vpop.f32.mrb[0].mxu0
  %v1069 = vpop.f32.mrb[0].mxu0
  %v1070 = vpop.f32.mrb[0].mxu0
  %1071 = vdwg.mxu0
  %v1072 = vadd.f32 %v987, %v1026
  %v1073 = vxor.u32 %v1072, 2147483648
  %v1074 = vmul.f32 %v1073, 1.442695
  %v1075 = vpow.pop %v1074
  %v1076 = vadd.f32 %v1075, 1.0
  %v1077 = vrcp.pop %v1076
  %v1078 = vmul.f32 1.0, %v1077
  %v1079 = vadd.f32 %v988, %v1028
  %v1080 = vxor.u32 %v1079, 2147483648
  %v1081 = vmul.f32 %v1080, 1.442695
  %v1082 = vpow.pop %v1081
  %v1083 = vadd.f32 %v1082, 1.0
  %v1084 = vrcp.pop %v1083
  %v1085 = vmul.f32 1.0, %v1084
  %v1086 = vmul.f32 %v1078, %v1067
  %v1087 = vadd.f32 %v989, %v1086
  %v1088 = vtanh.pop %v1087
  %v1089 = vsub.f32 1.0, %v1085
  %v1090 = vmul.f32 %v1089, %v1088
  %v1091 = vmul.f32 %v1085, %v985
  %v1092 = vadd.f32 %v1090, %v1091
  %vm1093 = vcmp.gt.s32.totalorder %v62, 7
  %v1094 = vsel %vm1093, %v1092, %v985
  %v1095 = vld [vmem:[%s3] sm:$0xff]
  %v1096 = vadd.f32 %v1094, %v1095
  %v1097 = vld [vmem:[%s2] sm:$0xff]
  %v1098 = vld [vmem:[%s2 + $0x8] sm:$0xff]
  %v1099 = vld [vmem:[%s2 + $0x10] sm:$0xff]
  %v1100 = vpack.c.bf16 %v1096, %v1096
  %v1101 = vld [vmem:[%s9] sm:$0xff]
  %v1102 = vld [vmem:[%s9 + $0x8] sm:$0xf]
  %v1103 = vld [vmem:[%s9 + $0xc] sm:$0xff]
  %v1104 = vld [vmem:[%s9 + $0x14] sm:$0xf]
  %v1105 = vld [vmem:[%s9 + $0x18] sm:$0xff]
  %v1106 = vld [vmem:[%s9 + $0x20] sm:$0xf]
  %v1107 = vld [vmem:[%s9 + $0x24] sm:$0xff]
  %v1108 = vld [vmem:[%s9 + $0x2c] sm:$0xf]
  %v1109 = vld [vmem:[%s9 + $0x30] sm:$0xff]
  %v1110 = vld [vmem:[%s9 + $0x38] sm:$0xf]
  %v1111 = vld [vmem:[%s9 + $0x3c] sm:$0xff]
  %v1112 = vld [vmem:[%s9 + $0x44] sm:$0xf]
  %v1113 = vld [vmem:[%s9 + $0x48] sm:$0xff]
  %v1114 = vld [vmem:[%s9 + $0x50] sm:$0xf]
  %v1115 = vld [vmem:[%s9 + $0x54] sm:$0xff]
  %v1116 = vld [vmem:[%s9 + $0x5c] sm:$0xf]
  %v1117 = vld [vmem:[%s9 + $0x60] sm:$0xff]
  %v1118 = vld [vmem:[%s9 + $0x68] sm:$0xf]
  %v1119 = vld [vmem:[%s9 + $0x6c] sm:$0xff]
  %v1120 = vld [vmem:[%s9 + $0x74] sm:$0xf]
  %v1121 = vld [vmem:[%s9 + $0x78] sm:$0xff]
  %v1122 = vld [vmem:[%s9 + $0x80] sm:$0xf]
  %v1123 = vld [vmem:[%s9 + $0x84] sm:$0xff]
  %v1124 = vld [vmem:[%s9 + $0x8c] sm:$0xf]
  %v1125 = vld [vmem:[%s9 + $0x90] sm:$0xff]
  %v1126 = vld [vmem:[%s9 + $0x98] sm:$0xf]
  %v1127 = vld [vmem:[%s9 + $0x9c] sm:$0xff]
  %v1128 = vld [vmem:[%s9 + $0xa4] sm:$0xf]
  %v1129 = vld [vmem:[%s9 + $0xa8] sm:$0xff]
  %v1130 = vld [vmem:[%s9 + $0xb0] sm:$0xf]
  %v1131 = vld [vmem:[%s9 + $0xb4] sm:$0xff]
  %v1132 = vld [vmem:[%s9 + $0xbc] sm:$0xf]
  %v1165 = vunpack.c.l.b16 %v1101
  %v1166 = vunpack.c.h.b16 %v1101
  %v1167 = vunpack.c.l.b16 %v1102
  %v1168 = vunpack.c.l.b16 %v1103
  %v1169 = vunpack.c.h.b16 %v1103
  %v1170 = vunpack.c.l.b16 %v1104
  %v1171 = vunpack.c.l.b16 %v1105
  %v1172 = vunpack.c.h.b16 %v1105
  %v1173 = vunpack.c.l.b16 %v1106
  %v1174 = vunpack.c.l.b16 %v1107
  %v1175 = vunpack.c.h.b16 %v1107
  %v1176 = vunpack.c.l.b16 %v1108
  %v1177 = vunpack.c.l.b16 %v1109
  %v1178 = vunpack.c.h.b16 %v1109
  %v1179 = vunpack.c.l.b16 %v1110
  %v1180 = vunpack.c.l.b16 %v1111
  %v1181 = vunpack.c.h.b16 %v1111
  %v1182 = vunpack.c.l.b16 %v1112
  %v1183 = vunpack.c.l.b16 %v1113
  %v1184 = vunpack.c.h.b16 %v1113
  %v1185 = vunpack.c.l.b16 %v1114
  %v1186 = vunpack.c.l.b16 %v1115
  %v1187 = vunpack.c.h.b16 %v1115
  %v1188 = vunpack.c.l.b16 %v1116
  %v1189 = vunpack.c.l.b16 %v1117
  %v1190 = vunpack.c.h.b16 %v1117
  %v1191 = vunpack.c.l.b16 %v1118
  %v1192 = vunpack.c.l.b16 %v1119
  %v1193 = vunpack.c.h.b16 %v1119
  %v1194 = vunpack.c.l.b16 %v1120
  %v1195 = vunpack.c.l.b16 %v1121
  %v1196 = vunpack.c.h.b16 %v1121
  %v1197 = vunpack.c.l.b16 %v1122
  %v1198 = vunpack.c.l.b16 %v1123
  %v1199 = vunpack.c.h.b16 %v1123
  %v1200 = vunpack.c.l.b16 %v1124
  %v1201 = vunpack.c.l.b16 %v1125
  %v1202 = vunpack.c.h.b16 %v1125
  %v1203 = vunpack.c.l.b16 %v1126
  %v1204 = vunpack.c.l.b16 %v1127
  %v1205 = vunpack.c.h.b16 %v1127
  %v1206 = vunpack.c.l.b16 %v1128
  %v1207 = vunpack.c.l.b16 %v1129
  %v1208 = vunpack.c.h.b16 %v1129
  %v1209 = vunpack.c.l.b16 %v1130
  %v1210 = vunpack.c.l.b16 %v1131
  %v1211 = vunpack.c.h.b16 %v1131
  %v1212 = vunpack.c.l.b16 %v1132
  %v1213 = vpack.c.b16 %v1168, %v1165
  %v1214 = vpack.c.b16 %v1169, %v1166
  %v1215 = vpack.c.b16 %v1170, %v1167
  %v1216 = vpack.c.b16 %v1174, %v1171
  %v1217 = vpack.c.b16 %v1175, %v1172
  %v1218 = vpack.c.b16 %v1176, %v1173
  %v1219 = vpack.c.b16 %v1180, %v1177
  %v1220 = vpack.c.b16 %v1181, %v1178
  %v1221 = vpack.c.b16 %v1182, %v1179
  %v1222 = vpack.c.b16 %v1186, %v1183
  %v1223 = vpack.c.b16 %v1187, %v1184
  %v1224 = vpack.c.b16 %v1188, %v1185
  %v1225 = vpack.c.b16 %v1192, %v1189
  %v1226 = vpack.c.b16 %v1193, %v1190
  %v1227 = vpack.c.b16 %v1194, %v1191
  %v1228 = vpack.c.b16 %v1198, %v1195
  %v1229 = vpack.c.b16 %v1199, %v1196
  %v1230 = vpack.c.b16 %v1200, %v1197
  %v1231 = vpack.c.b16 %v1204, %v1201
  %v1232 = vpack.c.b16 %v1205, %v1202
  %v1233 = vpack.c.b16 %v1206, %v1203
  %v1234 = vpack.c.b16 %v1210, %v1207
  %v1235 = vpack.c.b16 %v1211, %v1208
  %v1236 = vpack.c.b16 %v1212, %v1209
  %1261 = vmatprep.subr.bf16.mxu0 %v1214
  %1262 = vmatpush1.bf16.msra.mxu0 %v1213
  %1263 = vmatprep.subr.bf16.mxu0 %v1217
  %1264 = vmatpush1.bf16.msra.mxu0 %v1216
  %1265 = vmatprep.subr.bf16.mxu0 %v1220
  %1266 = vmatpush1.bf16.msra.mxu0 %v1219
  %1267 = vmatprep.subr.bf16.mxu0 %v1223
  %1268 = vmatpush1.bf16.msra.mxu0 %v1222
  %1269 = vmatprep.subr.bf16.mxu0 %v1226
  %1270 = vmatpush1.bf16.msra.mxu0 %v1225
  %1271 = vmatprep.subr.bf16.mxu0 %v1229
  %1272 = vmatpush1.bf16.msra.mxu0 %v1228
  %1273 = vmatprep.subr.bf16.mxu0 %v1232
  %1274 = vmatpush1.bf16.msra.mxu0 %v1231
  %1275 = vmatprep.subr.bf16.mxu0 %v1235
  %1276 = vmatpush1.bf16.msra.mxu0 %v1234
  %1277 = vmatprep.subr.bf16.mxu0 0
  %1278 = vmatpush1.bf16.msra.mxu0 0
  %1279 = vmatprep.subr.bf16.mxu0 0
  %1280 = vmatpush1.bf16.msra.mxu0 0
  %1281 = vmatprep.subr.bf16.mxu0 0
  %1282 = vmatpush1.bf16.msra.mxu0 0
  %1283 = vmatprep.subr.bf16.mxu0 0
  %1284 = vmatpush1.bf16.msra.mxu0 0
  %1285 = vmatprep.subr.bf16.mxu0 0
  %1286 = vmatpush1.bf16.msra.mxu0 0
  %1287 = vmatprep.subr.bf16.mxu0 0
  %1288 = vmatpush1.bf16.msra.mxu0 0
  %1289 = vmatprep.subr.bf16.mxu0 0
  %1290 = vmatpush1.bf16.msra.mxu0 0
  %1291 = vmatprep.subr.bf16.mxu0 0
  %1292 = vmatpush1.bf16.msra.mxu0 0
  %1293 = vmatprep.mubr.bf16.mxu0 0
  %1294 = vmatmul.mubr.bf16.gmra.mrb[0].mxu0 %v1100
  %v1295 = vpop.f32.mrb[0].mxu0
  %v1296 = vadd.f32 %v58, %v1295
  %v1297 = vpop.f32.mrb[0].mxu0
  %v1298 = vadd.f32 %v59, %v1297
  %v1299 = vpop.f32.mrb[0].mxu0
  %v1300 = vpop.f32.mrb[0].mxu0
  %1301 = vdwg.mxu0
  %1302 = vmatprep.subr.bf16.mxu0 0
  %1303 = vmatpush1.bf16.msra.mxu0 %v1215
  %1304 = vmatprep.subr.bf16.mxu0 0
  %1305 = vmatpush1.bf16.msra.mxu0 %v1218
  %1306 = vmatprep.subr.bf16.mxu0 0
  %1307 = vmatpush1.bf16.msra.mxu0 %v1221
  %1308 = vmatprep.subr.bf16.mxu0 0
  %1309 = vmatpush1.bf16.msra.mxu0 %v1224
  %1310 = vmatprep.subr.bf16.mxu0 0
  %1311 = vmatpush1.bf16.msra.mxu0 %v1227
  %1312 = vmatprep.subr.bf16.mxu0 0
  %1313 = vmatpush1.bf16.msra.mxu0 %v1230
  %1314 = vmatprep.subr.bf16.mxu0 0
  %1315 = vmatpush1.bf16.msra.mxu0 %v1233
  %1316 = vmatprep.subr.bf16.mxu0 0
  %1317 = vmatpush1.bf16.msra.mxu0 %v1236
  %1318 = vmatprep.subr.bf16.mxu0 0
  %1319 = vmatpush1.bf16.msra.mxu0 0
  %1320 = vmatprep.subr.bf16.mxu0 0
  %1321 = vmatpush1.bf16.msra.mxu0 0
  %1322 = vmatprep.subr.bf16.mxu0 0
  %1323 = vmatpush1.bf16.msra.mxu0 0
  %1324 = vmatprep.subr.bf16.mxu0 0
  %1325 = vmatpush1.bf16.msra.mxu0 0
  %1326 = vmatprep.subr.bf16.mxu0 0
  %1327 = vmatpush1.bf16.msra.mxu0 0
  %1328 = vmatprep.subr.bf16.mxu0 0
  %1329 = vmatpush1.bf16.msra.mxu0 0
  %1330 = vmatprep.subr.bf16.mxu0 0
  %1331 = vmatpush1.bf16.msra.mxu0 0
  %1332 = vmatprep.subr.bf16.mxu0 0
  %1333 = vmatpush1.bf16.msra.mxu0 0
  %1334 = vmatprep.mubr.bf16.mxu0 0
  %1335 = vmatmul.mubr.bf16.gmra.mrb[0].mxu0 %v1100
  %v1336 = vpop.f32.mrb[0].mxu0
  %v1337 = vadd.f32 %v60, %v1336
  %v1338 = vpop.f32.mrb[0].mxu0
  %v1339 = vpop.f32.mrb[0].mxu0
  %v1340 = vpop.f32.mrb[0].mxu0
  %1341 = vdwg.mxu0
  %v1342 = vadd.f32 %v1097, %v1296
  %v1343 = vxor.u32 %v1342, 2147483648
  %v1344 = vmul.f32 %v1343, 1.442695
  %v1345 = vpow.pop %v1344
  %v1346 = vadd.f32 %v1345, 1.0
  %v1347 = vrcp.pop %v1346
  %v1348 = vmul.f32 1.0, %v1347
  %v1349 = vadd.f32 %v1098, %v1298
  %v1350 = vxor.u32 %v1349, 2147483648
  %v1351 = vmul.f32 %v1350, 1.442695
  %v1352 = vpow.pop %v1351
  %v1353 = vadd.f32 %v1352, 1.0
  %v1354 = vrcp.pop %v1353
  %v1355 = vmul.f32 1.0, %v1354
  %v1356 = vmul.f32 %v1348, %v1337
  %v1357 = vadd.f32 %v1099, %v1356
  %v1358 = vtanh.pop %v1357
  %v1359 = vsub.f32 1.0, %v1355
  %v1360 = vmul.f32 %v1359, %v1358
  %v1361 = vmul.f32 %v1355, %v1096
  %v1362 = vadd.f32 %v1360, %v1361
  %1363 = vst [vmem:[%s15] sm:$0xff] %v1362
  %v1364 = vpack.c.bf16 %v1362, %v1362
  %v1365 = vld [vmem:[%s13] sm:$0xf]
  %v1366 = vld [vmem:[%s13 + $0x4] sm:$0xf]
  %v1367 = vld [vmem:[%s13 + $0x8] sm:$0xf]
  %v1368 = vld [vmem:[%s13 + $0xc] sm:$0xf]
  %v1369 = vld [vmem:[%s13 + $0x10] sm:$0xf]
  %v1370 = vld [vmem:[%s13 + $0x14] sm:$0xf]
  %v1371 = vld [vmem:[%s13 + $0x18] sm:$0xf]
  %v1372 = vld [vmem:[%s13 + $0x1c] sm:$0xf]
  %v1373 = vld [vmem:[%s13 + $0x20] sm:$0xf]
  %v1374 = vld [vmem:[%s13 + $0x24] sm:$0xf]
  %v1375 = vld [vmem:[%s13 + $0x28] sm:$0xf]
  %v1376 = vld [vmem:[%s13 + $0x2c] sm:$0xf]
  %v1377 = vld [vmem:[%s13 + $0x30] sm:$0xf]
  %v1378 = vld [vmem:[%s13 + $0x34] sm:$0xf]
  %v1379 = vld [vmem:[%s13 + $0x38] sm:$0xf]
  %v1380 = vld [vmem:[%s13 + $0x3c] sm:$0xf]
  %v1397 = vunpack.c.l.b16 %v1365
  %v1398 = vunpack.c.l.b16 %v1366
  %v1399 = vunpack.c.l.b16 %v1367
  %v1400 = vunpack.c.l.b16 %v1368
  %v1401 = vunpack.c.l.b16 %v1369
  %v1402 = vunpack.c.l.b16 %v1370
  %v1403 = vunpack.c.l.b16 %v1371
  %v1404 = vunpack.c.l.b16 %v1372
  %v1405 = vunpack.c.l.b16 %v1373
  %v1406 = vunpack.c.l.b16 %v1374
  %v1407 = vunpack.c.l.b16 %v1375
  %v1408 = vunpack.c.l.b16 %v1376
  %v1409 = vunpack.c.l.b16 %v1377
  %v1410 = vunpack.c.l.b16 %v1378
  %v1411 = vunpack.c.l.b16 %v1379
  %v1412 = vunpack.c.l.b16 %v1380
  %v1413 = vpack.c.b16 %v1398, %v1397
  %v1414 = vpack.c.b16 %v1400, %v1399
  %v1415 = vpack.c.b16 %v1402, %v1401
  %v1416 = vpack.c.b16 %v1404, %v1403
  %v1417 = vpack.c.b16 %v1406, %v1405
  %v1418 = vpack.c.b16 %v1408, %v1407
  %v1419 = vpack.c.b16 %v1410, %v1409
  %v1420 = vpack.c.b16 %v1412, %v1411
  %1429 = vmatprep.subr.bf16.mxu0 0
  %1430 = vmatpush1.bf16.msra.mxu0 %v1413
  %1431 = vmatprep.subr.bf16.mxu0 0
  %1432 = vmatpush1.bf16.msra.mxu0 %v1414
  %1433 = vmatprep.subr.bf16.mxu0 0
  %1434 = vmatpush1.bf16.msra.mxu0 %v1415
  %1435 = vmatprep.subr.bf16.mxu0 0
  %1436 = vmatpush1.bf16.msra.mxu0 %v1416
  %1437 = vmatprep.subr.bf16.mxu0 0
  %1438 = vmatpush1.bf16.msra.mxu0 %v1417
  %1439 = vmatprep.subr.bf16.mxu0 0
  %1440 = vmatpush1.bf16.msra.mxu0 %v1418
  %1441 = vmatprep.subr.bf16.mxu0 0
  %1442 = vmatpush1.bf16.msra.mxu0 %v1419
  %1443 = vmatprep.subr.bf16.mxu0 0
  %1444 = vmatpush1.bf16.msra.mxu0 %v1420
  %1445 = vmatprep.subr.bf16.mxu0 0
  %1446 = vmatpush1.bf16.msra.mxu0 0
  %1447 = vmatprep.subr.bf16.mxu0 0
  %1448 = vmatpush1.bf16.msra.mxu0 0
  %1449 = vmatprep.subr.bf16.mxu0 0
  %1450 = vmatpush1.bf16.msra.mxu0 0
  %1451 = vmatprep.subr.bf16.mxu0 0
  %1452 = vmatpush1.bf16.msra.mxu0 0
  %1453 = vmatprep.subr.bf16.mxu0 0
  %1454 = vmatpush1.bf16.msra.mxu0 0
  %1455 = vmatprep.subr.bf16.mxu0 0
  %1456 = vmatpush1.bf16.msra.mxu0 0
  %1457 = vmatprep.subr.bf16.mxu0 0
  %1458 = vmatpush1.bf16.msra.mxu0 0
  %1459 = vmatprep.subr.bf16.mxu0 0
  %1460 = vmatpush1.bf16.msra.mxu0 0
  %1461 = vmatprep.mubr.bf16.mxu0 0
  %1462 = vmatmul.mubr.bf16.gmra.mrb[0].mxu0 %v1364
  %v1463 = vpop.f32.mrb[0].mxu0
  %v1464 = vadd.f32 %v61, %v1463
  %v1465 = vpop.f32.mrb[0].mxu0
  %v1466 = vpop.f32.mrb[0].mxu0
  %v1467 = vpop.f32.mrb[0].mxu0
  %1468 = vdwg.mxu0
  %1469 = vmax.xlane.f32.xlu0 %v1464
  %v1470 = vpop.xlane.xlu0 %1469
  %vm1471 = vcmp.eq.f32.partialorder %v1464, %v1470
  %v1472 = vsel %vm1471, %v64, 128
  %v1473 = vand.u32 %v1472, 65535
  %v1474 = vshra.s32 %v1472, 16
  %v1475 = vcvt.s32.f32 %v1473
  %v1476 = vcvt.s32.f32 %v1474
  %1477 = vmin.xlane.f32.xlu0 %v1476
  %v1478 = vpop.xlane.xlu0 %1477
  %vm1479 = vcmp.eq.f32.partialorder %v1476, %v1478
  %v1480 = vsel %vm1479, %v1475, inf
  %1481 = vmin.xlane.f32.xlu0 %v1480
  %v1482 = vpop.xlane.xlu0 %1481
  %v1483 = vcvt.f32.s32 %v1482
  %v1484 = vcvt.f32.s32 %v1478
  %v1485 = vshll.u32 %v1484, 16
  %v1486 = vadd.s32 %v1485, %v1483
  %vm1487 = vcmp.eq.s32.totalorder %v64, %v1486
  %v1488 = vsel %vm1487, 1.0, 0.0
  %v1489 = vpack.c.bf16 %v1488, %v1488
  %vm1490 = vcmp.eq.s32.totalorder %v1486, 2
  %v1491 = vsel %vm1490, 1, 0
  %v1492 = vsub.s32 1, %v1491
  %v1493 = vmul.u32 %v1492, 5
  %v1494 = vsel %vm1490, %v1491, 0
  %v1495 = vld [vmem:[%s12] sm:$0xff]
  %v1496 = vld [vmem:[%s12 + $0x8] sm:$0xf]
  %v1497 = vld [vmem:[%s12 + $0xc] sm:$0xff]
  %v1498 = vld [vmem:[%s12 + $0x14] sm:$0xf]
  %v1499 = vld [vmem:[%s12 + $0x18] sm:$0xff]
  %v1500 = vld [vmem:[%s12 + $0x20] sm:$0xf]
  %v1501 = vld [vmem:[%s12 + $0x24] sm:$0xff]
  %v1502 = vld [vmem:[%s12 + $0x2c] sm:$0xf]
  %v1503 = vld [vmem:[%s12 + $0x30] sm:$0xff]
  %v1504 = vld [vmem:[%s12 + $0x38] sm:$0xf]
  %v1505 = vld [vmem:[%s12 + $0x3c] sm:$0xff]
  %v1506 = vld [vmem:[%s12 + $0x44] sm:$0xf]
  %v1507 = vld [vmem:[%s12 + $0x48] sm:$0xff]
  %v1508 = vld [vmem:[%s12 + $0x50] sm:$0xf]
  %v1509 = vld [vmem:[%s12 + $0x54] sm:$0xff]
  %v1510 = vld [vmem:[%s12 + $0x5c] sm:$0xf]
  %v1511 = vld [vmem:[%s12 + $0x60] sm:$0xff]
  %v1512 = vld [vmem:[%s12 + $0x68] sm:$0xf]
  %v1513 = vld [vmem:[%s12 + $0x6c] sm:$0xff]
  %v1514 = vld [vmem:[%s12 + $0x74] sm:$0xf]
  %v1515 = vld [vmem:[%s12 + $0x78] sm:$0xff]
  %v1516 = vld [vmem:[%s12 + $0x80] sm:$0xf]
  %v1517 = vld [vmem:[%s12 + $0x84] sm:$0xff]
  %v1518 = vld [vmem:[%s12 + $0x8c] sm:$0xf]
  %v1519 = vld [vmem:[%s12 + $0x90] sm:$0xff]
  %v1520 = vld [vmem:[%s12 + $0x98] sm:$0xf]
  %v1521 = vld [vmem:[%s12 + $0x9c] sm:$0xff]
  %v1522 = vld [vmem:[%s12 + $0xa4] sm:$0xf]
  %v1523 = vld [vmem:[%s12 + $0xa8] sm:$0xff]
  %v1524 = vld [vmem:[%s12 + $0xb0] sm:$0xf]
  %v1525 = vld [vmem:[%s12 + $0xb4] sm:$0xff]
  %v1526 = vld [vmem:[%s12 + $0xbc] sm:$0xf]
  %v1559 = vunpack.c.l.b16 %v1495
  %v1560 = vunpack.c.h.b16 %v1495
  %v1561 = vunpack.c.l.b16 %v1496
  %v1562 = vunpack.c.l.b16 %v1497
  %v1563 = vunpack.c.h.b16 %v1497
  %v1564 = vunpack.c.l.b16 %v1498
  %v1565 = vunpack.c.l.b16 %v1499
  %v1566 = vunpack.c.h.b16 %v1499
  %v1567 = vunpack.c.l.b16 %v1500
  %v1568 = vunpack.c.l.b16 %v1501
  %v1569 = vunpack.c.h.b16 %v1501
  %v1570 = vunpack.c.l.b16 %v1502
  %v1571 = vunpack.c.l.b16 %v1503
  %v1572 = vunpack.c.h.b16 %v1503
  %v1573 = vunpack.c.l.b16 %v1504
  %v1574 = vunpack.c.l.b16 %v1505
  %v1575 = vunpack.c.h.b16 %v1505
  %v1576 = vunpack.c.l.b16 %v1506
  %v1577 = vunpack.c.l.b16 %v1507
  %v1578 = vunpack.c.h.b16 %v1507
  %v1579 = vunpack.c.l.b16 %v1508
  %v1580 = vunpack.c.l.b16 %v1509
  %v1581 = vunpack.c.h.b16 %v1509
  %v1582 = vunpack.c.l.b16 %v1510
  %v1583 = vunpack.c.l.b16 %v1511
  %v1584 = vunpack.c.h.b16 %v1511
  %v1585 = vunpack.c.l.b16 %v1512
  %v1586 = vunpack.c.l.b16 %v1513
  %v1587 = vunpack.c.h.b16 %v1513
  %v1588 = vunpack.c.l.b16 %v1514
  %v1589 = vunpack.c.l.b16 %v1515
  %v1590 = vunpack.c.h.b16 %v1515
  %v1591 = vunpack.c.l.b16 %v1516
  %v1592 = vunpack.c.l.b16 %v1517
  %v1593 = vunpack.c.h.b16 %v1517
  %v1594 = vunpack.c.l.b16 %v1518
  %v1595 = vunpack.c.l.b16 %v1519
  %v1596 = vunpack.c.h.b16 %v1519
  %v1597 = vunpack.c.l.b16 %v1520
  %v1598 = vunpack.c.l.b16 %v1521
  %v1599 = vunpack.c.h.b16 %v1521
  %v1600 = vunpack.c.l.b16 %v1522
  %v1601 = vunpack.c.l.b16 %v1523
  %v1602 = vunpack.c.h.b16 %v1523
  %v1603 = vunpack.c.l.b16 %v1524
  %v1604 = vunpack.c.l.b16 %v1525
  %v1605 = vunpack.c.h.b16 %v1525
  %v1606 = vunpack.c.l.b16 %v1526
  %v1607 = vpack.c.b16 %v1562, %v1559
  %v1608 = vpack.c.b16 %v1563, %v1560
  %v1609 = vpack.c.b16 %v1564, %v1561
  %v1610 = vpack.c.b16 %v1568, %v1565
  %v1611 = vpack.c.b16 %v1569, %v1566
  %v1612 = vpack.c.b16 %v1570, %v1567
  %v1613 = vpack.c.b16 %v1574, %v1571
  %v1614 = vpack.c.b16 %v1575, %v1572
  %v1615 = vpack.c.b16 %v1576, %v1573
  %v1616 = vpack.c.b16 %v1580, %v1577
  %v1617 = vpack.c.b16 %v1581, %v1578
  %v1618 = vpack.c.b16 %v1582, %v1579
  %v1619 = vpack.c.b16 %v1586, %v1583
  %v1620 = vpack.c.b16 %v1587, %v1584
  %v1621 = vpack.c.b16 %v1588, %v1585
  %v1622 = vpack.c.b16 %v1592, %v1589
  %v1623 = vpack.c.b16 %v1593, %v1590
  %v1624 = vpack.c.b16 %v1594, %v1591
  %v1625 = vpack.c.b16 %v1598, %v1595
  %v1626 = vpack.c.b16 %v1599, %v1596
  %v1627 = vpack.c.b16 %v1600, %v1597
  %v1628 = vpack.c.b16 %v1604, %v1601
  %v1629 = vpack.c.b16 %v1605, %v1602
  %v1630 = vpack.c.b16 %v1606, %v1603
  %1655 = vmatprep.subr.bf16.mxu0 %v1608
  %1656 = vmatpush1.bf16.msra.mxu0 %v1607
  %1657 = vmatprep.subr.bf16.mxu0 %v1611
  %1658 = vmatpush1.bf16.msra.mxu0 %v1610
  %1659 = vmatprep.subr.bf16.mxu0 %v1614
  %1660 = vmatpush1.bf16.msra.mxu0 %v1613
  %1661 = vmatprep.subr.bf16.mxu0 %v1617
  %1662 = vmatpush1.bf16.msra.mxu0 %v1616
  %1663 = vmatprep.subr.bf16.mxu0 %v1620
  %1664 = vmatpush1.bf16.msra.mxu0 %v1619
  %1665 = vmatprep.subr.bf16.mxu0 %v1623
  %1666 = vmatpush1.bf16.msra.mxu0 %v1622
  %1667 = vmatprep.subr.bf16.mxu0 %v1626
  %1668 = vmatpush1.bf16.msra.mxu0 %v1625
  %1669 = vmatprep.subr.bf16.mxu0 %v1629
  %1670 = vmatpush1.bf16.msra.mxu0 %v1628
  %1671 = vmatprep.subr.bf16.mxu0 0
  %1672 = vmatpush1.bf16.msra.mxu0 0
  %1673 = vmatprep.subr.bf16.mxu0 0
  %1674 = vmatpush1.bf16.msra.mxu0 0
  %1675 = vmatprep.subr.bf16.mxu0 0
  %1676 = vmatpush1.bf16.msra.mxu0 0
  %1677 = vmatprep.subr.bf16.mxu0 0
  %1678 = vmatpush1.bf16.msra.mxu0 0
  %1679 = vmatprep.subr.bf16.mxu0 0
  %1680 = vmatpush1.bf16.msra.mxu0 0
  %1681 = vmatprep.subr.bf16.mxu0 0
  %1682 = vmatpush1.bf16.msra.mxu0 0
  %1683 = vmatprep.subr.bf16.mxu0 0
  %1684 = vmatpush1.bf16.msra.mxu0 0
  %1685 = vmatprep.subr.bf16.mxu0 0
  %1686 = vmatpush1.bf16.msra.mxu0 0
  %1687 = vmatprep.mubr.bf16.mxu0 0
  %1688 = vmatmul.mubr.bf16.gmra.mrb[0].mxu0 %v1489
  %v1689 = vpop.f32.mrb[0].mxu0
  %v1690 = vadd.f32 0.0, %v1689
  %v1691 = vpop.f32.mrb[0].mxu0
  %v1692 = vadd.f32 0.0, %v1691
  %v1693 = vpop.f32.mrb[0].mxu0
  %v1694 = vpop.f32.mrb[0].mxu0
  %1695 = vdwg.mxu0
  %1696 = vmatprep.subr.bf16.mxu0 0
  %1697 = vmatpush1.bf16.msra.mxu0 %v1609
  %1698 = vmatprep.subr.bf16.mxu0 0
  %1699 = vmatpush1.bf16.msra.mxu0 %v1612
  %1700 = vmatprep.subr.bf16.mxu0 0
  %1701 = vmatpush1.bf16.msra.mxu0 %v1615
  %1702 = vmatprep.subr.bf16.mxu0 0
  %1703 = vmatpush1.bf16.msra.mxu0 %v1618
  %1704 = vmatprep.subr.bf16.mxu0 0
  %1705 = vmatpush1.bf16.msra.mxu0 %v1621
  %1706 = vmatprep.subr.bf16.mxu0 0
  %1707 = vmatpush1.bf16.msra.mxu0 %v1624
  %1708 = vmatprep.subr.bf16.mxu0 0
  %1709 = vmatpush1.bf16.msra.mxu0 %v1627
  %1710 = vmatprep.subr.bf16.mxu0 0
  %1711 = vmatpush1.bf16.msra.mxu0 %v1630
  %1712 = vmatprep.subr.bf16.mxu0 0
  %1713 = vmatpush1.bf16.msra.mxu0 0
  %1714 = vmatprep.subr.bf16.mxu0 0
  %1715 = vmatpush1.bf16.msra.mxu0 0
  %1716 = vmatprep.subr.bf16.mxu0 0
  %1717 = vmatpush1.bf16.msra.mxu0 0
  %1718 = vmatprep.subr.bf16.mxu0 0
  %1719 = vmatpush1.bf16.msra.mxu0 0
  %1720 = vmatprep.subr.bf16.mxu0 0
  %1721 = vmatpush1.bf16.msra.mxu0 0
  %1722 = vmatprep.subr.bf16.mxu0 0
  %1723 = vmatpush1.bf16.msra.mxu0 0
  %1724 = vmatprep.subr.bf16.mxu0 0
  %1725 = vmatpush1.bf16.msra.mxu0 0
  %1726 = vmatprep.subr.bf16.mxu0 0
  %1727 = vmatpush1.bf16.msra.mxu0 0
  %1728 = vmatprep.mubr.bf16.mxu0 0
  %1729 = vmatmul.mubr.bf16.gmra.mrb[0].mxu0 %v1489
  %v1730 = vpop.f32.mrb[0].mxu0
  %v1731 = vadd.f32 0.0, %v1730
  %v1732 = vpop.f32.mrb[0].mxu0
  %v1733 = vpop.f32.mrb[0].mxu0
  %v1734 = vpop.f32.mrb[0].mxu0
  %1735 = vdwg.mxu0
  %v1736 = vld [vmem:[%s9] sm:$0xff]
  %v1737 = vld [vmem:[%s9 + $0x8] sm:$0xf]
  %v1738 = vld [vmem:[%s9 + $0xc] sm:$0xff]
  %v1739 = vld [vmem:[%s9 + $0x14] sm:$0xf]
  %v1740 = vld [vmem:[%s9 + $0x18] sm:$0xff]
  %v1741 = vld [vmem:[%s9 + $0x20] sm:$0xf]
  %v1742 = vld [vmem:[%s9 + $0x24] sm:$0xff]
  %v1743 = vld [vmem:[%s9 + $0x2c] sm:$0xf]
  %v1744 = vld [vmem:[%s9 + $0x30] sm:$0xff]
  %v1745 = vld [vmem:[%s9 + $0x38] sm:$0xf]
  %v1746 = vld [vmem:[%s9 + $0x3c] sm:$0xff]
  %v1747 = vld [vmem:[%s9 + $0x44] sm:$0xf]
  %v1748 = vld [vmem:[%s9 + $0x48] sm:$0xff]
  %v1749 = vld [vmem:[%s9 + $0x50] sm:$0xf]
  %v1750 = vld [vmem:[%s9 + $0x54] sm:$0xff]
  %v1751 = vld [vmem:[%s9 + $0x5c] sm:$0xf]
  %v1752 = vld [vmem:[%s9 + $0x60] sm:$0xff]
  %v1753 = vld [vmem:[%s9 + $0x68] sm:$0xf]
  %v1754 = vld [vmem:[%s9 + $0x6c] sm:$0xff]
  %v1755 = vld [vmem:[%s9 + $0x74] sm:$0xf]
  %v1756 = vld [vmem:[%s9 + $0x78] sm:$0xff]
  %v1757 = vld [vmem:[%s9 + $0x80] sm:$0xf]
  %v1758 = vld [vmem:[%s9 + $0x84] sm:$0xff]
  %v1759 = vld [vmem:[%s9 + $0x8c] sm:$0xf]
  %v1760 = vld [vmem:[%s9 + $0x90] sm:$0xff]
  %v1761 = vld [vmem:[%s9 + $0x98] sm:$0xf]
  %v1762 = vld [vmem:[%s9 + $0x9c] sm:$0xff]
  %v1763 = vld [vmem:[%s9 + $0xa4] sm:$0xf]
  %v1764 = vld [vmem:[%s9 + $0xa8] sm:$0xff]
  %v1765 = vld [vmem:[%s9 + $0xb0] sm:$0xf]
  %v1766 = vld [vmem:[%s9 + $0xb4] sm:$0xff]
  %v1767 = vld [vmem:[%s9 + $0xbc] sm:$0xf]
  %v1800 = vunpack.c.l.b16 %v1736
  %v1801 = vunpack.c.h.b16 %v1736
  %v1802 = vunpack.c.l.b16 %v1737
  %v1803 = vunpack.c.l.b16 %v1738
  %v1804 = vunpack.c.h.b16 %v1738
  %v1805 = vunpack.c.l.b16 %v1739
  %v1806 = vunpack.c.l.b16 %v1740
  %v1807 = vunpack.c.h.b16 %v1740
  %v1808 = vunpack.c.l.b16 %v1741
  %v1809 = vunpack.c.l.b16 %v1742
  %v1810 = vunpack.c.h.b16 %v1742
  %v1811 = vunpack.c.l.b16 %v1743
  %v1812 = vunpack.c.l.b16 %v1744
  %v1813 = vunpack.c.h.b16 %v1744
  %v1814 = vunpack.c.l.b16 %v1745
  %v1815 = vunpack.c.l.b16 %v1746
  %v1816 = vunpack.c.h.b16 %v1746
  %v1817 = vunpack.c.l.b16 %v1747
  %v1818 = vunpack.c.l.b16 %v1748
  %v1819 = vunpack.c.h.b16 %v1748
  %v1820 = vunpack.c.l.b16 %v1749
  %v1821 = vunpack.c.l.b16 %v1750
  %v1822 = vunpack.c.h.b16 %v1750
  %v1823 = vunpack.c.l.b16 %v1751
  %v1824 = vunpack.c.l.b16 %v1752
  %v1825 = vunpack.c.h.b16 %v1752
  %v1826 = vunpack.c.l.b16 %v1753
  %v1827 = vunpack.c.l.b16 %v1754
  %v1828 = vunpack.c.h.b16 %v1754
  %v1829 = vunpack.c.l.b16 %v1755
  %v1830 = vunpack.c.l.b16 %v1756
  %v1831 = vunpack.c.h.b16 %v1756
  %v1832 = vunpack.c.l.b16 %v1757
  %v1833 = vunpack.c.l.b16 %v1758
  %v1834 = vunpack.c.h.b16 %v1758
  %v1835 = vunpack.c.l.b16 %v1759
  %v1836 = vunpack.c.l.b16 %v1760
  %v1837 = vunpack.c.h.b16 %v1760
  %v1838 = vunpack.c.l.b16 %v1761
  %v1839 = vunpack.c.l.b16 %v1762
  %v1840 = vunpack.c.h.b16 %v1762
  %v1841 = vunpack.c.l.b16 %v1763
  %v1842 = vunpack.c.l.b16 %v1764
  %v1843 = vunpack.c.h.b16 %v1764
  %v1844 = vunpack.c.l.b16 %v1765
  %v1845 = vunpack.c.l.b16 %v1766
  %v1846 = vunpack.c.h.b16 %v1766
  %v1847 = vunpack.c.l.b16 %v1767
  %v1848 = vpack.c.b16 %v1803, %v1800
  %v1849 = vpack.c.b16 %v1804, %v1801
  %v1850 = vpack.c.b16 %v1805, %v1802
  %v1851 = vpack.c.b16 %v1809, %v1806
  %v1852 = vpack.c.b16 %v1810, %v1807
  %v1853 = vpack.c.b16 %v1811, %v1808
  %v1854 = vpack.c.b16 %v1815, %v1812
  %v1855 = vpack.c.b16 %v1816, %v1813
  %v1856 = vpack.c.b16 %v1817, %v1814
  %v1857 = vpack.c.b16 %v1821, %v1818
  %v1858 = vpack.c.b16 %v1822, %v1819
  %v1859 = vpack.c.b16 %v1823, %v1820
  %v1860 = vpack.c.b16 %v1827, %v1824
  %v1861 = vpack.c.b16 %v1828, %v1825
  %v1862 = vpack.c.b16 %v1829, %v1826
  %v1863 = vpack.c.b16 %v1833, %v1830
  %v1864 = vpack.c.b16 %v1834, %v1831
  %v1865 = vpack.c.b16 %v1835, %v1832
  %v1866 = vpack.c.b16 %v1839, %v1836
  %v1867 = vpack.c.b16 %v1840, %v1837
  %v1868 = vpack.c.b16 %v1841, %v1838
  %v1869 = vpack.c.b16 %v1845, %v1842
  %v1870 = vpack.c.b16 %v1846, %v1843
  %v1871 = vpack.c.b16 %v1847, %v1844
  %1896 = vmatprep.subr.bf16.mxu0 %v1849
  %1897 = vmatpush1.bf16.msra.mxu0 %v1848
  %1898 = vmatprep.subr.bf16.mxu0 %v1852
  %1899 = vmatpush1.bf16.msra.mxu0 %v1851
  %1900 = vmatprep.subr.bf16.mxu0 %v1855
  %1901 = vmatpush1.bf16.msra.mxu0 %v1854
  %1902 = vmatprep.subr.bf16.mxu0 %v1858
  %1903 = vmatpush1.bf16.msra.mxu0 %v1857
  %1904 = vmatprep.subr.bf16.mxu0 %v1861
  %1905 = vmatpush1.bf16.msra.mxu0 %v1860
  %1906 = vmatprep.subr.bf16.mxu0 %v1864
  %1907 = vmatpush1.bf16.msra.mxu0 %v1863
  %1908 = vmatprep.subr.bf16.mxu0 %v1867
  %1909 = vmatpush1.bf16.msra.mxu0 %v1866
  %1910 = vmatprep.subr.bf16.mxu0 %v1870
  %1911 = vmatpush1.bf16.msra.mxu0 %v1869
  %1912 = vmatprep.subr.bf16.mxu0 0
  %1913 = vmatpush1.bf16.msra.mxu0 0
  %1914 = vmatprep.subr.bf16.mxu0 0
  %1915 = vmatpush1.bf16.msra.mxu0 0
  %1916 = vmatprep.subr.bf16.mxu0 0
  %1917 = vmatpush1.bf16.msra.mxu0 0
  %1918 = vmatprep.subr.bf16.mxu0 0
  %1919 = vmatpush1.bf16.msra.mxu0 0
  %1920 = vmatprep.subr.bf16.mxu0 0
  %1921 = vmatpush1.bf16.msra.mxu0 0
  %1922 = vmatprep.subr.bf16.mxu0 0
  %1923 = vmatpush1.bf16.msra.mxu0 0
  %1924 = vmatprep.subr.bf16.mxu0 0
  %1925 = vmatpush1.bf16.msra.mxu0 0
  %1926 = vmatprep.subr.bf16.mxu0 0
  %1927 = vmatpush1.bf16.msra.mxu0 0
  %1928 = vmatprep.mubr.bf16.mxu0 0
  %1929 = vmatmul.mubr.bf16.gmra.mrb[0].mxu0 %v1364
  %v1930 = vpop.f32.mrb[0].mxu0
  %v1931 = vadd.f32 %v58, %v1930
  %v1932 = vpop.f32.mrb[0].mxu0
  %v1933 = vadd.f32 %v59, %v1932
  %v1934 = vpop.f32.mrb[0].mxu0
  %v1935 = vpop.f32.mrb[0].mxu0
  %1936 = vdwg.mxu0
  %1937 = vmatprep.subr.bf16.mxu0 0
  %1938 = vmatpush1.bf16.msra.mxu0 %v1850
  %1939 = vmatprep.subr.bf16.mxu0 0
  %1940 = vmatpush1.bf16.msra.mxu0 %v1853
  %1941 = vmatprep.subr.bf16.mxu0 0
  %1942 = vmatpush1.bf16.msra.mxu0 %v1856
  %1943 = vmatprep.subr.bf16.mxu0 0
  %1944 = vmatpush1.bf16.msra.mxu0 %v1859
  %1945 = vmatprep.subr.bf16.mxu0 0
  %1946 = vmatpush1.bf16.msra.mxu0 %v1862
  %1947 = vmatprep.subr.bf16.mxu0 0
  %1948 = vmatpush1.bf16.msra.mxu0 %v1865
  %1949 = vmatprep.subr.bf16.mxu0 0
  %1950 = vmatpush1.bf16.msra.mxu0 %v1868
  %1951 = vmatprep.subr.bf16.mxu0 0
  %1952 = vmatpush1.bf16.msra.mxu0 %v1871
  %1953 = vmatprep.subr.bf16.mxu0 0
  %1954 = vmatpush1.bf16.msra.mxu0 0
  %1955 = vmatprep.subr.bf16.mxu0 0
  %1956 = vmatpush1.bf16.msra.mxu0 0
  %1957 = vmatprep.subr.bf16.mxu0 0
  %1958 = vmatpush1.bf16.msra.mxu0 0
  %1959 = vmatprep.subr.bf16.mxu0 0
  %1960 = vmatpush1.bf16.msra.mxu0 0
  %1961 = vmatprep.subr.bf16.mxu0 0
  %1962 = vmatpush1.bf16.msra.mxu0 0
  %1963 = vmatprep.subr.bf16.mxu0 0
  %1964 = vmatpush1.bf16.msra.mxu0 0
  %1965 = vmatprep.subr.bf16.mxu0 0
  %1966 = vmatpush1.bf16.msra.mxu0 0
  %1967 = vmatprep.subr.bf16.mxu0 0
  %1968 = vmatpush1.bf16.msra.mxu0 0
  %1969 = vmatprep.mubr.bf16.mxu0 0
  %1970 = vmatmul.mubr.bf16.gmra.mrb[0].mxu0 %v1364
  %v1971 = vpop.f32.mrb[0].mxu0
  %v1972 = vadd.f32 %v60, %v1971
  %v1973 = vpop.f32.mrb[0].mxu0
  %v1974 = vpop.f32.mrb[0].mxu0
  %v1975 = vpop.f32.mrb[0].mxu0
  %1976 = vdwg.mxu0
  %v1977 = vadd.f32 %v1690, %v1931
  %v1978 = vxor.u32 %v1977, 2147483648
  %v1979 = vmul.f32 %v1978, 1.442695
  %v1980 = vpow.pop %v1979
  %v1981 = vadd.f32 %v1980, 1.0
  %v1982 = vrcp.pop %v1981
  %v1983 = vmul.f32 1.0, %v1982
  %v1984 = vadd.f32 %v1692, %v1933
  %v1985 = vxor.u32 %v1984, 2147483648
  %v1986 = vmul.f32 %v1985, 1.442695
  %v1987 = vpow.pop %v1986
  %v1988 = vadd.f32 %v1987, 1.0
  %v1989 = vrcp.pop %v1988
  %v1990 = vmul.f32 1.0, %v1989
  %v1991 = vmul.f32 %v1983, %v1972
  %v1992 = vadd.f32 %v1731, %v1991
  %v1993 = vtanh.pop %v1992
  %v1994 = vsub.f32 1.0, %v1990
  %v1995 = vmul.f32 %v1994, %v1993
  %v1996 = vmul.f32 %v1990, %v1362
  %v1997 = vadd.f32 %v1995, %v1996
  %s1998 = scalar_lea.vmem %s15, 8
  %1999 = vst [vmem:[%s1998] sm:$0xff] %v1997
  %v2000 = vpack.c.bf16 %v1997, %v1997
  %v2001 = vld [vmem:[%s13] sm:$0xf]
  %v2002 = vld [vmem:[%s13 + $0x4] sm:$0xf]
  %v2003 = vld [vmem:[%s13 + $0x8] sm:$0xf]
  %v2004 = vld [vmem:[%s13 + $0xc] sm:$0xf]
  %v2005 = vld [vmem:[%s13 + $0x10] sm:$0xf]
  %v2006 = vld [vmem:[%s13 + $0x14] sm:$0xf]
  %v2007 = vld [vmem:[%s13 + $0x18] sm:$0xf]
  %v2008 = vld [vmem:[%s13 + $0x1c] sm:$0xf]
  %v2009 = vld [vmem:[%s13 + $0x20] sm:$0xf]
  %v2010 = vld [vmem:[%s13 + $0x24] sm:$0xf]
  %v2011 = vld [vmem:[%s13 + $0x28] sm:$0xf]
  %v2012 = vld [vmem:[%s13 + $0x2c] sm:$0xf]
  %v2013 = vld [vmem:[%s13 + $0x30] sm:$0xf]
  %v2014 = vld [vmem:[%s13 + $0x34] sm:$0xf]
  %v2015 = vld [vmem:[%s13 + $0x38] sm:$0xf]
  %v2016 = vld [vmem:[%s13 + $0x3c] sm:$0xf]
  %v2033 = vunpack.c.l.b16 %v2001
  %v2034 = vunpack.c.l.b16 %v2002
  %v2035 = vunpack.c.l.b16 %v2003
  %v2036 = vunpack.c.l.b16 %v2004
  %v2037 = vunpack.c.l.b16 %v2005
  %v2038 = vunpack.c.l.b16 %v2006
  %v2039 = vunpack.c.l.b16 %v2007
  %v2040 = vunpack.c.l.b16 %v2008
  %v2041 = vunpack.c.l.b16 %v2009
  %v2042 = vunpack.c.l.b16 %v2010
  %v2043 = vunpack.c.l.b16 %v2011
  %v2044 = vunpack.c.l.b16 %v2012
  %v2045 = vunpack.c.l.b16 %v2013
  %v2046 = vunpack.c.l.b16 %v2014
  %v2047 = vunpack.c.l.b16 %v2015
  %v2048 = vunpack.c.l.b16 %v2016
  %v2049 = vpack.c.b16 %v2034, %v2033
  %v2050 = vpack.c.b16 %v2036, %v2035
  %v2051 = vpack.c.b16 %v2038, %v2037
  %v2052 = vpack.c.b16 %v2040, %v2039
  %v2053 = vpack.c.b16 %v2042, %v2041
  %v2054 = vpack.c.b16 %v2044, %v2043
  %v2055 = vpack.c.b16 %v2046, %v2045
  %v2056 = vpack.c.b16 %v2048, %v2047
  %2065 = vmatprep.subr.bf16.mxu0 0
  %2066 = vmatpush1.bf16.msra.mxu0 %v2049
  %2067 = vmatprep.subr.bf16.mxu0 0
  %2068 = vmatpush1.bf16.msra.mxu0 %v2050
  %2069 = vmatprep.subr.bf16.mxu0 0
  %2070 = vmatpush1.bf16.msra.mxu0 %v2051
  %2071 = vmatprep.subr.bf16.mxu0 0
  %2072 = vmatpush1.bf16.msra.mxu0 %v2052
  %2073 = vmatprep.subr.bf16.mxu0 0
  %2074 = vmatpush1.bf16.msra.mxu0 %v2053
  %2075 = vmatprep.subr.bf16.mxu0 0
  %2076 = vmatpush1.bf16.msra.mxu0 %v2054
  %2077 = vmatprep.subr.bf16.mxu0 0
  %2078 = vmatpush1.bf16.msra.mxu0 %v2055
  %2079 = vmatprep.subr.bf16.mxu0 0
  %2080 = vmatpush1.bf16.msra.mxu0 %v2056
  %2081 = vmatprep.subr.bf16.mxu0 0
  %2082 = vmatpush1.bf16.msra.mxu0 0
  %2083 = vmatprep.subr.bf16.mxu0 0
  %2084 = vmatpush1.bf16.msra.mxu0 0
  %2085 = vmatprep.subr.bf16.mxu0 0
  %2086 = vmatpush1.bf16.msra.mxu0 0
  %2087 = vmatprep.subr.bf16.mxu0 0
  %2088 = vmatpush1.bf16.msra.mxu0 0
  %2089 = vmatprep.subr.bf16.mxu0 0
  %2090 = vmatpush1.bf16.msra.mxu0 0
  %2091 = vmatprep.subr.bf16.mxu0 0
  %2092 = vmatpush1.bf16.msra.mxu0 0
  %2093 = vmatprep.subr.bf16.mxu0 0
  %2094 = vmatpush1.bf16.msra.mxu0 0
  %2095 = vmatprep.subr.bf16.mxu0 0
  %2096 = vmatpush1.bf16.msra.mxu0 0
  %2097 = vmatprep.mubr.bf16.mxu0 0
  %2098 = vmatmul.mubr.bf16.gmra.mrb[0].mxu0 %v2000
  %v2099 = vpop.f32.mrb[0].mxu0
  %v2100 = vadd.f32 %v61, %v2099
  %v2101 = vpop.f32.mrb[0].mxu0
  %v2102 = vpop.f32.mrb[0].mxu0
  %v2103 = vpop.f32.mrb[0].mxu0
  %2104 = vdwg.mxu0
  %2105 = vmax.xlane.f32.xlu0 %v2100
  %v2106 = vpop.xlane.xlu0 %2105
  %vm2107 = vcmp.eq.f32.partialorder %v2100, %v2106
  %v2108 = vsel %vm2107, %v64, 128
  %v2109 = vand.u32 %v2108, 65535
  %v2110 = vshra.s32 %v2108, 16
  %v2111 = vcvt.s32.f32 %v2109
  %v2112 = vcvt.s32.f32 %v2110
  %2113 = vmin.xlane.f32.xlu0 %v2112
  %v2114 = vpop.xlane.xlu0 %2113
  %vm2115 = vcmp.eq.f32.partialorder %v2112, %v2114
  %v2116 = vsel %vm2115, %v2111, inf
  %2117 = vmin.xlane.f32.xlu0 %v2116
  %v2118 = vpop.xlane.xlu0 %2117
  %v2119 = vcvt.f32.s32 %v2118
  %v2120 = vcvt.f32.s32 %v2114
  %v2121 = vshll.u32 %v2120, 16
  %v2122 = vadd.s32 %v2121, %v2119
  %vm2123 = vcmp.eq.s32.totalorder %v64, %v2122
  %v2124 = vsel %vm2123, 1.0, 0.0
  %v2125 = vpack.c.bf16 %v2124, %v2124
  %vm2126 = vcmp.eq.s32.totalorder %v2122, 2
  %v2127 = vsel %vm2126, 1, 0
  %v2128 = vsub.s32 1, %v1494
  %v2129 = vmul.u32 %v2127, %v2128
  %v2130 = vsub.s32 1, %v2129
  %v2131 = vmul.u32 %v1493, %v2130
  %v2132 = vadd.s32 %v2131, %v2129
  %vm2133 = vcmp.gt.s32.totalorder %v1494, %v2127
  %v2134 = vsel %vm2133, %v1494, %v2127
  %v2135 = vld [vmem:[%s12] sm:$0xff]
  %v2136 = vld [vmem:[%s12 + $0x8] sm:$0xf]
  %v2137 = vld [vmem:[%s12 + $0xc] sm:$0xff]
  %v2138 = vld [vmem:[%s12 + $0x14] sm:$0xf]
  %v2139 = vld [vmem:[%s12 + $0x18] sm:$0xff]
  %v2140 = vld [vmem:[%s12 + $0x20] sm:$0xf]
  %v2141 = vld [vmem:[%s12 + $0x24] sm:$0xff]
  %v2142 = vld [vmem:[%s12 + $0x2c] sm:$0xf]
  %v2143 = vld [vmem:[%s12 + $0x30] sm:$0xff]
  %v2144 = vld [vmem:[%s12 + $0x38] sm:$0xf]
  %v2145 = vld [vmem:[%s12 + $0x3c] sm:$0xff]
  %v2146 = vld [vmem:[%s12 + $0x44] sm:$0xf]
  %v2147 = vld [vmem:[%s12 + $0x48] sm:$0xff]
  %v2148 = vld [vmem:[%s12 + $0x50] sm:$0xf]
  %v2149 = vld [vmem:[%s12 + $0x54] sm:$0xff]
  %v2150 = vld [vmem:[%s12 + $0x5c] sm:$0xf]
  %v2151 = vld [vmem:[%s12 + $0x60] sm:$0xff]
  %v2152 = vld [vmem:[%s12 + $0x68] sm:$0xf]
  %v2153 = vld [vmem:[%s12 + $0x6c] sm:$0xff]
  %v2154 = vld [vmem:[%s12 + $0x74] sm:$0xf]
  %v2155 = vld [vmem:[%s12 + $0x78] sm:$0xff]
  %v2156 = vld [vmem:[%s12 + $0x80] sm:$0xf]
  %v2157 = vld [vmem:[%s12 + $0x84] sm:$0xff]
  %v2158 = vld [vmem:[%s12 + $0x8c] sm:$0xf]
  %v2159 = vld [vmem:[%s12 + $0x90] sm:$0xff]
  %v2160 = vld [vmem:[%s12 + $0x98] sm:$0xf]
  %v2161 = vld [vmem:[%s12 + $0x9c] sm:$0xff]
  %v2162 = vld [vmem:[%s12 + $0xa4] sm:$0xf]
  %v2163 = vld [vmem:[%s12 + $0xa8] sm:$0xff]
  %v2164 = vld [vmem:[%s12 + $0xb0] sm:$0xf]
  %v2165 = vld [vmem:[%s12 + $0xb4] sm:$0xff]
  %v2166 = vld [vmem:[%s12 + $0xbc] sm:$0xf]
  %v2199 = vunpack.c.l.b16 %v2135
  %v2200 = vunpack.c.h.b16 %v2135
  %v2201 = vunpack.c.l.b16 %v2136
  %v2202 = vunpack.c.l.b16 %v2137
  %v2203 = vunpack.c.h.b16 %v2137
  %v2204 = vunpack.c.l.b16 %v2138
  %v2205 = vunpack.c.l.b16 %v2139
  %v2206 = vunpack.c.h.b16 %v2139
  %v2207 = vunpack.c.l.b16 %v2140
  %v2208 = vunpack.c.l.b16 %v2141
  %v2209 = vunpack.c.h.b16 %v2141
  %v2210 = vunpack.c.l.b16 %v2142
  %v2211 = vunpack.c.l.b16 %v2143
  %v2212 = vunpack.c.h.b16 %v2143
  %v2213 = vunpack.c.l.b16 %v2144
  %v2214 = vunpack.c.l.b16 %v2145
  %v2215 = vunpack.c.h.b16 %v2145
  %v2216 = vunpack.c.l.b16 %v2146
  %v2217 = vunpack.c.l.b16 %v2147
  %v2218 = vunpack.c.h.b16 %v2147
  %v2219 = vunpack.c.l.b16 %v2148
  %v2220 = vunpack.c.l.b16 %v2149
  %v2221 = vunpack.c.h.b16 %v2149
  %v2222 = vunpack.c.l.b16 %v2150
  %v2223 = vunpack.c.l.b16 %v2151
  %v2224 = vunpack.c.h.b16 %v2151
  %v2225 = vunpack.c.l.b16 %v2152
  %v2226 = vunpack.c.l.b16 %v2153
  %v2227 = vunpack.c.h.b16 %v2153
  %v2228 = vunpack.c.l.b16 %v2154
  %v2229 = vunpack.c.l.b16 %v2155
  %v2230 = vunpack.c.h.b16 %v2155
  %v2231 = vunpack.c.l.b16 %v2156
  %v2232 = vunpack.c.l.b16 %v2157
  %v2233 = vunpack.c.h.b16 %v2157
  %v2234 = vunpack.c.l.b16 %v2158
  %v2235 = vunpack.c.l.b16 %v2159
  %v2236 = vunpack.c.h.b16 %v2159
  %v2237 = vunpack.c.l.b16 %v2160
  %v2238 = vunpack.c.l.b16 %v2161
  %v2239 = vunpack.c.h.b16 %v2161
  %v2240 = vunpack.c.l.b16 %v2162
  %v2241 = vunpack.c.l.b16 %v2163
  %v2242 = vunpack.c.h.b16 %v2163
  %v2243 = vunpack.c.l.b16 %v2164
  %v2244 = vunpack.c.l.b16 %v2165
  %v2245 = vunpack.c.h.b16 %v2165
  %v2246 = vunpack.c.l.b16 %v2166
  %v2247 = vpack.c.b16 %v2202, %v2199
  %v2248 = vpack.c.b16 %v2203, %v2200
  %v2249 = vpack.c.b16 %v2204, %v2201
  %v2250 = vpack.c.b16 %v2208, %v2205
  %v2251 = vpack.c.b16 %v2209, %v2206
  %v2252 = vpack.c.b16 %v2210, %v2207
  %v2253 = vpack.c.b16 %v2214, %v2211
  %v2254 = vpack.c.b16 %v2215, %v2212
  %v2255 = vpack.c.b16 %v2216, %v2213
  %v2256 = vpack.c.b16 %v2220, %v2217
  %v2257 = vpack.c.b16 %v2221, %v2218
  %v2258 = vpack.c.b16 %v2222, %v2219
  %v2259 = vpack.c.b16 %v2226, %v2223
  %v2260 = vpack.c.b16 %v2227, %v2224
  %v2261 = vpack.c.b16 %v2228, %v2225
  %v2262 = vpack.c.b16 %v2232, %v2229
  %v2263 = vpack.c.b16 %v2233, %v2230
  %v2264 = vpack.c.b16 %v2234, %v2231
  %v2265 = vpack.c.b16 %v2238, %v2235
  %v2266 = vpack.c.b16 %v2239, %v2236
  %v2267 = vpack.c.b16 %v2240, %v2237
  %v2268 = vpack.c.b16 %v2244, %v2241
  %v2269 = vpack.c.b16 %v2245, %v2242
  %v2270 = vpack.c.b16 %v2246, %v2243
  %2295 = vmatprep.subr.bf16.mxu0 %v2248
  %2296 = vmatpush1.bf16.msra.mxu0 %v2247
  %2297 = vmatprep.subr.bf16.mxu0 %v2251
  %2298 = vmatpush1.bf16.msra.mxu0 %v2250
  %2299 = vmatprep.subr.bf16.mxu0 %v2254
  %2300 = vmatpush1.bf16.msra.mxu0 %v2253
  %2301 = vmatprep.subr.bf16.mxu0 %v2257
  %2302 = vmatpush1.bf16.msra.mxu0 %v2256
  %2303 = vmatprep.subr.bf16.mxu0 %v2260
  %2304 = vmatpush1.bf16.msra.mxu0 %v2259
  %2305 = vmatprep.subr.bf16.mxu0 %v2263
  %2306 = vmatpush1.bf16.msra.mxu0 %v2262
  %2307 = vmatprep.subr.bf16.mxu0 %v2266
  %2308 = vmatpush1.bf16.msra.mxu0 %v2265
  %2309 = vmatprep.subr.bf16.mxu0 %v2269
  %2310 = vmatpush1.bf16.msra.mxu0 %v2268
  %2311 = vmatprep.subr.bf16.mxu0 0
  %2312 = vmatpush1.bf16.msra.mxu0 0
  %2313 = vmatprep.subr.bf16.mxu0 0
  %2314 = vmatpush1.bf16.msra.mxu0 0
  %2315 = vmatprep.subr.bf16.mxu0 0
  %2316 = vmatpush1.bf16.msra.mxu0 0
  %2317 = vmatprep.subr.bf16.mxu0 0
  %2318 = vmatpush1.bf16.msra.mxu0 0
  %2319 = vmatprep.subr.bf16.mxu0 0
  %2320 = vmatpush1.bf16.msra.mxu0 0
  %2321 = vmatprep.subr.bf16.mxu0 0
  %2322 = vmatpush1.bf16.msra.mxu0 0
  %2323 = vmatprep.subr.bf16.mxu0 0
  %2324 = vmatpush1.bf16.msra.mxu0 0
  %2325 = vmatprep.subr.bf16.mxu0 0
  %2326 = vmatpush1.bf16.msra.mxu0 0
  %2327 = vmatprep.mubr.bf16.mxu0 0
  %2328 = vmatmul.mubr.bf16.gmra.mrb[0].mxu0 %v2125
  %v2329 = vpop.f32.mrb[0].mxu0
  %v2330 = vadd.f32 0.0, %v2329
  %v2331 = vpop.f32.mrb[0].mxu0
  %v2332 = vadd.f32 0.0, %v2331
  %v2333 = vpop.f32.mrb[0].mxu0
  %v2334 = vpop.f32.mrb[0].mxu0
  %2335 = vdwg.mxu0
  %2336 = vmatprep.subr.bf16.mxu0 0
  %2337 = vmatpush1.bf16.msra.mxu0 %v2249
  %2338 = vmatprep.subr.bf16.mxu0 0
  %2339 = vmatpush1.bf16.msra.mxu0 %v2252
  %2340 = vmatprep.subr.bf16.mxu0 0
  %2341 = vmatpush1.bf16.msra.mxu0 %v2255
  %2342 = vmatprep.subr.bf16.mxu0 0
  %2343 = vmatpush1.bf16.msra.mxu0 %v2258
  %2344 = vmatprep.subr.bf16.mxu0 0
  %2345 = vmatpush1.bf16.msra.mxu0 %v2261
  %2346 = vmatprep.subr.bf16.mxu0 0
  %2347 = vmatpush1.bf16.msra.mxu0 %v2264
  %2348 = vmatprep.subr.bf16.mxu0 0
  %2349 = vmatpush1.bf16.msra.mxu0 %v2267
  %2350 = vmatprep.subr.bf16.mxu0 0
  %2351 = vmatpush1.bf16.msra.mxu0 %v2270
  %2352 = vmatprep.subr.bf16.mxu0 0
  %2353 = vmatpush1.bf16.msra.mxu0 0
  %2354 = vmatprep.subr.bf16.mxu0 0
  %2355 = vmatpush1.bf16.msra.mxu0 0
  %2356 = vmatprep.subr.bf16.mxu0 0
  %2357 = vmatpush1.bf16.msra.mxu0 0
  %2358 = vmatprep.subr.bf16.mxu0 0
  %2359 = vmatpush1.bf16.msra.mxu0 0
  %2360 = vmatprep.subr.bf16.mxu0 0
  %2361 = vmatpush1.bf16.msra.mxu0 0
  %2362 = vmatprep.subr.bf16.mxu0 0
  %2363 = vmatpush1.bf16.msra.mxu0 0
  %2364 = vmatprep.subr.bf16.mxu0 0
  %2365 = vmatpush1.bf16.msra.mxu0 0
  %2366 = vmatprep.subr.bf16.mxu0 0
  %2367 = vmatpush1.bf16.msra.mxu0 0
  %2368 = vmatprep.mubr.bf16.mxu0 0
  %2369 = vmatmul.mubr.bf16.gmra.mrb[0].mxu0 %v2125
  %v2370 = vpop.f32.mrb[0].mxu0
  %v2371 = vadd.f32 0.0, %v2370
  %v2372 = vpop.f32.mrb[0].mxu0
  %v2373 = vpop.f32.mrb[0].mxu0
  %v2374 = vpop.f32.mrb[0].mxu0
  %2375 = vdwg.mxu0
  %v2376 = vld [vmem:[%s9] sm:$0xff]
  %v2377 = vld [vmem:[%s9 + $0x8] sm:$0xf]
  %v2378 = vld [vmem:[%s9 + $0xc] sm:$0xff]
  %v2379 = vld [vmem:[%s9 + $0x14] sm:$0xf]
  %v2380 = vld [vmem:[%s9 + $0x18] sm:$0xff]
  %v2381 = vld [vmem:[%s9 + $0x20] sm:$0xf]
  %v2382 = vld [vmem:[%s9 + $0x24] sm:$0xff]
  %v2383 = vld [vmem:[%s9 + $0x2c] sm:$0xf]
  %v2384 = vld [vmem:[%s9 + $0x30] sm:$0xff]
  %v2385 = vld [vmem:[%s9 + $0x38] sm:$0xf]
  %v2386 = vld [vmem:[%s9 + $0x3c] sm:$0xff]
  %v2387 = vld [vmem:[%s9 + $0x44] sm:$0xf]
  %v2388 = vld [vmem:[%s9 + $0x48] sm:$0xff]
  %v2389 = vld [vmem:[%s9 + $0x50] sm:$0xf]
  %v2390 = vld [vmem:[%s9 + $0x54] sm:$0xff]
  %v2391 = vld [vmem:[%s9 + $0x5c] sm:$0xf]
  %v2392 = vld [vmem:[%s9 + $0x60] sm:$0xff]
  %v2393 = vld [vmem:[%s9 + $0x68] sm:$0xf]
  %v2394 = vld [vmem:[%s9 + $0x6c] sm:$0xff]
  %v2395 = vld [vmem:[%s9 + $0x74] sm:$0xf]
  %v2396 = vld [vmem:[%s9 + $0x78] sm:$0xff]
  %v2397 = vld [vmem:[%s9 + $0x80] sm:$0xf]
  %v2398 = vld [vmem:[%s9 + $0x84] sm:$0xff]
  %v2399 = vld [vmem:[%s9 + $0x8c] sm:$0xf]
  %v2400 = vld [vmem:[%s9 + $0x90] sm:$0xff]
  %v2401 = vld [vmem:[%s9 + $0x98] sm:$0xf]
  %v2402 = vld [vmem:[%s9 + $0x9c] sm:$0xff]
  %v2403 = vld [vmem:[%s9 + $0xa4] sm:$0xf]
  %v2404 = vld [vmem:[%s9 + $0xa8] sm:$0xff]
  %v2405 = vld [vmem:[%s9 + $0xb0] sm:$0xf]
  %v2406 = vld [vmem:[%s9 + $0xb4] sm:$0xff]
  %v2407 = vld [vmem:[%s9 + $0xbc] sm:$0xf]
  %v2440 = vunpack.c.l.b16 %v2376
  %v2441 = vunpack.c.h.b16 %v2376
  %v2442 = vunpack.c.l.b16 %v2377
  %v2443 = vunpack.c.l.b16 %v2378
  %v2444 = vunpack.c.h.b16 %v2378
  %v2445 = vunpack.c.l.b16 %v2379
  %v2446 = vunpack.c.l.b16 %v2380
  %v2447 = vunpack.c.h.b16 %v2380
  %v2448 = vunpack.c.l.b16 %v2381
  %v2449 = vunpack.c.l.b16 %v2382
  %v2450 = vunpack.c.h.b16 %v2382
  %v2451 = vunpack.c.l.b16 %v2383
  %v2452 = vunpack.c.l.b16 %v2384
  %v2453 = vunpack.c.h.b16 %v2384
  %v2454 = vunpack.c.l.b16 %v2385
  %v2455 = vunpack.c.l.b16 %v2386
  %v2456 = vunpack.c.h.b16 %v2386
  %v2457 = vunpack.c.l.b16 %v2387
  %v2458 = vunpack.c.l.b16 %v2388
  %v2459 = vunpack.c.h.b16 %v2388
  %v2460 = vunpack.c.l.b16 %v2389
  %v2461 = vunpack.c.l.b16 %v2390
  %v2462 = vunpack.c.h.b16 %v2390
  %v2463 = vunpack.c.l.b16 %v2391
  %v2464 = vunpack.c.l.b16 %v2392
  %v2465 = vunpack.c.h.b16 %v2392
  %v2466 = vunpack.c.l.b16 %v2393
  %v2467 = vunpack.c.l.b16 %v2394
  %v2468 = vunpack.c.h.b16 %v2394
  %v2469 = vunpack.c.l.b16 %v2395
  %v2470 = vunpack.c.l.b16 %v2396
  %v2471 = vunpack.c.h.b16 %v2396
  %v2472 = vunpack.c.l.b16 %v2397
  %v2473 = vunpack.c.l.b16 %v2398
  %v2474 = vunpack.c.h.b16 %v2398
  %v2475 = vunpack.c.l.b16 %v2399
  %v2476 = vunpack.c.l.b16 %v2400
  %v2477 = vunpack.c.h.b16 %v2400
  %v2478 = vunpack.c.l.b16 %v2401
  %v2479 = vunpack.c.l.b16 %v2402
  %v2480 = vunpack.c.h.b16 %v2402
  %v2481 = vunpack.c.l.b16 %v2403
  %v2482 = vunpack.c.l.b16 %v2404
  %v2483 = vunpack.c.h.b16 %v2404
  %v2484 = vunpack.c.l.b16 %v2405
  %v2485 = vunpack.c.l.b16 %v2406
  %v2486 = vunpack.c.h.b16 %v2406
  %v2487 = vunpack.c.l.b16 %v2407
  %v2488 = vpack.c.b16 %v2443, %v2440
  %v2489 = vpack.c.b16 %v2444, %v2441
  %v2490 = vpack.c.b16 %v2445, %v2442
  %v2491 = vpack.c.b16 %v2449, %v2446
  %v2492 = vpack.c.b16 %v2450, %v2447
  %v2493 = vpack.c.b16 %v2451, %v2448
  %v2494 = vpack.c.b16 %v2455, %v2452
  %v2495 = vpack.c.b16 %v2456, %v2453
  %v2496 = vpack.c.b16 %v2457, %v2454
  %v2497 = vpack.c.b16 %v2461, %v2458
  %v2498 = vpack.c.b16 %v2462, %v2459
  %v2499 = vpack.c.b16 %v2463, %v2460
  %v2500 = vpack.c.b16 %v2467, %v2464
  %v2501 = vpack.c.b16 %v2468, %v2465
  %v2502 = vpack.c.b16 %v2469, %v2466
  %v2503 = vpack.c.b16 %v2473, %v2470
  %v2504 = vpack.c.b16 %v2474, %v2471
  %v2505 = vpack.c.b16 %v2475, %v2472
  %v2506 = vpack.c.b16 %v2479, %v2476
  %v2507 = vpack.c.b16 %v2480, %v2477
  %v2508 = vpack.c.b16 %v2481, %v2478
  %v2509 = vpack.c.b16 %v2485, %v2482
  %v2510 = vpack.c.b16 %v2486, %v2483
  %v2511 = vpack.c.b16 %v2487, %v2484
  %2536 = vmatprep.subr.bf16.mxu0 %v2489
  %2537 = vmatpush1.bf16.msra.mxu0 %v2488
  %2538 = vmatprep.subr.bf16.mxu0 %v2492
  %2539 = vmatpush1.bf16.msra.mxu0 %v2491
  %2540 = vmatprep.subr.bf16.mxu0 %v2495
  %2541 = vmatpush1.bf16.msra.mxu0 %v2494
  %2542 = vmatprep.subr.bf16.mxu0 %v2498
  %2543 = vmatpush1.bf16.msra.mxu0 %v2497
  %2544 = vmatprep.subr.bf16.mxu0 %v2501
  %2545 = vmatpush1.bf16.msra.mxu0 %v2500
  %2546 = vmatprep.subr.bf16.mxu0 %v2504
  %2547 = vmatpush1.bf16.msra.mxu0 %v2503
  %2548 = vmatprep.subr.bf16.mxu0 %v2507
  %2549 = vmatpush1.bf16.msra.mxu0 %v2506
  %2550 = vmatprep.subr.bf16.mxu0 %v2510
  %2551 = vmatpush1.bf16.msra.mxu0 %v2509
  %2552 = vmatprep.subr.bf16.mxu0 0
  %2553 = vmatpush1.bf16.msra.mxu0 0
  %2554 = vmatprep.subr.bf16.mxu0 0
  %2555 = vmatpush1.bf16.msra.mxu0 0
  %2556 = vmatprep.subr.bf16.mxu0 0
  %2557 = vmatpush1.bf16.msra.mxu0 0
  %2558 = vmatprep.subr.bf16.mxu0 0
  %2559 = vmatpush1.bf16.msra.mxu0 0
  %2560 = vmatprep.subr.bf16.mxu0 0
  %2561 = vmatpush1.bf16.msra.mxu0 0
  %2562 = vmatprep.subr.bf16.mxu0 0
  %2563 = vmatpush1.bf16.msra.mxu0 0
  %2564 = vmatprep.subr.bf16.mxu0 0
  %2565 = vmatpush1.bf16.msra.mxu0 0
  %2566 = vmatprep.subr.bf16.mxu0 0
  %2567 = vmatpush1.bf16.msra.mxu0 0
  %2568 = vmatprep.mubr.bf16.mxu0 0
  %2569 = vmatmul.mubr.bf16.gmra.mrb[0].mxu0 %v2000
  %v2570 = vpop.f32.mrb[0].mxu0
  %v2571 = vadd.f32 %v58, %v2570
  %v2572 = vpop.f32.mrb[0].mxu0
  %v2573 = vadd.f32 %v59, %v2572
  %v2574 = vpop.f32.mrb[0].mxu0
  %v2575 = vpop.f32.mrb[0].mxu0
  %2576 = vdwg.mxu0
  %2577 = vmatprep.subr.bf16.mxu0 0
  %2578 = vmatpush1.bf16.msra.mxu0 %v2490
  %2579 = vmatprep.subr.bf16.mxu0 0
  %2580 = vmatpush1.bf16.msra.mxu0 %v2493
  %2581 = vmatprep.subr.bf16.mxu0 0
  %2582 = vmatpush1.bf16.msra.mxu0 %v2496
  %2583 = vmatprep.subr.bf16.mxu0 0
  %2584 = vmatpush1.bf16.msra.mxu0 %v2499
  %2585 = vmatprep.subr.bf16.mxu0 0
  %2586 = vmatpush1.bf16.msra.mxu0 %v2502
  %2587 = vmatprep.subr.bf16.mxu0 0
  %2588 = vmatpush1.bf16.msra.mxu0 %v2505
  %2589 = vmatprep.subr.bf16.mxu0 0
  %2590 = vmatpush1.bf16.msra.mxu0 %v2508
  %2591 = vmatprep.subr.bf16.mxu0 0
  %2592 = vmatpush1.bf16.msra.mxu0 %v2511
  %2593 = vmatprep.subr.bf16.mxu0 0
  %2594 = vmatpush1.bf16.msra.mxu0 0
  %2595 = vmatprep.subr.bf16.mxu0 0
  %2596 = vmatpush1.bf16.msra.mxu0 0
  %2597 = vmatprep.subr.bf16.mxu0 0
  %2598 = vmatpush1.bf16.msra.mxu0 0
  %2599 = vmatprep.subr.bf16.mxu0 0
  %2600 = vmatpush1.bf16.msra.mxu0 0
  %2601 = vmatprep.subr.bf16.mxu0 0
  %2602 = vmatpush1.bf16.msra.mxu0 0
  %2603 = vmatprep.subr.bf16.mxu0 0
  %2604 = vmatpush1.bf16.msra.mxu0 0
  %2605 = vmatprep.subr.bf16.mxu0 0
  %2606 = vmatpush1.bf16.msra.mxu0 0
  %2607 = vmatprep.subr.bf16.mxu0 0
  %2608 = vmatpush1.bf16.msra.mxu0 0
  %2609 = vmatprep.mubr.bf16.mxu0 0
  %2610 = vmatmul.mubr.bf16.gmra.mrb[0].mxu0 %v2000
  %v2611 = vpop.f32.mrb[0].mxu0
  %v2612 = vadd.f32 %v60, %v2611
  %v2613 = vpop.f32.mrb[0].mxu0
  %v2614 = vpop.f32.mrb[0].mxu0
  %v2615 = vpop.f32.mrb[0].mxu0
  %2616 = vdwg.mxu0
  %v2617 = vadd.f32 %v2330, %v2571
  %v2618 = vxor.u32 %v2617, 2147483648
  %v2619 = vmul.f32 %v2618, 1.442695
  %v2620 = vpow.pop %v2619
  %v2621 = vadd.f32 %v2620, 1.0
  %v2622 = vrcp.pop %v2621
  %v2623 = vmul.f32 1.0, %v2622
  %v2624 = vadd.f32 %v2332, %v2573
  %v2625 = vxor.u32 %v2624, 2147483648
  %v2626 = vmul.f32 %v2625, 1.442695
  %v2627 = vpow.pop %v2626
  %v2628 = vadd.f32 %v2627, 1.0
  %v2629 = vrcp.pop %v2628
  %v2630 = vmul.f32 1.0, %v2629
  %v2631 = vmul.f32 %v2623, %v2612
  %v2632 = vadd.f32 %v2371, %v2631
  %v2633 = vtanh.pop %v2632
  %v2634 = vsub.f32 1.0, %v2630
  %v2635 = vmul.f32 %v2634, %v2633
  %v2636 = vmul.f32 %v2630, %v1997
  %v2637 = vadd.f32 %v2635, %v2636
  %s2638 = scalar_lea.vmem %s15, 16
  %2639 = vst [vmem:[%s2638] sm:$0xff] %v2637
  %v2640 = vpack.c.bf16 %v2637, %v2637
  %v2641 = vld [vmem:[%s13] sm:$0xf]
  %v2642 = vld [vmem:[%s13 + $0x4] sm:$0xf]
  %v2643 = vld [vmem:[%s13 + $0x8] sm:$0xf]
  %v2644 = vld [vmem:[%s13 + $0xc] sm:$0xf]
  %v2645 = vld [vmem:[%s13 + $0x10] sm:$0xf]
  %v2646 = vld [vmem:[%s13 + $0x14] sm:$0xf]
  %v2647 = vld [vmem:[%s13 + $0x18] sm:$0xf]
  %v2648 = vld [vmem:[%s13 + $0x1c] sm:$0xf]
  %v2649 = vld [vmem:[%s13 + $0x20] sm:$0xf]
  %v2650 = vld [vmem:[%s13 + $0x24] sm:$0xf]
  %v2651 = vld [vmem:[%s13 + $0x28] sm:$0xf]
  %v2652 = vld [vmem:[%s13 + $0x2c] sm:$0xf]
  %v2653 = vld [vmem:[%s13 + $0x30] sm:$0xf]
  %v2654 = vld [vmem:[%s13 + $0x34] sm:$0xf]
  %v2655 = vld [vmem:[%s13 + $0x38] sm:$0xf]
  %v2656 = vld [vmem:[%s13 + $0x3c] sm:$0xf]
  %v2673 = vunpack.c.l.b16 %v2641
  %v2674 = vunpack.c.l.b16 %v2642
  %v2675 = vunpack.c.l.b16 %v2643
  %v2676 = vunpack.c.l.b16 %v2644
  %v2677 = vunpack.c.l.b16 %v2645
  %v2678 = vunpack.c.l.b16 %v2646
  %v2679 = vunpack.c.l.b16 %v2647
  %v2680 = vunpack.c.l.b16 %v2648
  %v2681 = vunpack.c.l.b16 %v2649
  %v2682 = vunpack.c.l.b16 %v2650
  %v2683 = vunpack.c.l.b16 %v2651
  %v2684 = vunpack.c.l.b16 %v2652
  %v2685 = vunpack.c.l.b16 %v2653
  %v2686 = vunpack.c.l.b16 %v2654
  %v2687 = vunpack.c.l.b16 %v2655
  %v2688 = vunpack.c.l.b16 %v2656
  %v2689 = vpack.c.b16 %v2674, %v2673
  %v2690 = vpack.c.b16 %v2676, %v2675
  %v2691 = vpack.c.b16 %v2678, %v2677
  %v2692 = vpack.c.b16 %v2680, %v2679
  %v2693 = vpack.c.b16 %v2682, %v2681
  %v2694 = vpack.c.b16 %v2684, %v2683
  %v2695 = vpack.c.b16 %v2686, %v2685
  %v2696 = vpack.c.b16 %v2688, %v2687
  %2705 = vmatprep.subr.bf16.mxu0 0
  %2706 = vmatpush1.bf16.msra.mxu0 %v2689
  %2707 = vmatprep.subr.bf16.mxu0 0
  %2708 = vmatpush1.bf16.msra.mxu0 %v2690
  %2709 = vmatprep.subr.bf16.mxu0 0
  %2710 = vmatpush1.bf16.msra.mxu0 %v2691
  %2711 = vmatprep.subr.bf16.mxu0 0
  %2712 = vmatpush1.bf16.msra.mxu0 %v2692
  %2713 = vmatprep.subr.bf16.mxu0 0
  %2714 = vmatpush1.bf16.msra.mxu0 %v2693
  %2715 = vmatprep.subr.bf16.mxu0 0
  %2716 = vmatpush1.bf16.msra.mxu0 %v2694
  %2717 = vmatprep.subr.bf16.mxu0 0
  %2718 = vmatpush1.bf16.msra.mxu0 %v2695
  %2719 = vmatprep.subr.bf16.mxu0 0
  %2720 = vmatpush1.bf16.msra.mxu0 %v2696
  %2721 = vmatprep.subr.bf16.mxu0 0
  %2722 = vmatpush1.bf16.msra.mxu0 0
  %2723 = vmatprep.subr.bf16.mxu0 0
  %2724 = vmatpush1.bf16.msra.mxu0 0
  %2725 = vmatprep.subr.bf16.mxu0 0
  %2726 = vmatpush1.bf16.msra.mxu0 0
  %2727 = vmatprep.subr.bf16.mxu0 0
  %2728 = vmatpush1.bf16.msra.mxu0 0
  %2729 = vmatprep.subr.bf16.mxu0 0
  %2730 = vmatpush1.bf16.msra.mxu0 0
  %2731 = vmatprep.subr.bf16.mxu0 0
  %2732 = vmatpush1.bf16.msra.mxu0 0
  %2733 = vmatprep.subr.bf16.mxu0 0
  %2734 = vmatpush1.bf16.msra.mxu0 0
  %2735 = vmatprep.subr.bf16.mxu0 0
  %2736 = vmatpush1.bf16.msra.mxu0 0
  %2737 = vmatprep.mubr.bf16.mxu0 0
  %2738 = vmatmul.mubr.bf16.gmra.mrb[0].mxu0 %v2640
  %v2739 = vpop.f32.mrb[0].mxu0
  %v2740 = vadd.f32 %v61, %v2739
  %v2741 = vpop.f32.mrb[0].mxu0
  %v2742 = vpop.f32.mrb[0].mxu0
  %v2743 = vpop.f32.mrb[0].mxu0
  %2744 = vdwg.mxu0
  %2745 = vmax.xlane.f32.xlu0 %v2740
  %v2746 = vpop.xlane.xlu0 %2745
  %vm2747 = vcmp.eq.f32.partialorder %v2740, %v2746
  %v2748 = vsel %vm2747, %v64, 128
  %v2749 = vand.u32 %v2748, 65535
  %v2750 = vshra.s32 %v2748, 16
  %v2751 = vcvt.s32.f32 %v2749
  %v2752 = vcvt.s32.f32 %v2750
  %2753 = vmin.xlane.f32.xlu0 %v2752
  %v2754 = vpop.xlane.xlu0 %2753
  %vm2755 = vcmp.eq.f32.partialorder %v2752, %v2754
  %v2756 = vsel %vm2755, %v2751, inf
  %2757 = vmin.xlane.f32.xlu0 %v2756
  %v2758 = vpop.xlane.xlu0 %2757
  %v2759 = vcvt.f32.s32 %v2758
  %v2760 = vcvt.f32.s32 %v2754
  %v2761 = vshll.u32 %v2760, 16
  %v2762 = vadd.s32 %v2761, %v2759
  %vm2763 = vcmp.eq.s32.totalorder %v64, %v2762
  %v2764 = vsel %vm2763, 1.0, 0.0
  %v2765 = vpack.c.bf16 %v2764, %v2764
  %vm2766 = vcmp.eq.s32.totalorder %v2762, 2
  %v2767 = vsel %vm2766, 1, 0
  %v2768 = vsub.s32 1, %v2134
  %v2769 = vmul.u32 %v2767, %v2768
  %v2770 = vsub.s32 1, %v2769
  %v2771 = vmul.u32 %v2132, %v2770
  %v2772 = vmul.u32 %v2769, 2
  %v2773 = vadd.s32 %v2771, %v2772
  %vm2774 = vcmp.gt.s32.totalorder %v2134, %v2767
  %v2775 = vsel %vm2774, %v2134, %v2767
  %v2776 = vld [vmem:[%s12] sm:$0xff]
  %v2777 = vld [vmem:[%s12 + $0x8] sm:$0xf]
  %v2778 = vld [vmem:[%s12 + $0xc] sm:$0xff]
  %v2779 = vld [vmem:[%s12 + $0x14] sm:$0xf]
  %v2780 = vld [vmem:[%s12 + $0x18] sm:$0xff]
  %v2781 = vld [vmem:[%s12 + $0x20] sm:$0xf]
  %v2782 = vld [vmem:[%s12 + $0x24] sm:$0xff]
  %v2783 = vld [vmem:[%s12 + $0x2c] sm:$0xf]
  %v2784 = vld [vmem:[%s12 + $0x30] sm:$0xff]
  %v2785 = vld [vmem:[%s12 + $0x38] sm:$0xf]
  %v2786 = vld [vmem:[%s12 + $0x3c] sm:$0xff]
  %v2787 = vld [vmem:[%s12 + $0x44] sm:$0xf]
  %v2788 = vld [vmem:[%s12 + $0x48] sm:$0xff]
  %v2789 = vld [vmem:[%s12 + $0x50] sm:$0xf]
  %v2790 = vld [vmem:[%s12 + $0x54] sm:$0xff]
  %v2791 = vld [vmem:[%s12 + $0x5c] sm:$0xf]
  %v2792 = vld [vmem:[%s12 + $0x60] sm:$0xff]
  %v2793 = vld [vmem:[%s12 + $0x68] sm:$0xf]
  %v2794 = vld [vmem:[%s12 + $0x6c] sm:$0xff]
  %v2795 = vld [vmem:[%s12 + $0x74] sm:$0xf]
  %v2796 = vld [vmem:[%s12 + $0x78] sm:$0xff]
  %v2797 = vld [vmem:[%s12 + $0x80] sm:$0xf]
  %v2798 = vld [vmem:[%s12 + $0x84] sm:$0xff]
  %v2799 = vld [vmem:[%s12 + $0x8c] sm:$0xf]
  %v2800 = vld [vmem:[%s12 + $0x90] sm:$0xff]
  %v2801 = vld [vmem:[%s12 + $0x98] sm:$0xf]
  %v2802 = vld [vmem:[%s12 + $0x9c] sm:$0xff]
  %v2803 = vld [vmem:[%s12 + $0xa4] sm:$0xf]
  %v2804 = vld [vmem:[%s12 + $0xa8] sm:$0xff]
  %v2805 = vld [vmem:[%s12 + $0xb0] sm:$0xf]
  %v2806 = vld [vmem:[%s12 + $0xb4] sm:$0xff]
  %v2807 = vld [vmem:[%s12 + $0xbc] sm:$0xf]
  %v2840 = vunpack.c.l.b16 %v2776
  %v2841 = vunpack.c.h.b16 %v2776
  %v2842 = vunpack.c.l.b16 %v2777
  %v2843 = vunpack.c.l.b16 %v2778
  %v2844 = vunpack.c.h.b16 %v2778
  %v2845 = vunpack.c.l.b16 %v2779
  %v2846 = vunpack.c.l.b16 %v2780
  %v2847 = vunpack.c.h.b16 %v2780
  %v2848 = vunpack.c.l.b16 %v2781
  %v2849 = vunpack.c.l.b16 %v2782
  %v2850 = vunpack.c.h.b16 %v2782
  %v2851 = vunpack.c.l.b16 %v2783
  %v2852 = vunpack.c.l.b16 %v2784
  %v2853 = vunpack.c.h.b16 %v2784
  %v2854 = vunpack.c.l.b16 %v2785
  %v2855 = vunpack.c.l.b16 %v2786
  %v2856 = vunpack.c.h.b16 %v2786
  %v2857 = vunpack.c.l.b16 %v2787
  %v2858 = vunpack.c.l.b16 %v2788
  %v2859 = vunpack.c.h.b16 %v2788
  %v2860 = vunpack.c.l.b16 %v2789
  %v2861 = vunpack.c.l.b16 %v2790
  %v2862 = vunpack.c.h.b16 %v2790
  %v2863 = vunpack.c.l.b16 %v2791
  %v2864 = vunpack.c.l.b16 %v2792
  %v2865 = vunpack.c.h.b16 %v2792
  %v2866 = vunpack.c.l.b16 %v2793
  %v2867 = vunpack.c.l.b16 %v2794
  %v2868 = vunpack.c.h.b16 %v2794
  %v2869 = vunpack.c.l.b16 %v2795
  %v2870 = vunpack.c.l.b16 %v2796
  %v2871 = vunpack.c.h.b16 %v2796
  %v2872 = vunpack.c.l.b16 %v2797
  %v2873 = vunpack.c.l.b16 %v2798
  %v2874 = vunpack.c.h.b16 %v2798
  %v2875 = vunpack.c.l.b16 %v2799
  %v2876 = vunpack.c.l.b16 %v2800
  %v2877 = vunpack.c.h.b16 %v2800
  %v2878 = vunpack.c.l.b16 %v2801
  %v2879 = vunpack.c.l.b16 %v2802
  %v2880 = vunpack.c.h.b16 %v2802
  %v2881 = vunpack.c.l.b16 %v2803
  %v2882 = vunpack.c.l.b16 %v2804
  %v2883 = vunpack.c.h.b16 %v2804
  %v2884 = vunpack.c.l.b16 %v2805
  %v2885 = vunpack.c.l.b16 %v2806
  %v2886 = vunpack.c.h.b16 %v2806
  %v2887 = vunpack.c.l.b16 %v2807
  %v2888 = vpack.c.b16 %v2843, %v2840
  %v2889 = vpack.c.b16 %v2844, %v2841
  %v2890 = vpack.c.b16 %v2845, %v2842
  %v2891 = vpack.c.b16 %v2849, %v2846
  %v2892 = vpack.c.b16 %v2850, %v2847
  %v2893 = vpack.c.b16 %v2851, %v2848
  %v2894 = vpack.c.b16 %v2855, %v2852
  %v2895 = vpack.c.b16 %v2856, %v2853
  %v2896 = vpack.c.b16 %v2857, %v2854
  %v2897 = vpack.c.b16 %v2861, %v2858
  %v2898 = vpack.c.b16 %v2862, %v2859
  %v2899 = vpack.c.b16 %v2863, %v2860
  %v2900 = vpack.c.b16 %v2867, %v2864
  %v2901 = vpack.c.b16 %v2868, %v2865
  %v2902 = vpack.c.b16 %v2869, %v2866
  %v2903 = vpack.c.b16 %v2873, %v2870
  %v2904 = vpack.c.b16 %v2874, %v2871
  %v2905 = vpack.c.b16 %v2875, %v2872
  %v2906 = vpack.c.b16 %v2879, %v2876
  %v2907 = vpack.c.b16 %v2880, %v2877
  %v2908 = vpack.c.b16 %v2881, %v2878
  %v2909 = vpack.c.b16 %v2885, %v2882
  %v2910 = vpack.c.b16 %v2886, %v2883
  %v2911 = vpack.c.b16 %v2887, %v2884
  %2936 = vmatprep.subr.bf16.mxu0 %v2889
  %2937 = vmatpush1.bf16.msra.mxu0 %v2888
  %2938 = vmatprep.subr.bf16.mxu0 %v2892
  %2939 = vmatpush1.bf16.msra.mxu0 %v2891
  %2940 = vmatprep.subr.bf16.mxu0 %v2895
  %2941 = vmatpush1.bf16.msra.mxu0 %v2894
  %2942 = vmatprep.subr.bf16.mxu0 %v2898
  %2943 = vmatpush1.bf16.msra.mxu0 %v2897
  %2944 = vmatprep.subr.bf16.mxu0 %v2901
  %2945 = vmatpush1.bf16.msra.mxu0 %v2900
  %2946 = vmatprep.subr.bf16.mxu0 %v2904
  %2947 = vmatpush1.bf16.msra.mxu0 %v2903
  %2948 = vmatprep.subr.bf16.mxu0 %v2907
  %2949 = vmatpush1.bf16.msra.mxu0 %v2906
  %2950 = vmatprep.subr.bf16.mxu0 %v2910
  %2951 = vmatpush1.bf16.msra.mxu0 %v2909
  %2952 = vmatprep.subr.bf16.mxu0 0
  %2953 = vmatpush1.bf16.msra.mxu0 0
  %2954 = vmatprep.subr.bf16.mxu0 0
  %2955 = vmatpush1.bf16.msra.mxu0 0
  %2956 = vmatprep.subr.bf16.mxu0 0
  %2957 = vmatpush1.bf16.msra.mxu0 0
  %2958 = vmatprep.subr.bf16.mxu0 0
  %2959 = vmatpush1.bf16.msra.mxu0 0
  %2960 = vmatprep.subr.bf16.mxu0 0
  %2961 = vmatpush1.bf16.msra.mxu0 0
  %2962 = vmatprep.subr.bf16.mxu0 0
  %2963 = vmatpush1.bf16.msra.mxu0 0
  %2964 = vmatprep.subr.bf16.mxu0 0
  %2965 = vmatpush1.bf16.msra.mxu0 0
  %2966 = vmatprep.subr.bf16.mxu0 0
  %2967 = vmatpush1.bf16.msra.mxu0 0
  %2968 = vmatprep.mubr.bf16.mxu0 0
  %2969 = vmatmul.mubr.bf16.gmra.mrb[0].mxu0 %v2765
  %v2970 = vpop.f32.mrb[0].mxu0
  %v2971 = vadd.f32 0.0, %v2970
  %v2972 = vpop.f32.mrb[0].mxu0
  %v2973 = vadd.f32 0.0, %v2972
  %v2974 = vpop.f32.mrb[0].mxu0
  %v2975 = vpop.f32.mrb[0].mxu0
  %2976 = vdwg.mxu0
  %2977 = vmatprep.subr.bf16.mxu0 0
  %2978 = vmatpush1.bf16.msra.mxu0 %v2890
  %2979 = vmatprep.subr.bf16.mxu0 0
  %2980 = vmatpush1.bf16.msra.mxu0 %v2893
  %2981 = vmatprep.subr.bf16.mxu0 0
  %2982 = vmatpush1.bf16.msra.mxu0 %v2896
  %2983 = vmatprep.subr.bf16.mxu0 0
  %2984 = vmatpush1.bf16.msra.mxu0 %v2899
  %2985 = vmatprep.subr.bf16.mxu0 0
  %2986 = vmatpush1.bf16.msra.mxu0 %v2902
  %2987 = vmatprep.subr.bf16.mxu0 0
  %2988 = vmatpush1.bf16.msra.mxu0 %v2905
  %2989 = vmatprep.subr.bf16.mxu0 0
  %2990 = vmatpush1.bf16.msra.mxu0 %v2908
  %2991 = vmatprep.subr.bf16.mxu0 0
  %2992 = vmatpush1.bf16.msra.mxu0 %v2911
  %2993 = vmatprep.subr.bf16.mxu0 0
  %2994 = vmatpush1.bf16.msra.mxu0 0
  %2995 = vmatprep.subr.bf16.mxu0 0
  %2996 = vmatpush1.bf16.msra.mxu0 0
  %2997 = vmatprep.subr.bf16.mxu0 0
  %2998 = vmatpush1.bf16.msra.mxu0 0
  %2999 = vmatprep.subr.bf16.mxu0 0
  %3000 = vmatpush1.bf16.msra.mxu0 0
  %3001 = vmatprep.subr.bf16.mxu0 0
  %3002 = vmatpush1.bf16.msra.mxu0 0
  %3003 = vmatprep.subr.bf16.mxu0 0
  %3004 = vmatpush1.bf16.msra.mxu0 0
  %3005 = vmatprep.subr.bf16.mxu0 0
  %3006 = vmatpush1.bf16.msra.mxu0 0
  %3007 = vmatprep.subr.bf16.mxu0 0
  %3008 = vmatpush1.bf16.msra.mxu0 0
  %3009 = vmatprep.mubr.bf16.mxu0 0
  %3010 = vmatmul.mubr.bf16.gmra.mrb[0].mxu0 %v2765
  %v3011 = vpop.f32.mrb[0].mxu0
  %v3012 = vadd.f32 0.0, %v3011
  %v3013 = vpop.f32.mrb[0].mxu0
  %v3014 = vpop.f32.mrb[0].mxu0
  %v3015 = vpop.f32.mrb[0].mxu0
  %3016 = vdwg.mxu0
  %v3017 = vld [vmem:[%s9] sm:$0xff]
  %v3018 = vld [vmem:[%s9 + $0x8] sm:$0xf]
  %v3019 = vld [vmem:[%s9 + $0xc] sm:$0xff]
  %v3020 = vld [vmem:[%s9 + $0x14] sm:$0xf]
  %v3021 = vld [vmem:[%s9 + $0x18] sm:$0xff]
  %v3022 = vld [vmem:[%s9 + $0x20] sm:$0xf]
  %v3023 = vld [vmem:[%s9 + $0x24] sm:$0xff]
  %v3024 = vld [vmem:[%s9 + $0x2c] sm:$0xf]
  %v3025 = vld [vmem:[%s9 + $0x30] sm:$0xff]
  %v3026 = vld [vmem:[%s9 + $0x38] sm:$0xf]
  %v3027 = vld [vmem:[%s9 + $0x3c] sm:$0xff]
  %v3028 = vld [vmem:[%s9 + $0x44] sm:$0xf]
  %v3029 = vld [vmem:[%s9 + $0x48] sm:$0xff]
  %v3030 = vld [vmem:[%s9 + $0x50] sm:$0xf]
  %v3031 = vld [vmem:[%s9 + $0x54] sm:$0xff]
  %v3032 = vld [vmem:[%s9 + $0x5c] sm:$0xf]
  %v3033 = vld [vmem:[%s9 + $0x60] sm:$0xff]
  %v3034 = vld [vmem:[%s9 + $0x68] sm:$0xf]
  %v3035 = vld [vmem:[%s9 + $0x6c] sm:$0xff]
  %v3036 = vld [vmem:[%s9 + $0x74] sm:$0xf]
  %v3037 = vld [vmem:[%s9 + $0x78] sm:$0xff]
  %v3038 = vld [vmem:[%s9 + $0x80] sm:$0xf]
  %v3039 = vld [vmem:[%s9 + $0x84] sm:$0xff]
  %v3040 = vld [vmem:[%s9 + $0x8c] sm:$0xf]
  %v3041 = vld [vmem:[%s9 + $0x90] sm:$0xff]
  %v3042 = vld [vmem:[%s9 + $0x98] sm:$0xf]
  %v3043 = vld [vmem:[%s9 + $0x9c] sm:$0xff]
  %v3044 = vld [vmem:[%s9 + $0xa4] sm:$0xf]
  %v3045 = vld [vmem:[%s9 + $0xa8] sm:$0xff]
  %v3046 = vld [vmem:[%s9 + $0xb0] sm:$0xf]
  %v3047 = vld [vmem:[%s9 + $0xb4] sm:$0xff]
  %v3048 = vld [vmem:[%s9 + $0xbc] sm:$0xf]
  %v3081 = vunpack.c.l.b16 %v3017
  %v3082 = vunpack.c.h.b16 %v3017
  %v3083 = vunpack.c.l.b16 %v3018
  %v3084 = vunpack.c.l.b16 %v3019
  %v3085 = vunpack.c.h.b16 %v3019
  %v3086 = vunpack.c.l.b16 %v3020
  %v3087 = vunpack.c.l.b16 %v3021
  %v3088 = vunpack.c.h.b16 %v3021
  %v3089 = vunpack.c.l.b16 %v3022
  %v3090 = vunpack.c.l.b16 %v3023
  %v3091 = vunpack.c.h.b16 %v3023
  %v3092 = vunpack.c.l.b16 %v3024
  %v3093 = vunpack.c.l.b16 %v3025
  %v3094 = vunpack.c.h.b16 %v3025
  %v3095 = vunpack.c.l.b16 %v3026
  %v3096 = vunpack.c.l.b16 %v3027
  %v3097 = vunpack.c.h.b16 %v3027
  %v3098 = vunpack.c.l.b16 %v3028
  %v3099 = vunpack.c.l.b16 %v3029
  %v3100 = vunpack.c.h.b16 %v3029
  %v3101 = vunpack.c.l.b16 %v3030
  %v3102 = vunpack.c.l.b16 %v3031
  %v3103 = vunpack.c.h.b16 %v3031
  %v3104 = vunpack.c.l.b16 %v3032
  %v3105 = vunpack.c.l.b16 %v3033
  %v3106 = vunpack.c.h.b16 %v3033
  %v3107 = vunpack.c.l.b16 %v3034
  %v3108 = vunpack.c.l.b16 %v3035
  %v3109 = vunpack.c.h.b16 %v3035
  %v3110 = vunpack.c.l.b16 %v3036
  %v3111 = vunpack.c.l.b16 %v3037
  %v3112 = vunpack.c.h.b16 %v3037
  %v3113 = vunpack.c.l.b16 %v3038
  %v3114 = vunpack.c.l.b16 %v3039
  %v3115 = vunpack.c.h.b16 %v3039
  %v3116 = vunpack.c.l.b16 %v3040
  %v3117 = vunpack.c.l.b16 %v3041
  %v3118 = vunpack.c.h.b16 %v3041
  %v3119 = vunpack.c.l.b16 %v3042
  %v3120 = vunpack.c.l.b16 %v3043
  %v3121 = vunpack.c.h.b16 %v3043
  %v3122 = vunpack.c.l.b16 %v3044
  %v3123 = vunpack.c.l.b16 %v3045
  %v3124 = vunpack.c.h.b16 %v3045
  %v3125 = vunpack.c.l.b16 %v3046
  %v3126 = vunpack.c.l.b16 %v3047
  %v3127 = vunpack.c.h.b16 %v3047
  %v3128 = vunpack.c.l.b16 %v3048
  %v3129 = vpack.c.b16 %v3084, %v3081
  %v3130 = vpack.c.b16 %v3085, %v3082
  %v3131 = vpack.c.b16 %v3086, %v3083
  %v3132 = vpack.c.b16 %v3090, %v3087
  %v3133 = vpack.c.b16 %v3091, %v3088
  %v3134 = vpack.c.b16 %v3092, %v3089
  %v3135 = vpack.c.b16 %v3096, %v3093
  %v3136 = vpack.c.b16 %v3097, %v3094
  %v3137 = vpack.c.b16 %v3098, %v3095
  %v3138 = vpack.c.b16 %v3102, %v3099
  %v3139 = vpack.c.b16 %v3103, %v3100
  %v3140 = vpack.c.b16 %v3104, %v3101
  %v3141 = vpack.c.b16 %v3108, %v3105
  %v3142 = vpack.c.b16 %v3109, %v3106
  %v3143 = vpack.c.b16 %v3110, %v3107
  %v3144 = vpack.c.b16 %v3114, %v3111
  %v3145 = vpack.c.b16 %v3115, %v3112
  %v3146 = vpack.c.b16 %v3116, %v3113
  %v3147 = vpack.c.b16 %v3120, %v3117
  %v3148 = vpack.c.b16 %v3121, %v3118
  %v3149 = vpack.c.b16 %v3122, %v3119
  %v3150 = vpack.c.b16 %v3126, %v3123
  %v3151 = vpack.c.b16 %v3127, %v3124
  %v3152 = vpack.c.b16 %v3128, %v3125
  %3177 = vmatprep.subr.bf16.mxu0 %v3130
  %3178 = vmatpush1.bf16.msra.mxu0 %v3129
  %3179 = vmatprep.subr.bf16.mxu0 %v3133
  %3180 = vmatpush1.bf16.msra.mxu0 %v3132
  %3181 = vmatprep.subr.bf16.mxu0 %v3136
  %3182 = vmatpush1.bf16.msra.mxu0 %v3135
  %3183 = vmatprep.subr.bf16.mxu0 %v3139
  %3184 = vmatpush1.bf16.msra.mxu0 %v3138
  %3185 = vmatprep.subr.bf16.mxu0 %v3142
  %3186 = vmatpush1.bf16.msra.mxu0 %v3141
  %3187 = vmatprep.subr.bf16.mxu0 %v3145
  %3188 = vmatpush1.bf16.msra.mxu0 %v3144
  %3189 = vmatprep.subr.bf16.mxu0 %v3148
  %3190 = vmatpush1.bf16.msra.mxu0 %v3147
  %3191 = vmatprep.subr.bf16.mxu0 %v3151
  %3192 = vmatpush1.bf16.msra.mxu0 %v3150
  %3193 = vmatprep.subr.bf16.mxu0 0
  %3194 = vmatpush1.bf16.msra.mxu0 0
  %3195 = vmatprep.subr.bf16.mxu0 0
  %3196 = vmatpush1.bf16.msra.mxu0 0
  %3197 = vmatprep.subr.bf16.mxu0 0
  %3198 = vmatpush1.bf16.msra.mxu0 0
  %3199 = vmatprep.subr.bf16.mxu0 0
  %3200 = vmatpush1.bf16.msra.mxu0 0
  %3201 = vmatprep.subr.bf16.mxu0 0
  %3202 = vmatpush1.bf16.msra.mxu0 0
  %3203 = vmatprep.subr.bf16.mxu0 0
  %3204 = vmatpush1.bf16.msra.mxu0 0
  %3205 = vmatprep.subr.bf16.mxu0 0
  %3206 = vmatpush1.bf16.msra.mxu0 0
  %3207 = vmatprep.subr.bf16.mxu0 0
  %3208 = vmatpush1.bf16.msra.mxu0 0
  %3209 = vmatprep.mubr.bf16.mxu0 0
  %3210 = vmatmul.mubr.bf16.gmra.mrb[0].mxu0 %v2640
  %v3211 = vpop.f32.mrb[0].mxu0
  %v3212 = vadd.f32 %v58, %v3211
  %v3213 = vpop.f32.mrb[0].mxu0
  %v3214 = vadd.f32 %v59, %v3213
  %v3215 = vpop.f32.mrb[0].mxu0
  %v3216 = vpop.f32.mrb[0].mxu0
  %3217 = vdwg.mxu0
  %3218 = vmatprep.subr.bf16.mxu0 0
  %3219 = vmatpush1.bf16.msra.mxu0 %v3131
  %3220 = vmatprep.subr.bf16.mxu0 0
  %3221 = vmatpush1.bf16.msra.mxu0 %v3134
  %3222 = vmatprep.subr.bf16.mxu0 0
  %3223 = vmatpush1.bf16.msra.mxu0 %v3137
  %3224 = vmatprep.subr.bf16.mxu0 0
  %3225 = vmatpush1.bf16.msra.mxu0 %v3140
  %3226 = vmatprep.subr.bf16.mxu0 0
  %3227 = vmatpush1.bf16.msra.mxu0 %v3143
  %3228 = vmatprep.subr.bf16.mxu0 0
  %3229 = vmatpush1.bf16.msra.mxu0 %v3146
  %3230 = vmatprep.subr.bf16.mxu0 0
  %3231 = vmatpush1.bf16.msra.mxu0 %v3149
  %3232 = vmatprep.subr.bf16.mxu0 0
  %3233 = vmatpush1.bf16.msra.mxu0 %v3152
  %3234 = vmatprep.subr.bf16.mxu0 0
  %3235 = vmatpush1.bf16.msra.mxu0 0
  %3236 = vmatprep.subr.bf16.mxu0 0
  %3237 = vmatpush1.bf16.msra.mxu0 0
  %3238 = vmatprep.subr.bf16.mxu0 0
  %3239 = vmatpush1.bf16.msra.mxu0 0
  %3240 = vmatprep.subr.bf16.mxu0 0
  %3241 = vmatpush1.bf16.msra.mxu0 0
  %3242 = vmatprep.subr.bf16.mxu0 0
  %3243 = vmatpush1.bf16.msra.mxu0 0
  %3244 = vmatprep.subr.bf16.mxu0 0
  %3245 = vmatpush1.bf16.msra.mxu0 0
  %3246 = vmatprep.subr.bf16.mxu0 0
  %3247 = vmatpush1.bf16.msra.mxu0 0
  %3248 = vmatprep.subr.bf16.mxu0 0
  %3249 = vmatpush1.bf16.msra.mxu0 0
  %3250 = vmatprep.mubr.bf16.mxu0 0
  %3251 = vmatmul.mubr.bf16.gmra.mrb[0].mxu0 %v2640
  %v3252 = vpop.f32.mrb[0].mxu0
  %v3253 = vadd.f32 %v60, %v3252
  %v3254 = vpop.f32.mrb[0].mxu0
  %v3255 = vpop.f32.mrb[0].mxu0
  %v3256 = vpop.f32.mrb[0].mxu0
  %3257 = vdwg.mxu0
  %v3258 = vadd.f32 %v2971, %v3212
  %v3259 = vxor.u32 %v3258, 2147483648
  %v3260 = vmul.f32 %v3259, 1.442695
  %v3261 = vpow.pop %v3260
  %v3262 = vadd.f32 %v3261, 1.0
  %v3263 = vrcp.pop %v3262
  %v3264 = vmul.f32 1.0, %v3263
  %v3265 = vadd.f32 %v2973, %v3214
  %v3266 = vxor.u32 %v3265, 2147483648
  %v3267 = vmul.f32 %v3266, 1.442695
  %v3268 = vpow.pop %v3267
  %v3269 = vadd.f32 %v3268, 1.0
  %v3270 = vrcp.pop %v3269
  %v3271 = vmul.f32 1.0, %v3270
  %v3272 = vmul.f32 %v3264, %v3253
  %v3273 = vadd.f32 %v3012, %v3272
  %v3274 = vtanh.pop %v3273
  %v3275 = vsub.f32 1.0, %v3271
  %v3276 = vmul.f32 %v3275, %v3274
  %v3277 = vmul.f32 %v3271, %v2637
  %v3278 = vadd.f32 %v3276, %v3277
  %s3279 = scalar_lea.vmem %s15, 24
  %3280 = vst [vmem:[%s3279] sm:$0xff] %v3278
  %v3281 = vpack.c.bf16 %v3278, %v3278
  %v3282 = vld [vmem:[%s13] sm:$0xf]
  %v3283 = vld [vmem:[%s13 + $0x4] sm:$0xf]
  %v3284 = vld [vmem:[%s13 + $0x8] sm:$0xf]
  %v3285 = vld [vmem:[%s13 + $0xc] sm:$0xf]
  %v3286 = vld [vmem:[%s13 + $0x10] sm:$0xf]
  %v3287 = vld [vmem:[%s13 + $0x14] sm:$0xf]
  %v3288 = vld [vmem:[%s13 + $0x18] sm:$0xf]
  %v3289 = vld [vmem:[%s13 + $0x1c] sm:$0xf]
  %v3290 = vld [vmem:[%s13 + $0x20] sm:$0xf]
  %v3291 = vld [vmem:[%s13 + $0x24] sm:$0xf]
  %v3292 = vld [vmem:[%s13 + $0x28] sm:$0xf]
  %v3293 = vld [vmem:[%s13 + $0x2c] sm:$0xf]
  %v3294 = vld [vmem:[%s13 + $0x30] sm:$0xf]
  %v3295 = vld [vmem:[%s13 + $0x34] sm:$0xf]
  %v3296 = vld [vmem:[%s13 + $0x38] sm:$0xf]
  %v3297 = vld [vmem:[%s13 + $0x3c] sm:$0xf]
  %v3314 = vunpack.c.l.b16 %v3282
  %v3315 = vunpack.c.l.b16 %v3283
  %v3316 = vunpack.c.l.b16 %v3284
  %v3317 = vunpack.c.l.b16 %v3285
  %v3318 = vunpack.c.l.b16 %v3286
  %v3319 = vunpack.c.l.b16 %v3287
  %v3320 = vunpack.c.l.b16 %v3288
  %v3321 = vunpack.c.l.b16 %v3289
  %v3322 = vunpack.c.l.b16 %v3290
  %v3323 = vunpack.c.l.b16 %v3291
  %v3324 = vunpack.c.l.b16 %v3292
  %v3325 = vunpack.c.l.b16 %v3293
  %v3326 = vunpack.c.l.b16 %v3294
  %v3327 = vunpack.c.l.b16 %v3295
  %v3328 = vunpack.c.l.b16 %v3296
  %v3329 = vunpack.c.l.b16 %v3297
  %v3330 = vpack.c.b16 %v3315, %v3314
  %v3331 = vpack.c.b16 %v3317, %v3316
  %v3332 = vpack.c.b16 %v3319, %v3318
  %v3333 = vpack.c.b16 %v3321, %v3320
  %v3334 = vpack.c.b16 %v3323, %v3322
  %v3335 = vpack.c.b16 %v3325, %v3324
  %v3336 = vpack.c.b16 %v3327, %v3326
  %v3337 = vpack.c.b16 %v3329, %v3328
  %3346 = vmatprep.subr.bf16.mxu0 0
  %3347 = vmatpush1.bf16.msra.mxu0 %v3330
  %3348 = vmatprep.subr.bf16.mxu0 0
  %3349 = vmatpush1.bf16.msra.mxu0 %v3331
  %3350 = vmatprep.subr.bf16.mxu0 0
  %3351 = vmatpush1.bf16.msra.mxu0 %v3332
  %3352 = vmatprep.subr.bf16.mxu0 0
  %3353 = vmatpush1.bf16.msra.mxu0 %v3333
  %3354 = vmatprep.subr.bf16.mxu0 0
  %3355 = vmatpush1.bf16.msra.mxu0 %v3334
  %3356 = vmatprep.subr.bf16.mxu0 0
  %3357 = vmatpush1.bf16.msra.mxu0 %v3335
  %3358 = vmatprep.subr.bf16.mxu0 0
  %3359 = vmatpush1.bf16.msra.mxu0 %v3336
  %3360 = vmatprep.subr.bf16.mxu0 0
  %3361 = vmatpush1.bf16.msra.mxu0 %v3337
  %3362 = vmatprep.subr.bf16.mxu0 0
  %3363 = vmatpush1.bf16.msra.mxu0 0
  %3364 = vmatprep.subr.bf16.mxu0 0
  %3365 = vmatpush1.bf16.msra.mxu0 0
  %3366 = vmatprep.subr.bf16.mxu0 0
  %3367 = vmatpush1.bf16.msra.mxu0 0
  %3368 = vmatprep.subr.bf16.mxu0 0
  %3369 = vmatpush1.bf16.msra.mxu0 0
  %3370 = vmatprep.subr.bf16.mxu0 0
  %3371 = vmatpush1.bf16.msra.mxu0 0
  %3372 = vmatprep.subr.bf16.mxu0 0
  %3373 = vmatpush1.bf16.msra.mxu0 0
  %3374 = vmatprep.subr.bf16.mxu0 0
  %3375 = vmatpush1.bf16.msra.mxu0 0
  %3376 = vmatprep.subr.bf16.mxu0 0
  %3377 = vmatpush1.bf16.msra.mxu0 0
  %3378 = vmatprep.mubr.bf16.mxu0 0
  %3379 = vmatmul.mubr.bf16.gmra.mrb[0].mxu0 %v3281
  %v3380 = vpop.f32.mrb[0].mxu0
  %v3381 = vadd.f32 %v61, %v3380
  %v3382 = vpop.f32.mrb[0].mxu0
  %v3383 = vpop.f32.mrb[0].mxu0
  %v3384 = vpop.f32.mrb[0].mxu0
  %3385 = vdwg.mxu0
  %3386 = vmax.xlane.f32.xlu0 %v3381
  %v3387 = vpop.xlane.xlu0 %3386
  %vm3388 = vcmp.eq.f32.partialorder %v3381, %v3387
  %v3389 = vsel %vm3388, %v64, 128
  %v3390 = vand.u32 %v3389, 65535
  %v3391 = vshra.s32 %v3389, 16
  %v3392 = vcvt.s32.f32 %v3390
  %v3393 = vcvt.s32.f32 %v3391
  %3394 = vmin.xlane.f32.xlu0 %v3393
  %v3395 = vpop.xlane.xlu0 %3394
  %vm3396 = vcmp.eq.f32.partialorder %v3393, %v3395
  %v3397 = vsel %vm3396, %v3392, inf
  %3398 = vmin.xlane.f32.xlu0 %v3397
  %v3399 = vpop.xlane.xlu0 %3398
  %v3400 = vcvt.f32.s32 %v3399
  %v3401 = vcvt.f32.s32 %v3395
  %v3402 = vshll.u32 %v3401, 16
  %v3403 = vadd.s32 %v3402, %v3400
  %vm3404 = vcmp.eq.s32.totalorder %v64, %v3403
  %v3405 = vsel %vm3404, 1.0, 0.0
  %v3406 = vpack.c.bf16 %v3405, %v3405
  %vm3407 = vcmp.eq.s32.totalorder %v3403, 2
  %v3408 = vsel %vm3407, 1, 0
  %v3409 = vsub.s32 1, %v2775
  %v3410 = vmul.u32 %v3408, %v3409
  %v3411 = vsub.s32 1, %v3410
  %v3412 = vmul.u32 %v2773, %v3411
  %v3413 = vmul.u32 %v3410, 3
  %v3414 = vadd.s32 %v3412, %v3413
  %vm3415 = vcmp.gt.s32.totalorder %v2775, %v3408
  %v3416 = vsel %vm3415, %v2775, %v3408
  %v3417 = vld [vmem:[%s12] sm:$0xff]
  %v3418 = vld [vmem:[%s12 + $0x8] sm:$0xf]
  %v3419 = vld [vmem:[%s12 + $0xc] sm:$0xff]
  %v3420 = vld [vmem:[%s12 + $0x14] sm:$0xf]
  %v3421 = vld [vmem:[%s12 + $0x18] sm:$0xff]
  %v3422 = vld [vmem:[%s12 + $0x20] sm:$0xf]
  %v3423 = vld [vmem:[%s12 + $0x24] sm:$0xff]
  %v3424 = vld [vmem:[%s12 + $0x2c] sm:$0xf]
  %v3425 = vld [vmem:[%s12 + $0x30] sm:$0xff]
  %v3426 = vld [vmem:[%s12 + $0x38] sm:$0xf]
  %v3427 = vld [vmem:[%s12 + $0x3c] sm:$0xff]
  %v3428 = vld [vmem:[%s12 + $0x44] sm:$0xf]
  %v3429 = vld [vmem:[%s12 + $0x48] sm:$0xff]
  %v3430 = vld [vmem:[%s12 + $0x50] sm:$0xf]
  %v3431 = vld [vmem:[%s12 + $0x54] sm:$0xff]
  %v3432 = vld [vmem:[%s12 + $0x5c] sm:$0xf]
  %v3433 = vld [vmem:[%s12 + $0x60] sm:$0xff]
  %v3434 = vld [vmem:[%s12 + $0x68] sm:$0xf]
  %v3435 = vld [vmem:[%s12 + $0x6c] sm:$0xff]
  %v3436 = vld [vmem:[%s12 + $0x74] sm:$0xf]
  %v3437 = vld [vmem:[%s12 + $0x78] sm:$0xff]
  %v3438 = vld [vmem:[%s12 + $0x80] sm:$0xf]
  %v3439 = vld [vmem:[%s12 + $0x84] sm:$0xff]
  %v3440 = vld [vmem:[%s12 + $0x8c] sm:$0xf]
  %v3441 = vld [vmem:[%s12 + $0x90] sm:$0xff]
  %v3442 = vld [vmem:[%s12 + $0x98] sm:$0xf]
  %v3443 = vld [vmem:[%s12 + $0x9c] sm:$0xff]
  %v3444 = vld [vmem:[%s12 + $0xa4] sm:$0xf]
  %v3445 = vld [vmem:[%s12 + $0xa8] sm:$0xff]
  %v3446 = vld [vmem:[%s12 + $0xb0] sm:$0xf]
  %v3447 = vld [vmem:[%s12 + $0xb4] sm:$0xff]
  %v3448 = vld [vmem:[%s12 + $0xbc] sm:$0xf]
  %v3481 = vunpack.c.l.b16 %v3417
  %v3482 = vunpack.c.h.b16 %v3417
  %v3483 = vunpack.c.l.b16 %v3418
  %v3484 = vunpack.c.l.b16 %v3419
  %v3485 = vunpack.c.h.b16 %v3419
  %v3486 = vunpack.c.l.b16 %v3420
  %v3487 = vunpack.c.l.b16 %v3421
  %v3488 = vunpack.c.h.b16 %v3421
  %v3489 = vunpack.c.l.b16 %v3422
  %v3490 = vunpack.c.l.b16 %v3423
  %v3491 = vunpack.c.h.b16 %v3423
  %v3492 = vunpack.c.l.b16 %v3424
  %v3493 = vunpack.c.l.b16 %v3425
  %v3494 = vunpack.c.h.b16 %v3425
  %v3495 = vunpack.c.l.b16 %v3426
  %v3496 = vunpack.c.l.b16 %v3427
  %v3497 = vunpack.c.h.b16 %v3427
  %v3498 = vunpack.c.l.b16 %v3428
  %v3499 = vunpack.c.l.b16 %v3429
  %v3500 = vunpack.c.h.b16 %v3429
  %v3501 = vunpack.c.l.b16 %v3430
  %v3502 = vunpack.c.l.b16 %v3431
  %v3503 = vunpack.c.h.b16 %v3431
  %v3504 = vunpack.c.l.b16 %v3432
  %v3505 = vunpack.c.l.b16 %v3433
  %v3506 = vunpack.c.h.b16 %v3433
  %v3507 = vunpack.c.l.b16 %v3434
  %v3508 = vunpack.c.l.b16 %v3435
  %v3509 = vunpack.c.h.b16 %v3435
  %v3510 = vunpack.c.l.b16 %v3436
  %v3511 = vunpack.c.l.b16 %v3437
  %v3512 = vunpack.c.h.b16 %v3437
  %v3513 = vunpack.c.l.b16 %v3438
  %v3514 = vunpack.c.l.b16 %v3439
  %v3515 = vunpack.c.h.b16 %v3439
  %v3516 = vunpack.c.l.b16 %v3440
  %v3517 = vunpack.c.l.b16 %v3441
  %v3518 = vunpack.c.h.b16 %v3441
  %v3519 = vunpack.c.l.b16 %v3442
  %v3520 = vunpack.c.l.b16 %v3443
  %v3521 = vunpack.c.h.b16 %v3443
  %v3522 = vunpack.c.l.b16 %v3444
  %v3523 = vunpack.c.l.b16 %v3445
  %v3524 = vunpack.c.h.b16 %v3445
  %v3525 = vunpack.c.l.b16 %v3446
  %v3526 = vunpack.c.l.b16 %v3447
  %v3527 = vunpack.c.h.b16 %v3447
  %v3528 = vunpack.c.l.b16 %v3448
  %v3529 = vpack.c.b16 %v3484, %v3481
  %v3530 = vpack.c.b16 %v3485, %v3482
  %v3531 = vpack.c.b16 %v3486, %v3483
  %v3532 = vpack.c.b16 %v3490, %v3487
  %v3533 = vpack.c.b16 %v3491, %v3488
  %v3534 = vpack.c.b16 %v3492, %v3489
  %v3535 = vpack.c.b16 %v3496, %v3493
  %v3536 = vpack.c.b16 %v3497, %v3494
  %v3537 = vpack.c.b16 %v3498, %v3495
  %v3538 = vpack.c.b16 %v3502, %v3499
  %v3539 = vpack.c.b16 %v3503, %v3500
  %v3540 = vpack.c.b16 %v3504, %v3501
  %v3541 = vpack.c.b16 %v3508, %v3505
  %v3542 = vpack.c.b16 %v3509, %v3506
  %v3543 = vpack.c.b16 %v3510, %v3507
  %v3544 = vpack.c.b16 %v3514, %v3511
  %v3545 = vpack.c.b16 %v3515, %v3512
  %v3546 = vpack.c.b16 %v3516, %v3513
  %v3547 = vpack.c.b16 %v3520, %v3517
  %v3548 = vpack.c.b16 %v3521, %v3518
  %v3549 = vpack.c.b16 %v3522, %v3519
  %v3550 = vpack.c.b16 %v3526, %v3523
  %v3551 = vpack.c.b16 %v3527, %v3524
  %v3552 = vpack.c.b16 %v3528, %v3525
  %3577 = vmatprep.subr.bf16.mxu0 %v3530
  %3578 = vmatpush1.bf16.msra.mxu0 %v3529
  %3579 = vmatprep.subr.bf16.mxu0 %v3533
  %3580 = vmatpush1.bf16.msra.mxu0 %v3532
  %3581 = vmatprep.subr.bf16.mxu0 %v3536
  %3582 = vmatpush1.bf16.msra.mxu0 %v3535
  %3583 = vmatprep.subr.bf16.mxu0 %v3539
  %3584 = vmatpush1.bf16.msra.mxu0 %v3538
  %3585 = vmatprep.subr.bf16.mxu0 %v3542
  %3586 = vmatpush1.bf16.msra.mxu0 %v3541
  %3587 = vmatprep.subr.bf16.mxu0 %v3545
  %3588 = vmatpush1.bf16.msra.mxu0 %v3544
  %3589 = vmatprep.subr.bf16.mxu0 %v3548
  %3590 = vmatpush1.bf16.msra.mxu0 %v3547
  %3591 = vmatprep.subr.bf16.mxu0 %v3551
  %3592 = vmatpush1.bf16.msra.mxu0 %v3550
  %3593 = vmatprep.subr.bf16.mxu0 0
  %3594 = vmatpush1.bf16.msra.mxu0 0
  %3595 = vmatprep.subr.bf16.mxu0 0
  %3596 = vmatpush1.bf16.msra.mxu0 0
  %3597 = vmatprep.subr.bf16.mxu0 0
  %3598 = vmatpush1.bf16.msra.mxu0 0
  %3599 = vmatprep.subr.bf16.mxu0 0
  %3600 = vmatpush1.bf16.msra.mxu0 0
  %3601 = vmatprep.subr.bf16.mxu0 0
  %3602 = vmatpush1.bf16.msra.mxu0 0
  %3603 = vmatprep.subr.bf16.mxu0 0
  %3604 = vmatpush1.bf16.msra.mxu0 0
  %3605 = vmatprep.subr.bf16.mxu0 0
  %3606 = vmatpush1.bf16.msra.mxu0 0
  %3607 = vmatprep.subr.bf16.mxu0 0
  %3608 = vmatpush1.bf16.msra.mxu0 0
  %3609 = vmatprep.mubr.bf16.mxu0 0
  %3610 = vmatmul.mubr.bf16.gmra.mrb[0].mxu0 %v3406
  %v3611 = vpop.f32.mrb[0].mxu0
  %v3612 = vadd.f32 0.0, %v3611
  %v3613 = vpop.f32.mrb[0].mxu0
  %v3614 = vadd.f32 0.0, %v3613
  %v3615 = vpop.f32.mrb[0].mxu0
  %v3616 = vpop.f32.mrb[0].mxu0
  %3617 = vdwg.mxu0
  %3618 = vmatprep.subr.bf16.mxu0 0
  %3619 = vmatpush1.bf16.msra.mxu0 %v3531
  %3620 = vmatprep.subr.bf16.mxu0 0
  %3621 = vmatpush1.bf16.msra.mxu0 %v3534
  %3622 = vmatprep.subr.bf16.mxu0 0
  %3623 = vmatpush1.bf16.msra.mxu0 %v3537
  %3624 = vmatprep.subr.bf16.mxu0 0
  %3625 = vmatpush1.bf16.msra.mxu0 %v3540
  %3626 = vmatprep.subr.bf16.mxu0 0
  %3627 = vmatpush1.bf16.msra.mxu0 %v3543
  %3628 = vmatprep.subr.bf16.mxu0 0
  %3629 = vmatpush1.bf16.msra.mxu0 %v3546
  %3630 = vmatprep.subr.bf16.mxu0 0
  %3631 = vmatpush1.bf16.msra.mxu0 %v3549
  %3632 = vmatprep.subr.bf16.mxu0 0
  %3633 = vmatpush1.bf16.msra.mxu0 %v3552
  %3634 = vmatprep.subr.bf16.mxu0 0
  %3635 = vmatpush1.bf16.msra.mxu0 0
  %3636 = vmatprep.subr.bf16.mxu0 0
  %3637 = vmatpush1.bf16.msra.mxu0 0
  %3638 = vmatprep.subr.bf16.mxu0 0
  %3639 = vmatpush1.bf16.msra.mxu0 0
  %3640 = vmatprep.subr.bf16.mxu0 0
  %3641 = vmatpush1.bf16.msra.mxu0 0
  %3642 = vmatprep.subr.bf16.mxu0 0
  %3643 = vmatpush1.bf16.msra.mxu0 0
  %3644 = vmatprep.subr.bf16.mxu0 0
  %3645 = vmatpush1.bf16.msra.mxu0 0
  %3646 = vmatprep.subr.bf16.mxu0 0
  %3647 = vmatpush1.bf16.msra.mxu0 0
  %3648 = vmatprep.subr.bf16.mxu0 0
  %3649 = vmatpush1.bf16.msra.mxu0 0
  %3650 = vmatprep.mubr.bf16.mxu0 0
  %3651 = vmatmul.mubr.bf16.gmra.mrb[0].mxu0 %v3406
  %v3652 = vpop.f32.mrb[0].mxu0
  %v3653 = vadd.f32 0.0, %v3652
  %v3654 = vpop.f32.mrb[0].mxu0
  %v3655 = vpop.f32.mrb[0].mxu0
  %v3656 = vpop.f32.mrb[0].mxu0
  %3657 = vdwg.mxu0
  %v3658 = vld [vmem:[%s9] sm:$0xff]
  %v3659 = vld [vmem:[%s9 + $0x8] sm:$0xf]
  %v3660 = vld [vmem:[%s9 + $0xc] sm:$0xff]
  %v3661 = vld [vmem:[%s9 + $0x14] sm:$0xf]
  %v3662 = vld [vmem:[%s9 + $0x18] sm:$0xff]
  %v3663 = vld [vmem:[%s9 + $0x20] sm:$0xf]
  %v3664 = vld [vmem:[%s9 + $0x24] sm:$0xff]
  %v3665 = vld [vmem:[%s9 + $0x2c] sm:$0xf]
  %v3666 = vld [vmem:[%s9 + $0x30] sm:$0xff]
  %v3667 = vld [vmem:[%s9 + $0x38] sm:$0xf]
  %v3668 = vld [vmem:[%s9 + $0x3c] sm:$0xff]
  %v3669 = vld [vmem:[%s9 + $0x44] sm:$0xf]
  %v3670 = vld [vmem:[%s9 + $0x48] sm:$0xff]
  %v3671 = vld [vmem:[%s9 + $0x50] sm:$0xf]
  %v3672 = vld [vmem:[%s9 + $0x54] sm:$0xff]
  %v3673 = vld [vmem:[%s9 + $0x5c] sm:$0xf]
  %v3674 = vld [vmem:[%s9 + $0x60] sm:$0xff]
  %v3675 = vld [vmem:[%s9 + $0x68] sm:$0xf]
  %v3676 = vld [vmem:[%s9 + $0x6c] sm:$0xff]
  %v3677 = vld [vmem:[%s9 + $0x74] sm:$0xf]
  %v3678 = vld [vmem:[%s9 + $0x78] sm:$0xff]
  %v3679 = vld [vmem:[%s9 + $0x80] sm:$0xf]
  %v3680 = vld [vmem:[%s9 + $0x84] sm:$0xff]
  %v3681 = vld [vmem:[%s9 + $0x8c] sm:$0xf]
  %v3682 = vld [vmem:[%s9 + $0x90] sm:$0xff]
  %v3683 = vld [vmem:[%s9 + $0x98] sm:$0xf]
  %v3684 = vld [vmem:[%s9 + $0x9c] sm:$0xff]
  %v3685 = vld [vmem:[%s9 + $0xa4] sm:$0xf]
  %v3686 = vld [vmem:[%s9 + $0xa8] sm:$0xff]
  %v3687 = vld [vmem:[%s9 + $0xb0] sm:$0xf]
  %v3688 = vld [vmem:[%s9 + $0xb4] sm:$0xff]
  %v3689 = vld [vmem:[%s9 + $0xbc] sm:$0xf]
  %v3722 = vunpack.c.l.b16 %v3658
  %v3723 = vunpack.c.h.b16 %v3658
  %v3724 = vunpack.c.l.b16 %v3659
  %v3725 = vunpack.c.l.b16 %v3660
  %v3726 = vunpack.c.h.b16 %v3660
  %v3727 = vunpack.c.l.b16 %v3661
  %v3728 = vunpack.c.l.b16 %v3662
  %v3729 = vunpack.c.h.b16 %v3662
  %v3730 = vunpack.c.l.b16 %v3663
  %v3731 = vunpack.c.l.b16 %v3664
  %v3732 = vunpack.c.h.b16 %v3664
  %v3733 = vunpack.c.l.b16 %v3665
  %v3734 = vunpack.c.l.b16 %v3666
  %v3735 = vunpack.c.h.b16 %v3666
  %v3736 = vunpack.c.l.b16 %v3667
  %v3737 = vunpack.c.l.b16 %v3668
  %v3738 = vunpack.c.h.b16 %v3668
  %v3739 = vunpack.c.l.b16 %v3669
  %v3740 = vunpack.c.l.b16 %v3670
  %v3741 = vunpack.c.h.b16 %v3670
  %v3742 = vunpack.c.l.b16 %v3671
  %v3743 = vunpack.c.l.b16 %v3672
  %v3744 = vunpack.c.h.b16 %v3672
  %v3745 = vunpack.c.l.b16 %v3673
  %v3746 = vunpack.c.l.b16 %v3674
  %v3747 = vunpack.c.h.b16 %v3674
  %v3748 = vunpack.c.l.b16 %v3675
  %v3749 = vunpack.c.l.b16 %v3676
  %v3750 = vunpack.c.h.b16 %v3676
  %v3751 = vunpack.c.l.b16 %v3677
  %v3752 = vunpack.c.l.b16 %v3678
  %v3753 = vunpack.c.h.b16 %v3678
  %v3754 = vunpack.c.l.b16 %v3679
  %v3755 = vunpack.c.l.b16 %v3680
  %v3756 = vunpack.c.h.b16 %v3680
  %v3757 = vunpack.c.l.b16 %v3681
  %v3758 = vunpack.c.l.b16 %v3682
  %v3759 = vunpack.c.h.b16 %v3682
  %v3760 = vunpack.c.l.b16 %v3683
  %v3761 = vunpack.c.l.b16 %v3684
  %v3762 = vunpack.c.h.b16 %v3684
  %v3763 = vunpack.c.l.b16 %v3685
  %v3764 = vunpack.c.l.b16 %v3686
  %v3765 = vunpack.c.h.b16 %v3686
  %v3766 = vunpack.c.l.b16 %v3687
  %v3767 = vunpack.c.l.b16 %v3688
  %v3768 = vunpack.c.h.b16 %v3688
  %v3769 = vunpack.c.l.b16 %v3689
  %v3770 = vpack.c.b16 %v3725, %v3722
  %v3771 = vpack.c.b16 %v3726, %v3723
  %v3772 = vpack.c.b16 %v3727, %v3724
  %v3773 = vpack.c.b16 %v3731, %v3728
  %v3774 = vpack.c.b16 %v3732, %v3729
  %v3775 = vpack.c.b16 %v3733, %v3730
  %v3776 = vpack.c.b16 %v3737, %v3734
  %v3777 = vpack.c.b16 %v3738, %v3735
  %v3778 = vpack.c.b16 %v3739, %v3736
  %v3779 = vpack.c.b16 %v3743, %v3740
  %v3780 = vpack.c.b16 %v3744, %v3741
  %v3781 = vpack.c.b16 %v3745, %v3742
  %v3782 = vpack.c.b16 %v3749, %v3746
  %v3783 = vpack.c.b16 %v3750, %v3747
  %v3784 = vpack.c.b16 %v3751, %v3748
  %v3785 = vpack.c.b16 %v3755, %v3752
  %v3786 = vpack.c.b16 %v3756, %v3753
  %v3787 = vpack.c.b16 %v3757, %v3754
  %v3788 = vpack.c.b16 %v3761, %v3758
  %v3789 = vpack.c.b16 %v3762, %v3759
  %v3790 = vpack.c.b16 %v3763, %v3760
  %v3791 = vpack.c.b16 %v3767, %v3764
  %v3792 = vpack.c.b16 %v3768, %v3765
  %v3793 = vpack.c.b16 %v3769, %v3766
  %3818 = vmatprep.subr.bf16.mxu0 %v3771
  %3819 = vmatpush1.bf16.msra.mxu0 %v3770
  %3820 = vmatprep.subr.bf16.mxu0 %v3774
  %3821 = vmatpush1.bf16.msra.mxu0 %v3773
  %3822 = vmatprep.subr.bf16.mxu0 %v3777
  %3823 = vmatpush1.bf16.msra.mxu0 %v3776
  %3824 = vmatprep.subr.bf16.mxu0 %v3780
  %3825 = vmatpush1.bf16.msra.mxu0 %v3779
  %3826 = vmatprep.subr.bf16.mxu0 %v3783
  %3827 = vmatpush1.bf16.msra.mxu0 %v3782
  %3828 = vmatprep.subr.bf16.mxu0 %v3786
  %3829 = vmatpush1.bf16.msra.mxu0 %v3785
  %3830 = vmatprep.subr.bf16.mxu0 %v3789
  %3831 = vmatpush1.bf16.msra.mxu0 %v3788
  %3832 = vmatprep.subr.bf16.mxu0 %v3792
  %3833 = vmatpush1.bf16.msra.mxu0 %v3791
  %3834 = vmatprep.subr.bf16.mxu0 0
  %3835 = vmatpush1.bf16.msra.mxu0 0
  %3836 = vmatprep.subr.bf16.mxu0 0
  %3837 = vmatpush1.bf16.msra.mxu0 0
  %3838 = vmatprep.subr.bf16.mxu0 0
  %3839 = vmatpush1.bf16.msra.mxu0 0
  %3840 = vmatprep.subr.bf16.mxu0 0
  %3841 = vmatpush1.bf16.msra.mxu0 0
  %3842 = vmatprep.subr.bf16.mxu0 0
  %3843 = vmatpush1.bf16.msra.mxu0 0
  %3844 = vmatprep.subr.bf16.mxu0 0
  %3845 = vmatpush1.bf16.msra.mxu0 0
  %3846 = vmatprep.subr.bf16.mxu0 0
  %3847 = vmatpush1.bf16.msra.mxu0 0
  %3848 = vmatprep.subr.bf16.mxu0 0
  %3849 = vmatpush1.bf16.msra.mxu0 0
  %3850 = vmatprep.mubr.bf16.mxu0 0
  %3851 = vmatmul.mubr.bf16.gmra.mrb[0].mxu0 %v3281
  %v3852 = vpop.f32.mrb[0].mxu0
  %v3853 = vadd.f32 %v58, %v3852
  %v3854 = vpop.f32.mrb[0].mxu0
  %v3855 = vadd.f32 %v59, %v3854
  %v3856 = vpop.f32.mrb[0].mxu0
  %v3857 = vpop.f32.mrb[0].mxu0
  %3858 = vdwg.mxu0
  %3859 = vmatprep.subr.bf16.mxu0 0
  %3860 = vmatpush1.bf16.msra.mxu0 %v3772
  %3861 = vmatprep.subr.bf16.mxu0 0
  %3862 = vmatpush1.bf16.msra.mxu0 %v3775
  %3863 = vmatprep.subr.bf16.mxu0 0
  %3864 = vmatpush1.bf16.msra.mxu0 %v3778
  %3865 = vmatprep.subr.bf16.mxu0 0
  %3866 = vmatpush1.bf16.msra.mxu0 %v3781
  %3867 = vmatprep.subr.bf16.mxu0 0
  %3868 = vmatpush1.bf16.msra.mxu0 %v3784
  %3869 = vmatprep.subr.bf16.mxu0 0
  %3870 = vmatpush1.bf16.msra.mxu0 %v3787
  %3871 = vmatprep.subr.bf16.mxu0 0
  %3872 = vmatpush1.bf16.msra.mxu0 %v3790
  %3873 = vmatprep.subr.bf16.mxu0 0
  %3874 = vmatpush1.bf16.msra.mxu0 %v3793
  %3875 = vmatprep.subr.bf16.mxu0 0
  %3876 = vmatpush1.bf16.msra.mxu0 0
  %3877 = vmatprep.subr.bf16.mxu0 0
  %3878 = vmatpush1.bf16.msra.mxu0 0
  %3879 = vmatprep.subr.bf16.mxu0 0
  %3880 = vmatpush1.bf16.msra.mxu0 0
  %3881 = vmatprep.subr.bf16.mxu0 0
  %3882 = vmatpush1.bf16.msra.mxu0 0
  %3883 = vmatprep.subr.bf16.mxu0 0
  %3884 = vmatpush1.bf16.msra.mxu0 0
  %3885 = vmatprep.subr.bf16.mxu0 0
  %3886 = vmatpush1.bf16.msra.mxu0 0
  %3887 = vmatprep.subr.bf16.mxu0 0
  %3888 = vmatpush1.bf16.msra.mxu0 0
  %3889 = vmatprep.subr.bf16.mxu0 0
  %3890 = vmatpush1.bf16.msra.mxu0 0
  %3891 = vmatprep.mubr.bf16.mxu0 0
  %3892 = vmatmul.mubr.bf16.gmra.mrb[0].mxu0 %v3281
  %v3893 = vpop.f32.mrb[0].mxu0
  %v3894 = vadd.f32 %v60, %v3893
  %v3895 = vpop.f32.mrb[0].mxu0
  %v3896 = vpop.f32.mrb[0].mxu0
  %v3897 = vpop.f32.mrb[0].mxu0
  %3898 = vdwg.mxu0
  %v3899 = vadd.f32 %v3612, %v3853
  %v3900 = vxor.u32 %v3899, 2147483648
  %v3901 = vmul.f32 %v3900, 1.442695
  %v3902 = vpow.pop %v3901
  %v3903 = vadd.f32 %v3902, 1.0
  %v3904 = vrcp.pop %v3903
  %v3905 = vmul.f32 1.0, %v3904
  %v3906 = vadd.f32 %v3614, %v3855
  %v3907 = vxor.u32 %v3906, 2147483648
  %v3908 = vmul.f32 %v3907, 1.442695
  %v3909 = vpow.pop %v3908
  %v3910 = vadd.f32 %v3909, 1.0
  %v3911 = vrcp.pop %v3910
  %v3912 = vmul.f32 1.0, %v3911
  %v3913 = vmul.f32 %v3905, %v3894
  %v3914 = vadd.f32 %v3653, %v3913
  %v3915 = vtanh.pop %v3914
  %v3916 = vsub.f32 1.0, %v3912
  %v3917 = vmul.f32 %v3916, %v3915
  %v3918 = vmul.f32 %v3912, %v3278
  %v3919 = vadd.f32 %v3917, %v3918
  %s3920 = scalar_lea.vmem %s15, 32
  %3921 = vst [vmem:[%s3920] sm:$0xff] %v3919
  %v3922 = vpack.c.bf16 %v3919, %v3919
  %v3923 = vld [vmem:[%s13] sm:$0xf]
  %v3924 = vld [vmem:[%s13 + $0x4] sm:$0xf]
  %v3925 = vld [vmem:[%s13 + $0x8] sm:$0xf]
  %v3926 = vld [vmem:[%s13 + $0xc] sm:$0xf]
  %v3927 = vld [vmem:[%s13 + $0x10] sm:$0xf]
  %v3928 = vld [vmem:[%s13 + $0x14] sm:$0xf]
  %v3929 = vld [vmem:[%s13 + $0x18] sm:$0xf]
  %v3930 = vld [vmem:[%s13 + $0x1c] sm:$0xf]
  %v3931 = vld [vmem:[%s13 + $0x20] sm:$0xf]
  %v3932 = vld [vmem:[%s13 + $0x24] sm:$0xf]
  %v3933 = vld [vmem:[%s13 + $0x28] sm:$0xf]
  %v3934 = vld [vmem:[%s13 + $0x2c] sm:$0xf]
  %v3935 = vld [vmem:[%s13 + $0x30] sm:$0xf]
  %v3936 = vld [vmem:[%s13 + $0x34] sm:$0xf]
  %v3937 = vld [vmem:[%s13 + $0x38] sm:$0xf]
  %v3938 = vld [vmem:[%s13 + $0x3c] sm:$0xf]
  %v3955 = vunpack.c.l.b16 %v3923
  %v3956 = vunpack.c.l.b16 %v3924
  %v3957 = vunpack.c.l.b16 %v3925
  %v3958 = vunpack.c.l.b16 %v3926
  %v3959 = vunpack.c.l.b16 %v3927
  %v3960 = vunpack.c.l.b16 %v3928
  %v3961 = vunpack.c.l.b16 %v3929
  %v3962 = vunpack.c.l.b16 %v3930
  %v3963 = vunpack.c.l.b16 %v3931
  %v3964 = vunpack.c.l.b16 %v3932
  %v3965 = vunpack.c.l.b16 %v3933
  %v3966 = vunpack.c.l.b16 %v3934
  %v3967 = vunpack.c.l.b16 %v3935
  %v3968 = vunpack.c.l.b16 %v3936
  %v3969 = vunpack.c.l.b16 %v3937
  %v3970 = vunpack.c.l.b16 %v3938
  %v3971 = vpack.c.b16 %v3956, %v3955
  %v3972 = vpack.c.b16 %v3958, %v3957
  %v3973 = vpack.c.b16 %v3960, %v3959
  %v3974 = vpack.c.b16 %v3962, %v3961
  %v3975 = vpack.c.b16 %v3964, %v3963
  %v3976 = vpack.c.b16 %v3966, %v3965
  %v3977 = vpack.c.b16 %v3968, %v3967
  %v3978 = vpack.c.b16 %v3970, %v3969
  %3987 = vmatprep.subr.bf16.mxu0 0
  %3988 = vmatpush1.bf16.msra.mxu0 %v3971
  %3989 = vmatprep.subr.bf16.mxu0 0
  %3990 = vmatpush1.bf16.msra.mxu0 %v3972
  %3991 = vmatprep.subr.bf16.mxu0 0
  %3992 = vmatpush1.bf16.msra.mxu0 %v3973
  %3993 = vmatprep.subr.bf16.mxu0 0
  %3994 = vmatpush1.bf16.msra.mxu0 %v3974
  %3995 = vmatprep.subr.bf16.mxu0 0
  %3996 = vmatpush1.bf16.msra.mxu0 %v3975
  %3997 = vmatprep.subr.bf16.mxu0 0
  %3998 = vmatpush1.bf16.msra.mxu0 %v3976
  %3999 = vmatprep.subr.bf16.mxu0 0
  %4000 = vmatpush1.bf16.msra.mxu0 %v3977
  %4001 = vmatprep.subr.bf16.mxu0 0
  %4002 = vmatpush1.bf16.msra.mxu0 %v3978
  %4003 = vmatprep.subr.bf16.mxu0 0
  %4004 = vmatpush1.bf16.msra.mxu0 0
  %4005 = vmatprep.subr.bf16.mxu0 0
  %4006 = vmatpush1.bf16.msra.mxu0 0
  %4007 = vmatprep.subr.bf16.mxu0 0
  %4008 = vmatpush1.bf16.msra.mxu0 0
  %4009 = vmatprep.subr.bf16.mxu0 0
  %4010 = vmatpush1.bf16.msra.mxu0 0
  %4011 = vmatprep.subr.bf16.mxu0 0
  %4012 = vmatpush1.bf16.msra.mxu0 0
  %4013 = vmatprep.subr.bf16.mxu0 0
  %4014 = vmatpush1.bf16.msra.mxu0 0
  %4015 = vmatprep.subr.bf16.mxu0 0
  %4016 = vmatpush1.bf16.msra.mxu0 0
  %4017 = vmatprep.subr.bf16.mxu0 0
  %4018 = vmatpush1.bf16.msra.mxu0 0
  %4019 = vmatprep.mubr.bf16.mxu0 0
  %4020 = vmatmul.mubr.bf16.gmra.mrb[0].mxu0 %v3922
  %v4021 = vpop.f32.mrb[0].mxu0
  %v4022 = vadd.f32 %v61, %v4021
  %v4023 = vpop.f32.mrb[0].mxu0
  %v4024 = vpop.f32.mrb[0].mxu0
  %v4025 = vpop.f32.mrb[0].mxu0
  %4026 = vdwg.mxu0
  %4027 = vmax.xlane.f32.xlu0 %v4022
  %v4028 = vpop.xlane.xlu0 %4027
  %vm4029 = vcmp.eq.f32.partialorder %v4022, %v4028
  %v4030 = vsel %vm4029, %v64, 128
  %v4031 = vand.u32 %v4030, 65535
  %v4032 = vshra.s32 %v4030, 16
  %v4033 = vcvt.s32.f32 %v4031
  %v4034 = vcvt.s32.f32 %v4032
  %4035 = vmin.xlane.f32.xlu0 %v4034
  %v4036 = vpop.xlane.xlu0 %4035
  %vm4037 = vcmp.eq.f32.partialorder %v4034, %v4036
  %v4038 = vsel %vm4037, %v4033, inf
  %4039 = vmin.xlane.f32.xlu0 %v4038
  %v4040 = vpop.xlane.xlu0 %4039
  %v4041 = vcvt.f32.s32 %v4040
  %v4042 = vcvt.f32.s32 %v4036
  %v4043 = vshll.u32 %v4042, 16
  %v4044 = vadd.s32 %v4043, %v4041
  %vm4045 = vcmp.eq.s32.totalorder %v64, %v4044
  %v4046 = vsel %vm4045, 1.0, 0.0
  %v4047 = vpack.c.bf16 %v4046, %v4046
  %vm4048 = vcmp.eq.s32.totalorder %v4044, 2
  %v4049 = vsel %vm4048, 1, 0
  %v4050 = vsub.s32 1, %v3416
  %v4051 = vmul.u32 %v4049, %v4050
  %v4052 = vsub.s32 1, %v4051
  %v4053 = vmul.u32 %v3414, %v4052
  %v4054 = vmul.u32 %v4051, 4
  %v4055 = vadd.s32 %v4053, %v4054
  %vm4056 = vcmp.gt.s32.totalorder %v3416, %v4049
  %v4057 = vsel %vm4056, %v3416, %v4049
  %v4058 = vld [vmem:[%s12] sm:$0xff]
  %v4059 = vld [vmem:[%s12 + $0x8] sm:$0xf]
  %v4060 = vld [vmem:[%s12 + $0xc] sm:$0xff]
  %v4061 = vld [vmem:[%s12 + $0x14] sm:$0xf]
  %v4062 = vld [vmem:[%s12 + $0x18] sm:$0xff]
  %v4063 = vld [vmem:[%s12 + $0x20] sm:$0xf]
  %v4064 = vld [vmem:[%s12 + $0x24] sm:$0xff]
  %v4065 = vld [vmem:[%s12 + $0x2c] sm:$0xf]
  %v4066 = vld [vmem:[%s12 + $0x30] sm:$0xff]
  %v4067 = vld [vmem:[%s12 + $0x38] sm:$0xf]
  %v4068 = vld [vmem:[%s12 + $0x3c] sm:$0xff]
  %v4069 = vld [vmem:[%s12 + $0x44] sm:$0xf]
  %v4070 = vld [vmem:[%s12 + $0x48] sm:$0xff]
  %v4071 = vld [vmem:[%s12 + $0x50] sm:$0xf]
  %v4072 = vld [vmem:[%s12 + $0x54] sm:$0xff]
  %v4073 = vld [vmem:[%s12 + $0x5c] sm:$0xf]
  %v4074 = vld [vmem:[%s12 + $0x60] sm:$0xff]
  %v4075 = vld [vmem:[%s12 + $0x68] sm:$0xf]
  %v4076 = vld [vmem:[%s12 + $0x6c] sm:$0xff]
  %v4077 = vld [vmem:[%s12 + $0x74] sm:$0xf]
  %v4078 = vld [vmem:[%s12 + $0x78] sm:$0xff]
  %v4079 = vld [vmem:[%s12 + $0x80] sm:$0xf]
  %v4080 = vld [vmem:[%s12 + $0x84] sm:$0xff]
  %v4081 = vld [vmem:[%s12 + $0x8c] sm:$0xf]
  %v4082 = vld [vmem:[%s12 + $0x90] sm:$0xff]
  %v4083 = vld [vmem:[%s12 + $0x98] sm:$0xf]
  %v4084 = vld [vmem:[%s12 + $0x9c] sm:$0xff]
  %v4085 = vld [vmem:[%s12 + $0xa4] sm:$0xf]
  %v4086 = vld [vmem:[%s12 + $0xa8] sm:$0xff]
  %v4087 = vld [vmem:[%s12 + $0xb0] sm:$0xf]
  %v4088 = vld [vmem:[%s12 + $0xb4] sm:$0xff]
  %v4089 = vld [vmem:[%s12 + $0xbc] sm:$0xf]
  %v4122 = vunpack.c.l.b16 %v4058
  %v4123 = vunpack.c.h.b16 %v4058
  %v4124 = vunpack.c.l.b16 %v4059
  %v4125 = vunpack.c.l.b16 %v4060
  %v4126 = vunpack.c.h.b16 %v4060
  %v4127 = vunpack.c.l.b16 %v4061
  %v4128 = vunpack.c.l.b16 %v4062
  %v4129 = vunpack.c.h.b16 %v4062
  %v4130 = vunpack.c.l.b16 %v4063
  %v4131 = vunpack.c.l.b16 %v4064
  %v4132 = vunpack.c.h.b16 %v4064
  %v4133 = vunpack.c.l.b16 %v4065
  %v4134 = vunpack.c.l.b16 %v4066
  %v4135 = vunpack.c.h.b16 %v4066
  %v4136 = vunpack.c.l.b16 %v4067
  %v4137 = vunpack.c.l.b16 %v4068
  %v4138 = vunpack.c.h.b16 %v4068
  %v4139 = vunpack.c.l.b16 %v4069
  %v4140 = vunpack.c.l.b16 %v4070
  %v4141 = vunpack.c.h.b16 %v4070
  %v4142 = vunpack.c.l.b16 %v4071
  %v4143 = vunpack.c.l.b16 %v4072
  %v4144 = vunpack.c.h.b16 %v4072
  %v4145 = vunpack.c.l.b16 %v4073
  %v4146 = vunpack.c.l.b16 %v4074
  %v4147 = vunpack.c.h.b16 %v4074
  %v4148 = vunpack.c.l.b16 %v4075
  %v4149 = vunpack.c.l.b16 %v4076
  %v4150 = vunpack.c.h.b16 %v4076
  %v4151 = vunpack.c.l.b16 %v4077
  %v4152 = vunpack.c.l.b16 %v4078
  %v4153 = vunpack.c.h.b16 %v4078
  %v4154 = vunpack.c.l.b16 %v4079
  %v4155 = vunpack.c.l.b16 %v4080
  %v4156 = vunpack.c.h.b16 %v4080
  %v4157 = vunpack.c.l.b16 %v4081
  %v4158 = vunpack.c.l.b16 %v4082
  %v4159 = vunpack.c.h.b16 %v4082
  %v4160 = vunpack.c.l.b16 %v4083
  %v4161 = vunpack.c.l.b16 %v4084
  %v4162 = vunpack.c.h.b16 %v4084
  %v4163 = vunpack.c.l.b16 %v4085
  %v4164 = vunpack.c.l.b16 %v4086
  %v4165 = vunpack.c.h.b16 %v4086
  %v4166 = vunpack.c.l.b16 %v4087
  %v4167 = vunpack.c.l.b16 %v4088
  %v4168 = vunpack.c.h.b16 %v4088
  %v4169 = vunpack.c.l.b16 %v4089
  %v4170 = vpack.c.b16 %v4125, %v4122
  %v4171 = vpack.c.b16 %v4126, %v4123
  %v4172 = vpack.c.b16 %v4127, %v4124
  %v4173 = vpack.c.b16 %v4131, %v4128
  %v4174 = vpack.c.b16 %v4132, %v4129
  %v4175 = vpack.c.b16 %v4133, %v4130
  %v4176 = vpack.c.b16 %v4137, %v4134
  %v4177 = vpack.c.b16 %v4138, %v4135
  %v4178 = vpack.c.b16 %v4139, %v4136
  %v4179 = vpack.c.b16 %v4143, %v4140
  %v4180 = vpack.c.b16 %v4144, %v4141
  %v4181 = vpack.c.b16 %v4145, %v4142
  %v4182 = vpack.c.b16 %v4149, %v4146
  %v4183 = vpack.c.b16 %v4150, %v4147
  %v4184 = vpack.c.b16 %v4151, %v4148
  %v4185 = vpack.c.b16 %v4155, %v4152
  %v4186 = vpack.c.b16 %v4156, %v4153
  %v4187 = vpack.c.b16 %v4157, %v4154
  %v4188 = vpack.c.b16 %v4161, %v4158
  %v4189 = vpack.c.b16 %v4162, %v4159
  %v4190 = vpack.c.b16 %v4163, %v4160
  %v4191 = vpack.c.b16 %v4167, %v4164
  %v4192 = vpack.c.b16 %v4168, %v4165
  %v4193 = vpack.c.b16 %v4169, %v4166
  %4218 = vmatprep.subr.bf16.mxu0 %v4171
  %4219 = vmatpush1.bf16.msra.mxu0 %v4170
  %4220 = vmatprep.subr.bf16.mxu0 %v4174
  %4221 = vmatpush1.bf16.msra.mxu0 %v4173
  %4222 = vmatprep.subr.bf16.mxu0 %v4177
  %4223 = vmatpush1.bf16.msra.mxu0 %v4176
  %4224 = vmatprep.subr.bf16.mxu0 %v4180
  %4225 = vmatpush1.bf16.msra.mxu0 %v4179
  %4226 = vmatprep.subr.bf16.mxu0 %v4183
  %4227 = vmatpush1.bf16.msra.mxu0 %v4182
  %4228 = vmatprep.subr.bf16.mxu0 %v4186
  %4229 = vmatpush1.bf16.msra.mxu0 %v4185
  %4230 = vmatprep.subr.bf16.mxu0 %v4189
  %4231 = vmatpush1.bf16.msra.mxu0 %v4188
  %4232 = vmatprep.subr.bf16.mxu0 %v4192
  %4233 = vmatpush1.bf16.msra.mxu0 %v4191
  %4234 = vmatprep.subr.bf16.mxu0 0
  %4235 = vmatpush1.bf16.msra.mxu0 0
  %4236 = vmatprep.subr.bf16.mxu0 0
  %4237 = vmatpush1.bf16.msra.mxu0 0
  %4238 = vmatprep.subr.bf16.mxu0 0
  %4239 = vmatpush1.bf16.msra.mxu0 0
  %4240 = vmatprep.subr.bf16.mxu0 0
  %4241 = vmatpush1.bf16.msra.mxu0 0
  %4242 = vmatprep.subr.bf16.mxu0 0
  %4243 = vmatpush1.bf16.msra.mxu0 0
  %4244 = vmatprep.subr.bf16.mxu0 0
  %4245 = vmatpush1.bf16.msra.mxu0 0
  %4246 = vmatprep.subr.bf16.mxu0 0
  %4247 = vmatpush1.bf16.msra.mxu0 0
  %4248 = vmatprep.subr.bf16.mxu0 0
  %4249 = vmatpush1.bf16.msra.mxu0 0
  %4250 = vmatprep.mubr.bf16.mxu0 0
  %4251 = vmatmul.mubr.bf16.gmra.mrb[0].mxu0 %v4047
  %v4252 = vpop.f32.mrb[0].mxu0
  %v4253 = vadd.f32 0.0, %v4252
  %v4254 = vpop.f32.mrb[0].mxu0
  %v4255 = vadd.f32 0.0, %v4254
  %v4256 = vpop.f32.mrb[0].mxu0
  %v4257 = vpop.f32.mrb[0].mxu0
  %4258 = vdwg.mxu0
  %4259 = vmatprep.subr.bf16.mxu0 0
  %4260 = vmatpush1.bf16.msra.mxu0 %v4172
  %4261 = vmatprep.subr.bf16.mxu0 0
  %4262 = vmatpush1.bf16.msra.mxu0 %v4175
  %4263 = vmatprep.subr.bf16.mxu0 0
  %4264 = vmatpush1.bf16.msra.mxu0 %v4178
  %4265 = vmatprep.subr.bf16.mxu0 0
  %4266 = vmatpush1.bf16.msra.mxu0 %v4181
  %4267 = vmatprep.subr.bf16.mxu0 0
  %4268 = vmatpush1.bf16.msra.mxu0 %v4184
  %4269 = vmatprep.subr.bf16.mxu0 0
  %4270 = vmatpush1.bf16.msra.mxu0 %v4187
  %4271 = vmatprep.subr.bf16.mxu0 0
  %4272 = vmatpush1.bf16.msra.mxu0 %v4190
  %4273 = vmatprep.subr.bf16.mxu0 0
  %4274 = vmatpush1.bf16.msra.mxu0 %v4193
  %4275 = vmatprep.subr.bf16.mxu0 0
  %4276 = vmatpush1.bf16.msra.mxu0 0
  %4277 = vmatprep.subr.bf16.mxu0 0
  %4278 = vmatpush1.bf16.msra.mxu0 0
  %4279 = vmatprep.subr.bf16.mxu0 0
  %4280 = vmatpush1.bf16.msra.mxu0 0
  %4281 = vmatprep.subr.bf16.mxu0 0
  %4282 = vmatpush1.bf16.msra.mxu0 0
  %4283 = vmatprep.subr.bf16.mxu0 0
  %4284 = vmatpush1.bf16.msra.mxu0 0
  %4285 = vmatprep.subr.bf16.mxu0 0
  %4286 = vmatpush1.bf16.msra.mxu0 0
  %4287 = vmatprep.subr.bf16.mxu0 0
  %4288 = vmatpush1.bf16.msra.mxu0 0
  %4289 = vmatprep.subr.bf16.mxu0 0
  %4290 = vmatpush1.bf16.msra.mxu0 0
  %4291 = vmatprep.mubr.bf16.mxu0 0
  %4292 = vmatmul.mubr.bf16.gmra.mrb[0].mxu0 %v4047
  %v4293 = vpop.f32.mrb[0].mxu0
  %v4294 = vadd.f32 0.0, %v4293
  %v4295 = vpop.f32.mrb[0].mxu0
  %v4296 = vpop.f32.mrb[0].mxu0
  %v4297 = vpop.f32.mrb[0].mxu0
  %4298 = vdwg.mxu0
  %v4299 = vld [vmem:[%s9] sm:$0xff]
  %v4300 = vld [vmem:[%s9 + $0x8] sm:$0xf]
  %v4301 = vld [vmem:[%s9 + $0xc] sm:$0xff]
  %v4302 = vld [vmem:[%s9 + $0x14] sm:$0xf]
  %v4303 = vld [vmem:[%s9 + $0x18] sm:$0xff]
  %v4304 = vld [vmem:[%s9 + $0x20] sm:$0xf]
  %v4305 = vld [vmem:[%s9 + $0x24] sm:$0xff]
  %v4306 = vld [vmem:[%s9 + $0x2c] sm:$0xf]
  %v4307 = vld [vmem:[%s9 + $0x30] sm:$0xff]
  %v4308 = vld [vmem:[%s9 + $0x38] sm:$0xf]
  %v4309 = vld [vmem:[%s9 + $0x3c] sm:$0xff]
  %v4310 = vld [vmem:[%s9 + $0x44] sm:$0xf]
  %v4311 = vld [vmem:[%s9 + $0x48] sm:$0xff]
  %v4312 = vld [vmem:[%s9 + $0x50] sm:$0xf]
  %v4313 = vld [vmem:[%s9 + $0x54] sm:$0xff]
  %v4314 = vld [vmem:[%s9 + $0x5c] sm:$0xf]
  %v4315 = vld [vmem:[%s9 + $0x60] sm:$0xff]
  %v4316 = vld [vmem:[%s9 + $0x68] sm:$0xf]
  %v4317 = vld [vmem:[%s9 + $0x6c] sm:$0xff]
  %v4318 = vld [vmem:[%s9 + $0x74] sm:$0xf]
  %v4319 = vld [vmem:[%s9 + $0x78] sm:$0xff]
  %v4320 = vld [vmem:[%s9 + $0x80] sm:$0xf]
  %v4321 = vld [vmem:[%s9 + $0x84] sm:$0xff]
  %v4322 = vld [vmem:[%s9 + $0x8c] sm:$0xf]
  %v4323 = vld [vmem:[%s9 + $0x90] sm:$0xff]
  %v4324 = vld [vmem:[%s9 + $0x98] sm:$0xf]
  %v4325 = vld [vmem:[%s9 + $0x9c] sm:$0xff]
  %v4326 = vld [vmem:[%s9 + $0xa4] sm:$0xf]
  %v4327 = vld [vmem:[%s9 + $0xa8] sm:$0xff]
  %v4328 = vld [vmem:[%s9 + $0xb0] sm:$0xf]
  %v4329 = vld [vmem:[%s9 + $0xb4] sm:$0xff]
  %v4330 = vld [vmem:[%s9 + $0xbc] sm:$0xf]
  %v4363 = vunpack.c.l.b16 %v4299
  %v4364 = vunpack.c.h.b16 %v4299
  %v4365 = vunpack.c.l.b16 %v4300
  %v4366 = vunpack.c.l.b16 %v4301
  %v4367 = vunpack.c.h.b16 %v4301
  %v4368 = vunpack.c.l.b16 %v4302
  %v4369 = vunpack.c.l.b16 %v4303
  %v4370 = vunpack.c.h.b16 %v4303
  %v4371 = vunpack.c.l.b16 %v4304
  %v4372 = vunpack.c.l.b16 %v4305
  %v4373 = vunpack.c.h.b16 %v4305
  %v4374 = vunpack.c.l.b16 %v4306
  %v4375 = vunpack.c.l.b16 %v4307
  %v4376 = vunpack.c.h.b16 %v4307
  %v4377 = vunpack.c.l.b16 %v4308
  %v4378 = vunpack.c.l.b16 %v4309
  %v4379 = vunpack.c.h.b16 %v4309
  %v4380 = vunpack.c.l.b16 %v4310
  %v4381 = vunpack.c.l.b16 %v4311
  %v4382 = vunpack.c.h.b16 %v4311
  %v4383 = vunpack.c.l.b16 %v4312
  %v4384 = vunpack.c.l.b16 %v4313
  %v4385 = vunpack.c.h.b16 %v4313
  %v4386 = vunpack.c.l.b16 %v4314
  %v4387 = vunpack.c.l.b16 %v4315
  %v4388 = vunpack.c.h.b16 %v4315
  %v4389 = vunpack.c.l.b16 %v4316
  %v4390 = vunpack.c.l.b16 %v4317
  %v4391 = vunpack.c.h.b16 %v4317
  %v4392 = vunpack.c.l.b16 %v4318
  %v4393 = vunpack.c.l.b16 %v4319
  %v4394 = vunpack.c.h.b16 %v4319
  %v4395 = vunpack.c.l.b16 %v4320
  %v4396 = vunpack.c.l.b16 %v4321
  %v4397 = vunpack.c.h.b16 %v4321
  %v4398 = vunpack.c.l.b16 %v4322
  %v4399 = vunpack.c.l.b16 %v4323
  %v4400 = vunpack.c.h.b16 %v4323
  %v4401 = vunpack.c.l.b16 %v4324
  %v4402 = vunpack.c.l.b16 %v4325
  %v4403 = vunpack.c.h.b16 %v4325
  %v4404 = vunpack.c.l.b16 %v4326
  %v4405 = vunpack.c.l.b16 %v4327
  %v4406 = vunpack.c.h.b16 %v4327
  %v4407 = vunpack.c.l.b16 %v4328
  %v4408 = vunpack.c.l.b16 %v4329
  %v4409 = vunpack.c.h.b16 %v4329
  %v4410 = vunpack.c.l.b16 %v4330
  %v4411 = vpack.c.b16 %v4366, %v4363
  %v4412 = vpack.c.b16 %v4367, %v4364
  %v4413 = vpack.c.b16 %v4368, %v4365
  %v4414 = vpack.c.b16 %v4372, %v4369
  %v4415 = vpack.c.b16 %v4373, %v4370
  %v4416 = vpack.c.b16 %v4374, %v4371
  %v4417 = vpack.c.b16 %v4378, %v4375
  %v4418 = vpack.c.b16 %v4379, %v4376
  %v4419 = vpack.c.b16 %v4380, %v4377
  %v4420 = vpack.c.b16 %v4384, %v4381
  %v4421 = vpack.c.b16 %v4385, %v4382
  %v4422 = vpack.c.b16 %v4386, %v4383
  %v4423 = vpack.c.b16 %v4390, %v4387
  %v4424 = vpack.c.b16 %v4391, %v4388
  %v4425 = vpack.c.b16 %v4392, %v4389
  %v4426 = vpack.c.b16 %v4396, %v4393
  %v4427 = vpack.c.b16 %v4397, %v4394
  %v4428 = vpack.c.b16 %v4398, %v4395
  %v4429 = vpack.c.b16 %v4402, %v4399
  %v4430 = vpack.c.b16 %v4403, %v4400
  %v4431 = vpack.c.b16 %v4404, %v4401
  %v4432 = vpack.c.b16 %v4408, %v4405
  %v4433 = vpack.c.b16 %v4409, %v4406
  %v4434 = vpack.c.b16 %v4410, %v4407
  %4459 = vmatprep.subr.bf16.mxu0 %v4412
  %4460 = vmatpush1.bf16.msra.mxu0 %v4411
  %4461 = vmatprep.subr.bf16.mxu0 %v4415
  %4462 = vmatpush1.bf16.msra.mxu0 %v4414
  %4463 = vmatprep.subr.bf16.mxu0 %v4418
  %4464 = vmatpush1.bf16.msra.mxu0 %v4417
  %4465 = vmatprep.subr.bf16.mxu0 %v4421
  %4466 = vmatpush1.bf16.msra.mxu0 %v4420
  %4467 = vmatprep.subr.bf16.mxu0 %v4424
  %4468 = vmatpush1.bf16.msra.mxu0 %v4423
  %4469 = vmatprep.subr.bf16.mxu0 %v4427
  %4470 = vmatpush1.bf16.msra.mxu0 %v4426
  %4471 = vmatprep.subr.bf16.mxu0 %v4430
  %4472 = vmatpush1.bf16.msra.mxu0 %v4429
  %4473 = vmatprep.subr.bf16.mxu0 %v4433
  %4474 = vmatpush1.bf16.msra.mxu0 %v4432
  %4475 = vmatprep.subr.bf16.mxu0 0
  %4476 = vmatpush1.bf16.msra.mxu0 0
  %4477 = vmatprep.subr.bf16.mxu0 0
  %4478 = vmatpush1.bf16.msra.mxu0 0
  %4479 = vmatprep.subr.bf16.mxu0 0
  %4480 = vmatpush1.bf16.msra.mxu0 0
  %4481 = vmatprep.subr.bf16.mxu0 0
  %4482 = vmatpush1.bf16.msra.mxu0 0
  %4483 = vmatprep.subr.bf16.mxu0 0
  %4484 = vmatpush1.bf16.msra.mxu0 0
  %4485 = vmatprep.subr.bf16.mxu0 0
  %4486 = vmatpush1.bf16.msra.mxu0 0
  %4487 = vmatprep.subr.bf16.mxu0 0
  %4488 = vmatpush1.bf16.msra.mxu0 0
  %4489 = vmatprep.subr.bf16.mxu0 0
  %4490 = vmatpush1.bf16.msra.mxu0 0
  %4491 = vmatprep.mubr.bf16.mxu0 0
  %4492 = vmatmul.mubr.bf16.gmra.mrb[0].mxu0 %v3922
  %v4493 = vpop.f32.mrb[0].mxu0
  %v4494 = vadd.f32 %v58, %v4493
  %v4495 = vpop.f32.mrb[0].mxu0
  %v4496 = vadd.f32 %v59, %v4495
  %v4497 = vpop.f32.mrb[0].mxu0
  %v4498 = vpop.f32.mrb[0].mxu0
  %4499 = vdwg.mxu0
  %4500 = vmatprep.subr.bf16.mxu0 0
  %4501 = vmatpush1.bf16.msra.mxu0 %v4413
  %4502 = vmatprep.subr.bf16.mxu0 0
  %4503 = vmatpush1.bf16.msra.mxu0 %v4416
  %4504 = vmatprep.subr.bf16.mxu0 0
  %4505 = vmatpush1.bf16.msra.mxu0 %v4419
  %4506 = vmatprep.subr.bf16.mxu0 0
  %4507 = vmatpush1.bf16.msra.mxu0 %v4422
  %4508 = vmatprep.subr.bf16.mxu0 0
  %4509 = vmatpush1.bf16.msra.mxu0 %v4425
  %4510 = vmatprep.subr.bf16.mxu0 0
  %4511 = vmatpush1.bf16.msra.mxu0 %v4428
  %4512 = vmatprep.subr.bf16.mxu0 0
  %4513 = vmatpush1.bf16.msra.mxu0 %v4431
  %4514 = vmatprep.subr.bf16.mxu0 0
  %4515 = vmatpush1.bf16.msra.mxu0 %v4434
  %4516 = vmatprep.subr.bf16.mxu0 0
  %4517 = vmatpush1.bf16.msra.mxu0 0
  %4518 = vmatprep.subr.bf16.mxu0 0
  %4519 = vmatpush1.bf16.msra.mxu0 0
  %4520 = vmatprep.subr.bf16.mxu0 0
  %4521 = vmatpush1.bf16.msra.mxu0 0
  %4522 = vmatprep.subr.bf16.mxu0 0
  %4523 = vmatpush1.bf16.msra.mxu0 0
  %4524 = vmatprep.subr.bf16.mxu0 0
  %4525 = vmatpush1.bf16.msra.mxu0 0
  %4526 = vmatprep.subr.bf16.mxu0 0
  %4527 = vmatpush1.bf16.msra.mxu0 0
  %4528 = vmatprep.subr.bf16.mxu0 0
  %4529 = vmatpush1.bf16.msra.mxu0 0
  %4530 = vmatprep.subr.bf16.mxu0 0
  %4531 = vmatpush1.bf16.msra.mxu0 0
  %4532 = vmatprep.mubr.bf16.mxu0 0
  %4533 = vmatmul.mubr.bf16.gmra.mrb[0].mxu0 %v3922
  %v4534 = vpop.f32.mrb[0].mxu0
  %v4535 = vadd.f32 %v60, %v4534
  %v4536 = vpop.f32.mrb[0].mxu0
  %v4537 = vpop.f32.mrb[0].mxu0
  %v4538 = vpop.f32.mrb[0].mxu0
  %4539 = vdwg.mxu0
  %v4540 = vadd.f32 %v4253, %v4494
  %v4541 = vxor.u32 %v4540, 2147483648
  %v4542 = vmul.f32 %v4541, 1.442695
  %v4543 = vpow.pop %v4542
  %v4544 = vadd.f32 %v4543, 1.0
  %v4545 = vrcp.pop %v4544
  %v4546 = vmul.f32 1.0, %v4545
  %v4547 = vadd.f32 %v4255, %v4496
  %v4548 = vxor.u32 %v4547, 2147483648
  %v4549 = vmul.f32 %v4548, 1.442695
  %v4550 = vpow.pop %v4549
  %v4551 = vadd.f32 %v4550, 1.0
  %v4552 = vrcp.pop %v4551
  %v4553 = vmul.f32 1.0, %v4552
  %v4554 = vmul.f32 %v4546, %v4535
  %v4555 = vadd.f32 %v4294, %v4554
  %v4556 = vtanh.pop %v4555
  %v4557 = vsub.f32 1.0, %v4553
  %v4558 = vmul.f32 %v4557, %v4556
  %v4559 = vmul.f32 %v4553, %v3919
  %v4560 = vadd.f32 %v4558, %v4559
  %s4561 = scalar_lea.vmem %s15, 40
  %4562 = vst [vmem:[%s4561] sm:$0xff] %v4560
  %v4563 = vpack.c.bf16 %v4560, %v4560
  %v4564 = vld [vmem:[%s13] sm:$0xf]
  %v4565 = vld [vmem:[%s13 + $0x4] sm:$0xf]
  %v4566 = vld [vmem:[%s13 + $0x8] sm:$0xf]
  %v4567 = vld [vmem:[%s13 + $0xc] sm:$0xf]
  %v4568 = vld [vmem:[%s13 + $0x10] sm:$0xf]
  %v4569 = vld [vmem:[%s13 + $0x14] sm:$0xf]
  %v4570 = vld [vmem:[%s13 + $0x18] sm:$0xf]
  %v4571 = vld [vmem:[%s13 + $0x1c] sm:$0xf]
  %v4572 = vld [vmem:[%s13 + $0x20] sm:$0xf]
  %v4573 = vld [vmem:[%s13 + $0x24] sm:$0xf]
  %v4574 = vld [vmem:[%s13 + $0x28] sm:$0xf]
  %v4575 = vld [vmem:[%s13 + $0x2c] sm:$0xf]
  %v4576 = vld [vmem:[%s13 + $0x30] sm:$0xf]
  %v4577 = vld [vmem:[%s13 + $0x34] sm:$0xf]
  %v4578 = vld [vmem:[%s13 + $0x38] sm:$0xf]
  %v4579 = vld [vmem:[%s13 + $0x3c] sm:$0xf]
  %v4596 = vunpack.c.l.b16 %v4564
  %v4597 = vunpack.c.l.b16 %v4565
  %v4598 = vunpack.c.l.b16 %v4566
  %v4599 = vunpack.c.l.b16 %v4567
  %v4600 = vunpack.c.l.b16 %v4568
  %v4601 = vunpack.c.l.b16 %v4569
  %v4602 = vunpack.c.l.b16 %v4570
  %v4603 = vunpack.c.l.b16 %v4571
  %v4604 = vunpack.c.l.b16 %v4572
  %v4605 = vunpack.c.l.b16 %v4573
  %v4606 = vunpack.c.l.b16 %v4574
  %v4607 = vunpack.c.l.b16 %v4575
  %v4608 = vunpack.c.l.b16 %v4576
  %v4609 = vunpack.c.l.b16 %v4577
  %v4610 = vunpack.c.l.b16 %v4578
  %v4611 = vunpack.c.l.b16 %v4579
  %v4612 = vpack.c.b16 %v4597, %v4596
  %v4613 = vpack.c.b16 %v4599, %v4598
  %v4614 = vpack.c.b16 %v4601, %v4600
  %v4615 = vpack.c.b16 %v4603, %v4602
  %v4616 = vpack.c.b16 %v4605, %v4604
  %v4617 = vpack.c.b16 %v4607, %v4606
  %v4618 = vpack.c.b16 %v4609, %v4608
  %v4619 = vpack.c.b16 %v4611, %v4610
  %4628 = vmatprep.subr.bf16.mxu0 0
  %4629 = vmatpush1.bf16.msra.mxu0 %v4612
  %4630 = vmatprep.subr.bf16.mxu0 0
  %4631 = vmatpush1.bf16.msra.mxu0 %v4613
  %4632 = vmatprep.subr.bf16.mxu0 0
  %4633 = vmatpush1.bf16.msra.mxu0 %v4614
  %4634 = vmatprep.subr.bf16.mxu0 0
  %4635 = vmatpush1.bf16.msra.mxu0 %v4615
  %4636 = vmatprep.subr.bf16.mxu0 0
  %4637 = vmatpush1.bf16.msra.mxu0 %v4616
  %4638 = vmatprep.subr.bf16.mxu0 0
  %4639 = vmatpush1.bf16.msra.mxu0 %v4617
  %4640 = vmatprep.subr.bf16.mxu0 0
  %4641 = vmatpush1.bf16.msra.mxu0 %v4618
  %4642 = vmatprep.subr.bf16.mxu0 0
  %4643 = vmatpush1.bf16.msra.mxu0 %v4619
  %4644 = vmatprep.subr.bf16.mxu0 0
  %4645 = vmatpush1.bf16.msra.mxu0 0
  %4646 = vmatprep.subr.bf16.mxu0 0
  %4647 = vmatpush1.bf16.msra.mxu0 0
  %4648 = vmatprep.subr.bf16.mxu0 0
  %4649 = vmatpush1.bf16.msra.mxu0 0
  %4650 = vmatprep.subr.bf16.mxu0 0
  %4651 = vmatpush1.bf16.msra.mxu0 0
  %4652 = vmatprep.subr.bf16.mxu0 0
  %4653 = vmatpush1.bf16.msra.mxu0 0
  %4654 = vmatprep.subr.bf16.mxu0 0
  %4655 = vmatpush1.bf16.msra.mxu0 0
  %4656 = vmatprep.subr.bf16.mxu0 0
  %4657 = vmatpush1.bf16.msra.mxu0 0
  %4658 = vmatprep.subr.bf16.mxu0 0
  %4659 = vmatpush1.bf16.msra.mxu0 0
  %4660 = vmatprep.mubr.bf16.mxu0 0
  %4661 = vmatmul.mubr.bf16.gmra.mrb[0].mxu0 %v4563
  %v4662 = vpop.f32.mrb[0].mxu0
  %v4663 = vadd.f32 %v61, %v4662
  %v4664 = vpop.f32.mrb[0].mxu0
  %v4665 = vpop.f32.mrb[0].mxu0
  %v4666 = vpop.f32.mrb[0].mxu0
  %4667 = vdwg.mxu0
  %4668 = vmax.xlane.f32.xlu0 %v4663
  %v4669 = vpop.xlane.xlu0 %4668
  %vm4670 = vcmp.eq.f32.partialorder %v4663, %v4669
  %v4671 = vsel %vm4670, %v64, 128
  %v4672 = vand.u32 %v4671, 65535
  %v4673 = vshra.s32 %v4671, 16
  %v4674 = vcvt.s32.f32 %v4672
  %v4675 = vcvt.s32.f32 %v4673
  %4676 = vmin.xlane.f32.xlu0 %v4675
  %v4677 = vpop.xlane.xlu0 %4676
  %vm4678 = vcmp.eq.f32.partialorder %v4675, %v4677
  %v4679 = vsel %vm4678, %v4674, inf
  %4680 = vmin.xlane.f32.xlu0 %v4679
  %v4681 = vpop.xlane.xlu0 %4680
  %v4682 = vcvt.f32.s32 %v4681
  %v4683 = vcvt.f32.s32 %v4677
  %v4684 = vshll.u32 %v4683, 16
  %v4685 = vadd.s32 %v4684, %v4682
  %vm4686 = vcmp.eq.s32.totalorder %v64, %v4685
  %v4687 = vsel %vm4686, 1.0, 0.0
  %v4688 = vpack.c.bf16 %v4687, %v4687
  %vm4689 = vcmp.eq.s32.totalorder %v4685, 2
  %v4690 = vsel %vm4689, 1, 0
  %v4691 = vsub.s32 1, %v4057
  %v4692 = vmul.u32 %v4690, %v4691
  %v4693 = vsub.s32 1, %v4692
  %v4694 = vmul.u32 %v4055, %v4693
  %v4695 = vmul.u32 %v4692, 5
  %v4696 = vadd.s32 %v4694, %v4695
  %v4697 = vadd.s32 %v4696, 1
  %4698 = vst [vmem:[%s16] sm:$0xff] %v4697
  %v4699 = vld [vmem:[%s11] sm:$0xff]
  %v4700 = vld [vmem:[%s11 + $0x8] sm:$0xf]
  %v4701 = vld [vmem:[%s11 + $0xc] sm:$0xff]
  %v4702 = vld [vmem:[%s11 + $0x14] sm:$0xf]
  %v4703 = vld [vmem:[%s11 + $0x18] sm:$0xff]
  %v4704 = vld [vmem:[%s11 + $0x20] sm:$0xf]
  %v4705 = vld [vmem:[%s11 + $0x24] sm:$0xff]
  %v4706 = vld [vmem:[%s11 + $0x2c] sm:$0xf]
  %v4707 = vld [vmem:[%s11 + $0x30] sm:$0xff]
  %v4708 = vld [vmem:[%s11 + $0x38] sm:$0xf]
  %v4709 = vld [vmem:[%s11 + $0x3c] sm:$0xff]
  %v4710 = vld [vmem:[%s11 + $0x44] sm:$0xf]
  %v4711 = vld [vmem:[%s11 + $0x48] sm:$0xff]
  %v4712 = vld [vmem:[%s11 + $0x50] sm:$0xf]
  %v4713 = vld [vmem:[%s11 + $0x54] sm:$0xff]
  %v4714 = vld [vmem:[%s11 + $0x5c] sm:$0xf]
  %v4715 = vld [vmem:[%s11 + $0x60] sm:$0xff]
  %v4716 = vld [vmem:[%s11 + $0x68] sm:$0xf]
  %v4717 = vld [vmem:[%s11 + $0x6c] sm:$0xff]
  %v4718 = vld [vmem:[%s11 + $0x74] sm:$0xf]
  %v4719 = vld [vmem:[%s11 + $0x78] sm:$0xff]
  %v4720 = vld [vmem:[%s11 + $0x80] sm:$0xf]
  %v4721 = vld [vmem:[%s11 + $0x84] sm:$0xff]
  %v4722 = vld [vmem:[%s11 + $0x8c] sm:$0xf]
  %v4723 = vld [vmem:[%s11 + $0x90] sm:$0xff]
  %v4724 = vld [vmem:[%s11 + $0x98] sm:$0xf]
  %v4725 = vld [vmem:[%s11 + $0x9c] sm:$0xff]
  %v4726 = vld [vmem:[%s11 + $0xa4] sm:$0xf]
  %v4727 = vld [vmem:[%s11 + $0xa8] sm:$0xff]
  %v4728 = vld [vmem:[%s11 + $0xb0] sm:$0xf]
  %v4729 = vld [vmem:[%s11 + $0xb4] sm:$0xff]
  %v4730 = vld [vmem:[%s11 + $0xbc] sm:$0xf]
  %v4763 = vunpack.c.l.b16 %v4699
  %v4764 = vunpack.c.h.b16 %v4699
  %v4765 = vunpack.c.l.b16 %v4700
  %v4766 = vunpack.c.l.b16 %v4701
  %v4767 = vunpack.c.h.b16 %v4701
  %v4768 = vunpack.c.l.b16 %v4702
  %v4769 = vunpack.c.l.b16 %v4703
  %v4770 = vunpack.c.h.b16 %v4703
  %v4771 = vunpack.c.l.b16 %v4704
  %v4772 = vunpack.c.l.b16 %v4705
  %v4773 = vunpack.c.h.b16 %v4705
  %v4774 = vunpack.c.l.b16 %v4706
  %v4775 = vunpack.c.l.b16 %v4707
  %v4776 = vunpack.c.h.b16 %v4707
  %v4777 = vunpack.c.l.b16 %v4708
  %v4778 = vunpack.c.l.b16 %v4709
  %v4779 = vunpack.c.h.b16 %v4709
  %v4780 = vunpack.c.l.b16 %v4710
  %v4781 = vunpack.c.l.b16 %v4711
  %v4782 = vunpack.c.h.b16 %v4711
  %v4783 = vunpack.c.l.b16 %v4712
  %v4784 = vunpack.c.l.b16 %v4713
  %v4785 = vunpack.c.h.b16 %v4713
  %v4786 = vunpack.c.l.b16 %v4714
  %v4787 = vunpack.c.l.b16 %v4715
  %v4788 = vunpack.c.h.b16 %v4715
  %v4789 = vunpack.c.l.b16 %v4716
  %v4790 = vunpack.c.l.b16 %v4717
  %v4791 = vunpack.c.h.b16 %v4717
  %v4792 = vunpack.c.l.b16 %v4718
  %v4793 = vunpack.c.l.b16 %v4719
  %v4794 = vunpack.c.h.b16 %v4719
  %v4795 = vunpack.c.l.b16 %v4720
  %v4796 = vunpack.c.l.b16 %v4721
  %v4797 = vunpack.c.h.b16 %v4721
  %v4798 = vunpack.c.l.b16 %v4722
  %v4799 = vunpack.c.l.b16 %v4723
  %v4800 = vunpack.c.h.b16 %v4723
  %v4801 = vunpack.c.l.b16 %v4724
  %v4802 = vunpack.c.l.b16 %v4725
  %v4803 = vunpack.c.h.b16 %v4725
  %v4804 = vunpack.c.l.b16 %v4726
  %v4805 = vunpack.c.l.b16 %v4727
  %v4806 = vunpack.c.h.b16 %v4727
  %v4807 = vunpack.c.l.b16 %v4728
  %v4808 = vunpack.c.l.b16 %v4729
  %v4809 = vunpack.c.h.b16 %v4729
  %v4810 = vunpack.c.l.b16 %v4730
  %v4811 = vpack.c.b16 %v4766, %v4763
  %v4812 = vpack.c.b16 %v4767, %v4764
  %v4813 = vpack.c.b16 %v4768, %v4765
  %v4814 = vpack.c.b16 %v4772, %v4769
  %v4815 = vpack.c.b16 %v4773, %v4770
  %v4816 = vpack.c.b16 %v4774, %v4771
  %v4817 = vpack.c.b16 %v4778, %v4775
  %v4818 = vpack.c.b16 %v4779, %v4776
  %v4819 = vpack.c.b16 %v4780, %v4777
  %v4820 = vpack.c.b16 %v4784, %v4781
  %v4821 = vpack.c.b16 %v4785, %v4782
  %v4822 = vpack.c.b16 %v4786, %v4783
  %v4823 = vpack.c.b16 %v4790, %v4787
  %v4824 = vpack.c.b16 %v4791, %v4788
  %v4825 = vpack.c.b16 %v4792, %v4789
  %v4826 = vpack.c.b16 %v4796, %v4793
  %v4827 = vpack.c.b16 %v4797, %v4794
  %v4828 = vpack.c.b16 %v4798, %v4795
  %v4829 = vpack.c.b16 %v4802, %v4799
  %v4830 = vpack.c.b16 %v4803, %v4800
  %v4831 = vpack.c.b16 %v4804, %v4801
  %v4832 = vpack.c.b16 %v4808, %v4805
  %v4833 = vpack.c.b16 %v4809, %v4806
  %v4834 = vpack.c.b16 %v4810, %v4807
  %4859 = vmatprep.subr.bf16.mxu0 %v4812
  %4860 = vmatpush1.bf16.msra.mxu0 %v4811
  %4861 = vmatprep.subr.bf16.mxu0 %v4815
  %4862 = vmatpush1.bf16.msra.mxu0 %v4814
  %4863 = vmatprep.subr.bf16.mxu0 %v4818
  %4864 = vmatpush1.bf16.msra.mxu0 %v4817
  %4865 = vmatprep.subr.bf16.mxu0 %v4821
  %4866 = vmatpush1.bf16.msra.mxu0 %v4820
  %4867 = vmatprep.subr.bf16.mxu0 %v4824
  %4868 = vmatpush1.bf16.msra.mxu0 %v4823
  %4869 = vmatprep.subr.bf16.mxu0 %v4827
  %4870 = vmatpush1.bf16.msra.mxu0 %v4826
  %4871 = vmatprep.subr.bf16.mxu0 %v4830
  %4872 = vmatpush1.bf16.msra.mxu0 %v4829
  %4873 = vmatprep.subr.bf16.mxu0 %v4833
  %4874 = vmatpush1.bf16.msra.mxu0 %v4832
  %4875 = vmatprep.subr.bf16.mxu0 0
  %4876 = vmatpush1.bf16.msra.mxu0 0
  %4877 = vmatprep.subr.bf16.mxu0 0
  %4878 = vmatpush1.bf16.msra.mxu0 0
  %4879 = vmatprep.subr.bf16.mxu0 0
  %4880 = vmatpush1.bf16.msra.mxu0 0
  %4881 = vmatprep.subr.bf16.mxu0 0
  %4882 = vmatpush1.bf16.msra.mxu0 0
  %4883 = vmatprep.subr.bf16.mxu0 0
  %4884 = vmatpush1.bf16.msra.mxu0 0
  %4885 = vmatprep.subr.bf16.mxu0 0
  %4886 = vmatpush1.bf16.msra.mxu0 0
  %4887 = vmatprep.subr.bf16.mxu0 0
  %4888 = vmatpush1.bf16.msra.mxu0 0
  %4889 = vmatprep.subr.bf16.mxu0 0
  %4890 = vmatpush1.bf16.msra.mxu0 0
  %4891 = vmatprep.mubr.bf16.mxu0 0
  %4892 = vmatmul.mubr.bf16.gmra.mrb[0].mxu0 %v1489
  %v4893 = vpop.f32.mrb[0].mxu0
  %v4894 = vadd.f32 0.0, %v4893
  %v4895 = vpop.f32.mrb[0].mxu0
  %v4896 = vadd.f32 0.0, %v4895
  %v4897 = vpop.f32.mrb[0].mxu0
  %v4898 = vpop.f32.mrb[0].mxu0
  %4899 = vdwg.mxu0
  %4900 = vmatprep.subr.bf16.mxu0 0
  %4901 = vmatpush1.bf16.msra.mxu0 %v4813
  %4902 = vmatprep.subr.bf16.mxu0 0
  %4903 = vmatpush1.bf16.msra.mxu0 %v4816
  %4904 = vmatprep.subr.bf16.mxu0 0
  %4905 = vmatpush1.bf16.msra.mxu0 %v4819
  %4906 = vmatprep.subr.bf16.mxu0 0
  %4907 = vmatpush1.bf16.msra.mxu0 %v4822
  %4908 = vmatprep.subr.bf16.mxu0 0
  %4909 = vmatpush1.bf16.msra.mxu0 %v4825
  %4910 = vmatprep.subr.bf16.mxu0 0
  %4911 = vmatpush1.bf16.msra.mxu0 %v4828
  %4912 = vmatprep.subr.bf16.mxu0 0
  %4913 = vmatpush1.bf16.msra.mxu0 %v4831
  %4914 = vmatprep.subr.bf16.mxu0 0
  %4915 = vmatpush1.bf16.msra.mxu0 %v4834
  %4916 = vmatprep.subr.bf16.mxu0 0
  %4917 = vmatpush1.bf16.msra.mxu0 0
  %4918 = vmatprep.subr.bf16.mxu0 0
  %4919 = vmatpush1.bf16.msra.mxu0 0
  %4920 = vmatprep.subr.bf16.mxu0 0
  %4921 = vmatpush1.bf16.msra.mxu0 0
  %4922 = vmatprep.subr.bf16.mxu0 0
  %4923 = vmatpush1.bf16.msra.mxu0 0
  %4924 = vmatprep.subr.bf16.mxu0 0
  %4925 = vmatpush1.bf16.msra.mxu0 0
  %4926 = vmatprep.subr.bf16.mxu0 0
  %4927 = vmatpush1.bf16.msra.mxu0 0
  %4928 = vmatprep.subr.bf16.mxu0 0
  %4929 = vmatpush1.bf16.msra.mxu0 0
  %4930 = vmatprep.subr.bf16.mxu0 0
  %4931 = vmatpush1.bf16.msra.mxu0 0
  %4932 = vmatprep.mubr.bf16.mxu0 0
  %4933 = vmatmul.mubr.bf16.gmra.mrb[0].mxu0 %v1489
  %v4934 = vpop.f32.mrb[0].mxu0
  %v4935 = vadd.f32 0.0, %v4934
  %v4936 = vpop.f32.mrb[0].mxu0
  %v4937 = vpop.f32.mrb[0].mxu0
  %v4938 = vpop.f32.mrb[0].mxu0
  %4939 = vdwg.mxu0
  %v4940 = vld [vmem:[%s7] sm:$0xff]
  %v4941 = vld [vmem:[%s7 + $0x8] sm:$0xf]
  %v4942 = vld [vmem:[%s7 + $0xc] sm:$0xff]
  %v4943 = vld [vmem:[%s7 + $0x14] sm:$0xf]
  %v4944 = vld [vmem:[%s7 + $0x18] sm:$0xff]
  %v4945 = vld [vmem:[%s7 + $0x20] sm:$0xf]
  %v4946 = vld [vmem:[%s7 + $0x24] sm:$0xff]
  %v4947 = vld [vmem:[%s7 + $0x2c] sm:$0xf]
  %v4948 = vld [vmem:[%s7 + $0x30] sm:$0xff]
  %v4949 = vld [vmem:[%s7 + $0x38] sm:$0xf]
  %v4950 = vld [vmem:[%s7 + $0x3c] sm:$0xff]
  %v4951 = vld [vmem:[%s7 + $0x44] sm:$0xf]
  %v4952 = vld [vmem:[%s7 + $0x48] sm:$0xff]
  %v4953 = vld [vmem:[%s7 + $0x50] sm:$0xf]
  %v4954 = vld [vmem:[%s7 + $0x54] sm:$0xff]
  %v4955 = vld [vmem:[%s7 + $0x5c] sm:$0xf]
  %v4956 = vld [vmem:[%s7 + $0x60] sm:$0xff]
  %v4957 = vld [vmem:[%s7 + $0x68] sm:$0xf]
  %v4958 = vld [vmem:[%s7 + $0x6c] sm:$0xff]
  %v4959 = vld [vmem:[%s7 + $0x74] sm:$0xf]
  %v4960 = vld [vmem:[%s7 + $0x78] sm:$0xff]
  %v4961 = vld [vmem:[%s7 + $0x80] sm:$0xf]
  %v4962 = vld [vmem:[%s7 + $0x84] sm:$0xff]
  %v4963 = vld [vmem:[%s7 + $0x8c] sm:$0xf]
  %v4964 = vld [vmem:[%s7 + $0x90] sm:$0xff]
  %v4965 = vld [vmem:[%s7 + $0x98] sm:$0xf]
  %v4966 = vld [vmem:[%s7 + $0x9c] sm:$0xff]
  %v4967 = vld [vmem:[%s7 + $0xa4] sm:$0xf]
  %v4968 = vld [vmem:[%s7 + $0xa8] sm:$0xff]
  %v4969 = vld [vmem:[%s7 + $0xb0] sm:$0xf]
  %v4970 = vld [vmem:[%s7 + $0xb4] sm:$0xff]
  %v4971 = vld [vmem:[%s7 + $0xbc] sm:$0xf]
  %v5004 = vunpack.c.l.b16 %v4940
  %v5005 = vunpack.c.h.b16 %v4940
  %v5006 = vunpack.c.l.b16 %v4941
  %v5007 = vunpack.c.l.b16 %v4942
  %v5008 = vunpack.c.h.b16 %v4942
  %v5009 = vunpack.c.l.b16 %v4943
  %v5010 = vunpack.c.l.b16 %v4944
  %v5011 = vunpack.c.h.b16 %v4944
  %v5012 = vunpack.c.l.b16 %v4945
  %v5013 = vunpack.c.l.b16 %v4946
  %v5014 = vunpack.c.h.b16 %v4946
  %v5015 = vunpack.c.l.b16 %v4947
  %v5016 = vunpack.c.l.b16 %v4948
  %v5017 = vunpack.c.h.b16 %v4948
  %v5018 = vunpack.c.l.b16 %v4949
  %v5019 = vunpack.c.l.b16 %v4950
  %v5020 = vunpack.c.h.b16 %v4950
  %v5021 = vunpack.c.l.b16 %v4951
  %v5022 = vunpack.c.l.b16 %v4952
  %v5023 = vunpack.c.h.b16 %v4952
  %v5024 = vunpack.c.l.b16 %v4953
  %v5025 = vunpack.c.l.b16 %v4954
  %v5026 = vunpack.c.h.b16 %v4954
  %v5027 = vunpack.c.l.b16 %v4955
  %v5028 = vunpack.c.l.b16 %v4956
  %v5029 = vunpack.c.h.b16 %v4956
  %v5030 = vunpack.c.l.b16 %v4957
  %v5031 = vunpack.c.l.b16 %v4958
  %v5032 = vunpack.c.h.b16 %v4958
  %v5033 = vunpack.c.l.b16 %v4959
  %v5034 = vunpack.c.l.b16 %v4960
  %v5035 = vunpack.c.h.b16 %v4960
  %v5036 = vunpack.c.l.b16 %v4961
  %v5037 = vunpack.c.l.b16 %v4962
  %v5038 = vunpack.c.h.b16 %v4962
  %v5039 = vunpack.c.l.b16 %v4963
  %v5040 = vunpack.c.l.b16 %v4964
  %v5041 = vunpack.c.h.b16 %v4964
  %v5042 = vunpack.c.l.b16 %v4965
  %v5043 = vunpack.c.l.b16 %v4966
  %v5044 = vunpack.c.h.b16 %v4966
  %v5045 = vunpack.c.l.b16 %v4967
  %v5046 = vunpack.c.l.b16 %v4968
  %v5047 = vunpack.c.h.b16 %v4968
  %v5048 = vunpack.c.l.b16 %v4969
  %v5049 = vunpack.c.l.b16 %v4970
  %v5050 = vunpack.c.h.b16 %v4970
  %v5051 = vunpack.c.l.b16 %v4971
  %v5052 = vpack.c.b16 %v5007, %v5004
  %v5053 = vpack.c.b16 %v5008, %v5005
  %v5054 = vpack.c.b16 %v5009, %v5006
  %v5055 = vpack.c.b16 %v5013, %v5010
  %v5056 = vpack.c.b16 %v5014, %v5011
  %v5057 = vpack.c.b16 %v5015, %v5012
  %v5058 = vpack.c.b16 %v5019, %v5016
  %v5059 = vpack.c.b16 %v5020, %v5017
  %v5060 = vpack.c.b16 %v5021, %v5018
  %v5061 = vpack.c.b16 %v5025, %v5022
  %v5062 = vpack.c.b16 %v5026, %v5023
  %v5063 = vpack.c.b16 %v5027, %v5024
  %v5064 = vpack.c.b16 %v5031, %v5028
  %v5065 = vpack.c.b16 %v5032, %v5029
  %v5066 = vpack.c.b16 %v5033, %v5030
  %v5067 = vpack.c.b16 %v5037, %v5034
  %v5068 = vpack.c.b16 %v5038, %v5035
  %v5069 = vpack.c.b16 %v5039, %v5036
  %v5070 = vpack.c.b16 %v5043, %v5040
  %v5071 = vpack.c.b16 %v5044, %v5041
  %v5072 = vpack.c.b16 %v5045, %v5042
  %v5073 = vpack.c.b16 %v5049, %v5046
  %v5074 = vpack.c.b16 %v5050, %v5047
  %v5075 = vpack.c.b16 %v5051, %v5048
  %5100 = vmatprep.subr.bf16.mxu0 %v5053
  %5101 = vmatpush1.bf16.msra.mxu0 %v5052
  %5102 = vmatprep.subr.bf16.mxu0 %v5056
  %5103 = vmatpush1.bf16.msra.mxu0 %v5055
  %5104 = vmatprep.subr.bf16.mxu0 %v5059
  %5105 = vmatpush1.bf16.msra.mxu0 %v5058
  %5106 = vmatprep.subr.bf16.mxu0 %v5062
  %5107 = vmatpush1.bf16.msra.mxu0 %v5061
  %5108 = vmatprep.subr.bf16.mxu0 %v5065
  %5109 = vmatpush1.bf16.msra.mxu0 %v5064
  %5110 = vmatprep.subr.bf16.mxu0 %v5068
  %5111 = vmatpush1.bf16.msra.mxu0 %v5067
  %5112 = vmatprep.subr.bf16.mxu0 %v5071
  %5113 = vmatpush1.bf16.msra.mxu0 %v5070
  %5114 = vmatprep.subr.bf16.mxu0 %v5074
  %5115 = vmatpush1.bf16.msra.mxu0 %v5073
  %5116 = vmatprep.subr.bf16.mxu0 0
  %5117 = vmatpush1.bf16.msra.mxu0 0
  %5118 = vmatprep.subr.bf16.mxu0 0
  %5119 = vmatpush1.bf16.msra.mxu0 0
  %5120 = vmatprep.subr.bf16.mxu0 0
  %5121 = vmatpush1.bf16.msra.mxu0 0
  %5122 = vmatprep.subr.bf16.mxu0 0
  %5123 = vmatpush1.bf16.msra.mxu0 0
  %5124 = vmatprep.subr.bf16.mxu0 0
  %5125 = vmatpush1.bf16.msra.mxu0 0
  %5126 = vmatprep.subr.bf16.mxu0 0
  %5127 = vmatpush1.bf16.msra.mxu0 0
  %5128 = vmatprep.subr.bf16.mxu0 0
  %5129 = vmatpush1.bf16.msra.mxu0 0
  %5130 = vmatprep.subr.bf16.mxu0 0
  %5131 = vmatpush1.bf16.msra.mxu0 0
  %5132 = vmatprep.mubr.bf16.mxu0 0
  %5133 = vmatmul.mubr.bf16.gmra.mrb[0].mxu0 0
  %v5134 = vpop.f32.mrb[0].mxu0
  %v5135 = vadd.f32 %v55, %v5134
  %v5136 = vpop.f32.mrb[0].mxu0
  %v5137 = vadd.f32 %v56, %v5136
  %v5138 = vpop.f32.mrb[0].mxu0
  %v5139 = vpop.f32.mrb[0].mxu0
  %5140 = vdwg.mxu0
  %5141 = vmatprep.subr.bf16.mxu0 0
  %5142 = vmatpush1.bf16.msra.mxu0 %v5054
  %5143 = vmatprep.subr.bf16.mxu0 0
  %5144 = vmatpush1.bf16.msra.mxu0 %v5057
  %5145 = vmatprep.subr.bf16.mxu0 0
  %5146 = vmatpush1.bf16.msra.mxu0 %v5060
  %5147 = vmatprep.subr.bf16.mxu0 0
  %5148 = vmatpush1.bf16.msra.mxu0 %v5063
  %5149 = vmatprep.subr.bf16.mxu0 0
  %5150 = vmatpush1.bf16.msra.mxu0 %v5066
  %5151 = vmatprep.subr.bf16.mxu0 0
  %5152 = vmatpush1.bf16.msra.mxu0 %v5069
  %5153 = vmatprep.subr.bf16.mxu0 0
  %5154 = vmatpush1.bf16.msra.mxu0 %v5072
  %5155 = vmatprep.subr.bf16.mxu0 0
  %5156 = vmatpush1.bf16.msra.mxu0 %v5075
  %5157 = vmatprep.subr.bf16.mxu0 0
  %5158 = vmatpush1.bf16.msra.mxu0 0
  %5159 = vmatprep.subr.bf16.mxu0 0
  %5160 = vmatpush1.bf16.msra.mxu0 0
  %5161 = vmatprep.subr.bf16.mxu0 0
  %5162 = vmatpush1.bf16.msra.mxu0 0
  %5163 = vmatprep.subr.bf16.mxu0 0
  %5164 = vmatpush1.bf16.msra.mxu0 0
  %5165 = vmatprep.subr.bf16.mxu0 0
  %5166 = vmatpush1.bf16.msra.mxu0 0
  %5167 = vmatprep.subr.bf16.mxu0 0
  %5168 = vmatpush1.bf16.msra.mxu0 0
  %5169 = vmatprep.subr.bf16.mxu0 0
  %5170 = vmatpush1.bf16.msra.mxu0 0
  %5171 = vmatprep.subr.bf16.mxu0 0
  %5172 = vmatpush1.bf16.msra.mxu0 0
  %5173 = vmatprep.mubr.bf16.mxu0 0
  %5174 = vmatmul.mubr.bf16.gmra.mrb[0].mxu0 0
  %v5175 = vpop.f32.mrb[0].mxu0
  %v5176 = vadd.f32 %v57, %v5175
  %v5177 = vpop.f32.mrb[0].mxu0
  %v5178 = vpop.f32.mrb[0].mxu0
  %v5179 = vpop.f32.mrb[0].mxu0
  %5180 = vdwg.mxu0
  %v5181 = vadd.f32 %v4894, %v5135
  %v5182 = vxor.u32 %v5181, 2147483648
  %v5183 = vmul.f32 %v5182, 1.442695
  %v5184 = vpow.pop %v5183
  %v5185 = vadd.f32 %v5184, 1.0
  %v5186 = vrcp.pop %v5185
  %v5187 = vmul.f32 1.0, %v5186
  %v5188 = vadd.f32 %v4896, %v5137
  %v5189 = vxor.u32 %v5188, 2147483648
  %v5190 = vmul.f32 %v5189, 1.442695
  %v5191 = vpow.pop %v5190
  %v5192 = vadd.f32 %v5191, 1.0
  %v5193 = vrcp.pop %v5192
  %v5194 = vmul.f32 1.0, %v5193
  %v5195 = vmul.f32 %v5187, %v5176
  %v5196 = vadd.f32 %v4935, %v5195
  %v5197 = vtanh.pop %v5196
  %v5198 = vsub.f32 1.0, %v5194
  %v5199 = vmul.f32 %v5198, %v5197
  %v5200 = vmul.f32 %v5194, 0.0
  %v5201 = vadd.f32 %v5199, %v5200
  %vm5202 = vcmp.ge.s32.totalorder %v4696, 0
  %v5203 = vsel %vm5202, %v5201, 0.0
  %5204 = vmatprep.subr.bf16.mxu0 %v4812
  %5205 = vmatpush1.bf16.msra.mxu0 %v4811
  %5206 = vmatprep.subr.bf16.mxu0 %v4815
  %5207 = vmatpush1.bf16.msra.mxu0 %v4814
  %5208 = vmatprep.subr.bf16.mxu0 %v4818
  %5209 = vmatpush1.bf16.msra.mxu0 %v4817
  %5210 = vmatprep.subr.bf16.mxu0 %v4821
  %5211 = vmatpush1.bf16.msra.mxu0 %v4820
  %5212 = vmatprep.subr.bf16.mxu0 %v4824
  %5213 = vmatpush1.bf16.msra.mxu0 %v4823
  %5214 = vmatprep.subr.bf16.mxu0 %v4827
  %5215 = vmatpush1.bf16.msra.mxu0 %v4826
  %5216 = vmatprep.subr.bf16.mxu0 %v4830
  %5217 = vmatpush1.bf16.msra.mxu0 %v4829
  %5218 = vmatprep.subr.bf16.mxu0 %v4833
  %5219 = vmatpush1.bf16.msra.mxu0 %v4832
  %5220 = vmatprep.subr.bf16.mxu0 0
  %5221 = vmatpush1.bf16.msra.mxu0 0
  %5222 = vmatprep.subr.bf16.mxu0 0
  %5223 = vmatpush1.bf16.msra.mxu0 0
  %5224 = vmatprep.subr.bf16.mxu0 0
  %5225 = vmatpush1.bf16.msra.mxu0 0
  %5226 = vmatprep.subr.bf16.mxu0 0
  %5227 = vmatpush1.bf16.msra.mxu0 0
  %5228 = vmatprep.subr.bf16.mxu0 0
  %5229 = vmatpush1.bf16.msra.mxu0 0
  %5230 = vmatprep.subr.bf16.mxu0 0
  %5231 = vmatpush1.bf16.msra.mxu0 0
  %5232 = vmatprep.subr.bf16.mxu0 0
  %5233 = vmatpush1.bf16.msra.mxu0 0
  %5234 = vmatprep.subr.bf16.mxu0 0
  %5235 = vmatpush1.bf16.msra.mxu0 0
  %5236 = vmatprep.mubr.bf16.mxu0 0
  %5237 = vmatmul.mubr.bf16.gmra.mrb[0].mxu0 %v2125
  %v5238 = vpop.f32.mrb[0].mxu0
  %v5239 = vadd.f32 0.0, %v5238
  %v5240 = vpop.f32.mrb[0].mxu0
  %v5241 = vadd.f32 0.0, %v5240
  %v5242 = vpop.f32.mrb[0].mxu0
  %v5243 = vpop.f32.mrb[0].mxu0
  %5244 = vdwg.mxu0
  %5245 = vmatprep.subr.bf16.mxu0 0
  %5246 = vmatpush1.bf16.msra.mxu0 %v4813
  %5247 = vmatprep.subr.bf16.mxu0 0
  %5248 = vmatpush1.bf16.msra.mxu0 %v4816
  %5249 = vmatprep.subr.bf16.mxu0 0
  %5250 = vmatpush1.bf16.msra.mxu0 %v4819
  %5251 = vmatprep.subr.bf16.mxu0 0
  %5252 = vmatpush1.bf16.msra.mxu0 %v4822
  %5253 = vmatprep.subr.bf16.mxu0 0
  %5254 = vmatpush1.bf16.msra.mxu0 %v4825
  %5255 = vmatprep.subr.bf16.mxu0 0
  %5256 = vmatpush1.bf16.msra.mxu0 %v4828
  %5257 = vmatprep.subr.bf16.mxu0 0
  %5258 = vmatpush1.bf16.msra.mxu0 %v4831
  %5259 = vmatprep.subr.bf16.mxu0 0
  %5260 = vmatpush1.bf16.msra.mxu0 %v4834
  %5261 = vmatprep.subr.bf16.mxu0 0
  %5262 = vmatpush1.bf16.msra.mxu0 0
  %5263 = vmatprep.subr.bf16.mxu0 0
  %5264 = vmatpush1.bf16.msra.mxu0 0
  %5265 = vmatprep.subr.bf16.mxu0 0
  %5266 = vmatpush1.bf16.msra.mxu0 0
  %5267 = vmatprep.subr.bf16.mxu0 0
  %5268 = vmatpush1.bf16.msra.mxu0 0
  %5269 = vmatprep.subr.bf16.mxu0 0
  %5270 = vmatpush1.bf16.msra.mxu0 0
  %5271 = vmatprep.subr.bf16.mxu0 0
  %5272 = vmatpush1.bf16.msra.mxu0 0
  %5273 = vmatprep.subr.bf16.mxu0 0
  %5274 = vmatpush1.bf16.msra.mxu0 0
  %5275 = vmatprep.subr.bf16.mxu0 0
  %5276 = vmatpush1.bf16.msra.mxu0 0
  %5277 = vmatprep.mubr.bf16.mxu0 0
  %5278 = vmatmul.mubr.bf16.gmra.mrb[0].mxu0 %v2125
  %v5279 = vpop.f32.mrb[0].mxu0
  %v5280 = vadd.f32 0.0, %v5279
  %v5281 = vpop.f32.mrb[0].mxu0
  %v5282 = vpop.f32.mrb[0].mxu0
  %v5283 = vpop.f32.mrb[0].mxu0
  %5284 = vdwg.mxu0
  %v5285 = vpack.c.bf16 %v5203, %v5203
  %5286 = vmatprep.subr.bf16.mxu0 %v5053
  %5287 = vmatpush1.bf16.msra.mxu0 %v5052
  %5288 = vmatprep.subr.bf16.mxu0 %v5056
  %5289 = vmatpush1.bf16.msra.mxu0 %v5055
  %5290 = vmatprep.subr.bf16.mxu0 %v5059
  %5291 = vmatpush1.bf16.msra.mxu0 %v5058
  %5292 = vmatprep.subr.bf16.mxu0 %v5062
  %5293 = vmatpush1.bf16.msra.mxu0 %v5061
  %5294 = vmatprep.subr.bf16.mxu0 %v5065
  %5295 = vmatpush1.bf16.msra.mxu0 %v5064
  %5296 = vmatprep.subr.bf16.mxu0 %v5068
  %5297 = vmatpush1.bf16.msra.mxu0 %v5067
  %5298 = vmatprep.subr.bf16.mxu0 %v5071
  %5299 = vmatpush1.bf16.msra.mxu0 %v5070
  %5300 = vmatprep.subr.bf16.mxu0 %v5074
  %5301 = vmatpush1.bf16.msra.mxu0 %v5073
  %5302 = vmatprep.subr.bf16.mxu0 0
  %5303 = vmatpush1.bf16.msra.mxu0 0
  %5304 = vmatprep.subr.bf16.mxu0 0
  %5305 = vmatpush1.bf16.msra.mxu0 0
  %5306 = vmatprep.subr.bf16.mxu0 0
  %5307 = vmatpush1.bf16.msra.mxu0 0
  %5308 = vmatprep.subr.bf16.mxu0 0
  %5309 = vmatpush1.bf16.msra.mxu0 0
  %5310 = vmatprep.subr.bf16.mxu0 0
  %5311 = vmatpush1.bf16.msra.mxu0 0
  %5312 = vmatprep.subr.bf16.mxu0 0
  %5313 = vmatpush1.bf16.msra.mxu0 0
  %5314 = vmatprep.subr.bf16.mxu0 0
  %5315 = vmatpush1.bf16.msra.mxu0 0
  %5316 = vmatprep.subr.bf16.mxu0 0
  %5317 = vmatpush1.bf16.msra.mxu0 0
  %5318 = vmatprep.mubr.bf16.mxu0 0
  %5319 = vmatmul.mubr.bf16.gmra.mrb[0].mxu0 %v5285
  %v5320 = vpop.f32.mrb[0].mxu0
  %v5321 = vadd.f32 %v55, %v5320
  %v5322 = vpop.f32.mrb[0].mxu0
  %v5323 = vadd.f32 %v56, %v5322
  %v5324 = vpop.f32.mrb[0].mxu0
  %v5325 = vpop.f32.mrb[0].mxu0
  %5326 = vdwg.mxu0
  %5327 = vmatprep.subr.bf16.mxu0 0
  %5328 = vmatpush1.bf16.msra.mxu0 %v5054
  %5329 = vmatprep.subr.bf16.mxu0 0
  %5330 = vmatpush1.bf16.msra.mxu0 %v5057
  %5331 = vmatprep.subr.bf16.mxu0 0
  %5332 = vmatpush1.bf16.msra.mxu0 %v5060
  %5333 = vmatprep.subr.bf16.mxu0 0
  %5334 = vmatpush1.bf16.msra.mxu0 %v5063
  %5335 = vmatprep.subr.bf16.mxu0 0
  %5336 = vmatpush1.bf16.msra.mxu0 %v5066
  %5337 = vmatprep.subr.bf16.mxu0 0
  %5338 = vmatpush1.bf16.msra.mxu0 %v5069
  %5339 = vmatprep.subr.bf16.mxu0 0
  %5340 = vmatpush1.bf16.msra.mxu0 %v5072
  %5341 = vmatprep.subr.bf16.mxu0 0
  %5342 = vmatpush1.bf16.msra.mxu0 %v5075
  %5343 = vmatprep.subr.bf16.mxu0 0
  %5344 = vmatpush1.bf16.msra.mxu0 0
  %5345 = vmatprep.subr.bf16.mxu0 0
  %5346 = vmatpush1.bf16.msra.mxu0 0
  %5347 = vmatprep.subr.bf16.mxu0 0
  %5348 = vmatpush1.bf16.msra.mxu0 0
  %5349 = vmatprep.subr.bf16.mxu0 0
  %5350 = vmatpush1.bf16.msra.mxu0 0
  %5351 = vmatprep.subr.bf16.mxu0 0
  %5352 = vmatpush1.bf16.msra.mxu0 0
  %5353 = vmatprep.subr.bf16.mxu0 0
  %5354 = vmatpush1.bf16.msra.mxu0 0
  %5355 = vmatprep.subr.bf16.mxu0 0
  %5356 = vmatpush1.bf16.msra.mxu0 0
  %5357 = vmatprep.subr.bf16.mxu0 0
  %5358 = vmatpush1.bf16.msra.mxu0 0
  %5359 = vmatprep.mubr.bf16.mxu0 0
  %5360 = vmatmul.mubr.bf16.gmra.mrb[0].mxu0 %v5285
  %v5361 = vpop.f32.mrb[0].mxu0
  %v5362 = vadd.f32 %v57, %v5361
  %v5363 = vpop.f32.mrb[0].mxu0
  %v5364 = vpop.f32.mrb[0].mxu0
  %v5365 = vpop.f32.mrb[0].mxu0
  %5366 = vdwg.mxu0
  %v5367 = vadd.f32 %v5239, %v5321
  %v5368 = vxor.u32 %v5367, 2147483648
  %v5369 = vmul.f32 %v5368, 1.442695
  %v5370 = vpow.pop %v5369
  %v5371 = vadd.f32 %v5370, 1.0
  %v5372 = vrcp.pop %v5371
  %v5373 = vmul.f32 1.0, %v5372
  %v5374 = vadd.f32 %v5241, %v5323
  %v5375 = vxor.u32 %v5374, 2147483648
  %v5376 = vmul.f32 %v5375, 1.442695
  %v5377 = vpow.pop %v5376
  %v5378 = vadd.f32 %v5377, 1.0
  %v5379 = vrcp.pop %v5378
  %v5380 = vmul.f32 1.0, %v5379
  %v5381 = vmul.f32 %v5373, %v5362
  %v5382 = vadd.f32 %v5280, %v5381
  %v5383 = vtanh.pop %v5382
  %v5384 = vsub.f32 1.0, %v5380
  %v5385 = vmul.f32 %v5384, %v5383
  %v5386 = vmul.f32 %v5380, %v5203
  %v5387 = vadd.f32 %v5385, %v5386
  %vm5388 = vcmp.ge.s32.totalorder %v4696, 1
  %v5389 = vsel %vm5388, %v5387, %v5203
  %5390 = vmatprep.subr.bf16.mxu0 %v4812
  %5391 = vmatpush1.bf16.msra.mxu0 %v4811
  %5392 = vmatprep.subr.bf16.mxu0 %v4815
  %5393 = vmatpush1.bf16.msra.mxu0 %v4814
  %5394 = vmatprep.subr.bf16.mxu0 %v4818
  %5395 = vmatpush1.bf16.msra.mxu0 %v4817
  %5396 = vmatprep.subr.bf16.mxu0 %v4821
  %5397 = vmatpush1.bf16.msra.mxu0 %v4820
  %5398 = vmatprep.subr.bf16.mxu0 %v4824
  %5399 = vmatpush1.bf16.msra.mxu0 %v4823
  %5400 = vmatprep.subr.bf16.mxu0 %v4827
  %5401 = vmatpush1.bf16.msra.mxu0 %v4826
  %5402 = vmatprep.subr.bf16.mxu0 %v4830
  %5403 = vmatpush1.bf16.msra.mxu0 %v4829
  %5404 = vmatprep.subr.bf16.mxu0 %v4833
  %5405 = vmatpush1.bf16.msra.mxu0 %v4832
  %5406 = vmatprep.subr.bf16.mxu0 0
  %5407 = vmatpush1.bf16.msra.mxu0 0
  %5408 = vmatprep.subr.bf16.mxu0 0
  %5409 = vmatpush1.bf16.msra.mxu0 0
  %5410 = vmatprep.subr.bf16.mxu0 0
  %5411 = vmatpush1.bf16.msra.mxu0 0
  %5412 = vmatprep.subr.bf16.mxu0 0
  %5413 = vmatpush1.bf16.msra.mxu0 0
  %5414 = vmatprep.subr.bf16.mxu0 0
  %5415 = vmatpush1.bf16.msra.mxu0 0
  %5416 = vmatprep.subr.bf16.mxu0 0
  %5417 = vmatpush1.bf16.msra.mxu0 0
  %5418 = vmatprep.subr.bf16.mxu0 0
  %5419 = vmatpush1.bf16.msra.mxu0 0
  %5420 = vmatprep.subr.bf16.mxu0 0
  %5421 = vmatpush1.bf16.msra.mxu0 0
  %5422 = vmatprep.mubr.bf16.mxu0 0
  %5423 = vmatmul.mubr.bf16.gmra.mrb[0].mxu0 %v2765
  %v5424 = vpop.f32.mrb[0].mxu0
  %v5425 = vadd.f32 0.0, %v5424
  %v5426 = vpop.f32.mrb[0].mxu0
  %v5427 = vadd.f32 0.0, %v5426
  %v5428 = vpop.f32.mrb[0].mxu0
  %v5429 = vpop.f32.mrb[0].mxu0
  %5430 = vdwg.mxu0
  %5431 = vmatprep.subr.bf16.mxu0 0
  %5432 = vmatpush1.bf16.msra.mxu0 %v4813
  %5433 = vmatprep.subr.bf16.mxu0 0
  %5434 = vmatpush1.bf16.msra.mxu0 %v4816
  %5435 = vmatprep.subr.bf16.mxu0 0
  %5436 = vmatpush1.bf16.msra.mxu0 %v4819
  %5437 = vmatprep.subr.bf16.mxu0 0
  %5438 = vmatpush1.bf16.msra.mxu0 %v4822
  %5439 = vmatprep.subr.bf16.mxu0 0
  %5440 = vmatpush1.bf16.msra.mxu0 %v4825
  %5441 = vmatprep.subr.bf16.mxu0 0
  %5442 = vmatpush1.bf16.msra.mxu0 %v4828
  %5443 = vmatprep.subr.bf16.mxu0 0
  %5444 = vmatpush1.bf16.msra.mxu0 %v4831
  %5445 = vmatprep.subr.bf16.mxu0 0
  %5446 = vmatpush1.bf16.msra.mxu0 %v4834
  %5447 = vmatprep.subr.bf16.mxu0 0
  %5448 = vmatpush1.bf16.msra.mxu0 0
  %5449 = vmatprep.subr.bf16.mxu0 0
  %5450 = vmatpush1.bf16.msra.mxu0 0
  %5451 = vmatprep.subr.bf16.mxu0 0
  %5452 = vmatpush1.bf16.msra.mxu0 0
  %5453 = vmatprep.subr.bf16.mxu0 0
  %5454 = vmatpush1.bf16.msra.mxu0 0
  %5455 = vmatprep.subr.bf16.mxu0 0
  %5456 = vmatpush1.bf16.msra.mxu0 0
  %5457 = vmatprep.subr.bf16.mxu0 0
  %5458 = vmatpush1.bf16.msra.mxu0 0
  %5459 = vmatprep.subr.bf16.mxu0 0
  %5460 = vmatpush1.bf16.msra.mxu0 0
  %5461 = vmatprep.subr.bf16.mxu0 0
  %5462 = vmatpush1.bf16.msra.mxu0 0
  %5463 = vmatprep.mubr.bf16.mxu0 0
  %5464 = vmatmul.mubr.bf16.gmra.mrb[0].mxu0 %v2765
  %v5465 = vpop.f32.mrb[0].mxu0
  %v5466 = vadd.f32 0.0, %v5465
  %v5467 = vpop.f32.mrb[0].mxu0
  %v5468 = vpop.f32.mrb[0].mxu0
  %v5469 = vpop.f32.mrb[0].mxu0
  %5470 = vdwg.mxu0
  %v5471 = vpack.c.bf16 %v5389, %v5389
  %5472 = vmatprep.subr.bf16.mxu0 %v5053
  %5473 = vmatpush1.bf16.msra.mxu0 %v5052
  %5474 = vmatprep.subr.bf16.mxu0 %v5056
  %5475 = vmatpush1.bf16.msra.mxu0 %v5055
  %5476 = vmatprep.subr.bf16.mxu0 %v5059
  %5477 = vmatpush1.bf16.msra.mxu0 %v5058
  %5478 = vmatprep.subr.bf16.mxu0 %v5062
  %5479 = vmatpush1.bf16.msra.mxu0 %v5061
  %5480 = vmatprep.subr.bf16.mxu0 %v5065
  %5481 = vmatpush1.bf16.msra.mxu0 %v5064
  %5482 = vmatprep.subr.bf16.mxu0 %v5068
  %5483 = vmatpush1.bf16.msra.mxu0 %v5067
  %5484 = vmatprep.subr.bf16.mxu0 %v5071
  %5485 = vmatpush1.bf16.msra.mxu0 %v5070
  %5486 = vmatprep.subr.bf16.mxu0 %v5074
  %5487 = vmatpush1.bf16.msra.mxu0 %v5073
  %5488 = vmatprep.subr.bf16.mxu0 0
  %5489 = vmatpush1.bf16.msra.mxu0 0
  %5490 = vmatprep.subr.bf16.mxu0 0
  %5491 = vmatpush1.bf16.msra.mxu0 0
  %5492 = vmatprep.subr.bf16.mxu0 0
  %5493 = vmatpush1.bf16.msra.mxu0 0
  %5494 = vmatprep.subr.bf16.mxu0 0
  %5495 = vmatpush1.bf16.msra.mxu0 0
  %5496 = vmatprep.subr.bf16.mxu0 0
  %5497 = vmatpush1.bf16.msra.mxu0 0
  %5498 = vmatprep.subr.bf16.mxu0 0
  %5499 = vmatpush1.bf16.msra.mxu0 0
  %5500 = vmatprep.subr.bf16.mxu0 0
  %5501 = vmatpush1.bf16.msra.mxu0 0
  %5502 = vmatprep.subr.bf16.mxu0 0
  %5503 = vmatpush1.bf16.msra.mxu0 0
  %5504 = vmatprep.mubr.bf16.mxu0 0
  %5505 = vmatmul.mubr.bf16.gmra.mrb[0].mxu0 %v5471
  %v5506 = vpop.f32.mrb[0].mxu0
  %v5507 = vadd.f32 %v55, %v5506
  %v5508 = vpop.f32.mrb[0].mxu0
  %v5509 = vadd.f32 %v56, %v5508
  %v5510 = vpop.f32.mrb[0].mxu0
  %v5511 = vpop.f32.mrb[0].mxu0
  %5512 = vdwg.mxu0
  %5513 = vmatprep.subr.bf16.mxu0 0
  %5514 = vmatpush1.bf16.msra.mxu0 %v5054
  %5515 = vmatprep.subr.bf16.mxu0 0
  %5516 = vmatpush1.bf16.msra.mxu0 %v5057
  %5517 = vmatprep.subr.bf16.mxu0 0
  %5518 = vmatpush1.bf16.msra.mxu0 %v5060
  %5519 = vmatprep.subr.bf16.mxu0 0
  %5520 = vmatpush1.bf16.msra.mxu0 %v5063
  %5521 = vmatprep.subr.bf16.mxu0 0
  %5522 = vmatpush1.bf16.msra.mxu0 %v5066
  %5523 = vmatprep.subr.bf16.mxu0 0
  %5524 = vmatpush1.bf16.msra.mxu0 %v5069
  %5525 = vmatprep.subr.bf16.mxu0 0
  %5526 = vmatpush1.bf16.msra.mxu0 %v5072
  %5527 = vmatprep.subr.bf16.mxu0 0
  %5528 = vmatpush1.bf16.msra.mxu0 %v5075
  %5529 = vmatprep.subr.bf16.mxu0 0
  %5530 = vmatpush1.bf16.msra.mxu0 0
  %5531 = vmatprep.subr.bf16.mxu0 0
  %5532 = vmatpush1.bf16.msra.mxu0 0
  %5533 = vmatprep.subr.bf16.mxu0 0
  %5534 = vmatpush1.bf16.msra.mxu0 0
  %5535 = vmatprep.subr.bf16.mxu0 0
  %5536 = vmatpush1.bf16.msra.mxu0 0
  %5537 = vmatprep.subr.bf16.mxu0 0
  %5538 = vmatpush1.bf16.msra.mxu0 0
  %5539 = vmatprep.subr.bf16.mxu0 0
  %5540 = vmatpush1.bf16.msra.mxu0 0
  %5541 = vmatprep.subr.bf16.mxu0 0
  %5542 = vmatpush1.bf16.msra.mxu0 0
  %5543 = vmatprep.subr.bf16.mxu0 0
  %5544 = vmatpush1.bf16.msra.mxu0 0
  %5545 = vmatprep.mubr.bf16.mxu0 0
  %5546 = vmatmul.mubr.bf16.gmra.mrb[0].mxu0 %v5471
  %v5547 = vpop.f32.mrb[0].mxu0
  %v5548 = vadd.f32 %v57, %v5547
  %v5549 = vpop.f32.mrb[0].mxu0
  %v5550 = vpop.f32.mrb[0].mxu0
  %v5551 = vpop.f32.mrb[0].mxu0
  %5552 = vdwg.mxu0
  %v5553 = vadd.f32 %v5425, %v5507
  %v5554 = vxor.u32 %v5553, 2147483648
  %v5555 = vmul.f32 %v5554, 1.442695
  %v5556 = vpow.pop %v5555
  %v5557 = vadd.f32 %v5556, 1.0
  %v5558 = vrcp.pop %v5557
  %v5559 = vmul.f32 1.0, %v5558
  %v5560 = vadd.f32 %v5427, %v5509
  %v5561 = vxor.u32 %v5560, 2147483648
  %v5562 = vmul.f32 %v5561, 1.442695
  %v5563 = vpow.pop %v5562
  %v5564 = vadd.f32 %v5563, 1.0
  %v5565 = vrcp.pop %v5564
  %v5566 = vmul.f32 1.0, %v5565
  %v5567 = vmul.f32 %v5559, %v5548
  %v5568 = vadd.f32 %v5466, %v5567
  %v5569 = vtanh.pop %v5568
  %v5570 = vsub.f32 1.0, %v5566
  %v5571 = vmul.f32 %v5570, %v5569
  %v5572 = vmul.f32 %v5566, %v5389
  %v5573 = vadd.f32 %v5571, %v5572
  %vm5574 = vcmp.ge.s32.totalorder %v4696, 2
  %v5575 = vsel %vm5574, %v5573, %v5389
  %5576 = vmatprep.subr.bf16.mxu0 %v4812
  %5577 = vmatpush1.bf16.msra.mxu0 %v4811
  %5578 = vmatprep.subr.bf16.mxu0 %v4815
  %5579 = vmatpush1.bf16.msra.mxu0 %v4814
  %5580 = vmatprep.subr.bf16.mxu0 %v4818
  %5581 = vmatpush1.bf16.msra.mxu0 %v4817
  %5582 = vmatprep.subr.bf16.mxu0 %v4821
  %5583 = vmatpush1.bf16.msra.mxu0 %v4820
  %5584 = vmatprep.subr.bf16.mxu0 %v4824
  %5585 = vmatpush1.bf16.msra.mxu0 %v4823
  %5586 = vmatprep.subr.bf16.mxu0 %v4827
  %5587 = vmatpush1.bf16.msra.mxu0 %v4826
  %5588 = vmatprep.subr.bf16.mxu0 %v4830
  %5589 = vmatpush1.bf16.msra.mxu0 %v4829
  %5590 = vmatprep.subr.bf16.mxu0 %v4833
  %5591 = vmatpush1.bf16.msra.mxu0 %v4832
  %5592 = vmatprep.subr.bf16.mxu0 0
  %5593 = vmatpush1.bf16.msra.mxu0 0
  %5594 = vmatprep.subr.bf16.mxu0 0
  %5595 = vmatpush1.bf16.msra.mxu0 0
  %5596 = vmatprep.subr.bf16.mxu0 0
  %5597 = vmatpush1.bf16.msra.mxu0 0
  %5598 = vmatprep.subr.bf16.mxu0 0
  %5599 = vmatpush1.bf16.msra.mxu0 0
  %5600 = vmatprep.subr.bf16.mxu0 0
  %5601 = vmatpush1.bf16.msra.mxu0 0
  %5602 = vmatprep.subr.bf16.mxu0 0
  %5603 = vmatpush1.bf16.msra.mxu0 0
  %5604 = vmatprep.subr.bf16.mxu0 0
  %5605 = vmatpush1.bf16.msra.mxu0 0
  %5606 = vmatprep.subr.bf16.mxu0 0
  %5607 = vmatpush1.bf16.msra.mxu0 0
  %5608 = vmatprep.mubr.bf16.mxu0 0
  %5609 = vmatmul.mubr.bf16.gmra.mrb[0].mxu0 %v3406
  %v5610 = vpop.f32.mrb[0].mxu0
  %v5611 = vadd.f32 0.0, %v5610
  %v5612 = vpop.f32.mrb[0].mxu0
  %v5613 = vadd.f32 0.0, %v5612
  %v5614 = vpop.f32.mrb[0].mxu0
  %v5615 = vpop.f32.mrb[0].mxu0
  %5616 = vdwg.mxu0
  %5617 = vmatprep.subr.bf16.mxu0 0
  %5618 = vmatpush1.bf16.msra.mxu0 %v4813
  %5619 = vmatprep.subr.bf16.mxu0 0
  %5620 = vmatpush1.bf16.msra.mxu0 %v4816
  %5621 = vmatprep.subr.bf16.mxu0 0
  %5622 = vmatpush1.bf16.msra.mxu0 %v4819
  %5623 = vmatprep.subr.bf16.mxu0 0
  %5624 = vmatpush1.bf16.msra.mxu0 %v4822
  %5625 = vmatprep.subr.bf16.mxu0 0
  %5626 = vmatpush1.bf16.msra.mxu0 %v4825
  %5627 = vmatprep.subr.bf16.mxu0 0
  %5628 = vmatpush1.bf16.msra.mxu0 %v4828
  %5629 = vmatprep.subr.bf16.mxu0 0
  %5630 = vmatpush1.bf16.msra.mxu0 %v4831
  %5631 = vmatprep.subr.bf16.mxu0 0
  %5632 = vmatpush1.bf16.msra.mxu0 %v4834
  %5633 = vmatprep.subr.bf16.mxu0 0
  %5634 = vmatpush1.bf16.msra.mxu0 0
  %5635 = vmatprep.subr.bf16.mxu0 0
  %5636 = vmatpush1.bf16.msra.mxu0 0
  %5637 = vmatprep.subr.bf16.mxu0 0
  %5638 = vmatpush1.bf16.msra.mxu0 0
  %5639 = vmatprep.subr.bf16.mxu0 0
  %5640 = vmatpush1.bf16.msra.mxu0 0
  %5641 = vmatprep.subr.bf16.mxu0 0
  %5642 = vmatpush1.bf16.msra.mxu0 0
  %5643 = vmatprep.subr.bf16.mxu0 0
  %5644 = vmatpush1.bf16.msra.mxu0 0
  %5645 = vmatprep.subr.bf16.mxu0 0
  %5646 = vmatpush1.bf16.msra.mxu0 0
  %5647 = vmatprep.subr.bf16.mxu0 0
  %5648 = vmatpush1.bf16.msra.mxu0 0
  %5649 = vmatprep.mubr.bf16.mxu0 0
  %5650 = vmatmul.mubr.bf16.gmra.mrb[0].mxu0 %v3406
  %v5651 = vpop.f32.mrb[0].mxu0
  %v5652 = vadd.f32 0.0, %v5651
  %v5653 = vpop.f32.mrb[0].mxu0
  %v5654 = vpop.f32.mrb[0].mxu0
  %v5655 = vpop.f32.mrb[0].mxu0
  %5656 = vdwg.mxu0
  %v5657 = vpack.c.bf16 %v5575, %v5575
  %5658 = vmatprep.subr.bf16.mxu0 %v5053
  %5659 = vmatpush1.bf16.msra.mxu0 %v5052
  %5660 = vmatprep.subr.bf16.mxu0 %v5056
  %5661 = vmatpush1.bf16.msra.mxu0 %v5055
  %5662 = vmatprep.subr.bf16.mxu0 %v5059
  %5663 = vmatpush1.bf16.msra.mxu0 %v5058
  %5664 = vmatprep.subr.bf16.mxu0 %v5062
  %5665 = vmatpush1.bf16.msra.mxu0 %v5061
  %5666 = vmatprep.subr.bf16.mxu0 %v5065
  %5667 = vmatpush1.bf16.msra.mxu0 %v5064
  %5668 = vmatprep.subr.bf16.mxu0 %v5068
  %5669 = vmatpush1.bf16.msra.mxu0 %v5067
  %5670 = vmatprep.subr.bf16.mxu0 %v5071
  %5671 = vmatpush1.bf16.msra.mxu0 %v5070
  %5672 = vmatprep.subr.bf16.mxu0 %v5074
  %5673 = vmatpush1.bf16.msra.mxu0 %v5073
  %5674 = vmatprep.subr.bf16.mxu0 0
  %5675 = vmatpush1.bf16.msra.mxu0 0
  %5676 = vmatprep.subr.bf16.mxu0 0
  %5677 = vmatpush1.bf16.msra.mxu0 0
  %5678 = vmatprep.subr.bf16.mxu0 0
  %5679 = vmatpush1.bf16.msra.mxu0 0
  %5680 = vmatprep.subr.bf16.mxu0 0
  %5681 = vmatpush1.bf16.msra.mxu0 0
  %5682 = vmatprep.subr.bf16.mxu0 0
  %5683 = vmatpush1.bf16.msra.mxu0 0
  %5684 = vmatprep.subr.bf16.mxu0 0
  %5685 = vmatpush1.bf16.msra.mxu0 0
  %5686 = vmatprep.subr.bf16.mxu0 0
  %5687 = vmatpush1.bf16.msra.mxu0 0
  %5688 = vmatprep.subr.bf16.mxu0 0
  %5689 = vmatpush1.bf16.msra.mxu0 0
  %5690 = vmatprep.mubr.bf16.mxu0 0
  %5691 = vmatmul.mubr.bf16.gmra.mrb[0].mxu0 %v5657
  %v5692 = vpop.f32.mrb[0].mxu0
  %v5693 = vadd.f32 %v55, %v5692
  %v5694 = vpop.f32.mrb[0].mxu0
  %v5695 = vadd.f32 %v56, %v5694
  %v5696 = vpop.f32.mrb[0].mxu0
  %v5697 = vpop.f32.mrb[0].mxu0
  %5698 = vdwg.mxu0
  %5699 = vmatprep.subr.bf16.mxu0 0
  %5700 = vmatpush1.bf16.msra.mxu0 %v5054
  %5701 = vmatprep.subr.bf16.mxu0 0
  %5702 = vmatpush1.bf16.msra.mxu0 %v5057
  %5703 = vmatprep.subr.bf16.mxu0 0
  %5704 = vmatpush1.bf16.msra.mxu0 %v5060
  %5705 = vmatprep.subr.bf16.mxu0 0
  %5706 = vmatpush1.bf16.msra.mxu0 %v5063
  %5707 = vmatprep.subr.bf16.mxu0 0
  %5708 = vmatpush1.bf16.msra.mxu0 %v5066
  %5709 = vmatprep.subr.bf16.mxu0 0
  %5710 = vmatpush1.bf16.msra.mxu0 %v5069
  %5711 = vmatprep.subr.bf16.mxu0 0
  %5712 = vmatpush1.bf16.msra.mxu0 %v5072
  %5713 = vmatprep.subr.bf16.mxu0 0
  %5714 = vmatpush1.bf16.msra.mxu0 %v5075
  %5715 = vmatprep.subr.bf16.mxu0 0
  %5716 = vmatpush1.bf16.msra.mxu0 0
  %5717 = vmatprep.subr.bf16.mxu0 0
  %5718 = vmatpush1.bf16.msra.mxu0 0
  %5719 = vmatprep.subr.bf16.mxu0 0
  %5720 = vmatpush1.bf16.msra.mxu0 0
  %5721 = vmatprep.subr.bf16.mxu0 0
  %5722 = vmatpush1.bf16.msra.mxu0 0
  %5723 = vmatprep.subr.bf16.mxu0 0
  %5724 = vmatpush1.bf16.msra.mxu0 0
  %5725 = vmatprep.subr.bf16.mxu0 0
  %5726 = vmatpush1.bf16.msra.mxu0 0
  %5727 = vmatprep.subr.bf16.mxu0 0
  %5728 = vmatpush1.bf16.msra.mxu0 0
  %5729 = vmatprep.subr.bf16.mxu0 0
  %5730 = vmatpush1.bf16.msra.mxu0 0
  %5731 = vmatprep.mubr.bf16.mxu0 0
  %5732 = vmatmul.mubr.bf16.gmra.mrb[0].mxu0 %v5657
  %v5733 = vpop.f32.mrb[0].mxu0
  %v5734 = vadd.f32 %v57, %v5733
  %v5735 = vpop.f32.mrb[0].mxu0
  %v5736 = vpop.f32.mrb[0].mxu0
  %v5737 = vpop.f32.mrb[0].mxu0
  %5738 = vdwg.mxu0
  %v5739 = vadd.f32 %v5611, %v5693
  %v5740 = vxor.u32 %v5739, 2147483648
  %v5741 = vmul.f32 %v5740, 1.442695
  %v5742 = vpow.pop %v5741
  %v5743 = vadd.f32 %v5742, 1.0
  %v5744 = vrcp.pop %v5743
  %v5745 = vmul.f32 1.0, %v5744
  %v5746 = vadd.f32 %v5613, %v5695
  %v5747 = vxor.u32 %v5746, 2147483648
  %v5748 = vmul.f32 %v5747, 1.442695
  %v5749 = vpow.pop %v5748
  %v5750 = vadd.f32 %v5749, 1.0
  %v5751 = vrcp.pop %v5750
  %v5752 = vmul.f32 1.0, %v5751
  %v5753 = vmul.f32 %v5745, %v5734
  %v5754 = vadd.f32 %v5652, %v5753
  %v5755 = vtanh.pop %v5754
  %v5756 = vsub.f32 1.0, %v5752
  %v5757 = vmul.f32 %v5756, %v5755
  %v5758 = vmul.f32 %v5752, %v5575
  %v5759 = vadd.f32 %v5757, %v5758
  %vm5760 = vcmp.ge.s32.totalorder %v4696, 3
  %v5761 = vsel %vm5760, %v5759, %v5575
  %5762 = vmatprep.subr.bf16.mxu0 %v4812
  %5763 = vmatpush1.bf16.msra.mxu0 %v4811
  %5764 = vmatprep.subr.bf16.mxu0 %v4815
  %5765 = vmatpush1.bf16.msra.mxu0 %v4814
  %5766 = vmatprep.subr.bf16.mxu0 %v4818
  %5767 = vmatpush1.bf16.msra.mxu0 %v4817
  %5768 = vmatprep.subr.bf16.mxu0 %v4821
  %5769 = vmatpush1.bf16.msra.mxu0 %v4820
  %5770 = vmatprep.subr.bf16.mxu0 %v4824
  %5771 = vmatpush1.bf16.msra.mxu0 %v4823
  %5772 = vmatprep.subr.bf16.mxu0 %v4827
  %5773 = vmatpush1.bf16.msra.mxu0 %v4826
  %5774 = vmatprep.subr.bf16.mxu0 %v4830
  %5775 = vmatpush1.bf16.msra.mxu0 %v4829
  %5776 = vmatprep.subr.bf16.mxu0 %v4833
  %5777 = vmatpush1.bf16.msra.mxu0 %v4832
  %5778 = vmatprep.subr.bf16.mxu0 0
  %5779 = vmatpush1.bf16.msra.mxu0 0
  %5780 = vmatprep.subr.bf16.mxu0 0
  %5781 = vmatpush1.bf16.msra.mxu0 0
  %5782 = vmatprep.subr.bf16.mxu0 0
  %5783 = vmatpush1.bf16.msra.mxu0 0
  %5784 = vmatprep.subr.bf16.mxu0 0
  %5785 = vmatpush1.bf16.msra.mxu0 0
  %5786 = vmatprep.subr.bf16.mxu0 0
  %5787 = vmatpush1.bf16.msra.mxu0 0
  %5788 = vmatprep.subr.bf16.mxu0 0
  %5789 = vmatpush1.bf16.msra.mxu0 0
  %5790 = vmatprep.subr.bf16.mxu0 0
  %5791 = vmatpush1.bf16.msra.mxu0 0
  %5792 = vmatprep.subr.bf16.mxu0 0
  %5793 = vmatpush1.bf16.msra.mxu0 0
  %5794 = vmatprep.mubr.bf16.mxu0 0
  %5795 = vmatmul.mubr.bf16.gmra.mrb[0].mxu0 %v4047
  %v5796 = vpop.f32.mrb[0].mxu0
  %v5797 = vadd.f32 0.0, %v5796
  %v5798 = vpop.f32.mrb[0].mxu0
  %v5799 = vadd.f32 0.0, %v5798
  %v5800 = vpop.f32.mrb[0].mxu0
  %v5801 = vpop.f32.mrb[0].mxu0
  %5802 = vdwg.mxu0
  %5803 = vmatprep.subr.bf16.mxu0 0
  %5804 = vmatpush1.bf16.msra.mxu0 %v4813
  %5805 = vmatprep.subr.bf16.mxu0 0
  %5806 = vmatpush1.bf16.msra.mxu0 %v4816
  %5807 = vmatprep.subr.bf16.mxu0 0
  %5808 = vmatpush1.bf16.msra.mxu0 %v4819
  %5809 = vmatprep.subr.bf16.mxu0 0
  %5810 = vmatpush1.bf16.msra.mxu0 %v4822
  %5811 = vmatprep.subr.bf16.mxu0 0
  %5812 = vmatpush1.bf16.msra.mxu0 %v4825
  %5813 = vmatprep.subr.bf16.mxu0 0
  %5814 = vmatpush1.bf16.msra.mxu0 %v4828
  %5815 = vmatprep.subr.bf16.mxu0 0
  %5816 = vmatpush1.bf16.msra.mxu0 %v4831
  %5817 = vmatprep.subr.bf16.mxu0 0
  %5818 = vmatpush1.bf16.msra.mxu0 %v4834
  %5819 = vmatprep.subr.bf16.mxu0 0
  %5820 = vmatpush1.bf16.msra.mxu0 0
  %5821 = vmatprep.subr.bf16.mxu0 0
  %5822 = vmatpush1.bf16.msra.mxu0 0
  %5823 = vmatprep.subr.bf16.mxu0 0
  %5824 = vmatpush1.bf16.msra.mxu0 0
  %5825 = vmatprep.subr.bf16.mxu0 0
  %5826 = vmatpush1.bf16.msra.mxu0 0
  %5827 = vmatprep.subr.bf16.mxu0 0
  %5828 = vmatpush1.bf16.msra.mxu0 0
  %5829 = vmatprep.subr.bf16.mxu0 0
  %5830 = vmatpush1.bf16.msra.mxu0 0
  %5831 = vmatprep.subr.bf16.mxu0 0
  %5832 = vmatpush1.bf16.msra.mxu0 0
  %5833 = vmatprep.subr.bf16.mxu0 0
  %5834 = vmatpush1.bf16.msra.mxu0 0
  %5835 = vmatprep.mubr.bf16.mxu0 0
  %5836 = vmatmul.mubr.bf16.gmra.mrb[0].mxu0 %v4047
  %v5837 = vpop.f32.mrb[0].mxu0
  %v5838 = vadd.f32 0.0, %v5837
  %v5839 = vpop.f32.mrb[0].mxu0
  %v5840 = vpop.f32.mrb[0].mxu0
  %v5841 = vpop.f32.mrb[0].mxu0
  %5842 = vdwg.mxu0
  %v5843 = vpack.c.bf16 %v5761, %v5761
  %5844 = vmatprep.subr.bf16.mxu0 %v5053
  %5845 = vmatpush1.bf16.msra.mxu0 %v5052
  %5846 = vmatprep.subr.bf16.mxu0 %v5056
  %5847 = vmatpush1.bf16.msra.mxu0 %v5055
  %5848 = vmatprep.subr.bf16.mxu0 %v5059
  %5849 = vmatpush1.bf16.msra.mxu0 %v5058
  %5850 = vmatprep.subr.bf16.mxu0 %v5062
  %5851 = vmatpush1.bf16.msra.mxu0 %v5061
  %5852 = vmatprep.subr.bf16.mxu0 %v5065
  %5853 = vmatpush1.bf16.msra.mxu0 %v5064
  %5854 = vmatprep.subr.bf16.mxu0 %v5068
  %5855 = vmatpush1.bf16.msra.mxu0 %v5067
  %5856 = vmatprep.subr.bf16.mxu0 %v5071
  %5857 = vmatpush1.bf16.msra.mxu0 %v5070
  %5858 = vmatprep.subr.bf16.mxu0 %v5074
  %5859 = vmatpush1.bf16.msra.mxu0 %v5073
  %5860 = vmatprep.subr.bf16.mxu0 0
  %5861 = vmatpush1.bf16.msra.mxu0 0
  %5862 = vmatprep.subr.bf16.mxu0 0
  %5863 = vmatpush1.bf16.msra.mxu0 0
  %5864 = vmatprep.subr.bf16.mxu0 0
  %5865 = vmatpush1.bf16.msra.mxu0 0
  %5866 = vmatprep.subr.bf16.mxu0 0
  %5867 = vmatpush1.bf16.msra.mxu0 0
  %5868 = vmatprep.subr.bf16.mxu0 0
  %5869 = vmatpush1.bf16.msra.mxu0 0
  %5870 = vmatprep.subr.bf16.mxu0 0
  %5871 = vmatpush1.bf16.msra.mxu0 0
  %5872 = vmatprep.subr.bf16.mxu0 0
  %5873 = vmatpush1.bf16.msra.mxu0 0
  %5874 = vmatprep.subr.bf16.mxu0 0
  %5875 = vmatpush1.bf16.msra.mxu0 0
  %5876 = vmatprep.mubr.bf16.mxu0 0
  %5877 = vmatmul.mubr.bf16.gmra.mrb[0].mxu0 %v5843
  %v5878 = vpop.f32.mrb[0].mxu0
  %v5879 = vadd.f32 %v55, %v5878
  %v5880 = vpop.f32.mrb[0].mxu0
  %v5881 = vadd.f32 %v56, %v5880
  %v5882 = vpop.f32.mrb[0].mxu0
  %v5883 = vpop.f32.mrb[0].mxu0
  %5884 = vdwg.mxu0
  %5885 = vmatprep.subr.bf16.mxu0 0
  %5886 = vmatpush1.bf16.msra.mxu0 %v5054
  %5887 = vmatprep.subr.bf16.mxu0 0
  %5888 = vmatpush1.bf16.msra.mxu0 %v5057
  %5889 = vmatprep.subr.bf16.mxu0 0
  %5890 = vmatpush1.bf16.msra.mxu0 %v5060
  %5891 = vmatprep.subr.bf16.mxu0 0
  %5892 = vmatpush1.bf16.msra.mxu0 %v5063
  %5893 = vmatprep.subr.bf16.mxu0 0
  %5894 = vmatpush1.bf16.msra.mxu0 %v5066
  %5895 = vmatprep.subr.bf16.mxu0 0
  %5896 = vmatpush1.bf16.msra.mxu0 %v5069
  %5897 = vmatprep.subr.bf16.mxu0 0
  %5898 = vmatpush1.bf16.msra.mxu0 %v5072
  %5899 = vmatprep.subr.bf16.mxu0 0
  %5900 = vmatpush1.bf16.msra.mxu0 %v5075
  %5901 = vmatprep.subr.bf16.mxu0 0
  %5902 = vmatpush1.bf16.msra.mxu0 0
  %5903 = vmatprep.subr.bf16.mxu0 0
  %5904 = vmatpush1.bf16.msra.mxu0 0
  %5905 = vmatprep.subr.bf16.mxu0 0
  %5906 = vmatpush1.bf16.msra.mxu0 0
  %5907 = vmatprep.subr.bf16.mxu0 0
  %5908 = vmatpush1.bf16.msra.mxu0 0
  %5909 = vmatprep.subr.bf16.mxu0 0
  %5910 = vmatpush1.bf16.msra.mxu0 0
  %5911 = vmatprep.subr.bf16.mxu0 0
  %5912 = vmatpush1.bf16.msra.mxu0 0
  %5913 = vmatprep.subr.bf16.mxu0 0
  %5914 = vmatpush1.bf16.msra.mxu0 0
  %5915 = vmatprep.subr.bf16.mxu0 0
  %5916 = vmatpush1.bf16.msra.mxu0 0
  %5917 = vmatprep.mubr.bf16.mxu0 0
  %5918 = vmatmul.mubr.bf16.gmra.mrb[0].mxu0 %v5843
  %v5919 = vpop.f32.mrb[0].mxu0
  %v5920 = vadd.f32 %v57, %v5919
  %v5921 = vpop.f32.mrb[0].mxu0
  %v5922 = vpop.f32.mrb[0].mxu0
  %v5923 = vpop.f32.mrb[0].mxu0
  %5924 = vdwg.mxu0
  %v5925 = vadd.f32 %v5797, %v5879
  %v5926 = vxor.u32 %v5925, 2147483648
  %v5927 = vmul.f32 %v5926, 1.442695
  %v5928 = vpow.pop %v5927
  %v5929 = vadd.f32 %v5928, 1.0
  %v5930 = vrcp.pop %v5929
  %v5931 = vmul.f32 1.0, %v5930
  %v5932 = vadd.f32 %v5799, %v5881
  %v5933 = vxor.u32 %v5932, 2147483648
  %v5934 = vmul.f32 %v5933, 1.442695
  %v5935 = vpow.pop %v5934
  %v5936 = vadd.f32 %v5935, 1.0
  %v5937 = vrcp.pop %v5936
  %v5938 = vmul.f32 1.0, %v5937
  %v5939 = vmul.f32 %v5931, %v5920
  %v5940 = vadd.f32 %v5838, %v5939
  %v5941 = vtanh.pop %v5940
  %v5942 = vsub.f32 1.0, %v5938
  %v5943 = vmul.f32 %v5942, %v5941
  %v5944 = vmul.f32 %v5938, %v5761
  %v5945 = vadd.f32 %v5943, %v5944
  %vm5946 = vcmp.ge.s32.totalorder %v4696, 4
  %v5947 = vsel %vm5946, %v5945, %v5761
  %5948 = vmatprep.subr.bf16.mxu0 %v4812
  %5949 = vmatpush1.bf16.msra.mxu0 %v4811
  %5950 = vmatprep.subr.bf16.mxu0 %v4815
  %5951 = vmatpush1.bf16.msra.mxu0 %v4814
  %5952 = vmatprep.subr.bf16.mxu0 %v4818
  %5953 = vmatpush1.bf16.msra.mxu0 %v4817
  %5954 = vmatprep.subr.bf16.mxu0 %v4821
  %5955 = vmatpush1.bf16.msra.mxu0 %v4820
  %5956 = vmatprep.subr.bf16.mxu0 %v4824
  %5957 = vmatpush1.bf16.msra.mxu0 %v4823
  %5958 = vmatprep.subr.bf16.mxu0 %v4827
  %5959 = vmatpush1.bf16.msra.mxu0 %v4826
  %5960 = vmatprep.subr.bf16.mxu0 %v4830
  %5961 = vmatpush1.bf16.msra.mxu0 %v4829
  %5962 = vmatprep.subr.bf16.mxu0 %v4833
  %5963 = vmatpush1.bf16.msra.mxu0 %v4832
  %5964 = vmatprep.subr.bf16.mxu0 0
  %5965 = vmatpush1.bf16.msra.mxu0 0
  %5966 = vmatprep.subr.bf16.mxu0 0
  %5967 = vmatpush1.bf16.msra.mxu0 0
  %5968 = vmatprep.subr.bf16.mxu0 0
  %5969 = vmatpush1.bf16.msra.mxu0 0
  %5970 = vmatprep.subr.bf16.mxu0 0
  %5971 = vmatpush1.bf16.msra.mxu0 0
  %5972 = vmatprep.subr.bf16.mxu0 0
  %5973 = vmatpush1.bf16.msra.mxu0 0
  %5974 = vmatprep.subr.bf16.mxu0 0
  %5975 = vmatpush1.bf16.msra.mxu0 0
  %5976 = vmatprep.subr.bf16.mxu0 0
  %5977 = vmatpush1.bf16.msra.mxu0 0
  %5978 = vmatprep.subr.bf16.mxu0 0
  %5979 = vmatpush1.bf16.msra.mxu0 0
  %5980 = vmatprep.mubr.bf16.mxu0 0
  %5981 = vmatmul.mubr.bf16.gmra.mrb[0].mxu0 %v4688
  %v5982 = vpop.f32.mrb[0].mxu0
  %v5983 = vadd.f32 0.0, %v5982
  %v5984 = vpop.f32.mrb[0].mxu0
  %v5985 = vadd.f32 0.0, %v5984
  %v5986 = vpop.f32.mrb[0].mxu0
  %v5987 = vpop.f32.mrb[0].mxu0
  %5988 = vdwg.mxu0
  %5989 = vmatprep.subr.bf16.mxu0 0
  %5990 = vmatpush1.bf16.msra.mxu0 %v4813
  %5991 = vmatprep.subr.bf16.mxu0 0
  %5992 = vmatpush1.bf16.msra.mxu0 %v4816
  %5993 = vmatprep.subr.bf16.mxu0 0
  %5994 = vmatpush1.bf16.msra.mxu0 %v4819
  %5995 = vmatprep.subr.bf16.mxu0 0
  %5996 = vmatpush1.bf16.msra.mxu0 %v4822
  %5997 = vmatprep.subr.bf16.mxu0 0
  %5998 = vmatpush1.bf16.msra.mxu0 %v4825
  %5999 = vmatprep.subr.bf16.mxu0 0
  %6000 = vmatpush1.bf16.msra.mxu0 %v4828
  %6001 = vmatprep.subr.bf16.mxu0 0
  %6002 = vmatpush1.bf16.msra.mxu0 %v4831
  %6003 = vmatprep.subr.bf16.mxu0 0
  %6004 = vmatpush1.bf16.msra.mxu0 %v4834
  %6005 = vmatprep.subr.bf16.mxu0 0
  %6006 = vmatpush1.bf16.msra.mxu0 0
  %6007 = vmatprep.subr.bf16.mxu0 0
  %6008 = vmatpush1.bf16.msra.mxu0 0
  %6009 = vmatprep.subr.bf16.mxu0 0
  %6010 = vmatpush1.bf16.msra.mxu0 0
  %6011 = vmatprep.subr.bf16.mxu0 0
  %6012 = vmatpush1.bf16.msra.mxu0 0
  %6013 = vmatprep.subr.bf16.mxu0 0
  %6014 = vmatpush1.bf16.msra.mxu0 0
  %6015 = vmatprep.subr.bf16.mxu0 0
  %6016 = vmatpush1.bf16.msra.mxu0 0
  %6017 = vmatprep.subr.bf16.mxu0 0
  %6018 = vmatpush1.bf16.msra.mxu0 0
  %6019 = vmatprep.subr.bf16.mxu0 0
  %6020 = vmatpush1.bf16.msra.mxu0 0
  %6021 = vmatprep.mubr.bf16.mxu0 0
  %6022 = vmatmul.mubr.bf16.gmra.mrb[0].mxu0 %v4688
  %v6023 = vpop.f32.mrb[0].mxu0
  %v6024 = vadd.f32 0.0, %v6023
  %v6025 = vpop.f32.mrb[0].mxu0
  %v6026 = vpop.f32.mrb[0].mxu0
  %v6027 = vpop.f32.mrb[0].mxu0
  %6028 = vdwg.mxu0
  %v6029 = vpack.c.bf16 %v5947, %v5947
  %6030 = vmatprep.subr.bf16.mxu0 %v5053
  %6031 = vmatpush1.bf16.msra.mxu0 %v5052
  %6032 = vmatprep.subr.bf16.mxu0 %v5056
  %6033 = vmatpush1.bf16.msra.mxu0 %v5055
  %6034 = vmatprep.subr.bf16.mxu0 %v5059
  %6035 = vmatpush1.bf16.msra.mxu0 %v5058
  %6036 = vmatprep.subr.bf16.mxu0 %v5062
  %6037 = vmatpush1.bf16.msra.mxu0 %v5061
  %6038 = vmatprep.subr.bf16.mxu0 %v5065
  %6039 = vmatpush1.bf16.msra.mxu0 %v5064
  %6040 = vmatprep.subr.bf16.mxu0 %v5068
  %6041 = vmatpush1.bf16.msra.mxu0 %v5067
  %6042 = vmatprep.subr.bf16.mxu0 %v5071
  %6043 = vmatpush1.bf16.msra.mxu0 %v5070
  %6044 = vmatprep.subr.bf16.mxu0 %v5074
  %6045 = vmatpush1.bf16.msra.mxu0 %v5073
  %6046 = vmatprep.subr.bf16.mxu0 0
  %6047 = vmatpush1.bf16.msra.mxu0 0
  %6048 = vmatprep.subr.bf16.mxu0 0
  %6049 = vmatpush1.bf16.msra.mxu0 0
  %6050 = vmatprep.subr.bf16.mxu0 0
  %6051 = vmatpush1.bf16.msra.mxu0 0
  %6052 = vmatprep.subr.bf16.mxu0 0
  %6053 = vmatpush1.bf16.msra.mxu0 0
  %6054 = vmatprep.subr.bf16.mxu0 0
  %6055 = vmatpush1.bf16.msra.mxu0 0
  %6056 = vmatprep.subr.bf16.mxu0 0
  %6057 = vmatpush1.bf16.msra.mxu0 0
  %6058 = vmatprep.subr.bf16.mxu0 0
  %6059 = vmatpush1.bf16.msra.mxu0 0
  %6060 = vmatprep.subr.bf16.mxu0 0
  %6061 = vmatpush1.bf16.msra.mxu0 0
  %6062 = vmatprep.mubr.bf16.mxu0 0
  %6063 = vmatmul.mubr.bf16.gmra.mrb[0].mxu0 %v6029
  %v6064 = vpop.f32.mrb[0].mxu0
  %v6065 = vadd.f32 %v55, %v6064
  %v6066 = vpop.f32.mrb[0].mxu0
  %v6067 = vadd.f32 %v56, %v6066
  %v6068 = vpop.f32.mrb[0].mxu0
  %v6069 = vpop.f32.mrb[0].mxu0
  %6070 = vdwg.mxu0
  %6071 = vmatprep.subr.bf16.mxu0 0
  %6072 = vmatpush1.bf16.msra.mxu0 %v5054
  %6073 = vmatprep.subr.bf16.mxu0 0
  %6074 = vmatpush1.bf16.msra.mxu0 %v5057
  %6075 = vmatprep.subr.bf16.mxu0 0
  %6076 = vmatpush1.bf16.msra.mxu0 %v5060
  %6077 = vmatprep.subr.bf16.mxu0 0
  %6078 = vmatpush1.bf16.msra.mxu0 %v5063
  %6079 = vmatprep.subr.bf16.mxu0 0
  %6080 = vmatpush1.bf16.msra.mxu0 %v5066
  %6081 = vmatprep.subr.bf16.mxu0 0
  %6082 = vmatpush1.bf16.msra.mxu0 %v5069
  %6083 = vmatprep.subr.bf16.mxu0 0
  %6084 = vmatpush1.bf16.msra.mxu0 %v5072
  %6085 = vmatprep.subr.bf16.mxu0 0
  %6086 = vmatpush1.bf16.msra.mxu0 %v5075
  %6087 = vmatprep.subr.bf16.mxu0 0
  %6088 = vmatpush1.bf16.msra.mxu0 0
  %6089 = vmatprep.subr.bf16.mxu0 0
  %6090 = vmatpush1.bf16.msra.mxu0 0
  %6091 = vmatprep.subr.bf16.mxu0 0
  %6092 = vmatpush1.bf16.msra.mxu0 0
  %6093 = vmatprep.subr.bf16.mxu0 0
  %6094 = vmatpush1.bf16.msra.mxu0 0
  %6095 = vmatprep.subr.bf16.mxu0 0
  %6096 = vmatpush1.bf16.msra.mxu0 0
  %6097 = vmatprep.subr.bf16.mxu0 0
  %6098 = vmatpush1.bf16.msra.mxu0 0
  %6099 = vmatprep.subr.bf16.mxu0 0
  %6100 = vmatpush1.bf16.msra.mxu0 0
  %6101 = vmatprep.subr.bf16.mxu0 0
  %6102 = vmatpush1.bf16.msra.mxu0 0
  %6103 = vmatprep.mubr.bf16.mxu0 0
  %6104 = vmatmul.mubr.bf16.gmra.mrb[0].mxu0 %v6029
  %v6105 = vpop.f32.mrb[0].mxu0
  %v6106 = vadd.f32 %v57, %v6105
  %v6107 = vpop.f32.mrb[0].mxu0
  %v6108 = vpop.f32.mrb[0].mxu0
  %v6109 = vpop.f32.mrb[0].mxu0
  %6110 = vdwg.mxu0
  %v6111 = vadd.f32 %v5983, %v6065
  %v6112 = vxor.u32 %v6111, 2147483648
  %v6113 = vmul.f32 %v6112, 1.442695
  %v6114 = vpow.pop %v6113
  %v6115 = vadd.f32 %v6114, 1.0
  %v6116 = vrcp.pop %v6115
  %v6117 = vmul.f32 1.0, %v6116
  %v6118 = vadd.f32 %v5985, %v6067
  %v6119 = vxor.u32 %v6118, 2147483648
  %v6120 = vmul.f32 %v6119, 1.442695
  %v6121 = vpow.pop %v6120
  %v6122 = vadd.f32 %v6121, 1.0
  %v6123 = vrcp.pop %v6122
  %v6124 = vmul.f32 1.0, %v6123
  %v6125 = vmul.f32 %v6117, %v6106
  %v6126 = vadd.f32 %v6024, %v6125
  %v6127 = vtanh.pop %v6126
  %v6128 = vsub.f32 1.0, %v6124
  %v6129 = vmul.f32 %v6128, %v6127
  %v6130 = vmul.f32 %v6124, %v5947
  %v6131 = vadd.f32 %v6129, %v6130
  %vm6132 = vcmp.ge.s32.totalorder %v4696, 5
  %v6133 = vsel %vm6132, %v6131, %v5947
  %v6134 = vld [vmem:[%s5] sm:$0xff]
  %v6135 = vmul.f32 %v6134, %v1094
  %v6136 = vsub.f32 1.0, %v6134
  %v6137 = vmul.f32 %v6136, %v6133
  %v6138 = vadd.f32 %v6135, %v6137
  %v6139 = vld [vmem:[%s4] sm:$0xff]
  %v6140 = vadd.f32 %v6138, %v6139
  %v6141 = vld [vmem:[%s6] sm:$0xff]
  %v6142 = vld [vmem:[%s6 + $0x8] sm:$0xff]
  %v6143 = vld [vmem:[%s6 + $0x10] sm:$0xff]
  %v6144 = vpack.c.bf16 %v6140, %v6140
  %v6145 = vld [vmem:[%s9] sm:$0xff]
  %v6146 = vld [vmem:[%s9 + $0x8] sm:$0xf]
  %v6147 = vld [vmem:[%s9 + $0xc] sm:$0xff]
  %v6148 = vld [vmem:[%s9 + $0x14] sm:$0xf]
  %v6149 = vld [vmem:[%s9 + $0x18] sm:$0xff]
  %v6150 = vld [vmem:[%s9 + $0x20] sm:$0xf]
  %v6151 = vld [vmem:[%s9 + $0x24] sm:$0xff]
  %v6152 = vld [vmem:[%s9 + $0x2c] sm:$0xf]
  %v6153 = vld [vmem:[%s9 + $0x30] sm:$0xff]
  %v6154 = vld [vmem:[%s9 + $0x38] sm:$0xf]
  %v6155 = vld [vmem:[%s9 + $0x3c] sm:$0xff]
  %v6156 = vld [vmem:[%s9 + $0x44] sm:$0xf]
  %v6157 = vld [vmem:[%s9 + $0x48] sm:$0xff]
  %v6158 = vld [vmem:[%s9 + $0x50] sm:$0xf]
  %v6159 = vld [vmem:[%s9 + $0x54] sm:$0xff]
  %v6160 = vld [vmem:[%s9 + $0x5c] sm:$0xf]
  %v6161 = vld [vmem:[%s9 + $0x60] sm:$0xff]
  %v6162 = vld [vmem:[%s9 + $0x68] sm:$0xf]
  %v6163 = vld [vmem:[%s9 + $0x6c] sm:$0xff]
  %v6164 = vld [vmem:[%s9 + $0x74] sm:$0xf]
  %v6165 = vld [vmem:[%s9 + $0x78] sm:$0xff]
  %v6166 = vld [vmem:[%s9 + $0x80] sm:$0xf]
  %v6167 = vld [vmem:[%s9 + $0x84] sm:$0xff]
  %v6168 = vld [vmem:[%s9 + $0x8c] sm:$0xf]
  %v6169 = vld [vmem:[%s9 + $0x90] sm:$0xff]
  %v6170 = vld [vmem:[%s9 + $0x98] sm:$0xf]
  %v6171 = vld [vmem:[%s9 + $0x9c] sm:$0xff]
  %v6172 = vld [vmem:[%s9 + $0xa4] sm:$0xf]
  %v6173 = vld [vmem:[%s9 + $0xa8] sm:$0xff]
  %v6174 = vld [vmem:[%s9 + $0xb0] sm:$0xf]
  %v6175 = vld [vmem:[%s9 + $0xb4] sm:$0xff]
  %v6176 = vld [vmem:[%s9 + $0xbc] sm:$0xf]
  %v6209 = vunpack.c.l.b16 %v6145
  %v6210 = vunpack.c.h.b16 %v6145
  %v6211 = vunpack.c.l.b16 %v6146
  %v6212 = vunpack.c.l.b16 %v6147
  %v6213 = vunpack.c.h.b16 %v6147
  %v6214 = vunpack.c.l.b16 %v6148
  %v6215 = vunpack.c.l.b16 %v6149
  %v6216 = vunpack.c.h.b16 %v6149
  %v6217 = vunpack.c.l.b16 %v6150
  %v6218 = vunpack.c.l.b16 %v6151
  %v6219 = vunpack.c.h.b16 %v6151
  %v6220 = vunpack.c.l.b16 %v6152
  %v6221 = vunpack.c.l.b16 %v6153
  %v6222 = vunpack.c.h.b16 %v6153
  %v6223 = vunpack.c.l.b16 %v6154
  %v6224 = vunpack.c.l.b16 %v6155
  %v6225 = vunpack.c.h.b16 %v6155
  %v6226 = vunpack.c.l.b16 %v6156
  %v6227 = vunpack.c.l.b16 %v6157
  %v6228 = vunpack.c.h.b16 %v6157
  %v6229 = vunpack.c.l.b16 %v6158
  %v6230 = vunpack.c.l.b16 %v6159
  %v6231 = vunpack.c.h.b16 %v6159
  %v6232 = vunpack.c.l.b16 %v6160
  %v6233 = vunpack.c.l.b16 %v6161
  %v6234 = vunpack.c.h.b16 %v6161
  %v6235 = vunpack.c.l.b16 %v6162
  %v6236 = vunpack.c.l.b16 %v6163
  %v6237 = vunpack.c.h.b16 %v6163
  %v6238 = vunpack.c.l.b16 %v6164
  %v6239 = vunpack.c.l.b16 %v6165
  %v6240 = vunpack.c.h.b16 %v6165
  %v6241 = vunpack.c.l.b16 %v6166
  %v6242 = vunpack.c.l.b16 %v6167
  %v6243 = vunpack.c.h.b16 %v6167
  %v6244 = vunpack.c.l.b16 %v6168
  %v6245 = vunpack.c.l.b16 %v6169
  %v6246 = vunpack.c.h.b16 %v6169
  %v6247 = vunpack.c.l.b16 %v6170
  %v6248 = vunpack.c.l.b16 %v6171
  %v6249 = vunpack.c.h.b16 %v6171
  %v6250 = vunpack.c.l.b16 %v6172
  %v6251 = vunpack.c.l.b16 %v6173
  %v6252 = vunpack.c.h.b16 %v6173
  %v6253 = vunpack.c.l.b16 %v6174
  %v6254 = vunpack.c.l.b16 %v6175
  %v6255 = vunpack.c.h.b16 %v6175
  %v6256 = vunpack.c.l.b16 %v6176
  %v6257 = vpack.c.b16 %v6212, %v6209
  %v6258 = vpack.c.b16 %v6213, %v6210
  %v6259 = vpack.c.b16 %v6214, %v6211
  %v6260 = vpack.c.b16 %v6218, %v6215
  %v6261 = vpack.c.b16 %v6219, %v6216
  %v6262 = vpack.c.b16 %v6220, %v6217
  %v6263 = vpack.c.b16 %v6224, %v6221
  %v6264 = vpack.c.b16 %v6225, %v6222
  %v6265 = vpack.c.b16 %v6226, %v6223
  %v6266 = vpack.c.b16 %v6230, %v6227
  %v6267 = vpack.c.b16 %v6231, %v6228
  %v6268 = vpack.c.b16 %v6232, %v6229
  %v6269 = vpack.c.b16 %v6236, %v6233
  %v6270 = vpack.c.b16 %v6237, %v6234
  %v6271 = vpack.c.b16 %v6238, %v6235
  %v6272 = vpack.c.b16 %v6242, %v6239
  %v6273 = vpack.c.b16 %v6243, %v6240
  %v6274 = vpack.c.b16 %v6244, %v6241
  %v6275 = vpack.c.b16 %v6248, %v6245
  %v6276 = vpack.c.b16 %v6249, %v6246
  %v6277 = vpack.c.b16 %v6250, %v6247
  %v6278 = vpack.c.b16 %v6254, %v6251
  %v6279 = vpack.c.b16 %v6255, %v6252
  %v6280 = vpack.c.b16 %v6256, %v6253
  %6305 = vmatprep.subr.bf16.mxu0 %v6258
  %6306 = vmatpush1.bf16.msra.mxu0 %v6257
  %6307 = vmatprep.subr.bf16.mxu0 %v6261
  %6308 = vmatpush1.bf16.msra.mxu0 %v6260
  %6309 = vmatprep.subr.bf16.mxu0 %v6264
  %6310 = vmatpush1.bf16.msra.mxu0 %v6263
  %6311 = vmatprep.subr.bf16.mxu0 %v6267
  %6312 = vmatpush1.bf16.msra.mxu0 %v6266
  %6313 = vmatprep.subr.bf16.mxu0 %v6270
  %6314 = vmatpush1.bf16.msra.mxu0 %v6269
  %6315 = vmatprep.subr.bf16.mxu0 %v6273
  %6316 = vmatpush1.bf16.msra.mxu0 %v6272
  %6317 = vmatprep.subr.bf16.mxu0 %v6276
  %6318 = vmatpush1.bf16.msra.mxu0 %v6275
  %6319 = vmatprep.subr.bf16.mxu0 %v6279
  %6320 = vmatpush1.bf16.msra.mxu0 %v6278
  %6321 = vmatprep.subr.bf16.mxu0 0
  %6322 = vmatpush1.bf16.msra.mxu0 0
  %6323 = vmatprep.subr.bf16.mxu0 0
  %6324 = vmatpush1.bf16.msra.mxu0 0
  %6325 = vmatprep.subr.bf16.mxu0 0
  %6326 = vmatpush1.bf16.msra.mxu0 0
  %6327 = vmatprep.subr.bf16.mxu0 0
  %6328 = vmatpush1.bf16.msra.mxu0 0
  %6329 = vmatprep.subr.bf16.mxu0 0
  %6330 = vmatpush1.bf16.msra.mxu0 0
  %6331 = vmatprep.subr.bf16.mxu0 0
  %6332 = vmatpush1.bf16.msra.mxu0 0
  %6333 = vmatprep.subr.bf16.mxu0 0
  %6334 = vmatpush1.bf16.msra.mxu0 0
  %6335 = vmatprep.subr.bf16.mxu0 0
  %6336 = vmatpush1.bf16.msra.mxu0 0
  %6337 = vmatprep.mubr.bf16.mxu0 0
  %6338 = vmatmul.mubr.bf16.gmra.mrb[0].mxu0 %v6144
  %v6339 = vpop.f32.mrb[0].mxu0
  %v6340 = vadd.f32 %v58, %v6339
  %v6341 = vpop.f32.mrb[0].mxu0
  %v6342 = vadd.f32 %v59, %v6341
  %v6343 = vpop.f32.mrb[0].mxu0
  %v6344 = vpop.f32.mrb[0].mxu0
  %6345 = vdwg.mxu0
  %6346 = vmatprep.subr.bf16.mxu0 0
  %6347 = vmatpush1.bf16.msra.mxu0 %v6259
  %6348 = vmatprep.subr.bf16.mxu0 0
  %6349 = vmatpush1.bf16.msra.mxu0 %v6262
  %6350 = vmatprep.subr.bf16.mxu0 0
  %6351 = vmatpush1.bf16.msra.mxu0 %v6265
  %6352 = vmatprep.subr.bf16.mxu0 0
  %6353 = vmatpush1.bf16.msra.mxu0 %v6268
  %6354 = vmatprep.subr.bf16.mxu0 0
  %6355 = vmatpush1.bf16.msra.mxu0 %v6271
  %6356 = vmatprep.subr.bf16.mxu0 0
  %6357 = vmatpush1.bf16.msra.mxu0 %v6274
  %6358 = vmatprep.subr.bf16.mxu0 0
  %6359 = vmatpush1.bf16.msra.mxu0 %v6277
  %6360 = vmatprep.subr.bf16.mxu0 0
  %6361 = vmatpush1.bf16.msra.mxu0 %v6280
  %6362 = vmatprep.subr.bf16.mxu0 0
  %6363 = vmatpush1.bf16.msra.mxu0 0
  %6364 = vmatprep.subr.bf16.mxu0 0
  %6365 = vmatpush1.bf16.msra.mxu0 0
  %6366 = vmatprep.subr.bf16.mxu0 0
  %6367 = vmatpush1.bf16.msra.mxu0 0
  %6368 = vmatprep.subr.bf16.mxu0 0
  %6369 = vmatpush1.bf16.msra.mxu0 0
  %6370 = vmatprep.subr.bf16.mxu0 0
  %6371 = vmatpush1.bf16.msra.mxu0 0
  %6372 = vmatprep.subr.bf16.mxu0 0
  %6373 = vmatpush1.bf16.msra.mxu0 0
  %6374 = vmatprep.subr.bf16.mxu0 0
  %6375 = vmatpush1.bf16.msra.mxu0 0
  %6376 = vmatprep.subr.bf16.mxu0 0
  %6377 = vmatpush1.bf16.msra.mxu0 0
  %6378 = vmatprep.mubr.bf16.mxu0 0
  %6379 = vmatmul.mubr.bf16.gmra.mrb[0].mxu0 %v6144
  %v6380 = vpop.f32.mrb[0].mxu0
  %v6381 = vadd.f32 %v60, %v6380
  %v6382 = vpop.f32.mrb[0].mxu0
  %v6383 = vpop.f32.mrb[0].mxu0
  %v6384 = vpop.f32.mrb[0].mxu0
  %6385 = vdwg.mxu0
  %v6386 = vadd.f32 %v6141, %v6340
  %v6387 = vxor.u32 %v6386, 2147483648
  %v6388 = vmul.f32 %v6387, 1.442695
  %v6389 = vpow.pop %v6388
  %v6390 = vadd.f32 %v6389, 1.0
  %v6391 = vrcp.pop %v6390
  %v6392 = vmul.f32 1.0, %v6391
  %v6393 = vadd.f32 %v6142, %v6342
  %v6394 = vxor.u32 %v6393, 2147483648
  %v6395 = vmul.f32 %v6394, 1.442695
  %v6396 = vpow.pop %v6395
  %v6397 = vadd.f32 %v6396, 1.0
  %v6398 = vrcp.pop %v6397
  %v6399 = vmul.f32 1.0, %v6398
  %v6400 = vmul.f32 %v6392, %v6381
  %v6401 = vadd.f32 %v6143, %v6400
  %v6402 = vtanh.pop %v6401
  %v6403 = vsub.f32 1.0, %v6399
  %v6404 = vmul.f32 %v6403, %v6402
  %v6405 = vmul.f32 %v6399, %v6140
  %v6406 = vadd.f32 %v6404, %v6405
  %6407 = vst [vmem:[%s17] sm:$0xff] %v6406
  %v6408 = vpack.c.bf16 %v6406, %v6406
  %v6409 = vld [vmem:[%s13] sm:$0xf]
  %v6410 = vld [vmem:[%s13 + $0x4] sm:$0xf]
  %v6411 = vld [vmem:[%s13 + $0x8] sm:$0xf]
  %v6412 = vld [vmem:[%s13 + $0xc] sm:$0xf]
  %v6413 = vld [vmem:[%s13 + $0x10] sm:$0xf]
  %v6414 = vld [vmem:[%s13 + $0x14] sm:$0xf]
  %v6415 = vld [vmem:[%s13 + $0x18] sm:$0xf]
  %v6416 = vld [vmem:[%s13 + $0x1c] sm:$0xf]
  %v6417 = vld [vmem:[%s13 + $0x20] sm:$0xf]
  %v6418 = vld [vmem:[%s13 + $0x24] sm:$0xf]
  %v6419 = vld [vmem:[%s13 + $0x28] sm:$0xf]
  %v6420 = vld [vmem:[%s13 + $0x2c] sm:$0xf]
  %v6421 = vld [vmem:[%s13 + $0x30] sm:$0xf]
  %v6422 = vld [vmem:[%s13 + $0x34] sm:$0xf]
  %v6423 = vld [vmem:[%s13 + $0x38] sm:$0xf]
  %v6424 = vld [vmem:[%s13 + $0x3c] sm:$0xf]
  %v6441 = vunpack.c.l.b16 %v6409
  %v6442 = vunpack.c.l.b16 %v6410
  %v6443 = vunpack.c.l.b16 %v6411
  %v6444 = vunpack.c.l.b16 %v6412
  %v6445 = vunpack.c.l.b16 %v6413
  %v6446 = vunpack.c.l.b16 %v6414
  %v6447 = vunpack.c.l.b16 %v6415
  %v6448 = vunpack.c.l.b16 %v6416
  %v6449 = vunpack.c.l.b16 %v6417
  %v6450 = vunpack.c.l.b16 %v6418
  %v6451 = vunpack.c.l.b16 %v6419
  %v6452 = vunpack.c.l.b16 %v6420
  %v6453 = vunpack.c.l.b16 %v6421
  %v6454 = vunpack.c.l.b16 %v6422
  %v6455 = vunpack.c.l.b16 %v6423
  %v6456 = vunpack.c.l.b16 %v6424
  %v6457 = vpack.c.b16 %v6442, %v6441
  %v6458 = vpack.c.b16 %v6444, %v6443
  %v6459 = vpack.c.b16 %v6446, %v6445
  %v6460 = vpack.c.b16 %v6448, %v6447
  %v6461 = vpack.c.b16 %v6450, %v6449
  %v6462 = vpack.c.b16 %v6452, %v6451
  %v6463 = vpack.c.b16 %v6454, %v6453
  %v6464 = vpack.c.b16 %v6456, %v6455
  %6473 = vmatprep.subr.bf16.mxu0 0
  %6474 = vmatpush1.bf16.msra.mxu0 %v6457
  %6475 = vmatprep.subr.bf16.mxu0 0
  %6476 = vmatpush1.bf16.msra.mxu0 %v6458
  %6477 = vmatprep.subr.bf16.mxu0 0
  %6478 = vmatpush1.bf16.msra.mxu0 %v6459
  %6479 = vmatprep.subr.bf16.mxu0 0
  %6480 = vmatpush1.bf16.msra.mxu0 %v6460
  %6481 = vmatprep.subr.bf16.mxu0 0
  %6482 = vmatpush1.bf16.msra.mxu0 %v6461
  %6483 = vmatprep.subr.bf16.mxu0 0
  %6484 = vmatpush1.bf16.msra.mxu0 %v6462
  %6485 = vmatprep.subr.bf16.mxu0 0
  %6486 = vmatpush1.bf16.msra.mxu0 %v6463
  %6487 = vmatprep.subr.bf16.mxu0 0
  %6488 = vmatpush1.bf16.msra.mxu0 %v6464
  %6489 = vmatprep.subr.bf16.mxu0 0
  %6490 = vmatpush1.bf16.msra.mxu0 0
  %6491 = vmatprep.subr.bf16.mxu0 0
  %6492 = vmatpush1.bf16.msra.mxu0 0
  %6493 = vmatprep.subr.bf16.mxu0 0
  %6494 = vmatpush1.bf16.msra.mxu0 0
  %6495 = vmatprep.subr.bf16.mxu0 0
  %6496 = vmatpush1.bf16.msra.mxu0 0
  %6497 = vmatprep.subr.bf16.mxu0 0
  %6498 = vmatpush1.bf16.msra.mxu0 0
  %6499 = vmatprep.subr.bf16.mxu0 0
  %6500 = vmatpush1.bf16.msra.mxu0 0
  %6501 = vmatprep.subr.bf16.mxu0 0
  %6502 = vmatpush1.bf16.msra.mxu0 0
  %6503 = vmatprep.subr.bf16.mxu0 0
  %6504 = vmatpush1.bf16.msra.mxu0 0
  %6505 = vmatprep.mubr.bf16.mxu0 0
  %6506 = vmatmul.mubr.bf16.gmra.mrb[0].mxu0 %v6408
  %v6507 = vpop.f32.mrb[0].mxu0
  %v6508 = vadd.f32 %v61, %v6507
  %v6509 = vpop.f32.mrb[0].mxu0
  %v6510 = vpop.f32.mrb[0].mxu0
  %v6511 = vpop.f32.mrb[0].mxu0
  %6512 = vdwg.mxu0
  %6513 = vst [vmem:[%s18] sm:$0xff] %v6508
  %s6514 = scalar_lea.vmem %s6, 24
  %v6515 = vld [vmem:[%s6514] sm:$0xff]
  %v6516 = vld [vmem:[%s6514 + $0x8] sm:$0xff]
  %v6517 = vld [vmem:[%s6514 + $0x10] sm:$0xff]
  %v6518 = vld [vmem:[%s9] sm:$0xff]
  %v6519 = vld [vmem:[%s9 + $0x8] sm:$0xf]
  %v6520 = vld [vmem:[%s9 + $0xc] sm:$0xff]
  %v6521 = vld [vmem:[%s9 + $0x14] sm:$0xf]
  %v6522 = vld [vmem:[%s9 + $0x18] sm:$0xff]
  %v6523 = vld [vmem:[%s9 + $0x20] sm:$0xf]
  %v6524 = vld [vmem:[%s9 + $0x24] sm:$0xff]
  %v6525 = vld [vmem:[%s9 + $0x2c] sm:$0xf]
  %v6526 = vld [vmem:[%s9 + $0x30] sm:$0xff]
  %v6527 = vld [vmem:[%s9 + $0x38] sm:$0xf]
  %v6528 = vld [vmem:[%s9 + $0x3c] sm:$0xff]
  %v6529 = vld [vmem:[%s9 + $0x44] sm:$0xf]
  %v6530 = vld [vmem:[%s9 + $0x48] sm:$0xff]
  %v6531 = vld [vmem:[%s9 + $0x50] sm:$0xf]
  %v6532 = vld [vmem:[%s9 + $0x54] sm:$0xff]
  %v6533 = vld [vmem:[%s9 + $0x5c] sm:$0xf]
  %v6534 = vld [vmem:[%s9 + $0x60] sm:$0xff]
  %v6535 = vld [vmem:[%s9 + $0x68] sm:$0xf]
  %v6536 = vld [vmem:[%s9 + $0x6c] sm:$0xff]
  %v6537 = vld [vmem:[%s9 + $0x74] sm:$0xf]
  %v6538 = vld [vmem:[%s9 + $0x78] sm:$0xff]
  %v6539 = vld [vmem:[%s9 + $0x80] sm:$0xf]
  %v6540 = vld [vmem:[%s9 + $0x84] sm:$0xff]
  %v6541 = vld [vmem:[%s9 + $0x8c] sm:$0xf]
  %v6542 = vld [vmem:[%s9 + $0x90] sm:$0xff]
  %v6543 = vld [vmem:[%s9 + $0x98] sm:$0xf]
  %v6544 = vld [vmem:[%s9 + $0x9c] sm:$0xff]
  %v6545 = vld [vmem:[%s9 + $0xa4] sm:$0xf]
  %v6546 = vld [vmem:[%s9 + $0xa8] sm:$0xff]
  %v6547 = vld [vmem:[%s9 + $0xb0] sm:$0xf]
  %v6548 = vld [vmem:[%s9 + $0xb4] sm:$0xff]
  %v6549 = vld [vmem:[%s9 + $0xbc] sm:$0xf]
  %v6582 = vunpack.c.l.b16 %v6518
  %v6583 = vunpack.c.h.b16 %v6518
  %v6584 = vunpack.c.l.b16 %v6519
  %v6585 = vunpack.c.l.b16 %v6520
  %v6586 = vunpack.c.h.b16 %v6520
  %v6587 = vunpack.c.l.b16 %v6521
  %v6588 = vunpack.c.l.b16 %v6522
  %v6589 = vunpack.c.h.b16 %v6522
  %v6590 = vunpack.c.l.b16 %v6523
  %v6591 = vunpack.c.l.b16 %v6524
  %v6592 = vunpack.c.h.b16 %v6524
  %v6593 = vunpack.c.l.b16 %v6525
  %v6594 = vunpack.c.l.b16 %v6526
  %v6595 = vunpack.c.h.b16 %v6526
  %v6596 = vunpack.c.l.b16 %v6527
  %v6597 = vunpack.c.l.b16 %v6528
  %v6598 = vunpack.c.h.b16 %v6528
  %v6599 = vunpack.c.l.b16 %v6529
  %v6600 = vunpack.c.l.b16 %v6530
  %v6601 = vunpack.c.h.b16 %v6530
  %v6602 = vunpack.c.l.b16 %v6531
  %v6603 = vunpack.c.l.b16 %v6532
  %v6604 = vunpack.c.h.b16 %v6532
  %v6605 = vunpack.c.l.b16 %v6533
  %v6606 = vunpack.c.l.b16 %v6534
  %v6607 = vunpack.c.h.b16 %v6534
  %v6608 = vunpack.c.l.b16 %v6535
  %v6609 = vunpack.c.l.b16 %v6536
  %v6610 = vunpack.c.h.b16 %v6536
  %v6611 = vunpack.c.l.b16 %v6537
  %v6612 = vunpack.c.l.b16 %v6538
  %v6613 = vunpack.c.h.b16 %v6538
  %v6614 = vunpack.c.l.b16 %v6539
  %v6615 = vunpack.c.l.b16 %v6540
  %v6616 = vunpack.c.h.b16 %v6540
  %v6617 = vunpack.c.l.b16 %v6541
  %v6618 = vunpack.c.l.b16 %v6542
  %v6619 = vunpack.c.h.b16 %v6542
  %v6620 = vunpack.c.l.b16 %v6543
  %v6621 = vunpack.c.l.b16 %v6544
  %v6622 = vunpack.c.h.b16 %v6544
  %v6623 = vunpack.c.l.b16 %v6545
  %v6624 = vunpack.c.l.b16 %v6546
  %v6625 = vunpack.c.h.b16 %v6546
  %v6626 = vunpack.c.l.b16 %v6547
  %v6627 = vunpack.c.l.b16 %v6548
  %v6628 = vunpack.c.h.b16 %v6548
  %v6629 = vunpack.c.l.b16 %v6549
  %v6630 = vpack.c.b16 %v6585, %v6582
  %v6631 = vpack.c.b16 %v6586, %v6583
  %v6632 = vpack.c.b16 %v6587, %v6584
  %v6633 = vpack.c.b16 %v6591, %v6588
  %v6634 = vpack.c.b16 %v6592, %v6589
  %v6635 = vpack.c.b16 %v6593, %v6590
  %v6636 = vpack.c.b16 %v6597, %v6594
  %v6637 = vpack.c.b16 %v6598, %v6595
  %v6638 = vpack.c.b16 %v6599, %v6596
  %v6639 = vpack.c.b16 %v6603, %v6600
  %v6640 = vpack.c.b16 %v6604, %v6601
  %v6641 = vpack.c.b16 %v6605, %v6602
  %v6642 = vpack.c.b16 %v6609, %v6606
  %v6643 = vpack.c.b16 %v6610, %v6607
  %v6644 = vpack.c.b16 %v6611, %v6608
  %v6645 = vpack.c.b16 %v6615, %v6612
  %v6646 = vpack.c.b16 %v6616, %v6613
  %v6647 = vpack.c.b16 %v6617, %v6614
  %v6648 = vpack.c.b16 %v6621, %v6618
  %v6649 = vpack.c.b16 %v6622, %v6619
  %v6650 = vpack.c.b16 %v6623, %v6620
  %v6651 = vpack.c.b16 %v6627, %v6624
  %v6652 = vpack.c.b16 %v6628, %v6625
  %v6653 = vpack.c.b16 %v6629, %v6626
  %6678 = vmatprep.subr.bf16.mxu0 %v6631
  %6679 = vmatpush1.bf16.msra.mxu0 %v6630
  %6680 = vmatprep.subr.bf16.mxu0 %v6634
  %6681 = vmatpush1.bf16.msra.mxu0 %v6633
  %6682 = vmatprep.subr.bf16.mxu0 %v6637
  %6683 = vmatpush1.bf16.msra.mxu0 %v6636
  %6684 = vmatprep.subr.bf16.mxu0 %v6640
  %6685 = vmatpush1.bf16.msra.mxu0 %v6639
  %6686 = vmatprep.subr.bf16.mxu0 %v6643
  %6687 = vmatpush1.bf16.msra.mxu0 %v6642
  %6688 = vmatprep.subr.bf16.mxu0 %v6646
  %6689 = vmatpush1.bf16.msra.mxu0 %v6645
  %6690 = vmatprep.subr.bf16.mxu0 %v6649
  %6691 = vmatpush1.bf16.msra.mxu0 %v6648
  %6692 = vmatprep.subr.bf16.mxu0 %v6652
  %6693 = vmatpush1.bf16.msra.mxu0 %v6651
  %6694 = vmatprep.subr.bf16.mxu0 0
  %6695 = vmatpush1.bf16.msra.mxu0 0
  %6696 = vmatprep.subr.bf16.mxu0 0
  %6697 = vmatpush1.bf16.msra.mxu0 0
  %6698 = vmatprep.subr.bf16.mxu0 0
  %6699 = vmatpush1.bf16.msra.mxu0 0
  %6700 = vmatprep.subr.bf16.mxu0 0
  %6701 = vmatpush1.bf16.msra.mxu0 0
  %6702 = vmatprep.subr.bf16.mxu0 0
  %6703 = vmatpush1.bf16.msra.mxu0 0
  %6704 = vmatprep.subr.bf16.mxu0 0
  %6705 = vmatpush1.bf16.msra.mxu0 0
  %6706 = vmatprep.subr.bf16.mxu0 0
  %6707 = vmatpush1.bf16.msra.mxu0 0
  %6708 = vmatprep.subr.bf16.mxu0 0
  %6709 = vmatpush1.bf16.msra.mxu0 0
  %6710 = vmatprep.mubr.bf16.mxu0 0
  %6711 = vmatmul.mubr.bf16.gmra.mrb[0].mxu0 %v6408
  %v6712 = vpop.f32.mrb[0].mxu0
  %v6713 = vadd.f32 %v58, %v6712
  %v6714 = vpop.f32.mrb[0].mxu0
  %v6715 = vadd.f32 %v59, %v6714
  %v6716 = vpop.f32.mrb[0].mxu0
  %v6717 = vpop.f32.mrb[0].mxu0
  %6718 = vdwg.mxu0
  %6719 = vmatprep.subr.bf16.mxu0 0
  %6720 = vmatpush1.bf16.msra.mxu0 %v6632
  %6721 = vmatprep.subr.bf16.mxu0 0
  %6722 = vmatpush1.bf16.msra.mxu0 %v6635
  %6723 = vmatprep.subr.bf16.mxu0 0
  %6724 = vmatpush1.bf16.msra.mxu0 %v6638
  %6725 = vmatprep.subr.bf16.mxu0 0
  %6726 = vmatpush1.bf16.msra.mxu0 %v6641
  %6727 = vmatprep.subr.bf16.mxu0 0
  %6728 = vmatpush1.bf16.msra.mxu0 %v6644
  %6729 = vmatprep.subr.bf16.mxu0 0
  %6730 = vmatpush1.bf16.msra.mxu0 %v6647
  %6731 = vmatprep.subr.bf16.mxu0 0
  %6732 = vmatpush1.bf16.msra.mxu0 %v6650
  %6733 = vmatprep.subr.bf16.mxu0 0
  %6734 = vmatpush1.bf16.msra.mxu0 %v6653
  %6735 = vmatprep.subr.bf16.mxu0 0
  %6736 = vmatpush1.bf16.msra.mxu0 0
  %6737 = vmatprep.subr.bf16.mxu0 0
  %6738 = vmatpush1.bf16.msra.mxu0 0
  %6739 = vmatprep.subr.bf16.mxu0 0
  %6740 = vmatpush1.bf16.msra.mxu0 0
  %6741 = vmatprep.subr.bf16.mxu0 0
  %6742 = vmatpush1.bf16.msra.mxu0 0
  %6743 = vmatprep.subr.bf16.mxu0 0
  %6744 = vmatpush1.bf16.msra.mxu0 0
  %6745 = vmatprep.subr.bf16.mxu0 0
  %6746 = vmatpush1.bf16.msra.mxu0 0
  %6747 = vmatprep.subr.bf16.mxu0 0
  %6748 = vmatpush1.bf16.msra.mxu0 0
  %6749 = vmatprep.subr.bf16.mxu0 0
  %6750 = vmatpush1.bf16.msra.mxu0 0
  %6751 = vmatprep.mubr.bf16.mxu0 0
  %6752 = vmatmul.mubr.bf16.gmra.mrb[0].mxu0 %v6408
  %v6753 = vpop.f32.mrb[0].mxu0
  %v6754 = vadd.f32 %v60, %v6753
  %v6755 = vpop.f32.mrb[0].mxu0
  %v6756 = vpop.f32.mrb[0].mxu0
  %v6757 = vpop.f32.mrb[0].mxu0
  %6758 = vdwg.mxu0
  %v6759 = vadd.f32 %v6515, %v6713
  %v6760 = vxor.u32 %v6759, 2147483648
  %v6761 = vmul.f32 %v6760, 1.442695
  %v6762 = vpow.pop %v6761
  %v6763 = vadd.f32 %v6762, 1.0
  %v6764 = vrcp.pop %v6763
  %v6765 = vmul.f32 1.0, %v6764
  %v6766 = vadd.f32 %v6516, %v6715
  %v6767 = vxor.u32 %v6766, 2147483648
  %v6768 = vmul.f32 %v6767, 1.442695
  %v6769 = vpow.pop %v6768
  %v6770 = vadd.f32 %v6769, 1.0
  %v6771 = vrcp.pop %v6770
  %v6772 = vmul.f32 1.0, %v6771
  %v6773 = vmul.f32 %v6765, %v6754
  %v6774 = vadd.f32 %v6517, %v6773
  %v6775 = vtanh.pop %v6774
  %v6776 = vsub.f32 1.0, %v6772
  %v6777 = vmul.f32 %v6776, %v6775
  %v6778 = vmul.f32 %v6772, %v6406
  %v6779 = vadd.f32 %v6777, %v6778
  %s6780 = scalar_lea.vmem %s17, 8
  %6781 = vst [vmem:[%s6780] sm:$0xff] %v6779
  %v6782 = vpack.c.bf16 %v6779, %v6779
  %v6783 = vld [vmem:[%s13] sm:$0xf]
  %v6784 = vld [vmem:[%s13 + $0x4] sm:$0xf]
  %v6785 = vld [vmem:[%s13 + $0x8] sm:$0xf]
  %v6786 = vld [vmem:[%s13 + $0xc] sm:$0xf]
  %v6787 = vld [vmem:[%s13 + $0x10] sm:$0xf]
  %v6788 = vld [vmem:[%s13 + $0x14] sm:$0xf]
  %v6789 = vld [vmem:[%s13 + $0x18] sm:$0xf]
  %v6790 = vld [vmem:[%s13 + $0x1c] sm:$0xf]
  %v6791 = vld [vmem:[%s13 + $0x20] sm:$0xf]
  %v6792 = vld [vmem:[%s13 + $0x24] sm:$0xf]
  %v6793 = vld [vmem:[%s13 + $0x28] sm:$0xf]
  %v6794 = vld [vmem:[%s13 + $0x2c] sm:$0xf]
  %v6795 = vld [vmem:[%s13 + $0x30] sm:$0xf]
  %v6796 = vld [vmem:[%s13 + $0x34] sm:$0xf]
  %v6797 = vld [vmem:[%s13 + $0x38] sm:$0xf]
  %v6798 = vld [vmem:[%s13 + $0x3c] sm:$0xf]
  %v6815 = vunpack.c.l.b16 %v6783
  %v6816 = vunpack.c.l.b16 %v6784
  %v6817 = vunpack.c.l.b16 %v6785
  %v6818 = vunpack.c.l.b16 %v6786
  %v6819 = vunpack.c.l.b16 %v6787
  %v6820 = vunpack.c.l.b16 %v6788
  %v6821 = vunpack.c.l.b16 %v6789
  %v6822 = vunpack.c.l.b16 %v6790
  %v6823 = vunpack.c.l.b16 %v6791
  %v6824 = vunpack.c.l.b16 %v6792
  %v6825 = vunpack.c.l.b16 %v6793
  %v6826 = vunpack.c.l.b16 %v6794
  %v6827 = vunpack.c.l.b16 %v6795
  %v6828 = vunpack.c.l.b16 %v6796
  %v6829 = vunpack.c.l.b16 %v6797
  %v6830 = vunpack.c.l.b16 %v6798
  %v6831 = vpack.c.b16 %v6816, %v6815
  %v6832 = vpack.c.b16 %v6818, %v6817
  %v6833 = vpack.c.b16 %v6820, %v6819
  %v6834 = vpack.c.b16 %v6822, %v6821
  %v6835 = vpack.c.b16 %v6824, %v6823
  %v6836 = vpack.c.b16 %v6826, %v6825
  %v6837 = vpack.c.b16 %v6828, %v6827
  %v6838 = vpack.c.b16 %v6830, %v6829
  %6847 = vmatprep.subr.bf16.mxu0 0
  %6848 = vmatpush1.bf16.msra.mxu0 %v6831
  %6849 = vmatprep.subr.bf16.mxu0 0
  %6850 = vmatpush1.bf16.msra.mxu0 %v6832
  %6851 = vmatprep.subr.bf16.mxu0 0
  %6852 = vmatpush1.bf16.msra.mxu0 %v6833
  %6853 = vmatprep.subr.bf16.mxu0 0
  %6854 = vmatpush1.bf16.msra.mxu0 %v6834
  %6855 = vmatprep.subr.bf16.mxu0 0
  %6856 = vmatpush1.bf16.msra.mxu0 %v6835
  %6857 = vmatprep.subr.bf16.mxu0 0
  %6858 = vmatpush1.bf16.msra.mxu0 %v6836
  %6859 = vmatprep.subr.bf16.mxu0 0
  %6860 = vmatpush1.bf16.msra.mxu0 %v6837
  %6861 = vmatprep.subr.bf16.mxu0 0
  %6862 = vmatpush1.bf16.msra.mxu0 %v6838
  %6863 = vmatprep.subr.bf16.mxu0 0
  %6864 = vmatpush1.bf16.msra.mxu0 0
  %6865 = vmatprep.subr.bf16.mxu0 0
  %6866 = vmatpush1.bf16.msra.mxu0 0
  %6867 = vmatprep.subr.bf16.mxu0 0
  %6868 = vmatpush1.bf16.msra.mxu0 0
  %6869 = vmatprep.subr.bf16.mxu0 0
  %6870 = vmatpush1.bf16.msra.mxu0 0
  %6871 = vmatprep.subr.bf16.mxu0 0
  %6872 = vmatpush1.bf16.msra.mxu0 0
  %6873 = vmatprep.subr.bf16.mxu0 0
  %6874 = vmatpush1.bf16.msra.mxu0 0
  %6875 = vmatprep.subr.bf16.mxu0 0
  %6876 = vmatpush1.bf16.msra.mxu0 0
  %6877 = vmatprep.subr.bf16.mxu0 0
  %6878 = vmatpush1.bf16.msra.mxu0 0
  %6879 = vmatprep.mubr.bf16.mxu0 0
  %6880 = vmatmul.mubr.bf16.gmra.mrb[0].mxu0 %v6782
  %v6881 = vpop.f32.mrb[0].mxu0
  %v6882 = vadd.f32 %v61, %v6881
  %v6883 = vpop.f32.mrb[0].mxu0
  %v6884 = vpop.f32.mrb[0].mxu0
  %v6885 = vpop.f32.mrb[0].mxu0
  %6886 = vdwg.mxu0
  %s6887 = scalar_lea.vmem %s18, 8
  %6888 = vst [vmem:[%s6887] sm:$0xff] %v6882
  %s6889 = scalar_lea.vmem %s6, 48
  %v6890 = vld [vmem:[%s6889] sm:$0xff]
  %v6891 = vld [vmem:[%s6889 + $0x8] sm:$0xff]
  %v6892 = vld [vmem:[%s6889 + $0x10] sm:$0xff]
  %v6893 = vld [vmem:[%s9] sm:$0xff]
  %v6894 = vld [vmem:[%s9 + $0x8] sm:$0xf]
  %v6895 = vld [vmem:[%s9 + $0xc] sm:$0xff]
  %v6896 = vld [vmem:[%s9 + $0x14] sm:$0xf]
  %v6897 = vld [vmem:[%s9 + $0x18] sm:$0xff]
  %v6898 = vld [vmem:[%s9 + $0x20] sm:$0xf]
  %v6899 = vld [vmem:[%s9 + $0x24] sm:$0xff]
  %v6900 = vld [vmem:[%s9 + $0x2c] sm:$0xf]
  %v6901 = vld [vmem:[%s9 + $0x30] sm:$0xff]
  %v6902 = vld [vmem:[%s9 + $0x38] sm:$0xf]
  %v6903 = vld [vmem:[%s9 + $0x3c] sm:$0xff]
  %v6904 = vld [vmem:[%s9 + $0x44] sm:$0xf]
  %v6905 = vld [vmem:[%s9 + $0x48] sm:$0xff]
  %v6906 = vld [vmem:[%s9 + $0x50] sm:$0xf]
  %v6907 = vld [vmem:[%s9 + $0x54] sm:$0xff]
  %v6908 = vld [vmem:[%s9 + $0x5c] sm:$0xf]
  %v6909 = vld [vmem:[%s9 + $0x60] sm:$0xff]
  %v6910 = vld [vmem:[%s9 + $0x68] sm:$0xf]
  %v6911 = vld [vmem:[%s9 + $0x6c] sm:$0xff]
  %v6912 = vld [vmem:[%s9 + $0x74] sm:$0xf]
  %v6913 = vld [vmem:[%s9 + $0x78] sm:$0xff]
  %v6914 = vld [vmem:[%s9 + $0x80] sm:$0xf]
  %v6915 = vld [vmem:[%s9 + $0x84] sm:$0xff]
  %v6916 = vld [vmem:[%s9 + $0x8c] sm:$0xf]
  %v6917 = vld [vmem:[%s9 + $0x90] sm:$0xff]
  %v6918 = vld [vmem:[%s9 + $0x98] sm:$0xf]
  %v6919 = vld [vmem:[%s9 + $0x9c] sm:$0xff]
  %v6920 = vld [vmem:[%s9 + $0xa4] sm:$0xf]
  %v6921 = vld [vmem:[%s9 + $0xa8] sm:$0xff]
  %v6922 = vld [vmem:[%s9 + $0xb0] sm:$0xf]
  %v6923 = vld [vmem:[%s9 + $0xb4] sm:$0xff]
  %v6924 = vld [vmem:[%s9 + $0xbc] sm:$0xf]
  %v6957 = vunpack.c.l.b16 %v6893
  %v6958 = vunpack.c.h.b16 %v6893
  %v6959 = vunpack.c.l.b16 %v6894
  %v6960 = vunpack.c.l.b16 %v6895
  %v6961 = vunpack.c.h.b16 %v6895
  %v6962 = vunpack.c.l.b16 %v6896
  %v6963 = vunpack.c.l.b16 %v6897
  %v6964 = vunpack.c.h.b16 %v6897
  %v6965 = vunpack.c.l.b16 %v6898
  %v6966 = vunpack.c.l.b16 %v6899
  %v6967 = vunpack.c.h.b16 %v6899
  %v6968 = vunpack.c.l.b16 %v6900
  %v6969 = vunpack.c.l.b16 %v6901
  %v6970 = vunpack.c.h.b16 %v6901
  %v6971 = vunpack.c.l.b16 %v6902
  %v6972 = vunpack.c.l.b16 %v6903
  %v6973 = vunpack.c.h.b16 %v6903
  %v6974 = vunpack.c.l.b16 %v6904
  %v6975 = vunpack.c.l.b16 %v6905
  %v6976 = vunpack.c.h.b16 %v6905
  %v6977 = vunpack.c.l.b16 %v6906
  %v6978 = vunpack.c.l.b16 %v6907
  %v6979 = vunpack.c.h.b16 %v6907
  %v6980 = vunpack.c.l.b16 %v6908
  %v6981 = vunpack.c.l.b16 %v6909
  %v6982 = vunpack.c.h.b16 %v6909
  %v6983 = vunpack.c.l.b16 %v6910
  %v6984 = vunpack.c.l.b16 %v6911
  %v6985 = vunpack.c.h.b16 %v6911
  %v6986 = vunpack.c.l.b16 %v6912
  %v6987 = vunpack.c.l.b16 %v6913
  %v6988 = vunpack.c.h.b16 %v6913
  %v6989 = vunpack.c.l.b16 %v6914
  %v6990 = vunpack.c.l.b16 %v6915
  %v6991 = vunpack.c.h.b16 %v6915
  %v6992 = vunpack.c.l.b16 %v6916
  %v6993 = vunpack.c.l.b16 %v6917
  %v6994 = vunpack.c.h.b16 %v6917
  %v6995 = vunpack.c.l.b16 %v6918
  %v6996 = vunpack.c.l.b16 %v6919
  %v6997 = vunpack.c.h.b16 %v6919
  %v6998 = vunpack.c.l.b16 %v6920
  %v6999 = vunpack.c.l.b16 %v6921
  %v7000 = vunpack.c.h.b16 %v6921
  %v7001 = vunpack.c.l.b16 %v6922
  %v7002 = vunpack.c.l.b16 %v6923
  %v7003 = vunpack.c.h.b16 %v6923
  %v7004 = vunpack.c.l.b16 %v6924
  %v7005 = vpack.c.b16 %v6960, %v6957
  %v7006 = vpack.c.b16 %v6961, %v6958
  %v7007 = vpack.c.b16 %v6962, %v6959
  %v7008 = vpack.c.b16 %v6966, %v6963
  %v7009 = vpack.c.b16 %v6967, %v6964
  %v7010 = vpack.c.b16 %v6968, %v6965
  %v7011 = vpack.c.b16 %v6972, %v6969
  %v7012 = vpack.c.b16 %v6973, %v6970
  %v7013 = vpack.c.b16 %v6974, %v6971
  %v7014 = vpack.c.b16 %v6978, %v6975
  %v7015 = vpack.c.b16 %v6979, %v6976
  %v7016 = vpack.c.b16 %v6980, %v6977
  %v7017 = vpack.c.b16 %v6984, %v6981
  %v7018 = vpack.c.b16 %v6985, %v6982
  %v7019 = vpack.c.b16 %v6986, %v6983
  %v7020 = vpack.c.b16 %v6990, %v6987
  %v7021 = vpack.c.b16 %v6991, %v6988
  %v7022 = vpack.c.b16 %v6992, %v6989
  %v7023 = vpack.c.b16 %v6996, %v6993
  %v7024 = vpack.c.b16 %v6997, %v6994
  %v7025 = vpack.c.b16 %v6998, %v6995
  %v7026 = vpack.c.b16 %v7002, %v6999
  %v7027 = vpack.c.b16 %v7003, %v7000
  %v7028 = vpack.c.b16 %v7004, %v7001
  %7053 = vmatprep.subr.bf16.mxu0 %v7006
  %7054 = vmatpush1.bf16.msra.mxu0 %v7005
  %7055 = vmatprep.subr.bf16.mxu0 %v7009
  %7056 = vmatpush1.bf16.msra.mxu0 %v7008
  %7057 = vmatprep.subr.bf16.mxu0 %v7012
  %7058 = vmatpush1.bf16.msra.mxu0 %v7011
  %7059 = vmatprep.subr.bf16.mxu0 %v7015
  %7060 = vmatpush1.bf16.msra.mxu0 %v7014
  %7061 = vmatprep.subr.bf16.mxu0 %v7018
  %7062 = vmatpush1.bf16.msra.mxu0 %v7017
  %7063 = vmatprep.subr.bf16.mxu0 %v7021
  %7064 = vmatpush1.bf16.msra.mxu0 %v7020
  %7065 = vmatprep.subr.bf16.mxu0 %v7024
  %7066 = vmatpush1.bf16.msra.mxu0 %v7023
  %7067 = vmatprep.subr.bf16.mxu0 %v7027
  %7068 = vmatpush1.bf16.msra.mxu0 %v7026
  %7069 = vmatprep.subr.bf16.mxu0 0
  %7070 = vmatpush1.bf16.msra.mxu0 0
  %7071 = vmatprep.subr.bf16.mxu0 0
  %7072 = vmatpush1.bf16.msra.mxu0 0
  %7073 = vmatprep.subr.bf16.mxu0 0
  %7074 = vmatpush1.bf16.msra.mxu0 0
  %7075 = vmatprep.subr.bf16.mxu0 0
  %7076 = vmatpush1.bf16.msra.mxu0 0
  %7077 = vmatprep.subr.bf16.mxu0 0
  %7078 = vmatpush1.bf16.msra.mxu0 0
  %7079 = vmatprep.subr.bf16.mxu0 0
  %7080 = vmatpush1.bf16.msra.mxu0 0
  %7081 = vmatprep.subr.bf16.mxu0 0
  %7082 = vmatpush1.bf16.msra.mxu0 0
  %7083 = vmatprep.subr.bf16.mxu0 0
  %7084 = vmatpush1.bf16.msra.mxu0 0
  %7085 = vmatprep.mubr.bf16.mxu0 0
  %7086 = vmatmul.mubr.bf16.gmra.mrb[0].mxu0 %v6782
  %v7087 = vpop.f32.mrb[0].mxu0
  %v7088 = vadd.f32 %v58, %v7087
  %v7089 = vpop.f32.mrb[0].mxu0
  %v7090 = vadd.f32 %v59, %v7089
  %v7091 = vpop.f32.mrb[0].mxu0
  %v7092 = vpop.f32.mrb[0].mxu0
  %7093 = vdwg.mxu0
  %7094 = vmatprep.subr.bf16.mxu0 0
  %7095 = vmatpush1.bf16.msra.mxu0 %v7007
  %7096 = vmatprep.subr.bf16.mxu0 0
  %7097 = vmatpush1.bf16.msra.mxu0 %v7010
  %7098 = vmatprep.subr.bf16.mxu0 0
  %7099 = vmatpush1.bf16.msra.mxu0 %v7013
  %7100 = vmatprep.subr.bf16.mxu0 0
  %7101 = vmatpush1.bf16.msra.mxu0 %v7016
  %7102 = vmatprep.subr.bf16.mxu0 0
  %7103 = vmatpush1.bf16.msra.mxu0 %v7019
  %7104 = vmatprep.subr.bf16.mxu0 0
  %7105 = vmatpush1.bf16.msra.mxu0 %v7022
  %7106 = vmatprep.subr.bf16.mxu0 0
  %7107 = vmatpush1.bf16.msra.mxu0 %v7025
  %7108 = vmatprep.subr.bf16.mxu0 0
  %7109 = vmatpush1.bf16.msra.mxu0 %v7028
  %7110 = vmatprep.subr.bf16.mxu0 0
  %7111 = vmatpush1.bf16.msra.mxu0 0
  %7112 = vmatprep.subr.bf16.mxu0 0
  %7113 = vmatpush1.bf16.msra.mxu0 0
  %7114 = vmatprep.subr.bf16.mxu0 0
  %7115 = vmatpush1.bf16.msra.mxu0 0
  %7116 = vmatprep.subr.bf16.mxu0 0
  %7117 = vmatpush1.bf16.msra.mxu0 0
  %7118 = vmatprep.subr.bf16.mxu0 0
  %7119 = vmatpush1.bf16.msra.mxu0 0
  %7120 = vmatprep.subr.bf16.mxu0 0
  %7121 = vmatpush1.bf16.msra.mxu0 0
  %7122 = vmatprep.subr.bf16.mxu0 0
  %7123 = vmatpush1.bf16.msra.mxu0 0
  %7124 = vmatprep.subr.bf16.mxu0 0
  %7125 = vmatpush1.bf16.msra.mxu0 0
  %7126 = vmatprep.mubr.bf16.mxu0 0
  %7127 = vmatmul.mubr.bf16.gmra.mrb[0].mxu0 %v6782
  %v7128 = vpop.f32.mrb[0].mxu0
  %v7129 = vadd.f32 %v60, %v7128
  %v7130 = vpop.f32.mrb[0].mxu0
  %v7131 = vpop.f32.mrb[0].mxu0
  %v7132 = vpop.f32.mrb[0].mxu0
  %7133 = vdwg.mxu0
  %v7134 = vadd.f32 %v6890, %v7088
  %v7135 = vxor.u32 %v7134, 2147483648
  %v7136 = vmul.f32 %v7135, 1.442695
  %v7137 = vpow.pop %v7136
  %v7138 = vadd.f32 %v7137, 1.0
  %v7139 = vrcp.pop %v7138
  %v7140 = vmul.f32 1.0, %v7139
  %v7141 = vadd.f32 %v6891, %v7090
  %v7142 = vxor.u32 %v7141, 2147483648
  %v7143 = vmul.f32 %v7142, 1.442695
  %v7144 = vpow.pop %v7143
  %v7145 = vadd.f32 %v7144, 1.0
  %v7146 = vrcp.pop %v7145
  %v7147 = vmul.f32 1.0, %v7146
  %v7148 = vmul.f32 %v7140, %v7129
  %v7149 = vadd.f32 %v6892, %v7148
  %v7150 = vtanh.pop %v7149
  %v7151 = vsub.f32 1.0, %v7147
  %v7152 = vmul.f32 %v7151, %v7150
  %v7153 = vmul.f32 %v7147, %v6779
  %v7154 = vadd.f32 %v7152, %v7153
  %s7155 = scalar_lea.vmem %s17, 16
  %7156 = vst [vmem:[%s7155] sm:$0xff] %v7154
  %v7157 = vpack.c.bf16 %v7154, %v7154
  %v7158 = vld [vmem:[%s13] sm:$0xf]
  %v7159 = vld [vmem:[%s13 + $0x4] sm:$0xf]
  %v7160 = vld [vmem:[%s13 + $0x8] sm:$0xf]
  %v7161 = vld [vmem:[%s13 + $0xc] sm:$0xf]
  %v7162 = vld [vmem:[%s13 + $0x10] sm:$0xf]
  %v7163 = vld [vmem:[%s13 + $0x14] sm:$0xf]
  %v7164 = vld [vmem:[%s13 + $0x18] sm:$0xf]
  %v7165 = vld [vmem:[%s13 + $0x1c] sm:$0xf]
  %v7166 = vld [vmem:[%s13 + $0x20] sm:$0xf]
  %v7167 = vld [vmem:[%s13 + $0x24] sm:$0xf]
  %v7168 = vld [vmem:[%s13 + $0x28] sm:$0xf]
  %v7169 = vld [vmem:[%s13 + $0x2c] sm:$0xf]
  %v7170 = vld [vmem:[%s13 + $0x30] sm:$0xf]
  %v7171 = vld [vmem:[%s13 + $0x34] sm:$0xf]
  %v7172 = vld [vmem:[%s13 + $0x38] sm:$0xf]
  %v7173 = vld [vmem:[%s13 + $0x3c] sm:$0xf]
  %v7190 = vunpack.c.l.b16 %v7158
  %v7191 = vunpack.c.l.b16 %v7159
  %v7192 = vunpack.c.l.b16 %v7160
  %v7193 = vunpack.c.l.b16 %v7161
  %v7194 = vunpack.c.l.b16 %v7162
  %v7195 = vunpack.c.l.b16 %v7163
  %v7196 = vunpack.c.l.b16 %v7164
  %v7197 = vunpack.c.l.b16 %v7165
  %v7198 = vunpack.c.l.b16 %v7166
  %v7199 = vunpack.c.l.b16 %v7167
  %v7200 = vunpack.c.l.b16 %v7168
  %v7201 = vunpack.c.l.b16 %v7169
  %v7202 = vunpack.c.l.b16 %v7170
  %v7203 = vunpack.c.l.b16 %v7171
  %v7204 = vunpack.c.l.b16 %v7172
  %v7205 = vunpack.c.l.b16 %v7173
  %v7206 = vpack.c.b16 %v7191, %v7190
  %v7207 = vpack.c.b16 %v7193, %v7192
  %v7208 = vpack.c.b16 %v7195, %v7194
  %v7209 = vpack.c.b16 %v7197, %v7196
  %v7210 = vpack.c.b16 %v7199, %v7198
  %v7211 = vpack.c.b16 %v7201, %v7200
  %v7212 = vpack.c.b16 %v7203, %v7202
  %v7213 = vpack.c.b16 %v7205, %v7204
  %7222 = vmatprep.subr.bf16.mxu0 0
  %7223 = vmatpush1.bf16.msra.mxu0 %v7206
  %7224 = vmatprep.subr.bf16.mxu0 0
  %7225 = vmatpush1.bf16.msra.mxu0 %v7207
  %7226 = vmatprep.subr.bf16.mxu0 0
  %7227 = vmatpush1.bf16.msra.mxu0 %v7208
  %7228 = vmatprep.subr.bf16.mxu0 0
  %7229 = vmatpush1.bf16.msra.mxu0 %v7209
  %7230 = vmatprep.subr.bf16.mxu0 0
  %7231 = vmatpush1.bf16.msra.mxu0 %v7210
  %7232 = vmatprep.subr.bf16.mxu0 0
  %7233 = vmatpush1.bf16.msra.mxu0 %v7211
  %7234 = vmatprep.subr.bf16.mxu0 0
  %7235 = vmatpush1.bf16.msra.mxu0 %v7212
  %7236 = vmatprep.subr.bf16.mxu0 0
  %7237 = vmatpush1.bf16.msra.mxu0 %v7213
  %7238 = vmatprep.subr.bf16.mxu0 0
  %7239 = vmatpush1.bf16.msra.mxu0 0
  %7240 = vmatprep.subr.bf16.mxu0 0
  %7241 = vmatpush1.bf16.msra.mxu0 0
  %7242 = vmatprep.subr.bf16.mxu0 0
  %7243 = vmatpush1.bf16.msra.mxu0 0
  %7244 = vmatprep.subr.bf16.mxu0 0
  %7245 = vmatpush1.bf16.msra.mxu0 0
  %7246 = vmatprep.subr.bf16.mxu0 0
  %7247 = vmatpush1.bf16.msra.mxu0 0
  %7248 = vmatprep.subr.bf16.mxu0 0
  %7249 = vmatpush1.bf16.msra.mxu0 0
  %7250 = vmatprep.subr.bf16.mxu0 0
  %7251 = vmatpush1.bf16.msra.mxu0 0
  %7252 = vmatprep.subr.bf16.mxu0 0
  %7253 = vmatpush1.bf16.msra.mxu0 0
  %7254 = vmatprep.mubr.bf16.mxu0 0
  %7255 = vmatmul.mubr.bf16.gmra.mrb[0].mxu0 %v7157
  %v7256 = vpop.f32.mrb[0].mxu0
  %v7257 = vadd.f32 %v61, %v7256
  %v7258 = vpop.f32.mrb[0].mxu0
  %v7259 = vpop.f32.mrb[0].mxu0
  %v7260 = vpop.f32.mrb[0].mxu0
  %7261 = vdwg.mxu0
  %s7262 = scalar_lea.vmem %s18, 16
  %7263 = vst [vmem:[%s7262] sm:$0xff] %v7257
  %s7264 = scalar_lea.vmem %s6, 72
  %v7265 = vld [vmem:[%s7264] sm:$0xff]
  %v7266 = vld [vmem:[%s7264 + $0x8] sm:$0xff]
  %v7267 = vld [vmem:[%s7264 + $0x10] sm:$0xff]
  %v7268 = vld [vmem:[%s9] sm:$0xff]
  %v7269 = vld [vmem:[%s9 + $0x8] sm:$0xf]
  %v7270 = vld [vmem:[%s9 + $0xc] sm:$0xff]
  %v7271 = vld [vmem:[%s9 + $0x14] sm:$0xf]
  %v7272 = vld [vmem:[%s9 + $0x18] sm:$0xff]
  %v7273 = vld [vmem:[%s9 + $0x20] sm:$0xf]
  %v7274 = vld [vmem:[%s9 + $0x24] sm:$0xff]
  %v7275 = vld [vmem:[%s9 + $0x2c] sm:$0xf]
  %v7276 = vld [vmem:[%s9 + $0x30] sm:$0xff]
  %v7277 = vld [vmem:[%s9 + $0x38] sm:$0xf]
  %v7278 = vld [vmem:[%s9 + $0x3c] sm:$0xff]
  %v7279 = vld [vmem:[%s9 + $0x44] sm:$0xf]
  %v7280 = vld [vmem:[%s9 + $0x48] sm:$0xff]
  %v7281 = vld [vmem:[%s9 + $0x50] sm:$0xf]
  %v7282 = vld [vmem:[%s9 + $0x54] sm:$0xff]
  %v7283 = vld [vmem:[%s9 + $0x5c] sm:$0xf]
  %v7284 = vld [vmem:[%s9 + $0x60] sm:$0xff]
  %v7285 = vld [vmem:[%s9 + $0x68] sm:$0xf]
  %v7286 = vld [vmem:[%s9 + $0x6c] sm:$0xff]
  %v7287 = vld [vmem:[%s9 + $0x74] sm:$0xf]
  %v7288 = vld [vmem:[%s9 + $0x78] sm:$0xff]
  %v7289 = vld [vmem:[%s9 + $0x80] sm:$0xf]
  %v7290 = vld [vmem:[%s9 + $0x84] sm:$0xff]
  %v7291 = vld [vmem:[%s9 + $0x8c] sm:$0xf]
  %v7292 = vld [vmem:[%s9 + $0x90] sm:$0xff]
  %v7293 = vld [vmem:[%s9 + $0x98] sm:$0xf]
  %v7294 = vld [vmem:[%s9 + $0x9c] sm:$0xff]
  %v7295 = vld [vmem:[%s9 + $0xa4] sm:$0xf]
  %v7296 = vld [vmem:[%s9 + $0xa8] sm:$0xff]
  %v7297 = vld [vmem:[%s9 + $0xb0] sm:$0xf]
  %v7298 = vld [vmem:[%s9 + $0xb4] sm:$0xff]
  %v7299 = vld [vmem:[%s9 + $0xbc] sm:$0xf]
  %v7332 = vunpack.c.l.b16 %v7268
  %v7333 = vunpack.c.h.b16 %v7268
  %v7334 = vunpack.c.l.b16 %v7269
  %v7335 = vunpack.c.l.b16 %v7270
  %v7336 = vunpack.c.h.b16 %v7270
  %v7337 = vunpack.c.l.b16 %v7271
  %v7338 = vunpack.c.l.b16 %v7272
  %v7339 = vunpack.c.h.b16 %v7272
  %v7340 = vunpack.c.l.b16 %v7273
  %v7341 = vunpack.c.l.b16 %v7274
  %v7342 = vunpack.c.h.b16 %v7274
  %v7343 = vunpack.c.l.b16 %v7275
  %v7344 = vunpack.c.l.b16 %v7276
  %v7345 = vunpack.c.h.b16 %v7276
  %v7346 = vunpack.c.l.b16 %v7277
  %v7347 = vunpack.c.l.b16 %v7278
  %v7348 = vunpack.c.h.b16 %v7278
  %v7349 = vunpack.c.l.b16 %v7279
  %v7350 = vunpack.c.l.b16 %v7280
  %v7351 = vunpack.c.h.b16 %v7280
  %v7352 = vunpack.c.l.b16 %v7281
  %v7353 = vunpack.c.l.b16 %v7282
  %v7354 = vunpack.c.h.b16 %v7282
  %v7355 = vunpack.c.l.b16 %v7283
  %v7356 = vunpack.c.l.b16 %v7284
  %v7357 = vunpack.c.h.b16 %v7284
  %v7358 = vunpack.c.l.b16 %v7285
  %v7359 = vunpack.c.l.b16 %v7286
  %v7360 = vunpack.c.h.b16 %v7286
  %v7361 = vunpack.c.l.b16 %v7287
  %v7362 = vunpack.c.l.b16 %v7288
  %v7363 = vunpack.c.h.b16 %v7288
  %v7364 = vunpack.c.l.b16 %v7289
  %v7365 = vunpack.c.l.b16 %v7290
  %v7366 = vunpack.c.h.b16 %v7290
  %v7367 = vunpack.c.l.b16 %v7291
  %v7368 = vunpack.c.l.b16 %v7292
  %v7369 = vunpack.c.h.b16 %v7292
  %v7370 = vunpack.c.l.b16 %v7293
  %v7371 = vunpack.c.l.b16 %v7294
  %v7372 = vunpack.c.h.b16 %v7294
  %v7373 = vunpack.c.l.b16 %v7295
  %v7374 = vunpack.c.l.b16 %v7296
  %v7375 = vunpack.c.h.b16 %v7296
  %v7376 = vunpack.c.l.b16 %v7297
  %v7377 = vunpack.c.l.b16 %v7298
  %v7378 = vunpack.c.h.b16 %v7298
  %v7379 = vunpack.c.l.b16 %v7299
  %v7380 = vpack.c.b16 %v7335, %v7332
  %v7381 = vpack.c.b16 %v7336, %v7333
  %v7382 = vpack.c.b16 %v7337, %v7334
  %v7383 = vpack.c.b16 %v7341, %v7338
  %v7384 = vpack.c.b16 %v7342, %v7339
  %v7385 = vpack.c.b16 %v7343, %v7340
  %v7386 = vpack.c.b16 %v7347, %v7344
  %v7387 = vpack.c.b16 %v7348, %v7345
  %v7388 = vpack.c.b16 %v7349, %v7346
  %v7389 = vpack.c.b16 %v7353, %v7350
  %v7390 = vpack.c.b16 %v7354, %v7351
  %v7391 = vpack.c.b16 %v7355, %v7352
  %v7392 = vpack.c.b16 %v7359, %v7356
  %v7393 = vpack.c.b16 %v7360, %v7357
  %v7394 = vpack.c.b16 %v7361, %v7358
  %v7395 = vpack.c.b16 %v7365, %v7362
  %v7396 = vpack.c.b16 %v7366, %v7363
  %v7397 = vpack.c.b16 %v7367, %v7364
  %v7398 = vpack.c.b16 %v7371, %v7368
  %v7399 = vpack.c.b16 %v7372, %v7369
  %v7400 = vpack.c.b16 %v7373, %v7370
  %v7401 = vpack.c.b16 %v7377, %v7374
  %v7402 = vpack.c.b16 %v7378, %v7375
  %v7403 = vpack.c.b16 %v7379, %v7376
  %7428 = vmatprep.subr.bf16.mxu0 %v7381
  %7429 = vmatpush1.bf16.msra.mxu0 %v7380
  %7430 = vmatprep.subr.bf16.mxu0 %v7384
  %7431 = vmatpush1.bf16.msra.mxu0 %v7383
  %7432 = vmatprep.subr.bf16.mxu0 %v7387
  %7433 = vmatpush1.bf16.msra.mxu0 %v7386
  %7434 = vmatprep.subr.bf16.mxu0 %v7390
  %7435 = vmatpush1.bf16.msra.mxu0 %v7389
  %7436 = vmatprep.subr.bf16.mxu0 %v7393
  %7437 = vmatpush1.bf16.msra.mxu0 %v7392
  %7438 = vmatprep.subr.bf16.mxu0 %v7396
  %7439 = vmatpush1.bf16.msra.mxu0 %v7395
  %7440 = vmatprep.subr.bf16.mxu0 %v7399
  %7441 = vmatpush1.bf16.msra.mxu0 %v7398
  %7442 = vmatprep.subr.bf16.mxu0 %v7402
  %7443 = vmatpush1.bf16.msra.mxu0 %v7401
  %7444 = vmatprep.subr.bf16.mxu0 0
  %7445 = vmatpush1.bf16.msra.mxu0 0
  %7446 = vmatprep.subr.bf16.mxu0 0
  %7447 = vmatpush1.bf16.msra.mxu0 0
  %7448 = vmatprep.subr.bf16.mxu0 0
  %7449 = vmatpush1.bf16.msra.mxu0 0
  %7450 = vmatprep.subr.bf16.mxu0 0
  %7451 = vmatpush1.bf16.msra.mxu0 0
  %7452 = vmatprep.subr.bf16.mxu0 0
  %7453 = vmatpush1.bf16.msra.mxu0 0
  %7454 = vmatprep.subr.bf16.mxu0 0
  %7455 = vmatpush1.bf16.msra.mxu0 0
  %7456 = vmatprep.subr.bf16.mxu0 0
  %7457 = vmatpush1.bf16.msra.mxu0 0
  %7458 = vmatprep.subr.bf16.mxu0 0
  %7459 = vmatpush1.bf16.msra.mxu0 0
  %7460 = vmatprep.mubr.bf16.mxu0 0
  %7461 = vmatmul.mubr.bf16.gmra.mrb[0].mxu0 %v7157
  %v7462 = vpop.f32.mrb[0].mxu0
  %v7463 = vadd.f32 %v58, %v7462
  %v7464 = vpop.f32.mrb[0].mxu0
  %v7465 = vadd.f32 %v59, %v7464
  %v7466 = vpop.f32.mrb[0].mxu0
  %v7467 = vpop.f32.mrb[0].mxu0
  %7468 = vdwg.mxu0
  %7469 = vmatprep.subr.bf16.mxu0 0
  %7470 = vmatpush1.bf16.msra.mxu0 %v7382
  %7471 = vmatprep.subr.bf16.mxu0 0
  %7472 = vmatpush1.bf16.msra.mxu0 %v7385
  %7473 = vmatprep.subr.bf16.mxu0 0
  %7474 = vmatpush1.bf16.msra.mxu0 %v7388
  %7475 = vmatprep.subr.bf16.mxu0 0
  %7476 = vmatpush1.bf16.msra.mxu0 %v7391
  %7477 = vmatprep.subr.bf16.mxu0 0
  %7478 = vmatpush1.bf16.msra.mxu0 %v7394
  %7479 = vmatprep.subr.bf16.mxu0 0
  %7480 = vmatpush1.bf16.msra.mxu0 %v7397
  %7481 = vmatprep.subr.bf16.mxu0 0
  %7482 = vmatpush1.bf16.msra.mxu0 %v7400
  %7483 = vmatprep.subr.bf16.mxu0 0
  %7484 = vmatpush1.bf16.msra.mxu0 %v7403
  %7485 = vmatprep.subr.bf16.mxu0 0
  %7486 = vmatpush1.bf16.msra.mxu0 0
  %7487 = vmatprep.subr.bf16.mxu0 0
  %7488 = vmatpush1.bf16.msra.mxu0 0
  %7489 = vmatprep.subr.bf16.mxu0 0
  %7490 = vmatpush1.bf16.msra.mxu0 0
  %7491 = vmatprep.subr.bf16.mxu0 0
  %7492 = vmatpush1.bf16.msra.mxu0 0
  %7493 = vmatprep.subr.bf16.mxu0 0
  %7494 = vmatpush1.bf16.msra.mxu0 0
  %7495 = vmatprep.subr.bf16.mxu0 0
  %7496 = vmatpush1.bf16.msra.mxu0 0
  %7497 = vmatprep.subr.bf16.mxu0 0
  %7498 = vmatpush1.bf16.msra.mxu0 0
  %7499 = vmatprep.subr.bf16.mxu0 0
  %7500 = vmatpush1.bf16.msra.mxu0 0
  %7501 = vmatprep.mubr.bf16.mxu0 0
  %7502 = vmatmul.mubr.bf16.gmra.mrb[0].mxu0 %v7157
  %v7503 = vpop.f32.mrb[0].mxu0
  %v7504 = vadd.f32 %v60, %v7503
  %v7505 = vpop.f32.mrb[0].mxu0
  %v7506 = vpop.f32.mrb[0].mxu0
  %v7507 = vpop.f32.mrb[0].mxu0
  %7508 = vdwg.mxu0
  %v7509 = vadd.f32 %v7265, %v7463
  %v7510 = vxor.u32 %v7509, 2147483648
  %v7511 = vmul.f32 %v7510, 1.442695
  %v7512 = vpow.pop %v7511
  %v7513 = vadd.f32 %v7512, 1.0
  %v7514 = vrcp.pop %v7513
  %v7515 = vmul.f32 1.0, %v7514
  %v7516 = vadd.f32 %v7266, %v7465
  %v7517 = vxor.u32 %v7516, 2147483648
  %v7518 = vmul.f32 %v7517, 1.442695
  %v7519 = vpow.pop %v7518
  %v7520 = vadd.f32 %v7519, 1.0
  %v7521 = vrcp.pop %v7520
  %v7522 = vmul.f32 1.0, %v7521
  %v7523 = vmul.f32 %v7515, %v7504
  %v7524 = vadd.f32 %v7267, %v7523
  %v7525 = vtanh.pop %v7524
  %v7526 = vsub.f32 1.0, %v7522
  %v7527 = vmul.f32 %v7526, %v7525
  %v7528 = vmul.f32 %v7522, %v7154
  %v7529 = vadd.f32 %v7527, %v7528
  %s7530 = scalar_lea.vmem %s17, 24
  %7531 = vst [vmem:[%s7530] sm:$0xff] %v7529
  %v7532 = vpack.c.bf16 %v7529, %v7529
  %v7533 = vld [vmem:[%s13] sm:$0xf]
  %v7534 = vld [vmem:[%s13 + $0x4] sm:$0xf]
  %v7535 = vld [vmem:[%s13 + $0x8] sm:$0xf]
  %v7536 = vld [vmem:[%s13 + $0xc] sm:$0xf]
  %v7537 = vld [vmem:[%s13 + $0x10] sm:$0xf]
  %v7538 = vld [vmem:[%s13 + $0x14] sm:$0xf]
  %v7539 = vld [vmem:[%s13 + $0x18] sm:$0xf]
  %v7540 = vld [vmem:[%s13 + $0x1c] sm:$0xf]
  %v7541 = vld [vmem:[%s13 + $0x20] sm:$0xf]
  %v7542 = vld [vmem:[%s13 + $0x24] sm:$0xf]
  %v7543 = vld [vmem:[%s13 + $0x28] sm:$0xf]
  %v7544 = vld [vmem:[%s13 + $0x2c] sm:$0xf]
  %v7545 = vld [vmem:[%s13 + $0x30] sm:$0xf]
  %v7546 = vld [vmem:[%s13 + $0x34] sm:$0xf]
  %v7547 = vld [vmem:[%s13 + $0x38] sm:$0xf]
  %v7548 = vld [vmem:[%s13 + $0x3c] sm:$0xf]
  %v7565 = vunpack.c.l.b16 %v7533
  %v7566 = vunpack.c.l.b16 %v7534
  %v7567 = vunpack.c.l.b16 %v7535
  %v7568 = vunpack.c.l.b16 %v7536
  %v7569 = vunpack.c.l.b16 %v7537
  %v7570 = vunpack.c.l.b16 %v7538
  %v7571 = vunpack.c.l.b16 %v7539
  %v7572 = vunpack.c.l.b16 %v7540
  %v7573 = vunpack.c.l.b16 %v7541
  %v7574 = vunpack.c.l.b16 %v7542
  %v7575 = vunpack.c.l.b16 %v7543
  %v7576 = vunpack.c.l.b16 %v7544
  %v7577 = vunpack.c.l.b16 %v7545
  %v7578 = vunpack.c.l.b16 %v7546
  %v7579 = vunpack.c.l.b16 %v7547
  %v7580 = vunpack.c.l.b16 %v7548
  %v7581 = vpack.c.b16 %v7566, %v7565
  %v7582 = vpack.c.b16 %v7568, %v7567
  %v7583 = vpack.c.b16 %v7570, %v7569
  %v7584 = vpack.c.b16 %v7572, %v7571
  %v7585 = vpack.c.b16 %v7574, %v7573
  %v7586 = vpack.c.b16 %v7576, %v7575
  %v7587 = vpack.c.b16 %v7578, %v7577
  %v7588 = vpack.c.b16 %v7580, %v7579
  %7597 = vmatprep.subr.bf16.mxu0 0
  %7598 = vmatpush1.bf16.msra.mxu0 %v7581
  %7599 = vmatprep.subr.bf16.mxu0 0
  %7600 = vmatpush1.bf16.msra.mxu0 %v7582
  %7601 = vmatprep.subr.bf16.mxu0 0
  %7602 = vmatpush1.bf16.msra.mxu0 %v7583
  %7603 = vmatprep.subr.bf16.mxu0 0
  %7604 = vmatpush1.bf16.msra.mxu0 %v7584
  %7605 = vmatprep.subr.bf16.mxu0 0
  %7606 = vmatpush1.bf16.msra.mxu0 %v7585
  %7607 = vmatprep.subr.bf16.mxu0 0
  %7608 = vmatpush1.bf16.msra.mxu0 %v7586
  %7609 = vmatprep.subr.bf16.mxu0 0
  %7610 = vmatpush1.bf16.msra.mxu0 %v7587
  %7611 = vmatprep.subr.bf16.mxu0 0
  %7612 = vmatpush1.bf16.msra.mxu0 %v7588
  %7613 = vmatprep.subr.bf16.mxu0 0
  %7614 = vmatpush1.bf16.msra.mxu0 0
  %7615 = vmatprep.subr.bf16.mxu0 0
  %7616 = vmatpush1.bf16.msra.mxu0 0
  %7617 = vmatprep.subr.bf16.mxu0 0
  %7618 = vmatpush1.bf16.msra.mxu0 0
  %7619 = vmatprep.subr.bf16.mxu0 0
  %7620 = vmatpush1.bf16.msra.mxu0 0
  %7621 = vmatprep.subr.bf16.mxu0 0
  %7622 = vmatpush1.bf16.msra.mxu0 0
  %7623 = vmatprep.subr.bf16.mxu0 0
  %7624 = vmatpush1.bf16.msra.mxu0 0
  %7625 = vmatprep.subr.bf16.mxu0 0
  %7626 = vmatpush1.bf16.msra.mxu0 0
  %7627 = vmatprep.subr.bf16.mxu0 0
  %7628 = vmatpush1.bf16.msra.mxu0 0
  %7629 = vmatprep.mubr.bf16.mxu0 0
  %7630 = vmatmul.mubr.bf16.gmra.mrb[0].mxu0 %v7532
  %v7631 = vpop.f32.mrb[0].mxu0
  %v7632 = vadd.f32 %v61, %v7631
  %v7633 = vpop.f32.mrb[0].mxu0
  %v7634 = vpop.f32.mrb[0].mxu0
  %v7635 = vpop.f32.mrb[0].mxu0
  %7636 = vdwg.mxu0
  %s7637 = scalar_lea.vmem %s18, 24
  %7638 = vst [vmem:[%s7637] sm:$0xff] %v7632
  %s7639 = scalar_lea.vmem %s6, 96
  %v7640 = vld [vmem:[%s7639] sm:$0xff]
  %v7641 = vld [vmem:[%s7639 + $0x8] sm:$0xff]
  %v7642 = vld [vmem:[%s7639 + $0x10] sm:$0xff]
  %v7643 = vld [vmem:[%s9] sm:$0xff]
  %v7644 = vld [vmem:[%s9 + $0x8] sm:$0xf]
  %v7645 = vld [vmem:[%s9 + $0xc] sm:$0xff]
  %v7646 = vld [vmem:[%s9 + $0x14] sm:$0xf]
  %v7647 = vld [vmem:[%s9 + $0x18] sm:$0xff]
  %v7648 = vld [vmem:[%s9 + $0x20] sm:$0xf]
  %v7649 = vld [vmem:[%s9 + $0x24] sm:$0xff]
  %v7650 = vld [vmem:[%s9 + $0x2c] sm:$0xf]
  %v7651 = vld [vmem:[%s9 + $0x30] sm:$0xff]
  %v7652 = vld [vmem:[%s9 + $0x38] sm:$0xf]
  %v7653 = vld [vmem:[%s9 + $0x3c] sm:$0xff]
  %v7654 = vld [vmem:[%s9 + $0x44] sm:$0xf]
  %v7655 = vld [vmem:[%s9 + $0x48] sm:$0xff]
  %v7656 = vld [vmem:[%s9 + $0x50] sm:$0xf]
  %v7657 = vld [vmem:[%s9 + $0x54] sm:$0xff]
  %v7658 = vld [vmem:[%s9 + $0x5c] sm:$0xf]
  %v7659 = vld [vmem:[%s9 + $0x60] sm:$0xff]
  %v7660 = vld [vmem:[%s9 + $0x68] sm:$0xf]
  %v7661 = vld [vmem:[%s9 + $0x6c] sm:$0xff]
  %v7662 = vld [vmem:[%s9 + $0x74] sm:$0xf]
  %v7663 = vld [vmem:[%s9 + $0x78] sm:$0xff]
  %v7664 = vld [vmem:[%s9 + $0x80] sm:$0xf]
  %v7665 = vld [vmem:[%s9 + $0x84] sm:$0xff]
  %v7666 = vld [vmem:[%s9 + $0x8c] sm:$0xf]
  %v7667 = vld [vmem:[%s9 + $0x90] sm:$0xff]
  %v7668 = vld [vmem:[%s9 + $0x98] sm:$0xf]
  %v7669 = vld [vmem:[%s9 + $0x9c] sm:$0xff]
  %v7670 = vld [vmem:[%s9 + $0xa4] sm:$0xf]
  %v7671 = vld [vmem:[%s9 + $0xa8] sm:$0xff]
  %v7672 = vld [vmem:[%s9 + $0xb0] sm:$0xf]
  %v7673 = vld [vmem:[%s9 + $0xb4] sm:$0xff]
  %v7674 = vld [vmem:[%s9 + $0xbc] sm:$0xf]
  %v7707 = vunpack.c.l.b16 %v7643
  %v7708 = vunpack.c.h.b16 %v7643
  %v7709 = vunpack.c.l.b16 %v7644
  %v7710 = vunpack.c.l.b16 %v7645
  %v7711 = vunpack.c.h.b16 %v7645
  %v7712 = vunpack.c.l.b16 %v7646
  %v7713 = vunpack.c.l.b16 %v7647
  %v7714 = vunpack.c.h.b16 %v7647
  %v7715 = vunpack.c.l.b16 %v7648
  %v7716 = vunpack.c.l.b16 %v7649
  %v7717 = vunpack.c.h.b16 %v7649
  %v7718 = vunpack.c.l.b16 %v7650
  %v7719 = vunpack.c.l.b16 %v7651
  %v7720 = vunpack.c.h.b16 %v7651
  %v7721 = vunpack.c.l.b16 %v7652
  %v7722 = vunpack.c.l.b16 %v7653
  %v7723 = vunpack.c.h.b16 %v7653
  %v7724 = vunpack.c.l.b16 %v7654
  %v7725 = vunpack.c.l.b16 %v7655
  %v7726 = vunpack.c.h.b16 %v7655
  %v7727 = vunpack.c.l.b16 %v7656
  %v7728 = vunpack.c.l.b16 %v7657
  %v7729 = vunpack.c.h.b16 %v7657
  %v7730 = vunpack.c.l.b16 %v7658
  %v7731 = vunpack.c.l.b16 %v7659
  %v7732 = vunpack.c.h.b16 %v7659
  %v7733 = vunpack.c.l.b16 %v7660
  %v7734 = vunpack.c.l.b16 %v7661
  %v7735 = vunpack.c.h.b16 %v7661
  %v7736 = vunpack.c.l.b16 %v7662
  %v7737 = vunpack.c.l.b16 %v7663
  %v7738 = vunpack.c.h.b16 %v7663
  %v7739 = vunpack.c.l.b16 %v7664
  %v7740 = vunpack.c.l.b16 %v7665
  %v7741 = vunpack.c.h.b16 %v7665
  %v7742 = vunpack.c.l.b16 %v7666
  %v7743 = vunpack.c.l.b16 %v7667
  %v7744 = vunpack.c.h.b16 %v7667
  %v7745 = vunpack.c.l.b16 %v7668
  %v7746 = vunpack.c.l.b16 %v7669
  %v7747 = vunpack.c.h.b16 %v7669
  %v7748 = vunpack.c.l.b16 %v7670
  %v7749 = vunpack.c.l.b16 %v7671
  %v7750 = vunpack.c.h.b16 %v7671
  %v7751 = vunpack.c.l.b16 %v7672
  %v7752 = vunpack.c.l.b16 %v7673
  %v7753 = vunpack.c.h.b16 %v7673
  %v7754 = vunpack.c.l.b16 %v7674
  %v7755 = vpack.c.b16 %v7710, %v7707
  %v7756 = vpack.c.b16 %v7711, %v7708
  %v7757 = vpack.c.b16 %v7712, %v7709
  %v7758 = vpack.c.b16 %v7716, %v7713
  %v7759 = vpack.c.b16 %v7717, %v7714
  %v7760 = vpack.c.b16 %v7718, %v7715
  %v7761 = vpack.c.b16 %v7722, %v7719
  %v7762 = vpack.c.b16 %v7723, %v7720
  %v7763 = vpack.c.b16 %v7724, %v7721
  %v7764 = vpack.c.b16 %v7728, %v7725
  %v7765 = vpack.c.b16 %v7729, %v7726
  %v7766 = vpack.c.b16 %v7730, %v7727
  %v7767 = vpack.c.b16 %v7734, %v7731
  %v7768 = vpack.c.b16 %v7735, %v7732
  %v7769 = vpack.c.b16 %v7736, %v7733
  %v7770 = vpack.c.b16 %v7740, %v7737
  %v7771 = vpack.c.b16 %v7741, %v7738
  %v7772 = vpack.c.b16 %v7742, %v7739
  %v7773 = vpack.c.b16 %v7746, %v7743
  %v7774 = vpack.c.b16 %v7747, %v7744
  %v7775 = vpack.c.b16 %v7748, %v7745
  %v7776 = vpack.c.b16 %v7752, %v7749
  %v7777 = vpack.c.b16 %v7753, %v7750
  %v7778 = vpack.c.b16 %v7754, %v7751
  %7803 = vmatprep.subr.bf16.mxu0 %v7756
  %7804 = vmatpush1.bf16.msra.mxu0 %v7755
  %7805 = vmatprep.subr.bf16.mxu0 %v7759
  %7806 = vmatpush1.bf16.msra.mxu0 %v7758
  %7807 = vmatprep.subr.bf16.mxu0 %v7762
  %7808 = vmatpush1.bf16.msra.mxu0 %v7761
  %7809 = vmatprep.subr.bf16.mxu0 %v7765
  %7810 = vmatpush1.bf16.msra.mxu0 %v7764
  %7811 = vmatprep.subr.bf16.mxu0 %v7768
  %7812 = vmatpush1.bf16.msra.mxu0 %v7767
  %7813 = vmatprep.subr.bf16.mxu0 %v7771
  %7814 = vmatpush1.bf16.msra.mxu0 %v7770
  %7815 = vmatprep.subr.bf16.mxu0 %v7774
  %7816 = vmatpush1.bf16.msra.mxu0 %v7773
  %7817 = vmatprep.subr.bf16.mxu0 %v7777
  %7818 = vmatpush1.bf16.msra.mxu0 %v7776
  %7819 = vmatprep.subr.bf16.mxu0 0
  %7820 = vmatpush1.bf16.msra.mxu0 0
  %7821 = vmatprep.subr.bf16.mxu0 0
  %7822 = vmatpush1.bf16.msra.mxu0 0
  %7823 = vmatprep.subr.bf16.mxu0 0
  %7824 = vmatpush1.bf16.msra.mxu0 0
  %7825 = vmatprep.subr.bf16.mxu0 0
  %7826 = vmatpush1.bf16.msra.mxu0 0
  %7827 = vmatprep.subr.bf16.mxu0 0
  %7828 = vmatpush1.bf16.msra.mxu0 0
  %7829 = vmatprep.subr.bf16.mxu0 0
  %7830 = vmatpush1.bf16.msra.mxu0 0
  %7831 = vmatprep.subr.bf16.mxu0 0
  %7832 = vmatpush1.bf16.msra.mxu0 0
  %7833 = vmatprep.subr.bf16.mxu0 0
  %7834 = vmatpush1.bf16.msra.mxu0 0
  %7835 = vmatprep.mubr.bf16.mxu0 0
  %7836 = vmatmul.mubr.bf16.gmra.mrb[0].mxu0 %v7532
  %v7837 = vpop.f32.mrb[0].mxu0
  %v7838 = vadd.f32 %v58, %v7837
  %v7839 = vpop.f32.mrb[0].mxu0
  %v7840 = vadd.f32 %v59, %v7839
  %v7841 = vpop.f32.mrb[0].mxu0
  %v7842 = vpop.f32.mrb[0].mxu0
  %7843 = vdwg.mxu0
  %7844 = vmatprep.subr.bf16.mxu0 0
  %7845 = vmatpush1.bf16.msra.mxu0 %v7757
  %7846 = vmatprep.subr.bf16.mxu0 0
  %7847 = vmatpush1.bf16.msra.mxu0 %v7760
  %7848 = vmatprep.subr.bf16.mxu0 0
  %7849 = vmatpush1.bf16.msra.mxu0 %v7763
  %7850 = vmatprep.subr.bf16.mxu0 0
  %7851 = vmatpush1.bf16.msra.mxu0 %v7766
  %7852 = vmatprep.subr.bf16.mxu0 0
  %7853 = vmatpush1.bf16.msra.mxu0 %v7769
  %7854 = vmatprep.subr.bf16.mxu0 0
  %7855 = vmatpush1.bf16.msra.mxu0 %v7772
  %7856 = vmatprep.subr.bf16.mxu0 0
  %7857 = vmatpush1.bf16.msra.mxu0 %v7775
  %7858 = vmatprep.subr.bf16.mxu0 0
  %7859 = vmatpush1.bf16.msra.mxu0 %v7778
  %7860 = vmatprep.subr.bf16.mxu0 0
  %7861 = vmatpush1.bf16.msra.mxu0 0
  %7862 = vmatprep.subr.bf16.mxu0 0
  %7863 = vmatpush1.bf16.msra.mxu0 0
  %7864 = vmatprep.subr.bf16.mxu0 0
  %7865 = vmatpush1.bf16.msra.mxu0 0
  %7866 = vmatprep.subr.bf16.mxu0 0
  %7867 = vmatpush1.bf16.msra.mxu0 0
  %7868 = vmatprep.subr.bf16.mxu0 0
  %7869 = vmatpush1.bf16.msra.mxu0 0
  %7870 = vmatprep.subr.bf16.mxu0 0
  %7871 = vmatpush1.bf16.msra.mxu0 0
  %7872 = vmatprep.subr.bf16.mxu0 0
  %7873 = vmatpush1.bf16.msra.mxu0 0
  %7874 = vmatprep.subr.bf16.mxu0 0
  %7875 = vmatpush1.bf16.msra.mxu0 0
  %7876 = vmatprep.mubr.bf16.mxu0 0
  %7877 = vmatmul.mubr.bf16.gmra.mrb[0].mxu0 %v7532
  %v7878 = vpop.f32.mrb[0].mxu0
  %v7879 = vadd.f32 %v60, %v7878
  %v7880 = vpop.f32.mrb[0].mxu0
  %v7881 = vpop.f32.mrb[0].mxu0
  %v7882 = vpop.f32.mrb[0].mxu0
  %7883 = vdwg.mxu0
  %v7884 = vadd.f32 %v7640, %v7838
  %v7885 = vxor.u32 %v7884, 2147483648
  %v7886 = vmul.f32 %v7885, 1.442695
  %v7887 = vpow.pop %v7886
  %v7888 = vadd.f32 %v7887, 1.0
  %v7889 = vrcp.pop %v7888
  %v7890 = vmul.f32 1.0, %v7889
  %v7891 = vadd.f32 %v7641, %v7840
  %v7892 = vxor.u32 %v7891, 2147483648
  %v7893 = vmul.f32 %v7892, 1.442695
  %v7894 = vpow.pop %v7893
  %v7895 = vadd.f32 %v7894, 1.0
  %v7896 = vrcp.pop %v7895
  %v7897 = vmul.f32 1.0, %v7896
  %v7898 = vmul.f32 %v7890, %v7879
  %v7899 = vadd.f32 %v7642, %v7898
  %v7900 = vtanh.pop %v7899
  %v7901 = vsub.f32 1.0, %v7897
  %v7902 = vmul.f32 %v7901, %v7900
  %v7903 = vmul.f32 %v7897, %v7529
  %v7904 = vadd.f32 %v7902, %v7903
  %s7905 = scalar_lea.vmem %s17, 32
  %7906 = vst [vmem:[%s7905] sm:$0xff] %v7904
  %v7907 = vpack.c.bf16 %v7904, %v7904
  %v7908 = vld [vmem:[%s13] sm:$0xf]
  %v7909 = vld [vmem:[%s13 + $0x4] sm:$0xf]
  %v7910 = vld [vmem:[%s13 + $0x8] sm:$0xf]
  %v7911 = vld [vmem:[%s13 + $0xc] sm:$0xf]
  %v7912 = vld [vmem:[%s13 + $0x10] sm:$0xf]
  %v7913 = vld [vmem:[%s13 + $0x14] sm:$0xf]
  %v7914 = vld [vmem:[%s13 + $0x18] sm:$0xf]
  %v7915 = vld [vmem:[%s13 + $0x1c] sm:$0xf]
  %v7916 = vld [vmem:[%s13 + $0x20] sm:$0xf]
  %v7917 = vld [vmem:[%s13 + $0x24] sm:$0xf]
  %v7918 = vld [vmem:[%s13 + $0x28] sm:$0xf]
  %v7919 = vld [vmem:[%s13 + $0x2c] sm:$0xf]
  %v7920 = vld [vmem:[%s13 + $0x30] sm:$0xf]
  %v7921 = vld [vmem:[%s13 + $0x34] sm:$0xf]
  %v7922 = vld [vmem:[%s13 + $0x38] sm:$0xf]
  %v7923 = vld [vmem:[%s13 + $0x3c] sm:$0xf]
  %v7940 = vunpack.c.l.b16 %v7908
  %v7941 = vunpack.c.l.b16 %v7909
  %v7942 = vunpack.c.l.b16 %v7910
  %v7943 = vunpack.c.l.b16 %v7911
  %v7944 = vunpack.c.l.b16 %v7912
  %v7945 = vunpack.c.l.b16 %v7913
  %v7946 = vunpack.c.l.b16 %v7914
  %v7947 = vunpack.c.l.b16 %v7915
  %v7948 = vunpack.c.l.b16 %v7916
  %v7949 = vunpack.c.l.b16 %v7917
  %v7950 = vunpack.c.l.b16 %v7918
  %v7951 = vunpack.c.l.b16 %v7919
  %v7952 = vunpack.c.l.b16 %v7920
  %v7953 = vunpack.c.l.b16 %v7921
  %v7954 = vunpack.c.l.b16 %v7922
  %v7955 = vunpack.c.l.b16 %v7923
  %v7956 = vpack.c.b16 %v7941, %v7940
  %v7957 = vpack.c.b16 %v7943, %v7942
  %v7958 = vpack.c.b16 %v7945, %v7944
  %v7959 = vpack.c.b16 %v7947, %v7946
  %v7960 = vpack.c.b16 %v7949, %v7948
  %v7961 = vpack.c.b16 %v7951, %v7950
  %v7962 = vpack.c.b16 %v7953, %v7952
  %v7963 = vpack.c.b16 %v7955, %v7954
  %7972 = vmatprep.subr.bf16.mxu0 0
  %7973 = vmatpush1.bf16.msra.mxu0 %v7956
  %7974 = vmatprep.subr.bf16.mxu0 0
  %7975 = vmatpush1.bf16.msra.mxu0 %v7957
  %7976 = vmatprep.subr.bf16.mxu0 0
  %7977 = vmatpush1.bf16.msra.mxu0 %v7958
  %7978 = vmatprep.subr.bf16.mxu0 0
  %7979 = vmatpush1.bf16.msra.mxu0 %v7959
  %7980 = vmatprep.subr.bf16.mxu0 0
  %7981 = vmatpush1.bf16.msra.mxu0 %v7960
  %7982 = vmatprep.subr.bf16.mxu0 0
  %7983 = vmatpush1.bf16.msra.mxu0 %v7961
  %7984 = vmatprep.subr.bf16.mxu0 0
  %7985 = vmatpush1.bf16.msra.mxu0 %v7962
  %7986 = vmatprep.subr.bf16.mxu0 0
  %7987 = vmatpush1.bf16.msra.mxu0 %v7963
  %7988 = vmatprep.subr.bf16.mxu0 0
  %7989 = vmatpush1.bf16.msra.mxu0 0
  %7990 = vmatprep.subr.bf16.mxu0 0
  %7991 = vmatpush1.bf16.msra.mxu0 0
  %7992 = vmatprep.subr.bf16.mxu0 0
  %7993 = vmatpush1.bf16.msra.mxu0 0
  %7994 = vmatprep.subr.bf16.mxu0 0
  %7995 = vmatpush1.bf16.msra.mxu0 0
  %7996 = vmatprep.subr.bf16.mxu0 0
  %7997 = vmatpush1.bf16.msra.mxu0 0
  %7998 = vmatprep.subr.bf16.mxu0 0
  %7999 = vmatpush1.bf16.msra.mxu0 0
  %8000 = vmatprep.subr.bf16.mxu0 0
  %8001 = vmatpush1.bf16.msra.mxu0 0
  %8002 = vmatprep.subr.bf16.mxu0 0
  %8003 = vmatpush1.bf16.msra.mxu0 0
  %8004 = vmatprep.mubr.bf16.mxu0 0
  %8005 = vmatmul.mubr.bf16.gmra.mrb[0].mxu0 %v7907
  %v8006 = vpop.f32.mrb[0].mxu0
  %v8007 = vadd.f32 %v61, %v8006
  %v8008 = vpop.f32.mrb[0].mxu0
  %v8009 = vpop.f32.mrb[0].mxu0
  %v8010 = vpop.f32.mrb[0].mxu0
  %8011 = vdwg.mxu0
  %s8012 = scalar_lea.vmem %s18, 32
  %8013 = vst [vmem:[%s8012] sm:$0xff] %v8007
  %s8014 = scalar_lea.vmem %s6, 120
  %v8015 = vld [vmem:[%s8014] sm:$0xff]
  %v8016 = vld [vmem:[%s8014 + $0x8] sm:$0xff]
  %v8017 = vld [vmem:[%s8014 + $0x10] sm:$0xff]
  %v8018 = vld [vmem:[%s9] sm:$0xff]
  %v8019 = vld [vmem:[%s9 + $0x8] sm:$0xf]
  %v8020 = vld [vmem:[%s9 + $0xc] sm:$0xff]
  %v8021 = vld [vmem:[%s9 + $0x14] sm:$0xf]
  %v8022 = vld [vmem:[%s9 + $0x18] sm:$0xff]
  %v8023 = vld [vmem:[%s9 + $0x20] sm:$0xf]
  %v8024 = vld [vmem:[%s9 + $0x24] sm:$0xff]
  %v8025 = vld [vmem:[%s9 + $0x2c] sm:$0xf]
  %v8026 = vld [vmem:[%s9 + $0x30] sm:$0xff]
  %v8027 = vld [vmem:[%s9 + $0x38] sm:$0xf]
  %v8028 = vld [vmem:[%s9 + $0x3c] sm:$0xff]
  %v8029 = vld [vmem:[%s9 + $0x44] sm:$0xf]
  %v8030 = vld [vmem:[%s9 + $0x48] sm:$0xff]
  %v8031 = vld [vmem:[%s9 + $0x50] sm:$0xf]
  %v8032 = vld [vmem:[%s9 + $0x54] sm:$0xff]
  %v8033 = vld [vmem:[%s9 + $0x5c] sm:$0xf]
  %v8034 = vld [vmem:[%s9 + $0x60] sm:$0xff]
  %v8035 = vld [vmem:[%s9 + $0x68] sm:$0xf]
  %v8036 = vld [vmem:[%s9 + $0x6c] sm:$0xff]
  %v8037 = vld [vmem:[%s9 + $0x74] sm:$0xf]
  %v8038 = vld [vmem:[%s9 + $0x78] sm:$0xff]
  %v8039 = vld [vmem:[%s9 + $0x80] sm:$0xf]
  %v8040 = vld [vmem:[%s9 + $0x84] sm:$0xff]
  %v8041 = vld [vmem:[%s9 + $0x8c] sm:$0xf]
  %v8042 = vld [vmem:[%s9 + $0x90] sm:$0xff]
  %v8043 = vld [vmem:[%s9 + $0x98] sm:$0xf]
  %v8044 = vld [vmem:[%s9 + $0x9c] sm:$0xff]
  %v8045 = vld [vmem:[%s9 + $0xa4] sm:$0xf]
  %v8046 = vld [vmem:[%s9 + $0xa8] sm:$0xff]
  %v8047 = vld [vmem:[%s9 + $0xb0] sm:$0xf]
  %v8048 = vld [vmem:[%s9 + $0xb4] sm:$0xff]
  %v8049 = vld [vmem:[%s9 + $0xbc] sm:$0xf]
  %v8082 = vunpack.c.l.b16 %v8018
  %v8083 = vunpack.c.h.b16 %v8018
  %v8084 = vunpack.c.l.b16 %v8019
  %v8085 = vunpack.c.l.b16 %v8020
  %v8086 = vunpack.c.h.b16 %v8020
  %v8087 = vunpack.c.l.b16 %v8021
  %v8088 = vunpack.c.l.b16 %v8022
  %v8089 = vunpack.c.h.b16 %v8022
  %v8090 = vunpack.c.l.b16 %v8023
  %v8091 = vunpack.c.l.b16 %v8024
  %v8092 = vunpack.c.h.b16 %v8024
  %v8093 = vunpack.c.l.b16 %v8025
  %v8094 = vunpack.c.l.b16 %v8026
  %v8095 = vunpack.c.h.b16 %v8026
  %v8096 = vunpack.c.l.b16 %v8027
  %v8097 = vunpack.c.l.b16 %v8028
  %v8098 = vunpack.c.h.b16 %v8028
  %v8099 = vunpack.c.l.b16 %v8029
  %v8100 = vunpack.c.l.b16 %v8030
  %v8101 = vunpack.c.h.b16 %v8030
  %v8102 = vunpack.c.l.b16 %v8031
  %v8103 = vunpack.c.l.b16 %v8032
  %v8104 = vunpack.c.h.b16 %v8032
  %v8105 = vunpack.c.l.b16 %v8033
  %v8106 = vunpack.c.l.b16 %v8034
  %v8107 = vunpack.c.h.b16 %v8034
  %v8108 = vunpack.c.l.b16 %v8035
  %v8109 = vunpack.c.l.b16 %v8036
  %v8110 = vunpack.c.h.b16 %v8036
  %v8111 = vunpack.c.l.b16 %v8037
  %v8112 = vunpack.c.l.b16 %v8038
  %v8113 = vunpack.c.h.b16 %v8038
  %v8114 = vunpack.c.l.b16 %v8039
  %v8115 = vunpack.c.l.b16 %v8040
  %v8116 = vunpack.c.h.b16 %v8040
  %v8117 = vunpack.c.l.b16 %v8041
  %v8118 = vunpack.c.l.b16 %v8042
  %v8119 = vunpack.c.h.b16 %v8042
  %v8120 = vunpack.c.l.b16 %v8043
  %v8121 = vunpack.c.l.b16 %v8044
  %v8122 = vunpack.c.h.b16 %v8044
  %v8123 = vunpack.c.l.b16 %v8045
  %v8124 = vunpack.c.l.b16 %v8046
  %v8125 = vunpack.c.h.b16 %v8046
  %v8126 = vunpack.c.l.b16 %v8047
  %v8127 = vunpack.c.l.b16 %v8048
  %v8128 = vunpack.c.h.b16 %v8048
  %v8129 = vunpack.c.l.b16 %v8049
  %v8130 = vpack.c.b16 %v8085, %v8082
  %v8131 = vpack.c.b16 %v8086, %v8083
  %v8132 = vpack.c.b16 %v8087, %v8084
  %v8133 = vpack.c.b16 %v8091, %v8088
  %v8134 = vpack.c.b16 %v8092, %v8089
  %v8135 = vpack.c.b16 %v8093, %v8090
  %v8136 = vpack.c.b16 %v8097, %v8094
  %v8137 = vpack.c.b16 %v8098, %v8095
  %v8138 = vpack.c.b16 %v8099, %v8096
  %v8139 = vpack.c.b16 %v8103, %v8100
  %v8140 = vpack.c.b16 %v8104, %v8101
  %v8141 = vpack.c.b16 %v8105, %v8102
  %v8142 = vpack.c.b16 %v8109, %v8106
  %v8143 = vpack.c.b16 %v8110, %v8107
  %v8144 = vpack.c.b16 %v8111, %v8108
  %v8145 = vpack.c.b16 %v8115, %v8112
  %v8146 = vpack.c.b16 %v8116, %v8113
  %v8147 = vpack.c.b16 %v8117, %v8114
  %v8148 = vpack.c.b16 %v8121, %v8118
  %v8149 = vpack.c.b16 %v8122, %v8119
  %v8150 = vpack.c.b16 %v8123, %v8120
  %v8151 = vpack.c.b16 %v8127, %v8124
  %v8152 = vpack.c.b16 %v8128, %v8125
  %v8153 = vpack.c.b16 %v8129, %v8126
  %8178 = vmatprep.subr.bf16.mxu0 %v8131
  %8179 = vmatpush1.bf16.msra.mxu0 %v8130
  %8180 = vmatprep.subr.bf16.mxu0 %v8134
  %8181 = vmatpush1.bf16.msra.mxu0 %v8133
  %8182 = vmatprep.subr.bf16.mxu0 %v8137
  %8183 = vmatpush1.bf16.msra.mxu0 %v8136
  %8184 = vmatprep.subr.bf16.mxu0 %v8140
  %8185 = vmatpush1.bf16.msra.mxu0 %v8139
  %8186 = vmatprep.subr.bf16.mxu0 %v8143
  %8187 = vmatpush1.bf16.msra.mxu0 %v8142
  %8188 = vmatprep.subr.bf16.mxu0 %v8146
  %8189 = vmatpush1.bf16.msra.mxu0 %v8145
  %8190 = vmatprep.subr.bf16.mxu0 %v8149
  %8191 = vmatpush1.bf16.msra.mxu0 %v8148
  %8192 = vmatprep.subr.bf16.mxu0 %v8152
  %8193 = vmatpush1.bf16.msra.mxu0 %v8151
  %8194 = vmatprep.subr.bf16.mxu0 0
  %8195 = vmatpush1.bf16.msra.mxu0 0
  %8196 = vmatprep.subr.bf16.mxu0 0
  %8197 = vmatpush1.bf16.msra.mxu0 0
  %8198 = vmatprep.subr.bf16.mxu0 0
  %8199 = vmatpush1.bf16.msra.mxu0 0
  %8200 = vmatprep.subr.bf16.mxu0 0
  %8201 = vmatpush1.bf16.msra.mxu0 0
  %8202 = vmatprep.subr.bf16.mxu0 0
  %8203 = vmatpush1.bf16.msra.mxu0 0
  %8204 = vmatprep.subr.bf16.mxu0 0
  %8205 = vmatpush1.bf16.msra.mxu0 0
  %8206 = vmatprep.subr.bf16.mxu0 0
  %8207 = vmatpush1.bf16.msra.mxu0 0
  %8208 = vmatprep.subr.bf16.mxu0 0
  %8209 = vmatpush1.bf16.msra.mxu0 0
  %8210 = vmatprep.mubr.bf16.mxu0 0
  %8211 = vmatmul.mubr.bf16.gmra.mrb[0].mxu0 %v7907
  %v8212 = vpop.f32.mrb[0].mxu0
  %v8213 = vadd.f32 %v58, %v8212
  %v8214 = vpop.f32.mrb[0].mxu0
  %v8215 = vadd.f32 %v59, %v8214
  %v8216 = vpop.f32.mrb[0].mxu0
  %v8217 = vpop.f32.mrb[0].mxu0
  %8218 = vdwg.mxu0
  %8219 = vmatprep.subr.bf16.mxu0 0
  %8220 = vmatpush1.bf16.msra.mxu0 %v8132
  %8221 = vmatprep.subr.bf16.mxu0 0
  %8222 = vmatpush1.bf16.msra.mxu0 %v8135
  %8223 = vmatprep.subr.bf16.mxu0 0
  %8224 = vmatpush1.bf16.msra.mxu0 %v8138
  %8225 = vmatprep.subr.bf16.mxu0 0
  %8226 = vmatpush1.bf16.msra.mxu0 %v8141
  %8227 = vmatprep.subr.bf16.mxu0 0
  %8228 = vmatpush1.bf16.msra.mxu0 %v8144
  %8229 = vmatprep.subr.bf16.mxu0 0
  %8230 = vmatpush1.bf16.msra.mxu0 %v8147
  %8231 = vmatprep.subr.bf16.mxu0 0
  %8232 = vmatpush1.bf16.msra.mxu0 %v8150
  %8233 = vmatprep.subr.bf16.mxu0 0
  %8234 = vmatpush1.bf16.msra.mxu0 %v8153
  %8235 = vmatprep.subr.bf16.mxu0 0
  %8236 = vmatpush1.bf16.msra.mxu0 0
  %8237 = vmatprep.subr.bf16.mxu0 0
  %8238 = vmatpush1.bf16.msra.mxu0 0
  %8239 = vmatprep.subr.bf16.mxu0 0
  %8240 = vmatpush1.bf16.msra.mxu0 0
  %8241 = vmatprep.subr.bf16.mxu0 0
  %8242 = vmatpush1.bf16.msra.mxu0 0
  %8243 = vmatprep.subr.bf16.mxu0 0
  %8244 = vmatpush1.bf16.msra.mxu0 0
  %8245 = vmatprep.subr.bf16.mxu0 0
  %8246 = vmatpush1.bf16.msra.mxu0 0
  %8247 = vmatprep.subr.bf16.mxu0 0
  %8248 = vmatpush1.bf16.msra.mxu0 0
  %8249 = vmatprep.subr.bf16.mxu0 0
  %8250 = vmatpush1.bf16.msra.mxu0 0
  %8251 = vmatprep.mubr.bf16.mxu0 0
  %8252 = vmatmul.mubr.bf16.gmra.mrb[0].mxu0 %v7907
  %v8253 = vpop.f32.mrb[0].mxu0
  %v8254 = vadd.f32 %v60, %v8253
  %v8255 = vpop.f32.mrb[0].mxu0
  %v8256 = vpop.f32.mrb[0].mxu0
  %v8257 = vpop.f32.mrb[0].mxu0
  %8258 = vdwg.mxu0
  %v8259 = vadd.f32 %v8015, %v8213
  %v8260 = vxor.u32 %v8259, 2147483648
  %v8261 = vmul.f32 %v8260, 1.442695
  %v8262 = vpow.pop %v8261
  %v8263 = vadd.f32 %v8262, 1.0
  %v8264 = vrcp.pop %v8263
  %v8265 = vmul.f32 1.0, %v8264
  %v8266 = vadd.f32 %v8016, %v8215
  %v8267 = vxor.u32 %v8266, 2147483648
  %v8268 = vmul.f32 %v8267, 1.442695
  %v8269 = vpow.pop %v8268
  %v8270 = vadd.f32 %v8269, 1.0
  %v8271 = vrcp.pop %v8270
  %v8272 = vmul.f32 1.0, %v8271
  %v8273 = vmul.f32 %v8265, %v8254
  %v8274 = vadd.f32 %v8017, %v8273
  %v8275 = vtanh.pop %v8274
  %v8276 = vsub.f32 1.0, %v8272
  %v8277 = vmul.f32 %v8276, %v8275
  %v8278 = vmul.f32 %v8272, %v7904
  %v8279 = vadd.f32 %v8277, %v8278
  %s8280 = scalar_lea.vmem %s17, 40
  %8281 = vst [vmem:[%s8280] sm:$0xff] %v8279
  %v8282 = vpack.c.bf16 %v8279, %v8279
  %v8283 = vld [vmem:[%s13] sm:$0xf]
  %v8284 = vld [vmem:[%s13 + $0x4] sm:$0xf]
  %v8285 = vld [vmem:[%s13 + $0x8] sm:$0xf]
  %v8286 = vld [vmem:[%s13 + $0xc] sm:$0xf]
  %v8287 = vld [vmem:[%s13 + $0x10] sm:$0xf]
  %v8288 = vld [vmem:[%s13 + $0x14] sm:$0xf]
  %v8289 = vld [vmem:[%s13 + $0x18] sm:$0xf]
  %v8290 = vld [vmem:[%s13 + $0x1c] sm:$0xf]
  %v8291 = vld [vmem:[%s13 + $0x20] sm:$0xf]
  %v8292 = vld [vmem:[%s13 + $0x24] sm:$0xf]
  %v8293 = vld [vmem:[%s13 + $0x28] sm:$0xf]
  %v8294 = vld [vmem:[%s13 + $0x2c] sm:$0xf]
  %v8295 = vld [vmem:[%s13 + $0x30] sm:$0xf]
  %v8296 = vld [vmem:[%s13 + $0x34] sm:$0xf]
  %v8297 = vld [vmem:[%s13 + $0x38] sm:$0xf]
  %v8298 = vld [vmem:[%s13 + $0x3c] sm:$0xf]
  %v8315 = vunpack.c.l.b16 %v8283
  %v8316 = vunpack.c.l.b16 %v8284
  %v8317 = vunpack.c.l.b16 %v8285
  %v8318 = vunpack.c.l.b16 %v8286
  %v8319 = vunpack.c.l.b16 %v8287
  %v8320 = vunpack.c.l.b16 %v8288
  %v8321 = vunpack.c.l.b16 %v8289
  %v8322 = vunpack.c.l.b16 %v8290
  %v8323 = vunpack.c.l.b16 %v8291
  %v8324 = vunpack.c.l.b16 %v8292
  %v8325 = vunpack.c.l.b16 %v8293
  %v8326 = vunpack.c.l.b16 %v8294
  %v8327 = vunpack.c.l.b16 %v8295
  %v8328 = vunpack.c.l.b16 %v8296
  %v8329 = vunpack.c.l.b16 %v8297
  %v8330 = vunpack.c.l.b16 %v8298
  %v8331 = vpack.c.b16 %v8316, %v8315
  %v8332 = vpack.c.b16 %v8318, %v8317
  %v8333 = vpack.c.b16 %v8320, %v8319
  %v8334 = vpack.c.b16 %v8322, %v8321
  %v8335 = vpack.c.b16 %v8324, %v8323
  %v8336 = vpack.c.b16 %v8326, %v8325
  %v8337 = vpack.c.b16 %v8328, %v8327
  %v8338 = vpack.c.b16 %v8330, %v8329
  %8347 = vmatprep.subr.bf16.mxu0 0
  %8348 = vmatpush1.bf16.msra.mxu0 %v8331
  %8349 = vmatprep.subr.bf16.mxu0 0
  %8350 = vmatpush1.bf16.msra.mxu0 %v8332
  %8351 = vmatprep.subr.bf16.mxu0 0
  %8352 = vmatpush1.bf16.msra.mxu0 %v8333
  %8353 = vmatprep.subr.bf16.mxu0 0
  %8354 = vmatpush1.bf16.msra.mxu0 %v8334
  %8355 = vmatprep.subr.bf16.mxu0 0
  %8356 = vmatpush1.bf16.msra.mxu0 %v8335
  %8357 = vmatprep.subr.bf16.mxu0 0
  %8358 = vmatpush1.bf16.msra.mxu0 %v8336
  %8359 = vmatprep.subr.bf16.mxu0 0
  %8360 = vmatpush1.bf16.msra.mxu0 %v8337
  %8361 = vmatprep.subr.bf16.mxu0 0
  %8362 = vmatpush1.bf16.msra.mxu0 %v8338
  %8363 = vmatprep.subr.bf16.mxu0 0
  %8364 = vmatpush1.bf16.msra.mxu0 0
  %8365 = vmatprep.subr.bf16.mxu0 0
  %8366 = vmatpush1.bf16.msra.mxu0 0
  %8367 = vmatprep.subr.bf16.mxu0 0
  %8368 = vmatpush1.bf16.msra.mxu0 0
  %8369 = vmatprep.subr.bf16.mxu0 0
  %8370 = vmatpush1.bf16.msra.mxu0 0
  %8371 = vmatprep.subr.bf16.mxu0 0
  %8372 = vmatpush1.bf16.msra.mxu0 0
  %8373 = vmatprep.subr.bf16.mxu0 0
  %8374 = vmatpush1.bf16.msra.mxu0 0
  %8375 = vmatprep.subr.bf16.mxu0 0
  %8376 = vmatpush1.bf16.msra.mxu0 0
  %8377 = vmatprep.subr.bf16.mxu0 0
  %8378 = vmatpush1.bf16.msra.mxu0 0
  %8379 = vmatprep.mubr.bf16.mxu0 0
  %8380 = vmatmul.mubr.bf16.gmra.mrb[0].mxu0 %v8282
  %v8381 = vpop.f32.mrb[0].mxu0
  %v8382 = vadd.f32 %v61, %v8381
  %v8383 = vpop.f32.mrb[0].mxu0
  %v8384 = vpop.f32.mrb[0].mxu0
  %v8385 = vpop.f32.mrb[0].mxu0
  %8386 = vdwg.mxu0
  %s8387 = scalar_lea.vmem %s18, 40
  %8388 = vst [vmem:[%s8387] sm:$0xff] %v8382
  %s8389 = scalar_lea.vmem %s6, 144
  %v8390 = vld [vmem:[%s8389] sm:$0xff]
  %v8391 = vld [vmem:[%s8389 + $0x8] sm:$0xff]
  %v8392 = vld [vmem:[%s8389 + $0x10] sm:$0xff]
  %v8393 = vld [vmem:[%s9] sm:$0xff]
  %v8394 = vld [vmem:[%s9 + $0x8] sm:$0xf]
  %v8395 = vld [vmem:[%s9 + $0xc] sm:$0xff]
  %v8396 = vld [vmem:[%s9 + $0x14] sm:$0xf]
  %v8397 = vld [vmem:[%s9 + $0x18] sm:$0xff]
  %v8398 = vld [vmem:[%s9 + $0x20] sm:$0xf]
  %v8399 = vld [vmem:[%s9 + $0x24] sm:$0xff]
  %v8400 = vld [vmem:[%s9 + $0x2c] sm:$0xf]
  %v8401 = vld [vmem:[%s9 + $0x30] sm:$0xff]
  %v8402 = vld [vmem:[%s9 + $0x38] sm:$0xf]
  %v8403 = vld [vmem:[%s9 + $0x3c] sm:$0xff]
  %v8404 = vld [vmem:[%s9 + $0x44] sm:$0xf]
  %v8405 = vld [vmem:[%s9 + $0x48] sm:$0xff]
  %v8406 = vld [vmem:[%s9 + $0x50] sm:$0xf]
  %v8407 = vld [vmem:[%s9 + $0x54] sm:$0xff]
  %v8408 = vld [vmem:[%s9 + $0x5c] sm:$0xf]
  %v8409 = vld [vmem:[%s9 + $0x60] sm:$0xff]
  %v8410 = vld [vmem:[%s9 + $0x68] sm:$0xf]
  %v8411 = vld [vmem:[%s9 + $0x6c] sm:$0xff]
  %v8412 = vld [vmem:[%s9 + $0x74] sm:$0xf]
  %v8413 = vld [vmem:[%s9 + $0x78] sm:$0xff]
  %v8414 = vld [vmem:[%s9 + $0x80] sm:$0xf]
  %v8415 = vld [vmem:[%s9 + $0x84] sm:$0xff]
  %v8416 = vld [vmem:[%s9 + $0x8c] sm:$0xf]
  %v8417 = vld [vmem:[%s9 + $0x90] sm:$0xff]
  %v8418 = vld [vmem:[%s9 + $0x98] sm:$0xf]
  %v8419 = vld [vmem:[%s9 + $0x9c] sm:$0xff]
  %v8420 = vld [vmem:[%s9 + $0xa4] sm:$0xf]
  %v8421 = vld [vmem:[%s9 + $0xa8] sm:$0xff]
  %v8422 = vld [vmem:[%s9 + $0xb0] sm:$0xf]
  %v8423 = vld [vmem:[%s9 + $0xb4] sm:$0xff]
  %v8424 = vld [vmem:[%s9 + $0xbc] sm:$0xf]
  %v8457 = vunpack.c.l.b16 %v8393
  %v8458 = vunpack.c.h.b16 %v8393
  %v8459 = vunpack.c.l.b16 %v8394
  %v8460 = vunpack.c.l.b16 %v8395
  %v8461 = vunpack.c.h.b16 %v8395
  %v8462 = vunpack.c.l.b16 %v8396
  %v8463 = vunpack.c.l.b16 %v8397
  %v8464 = vunpack.c.h.b16 %v8397
  %v8465 = vunpack.c.l.b16 %v8398
  %v8466 = vunpack.c.l.b16 %v8399
  %v8467 = vunpack.c.h.b16 %v8399
  %v8468 = vunpack.c.l.b16 %v8400
  %v8469 = vunpack.c.l.b16 %v8401
  %v8470 = vunpack.c.h.b16 %v8401
  %v8471 = vunpack.c.l.b16 %v8402
  %v8472 = vunpack.c.l.b16 %v8403
  %v8473 = vunpack.c.h.b16 %v8403
  %v8474 = vunpack.c.l.b16 %v8404
  %v8475 = vunpack.c.l.b16 %v8405
  %v8476 = vunpack.c.h.b16 %v8405
  %v8477 = vunpack.c.l.b16 %v8406
  %v8478 = vunpack.c.l.b16 %v8407
  %v8479 = vunpack.c.h.b16 %v8407
  %v8480 = vunpack.c.l.b16 %v8408
  %v8481 = vunpack.c.l.b16 %v8409
  %v8482 = vunpack.c.h.b16 %v8409
  %v8483 = vunpack.c.l.b16 %v8410
  %v8484 = vunpack.c.l.b16 %v8411
  %v8485 = vunpack.c.h.b16 %v8411
  %v8486 = vunpack.c.l.b16 %v8412
  %v8487 = vunpack.c.l.b16 %v8413
  %v8488 = vunpack.c.h.b16 %v8413
  %v8489 = vunpack.c.l.b16 %v8414
  %v8490 = vunpack.c.l.b16 %v8415
  %v8491 = vunpack.c.h.b16 %v8415
  %v8492 = vunpack.c.l.b16 %v8416
  %v8493 = vunpack.c.l.b16 %v8417
  %v8494 = vunpack.c.h.b16 %v8417
  %v8495 = vunpack.c.l.b16 %v8418
  %v8496 = vunpack.c.l.b16 %v8419
  %v8497 = vunpack.c.h.b16 %v8419
  %v8498 = vunpack.c.l.b16 %v8420
  %v8499 = vunpack.c.l.b16 %v8421
  %v8500 = vunpack.c.h.b16 %v8421
  %v8501 = vunpack.c.l.b16 %v8422
  %v8502 = vunpack.c.l.b16 %v8423
  %v8503 = vunpack.c.h.b16 %v8423
  %v8504 = vunpack.c.l.b16 %v8424
  %v8505 = vpack.c.b16 %v8460, %v8457
  %v8506 = vpack.c.b16 %v8461, %v8458
  %v8507 = vpack.c.b16 %v8462, %v8459
  %v8508 = vpack.c.b16 %v8466, %v8463
  %v8509 = vpack.c.b16 %v8467, %v8464
  %v8510 = vpack.c.b16 %v8468, %v8465
  %v8511 = vpack.c.b16 %v8472, %v8469
  %v8512 = vpack.c.b16 %v8473, %v8470
  %v8513 = vpack.c.b16 %v8474, %v8471
  %v8514 = vpack.c.b16 %v8478, %v8475
  %v8515 = vpack.c.b16 %v8479, %v8476
  %v8516 = vpack.c.b16 %v8480, %v8477
  %v8517 = vpack.c.b16 %v8484, %v8481
  %v8518 = vpack.c.b16 %v8485, %v8482
  %v8519 = vpack.c.b16 %v8486, %v8483
  %v8520 = vpack.c.b16 %v8490, %v8487
  %v8521 = vpack.c.b16 %v8491, %v8488
  %v8522 = vpack.c.b16 %v8492, %v8489
  %v8523 = vpack.c.b16 %v8496, %v8493
  %v8524 = vpack.c.b16 %v8497, %v8494
  %v8525 = vpack.c.b16 %v8498, %v8495
  %v8526 = vpack.c.b16 %v8502, %v8499
  %v8527 = vpack.c.b16 %v8503, %v8500
  %v8528 = vpack.c.b16 %v8504, %v8501
  %8553 = vmatprep.subr.bf16.mxu0 %v8506
  %8554 = vmatpush1.bf16.msra.mxu0 %v8505
  %8555 = vmatprep.subr.bf16.mxu0 %v8509
  %8556 = vmatpush1.bf16.msra.mxu0 %v8508
  %8557 = vmatprep.subr.bf16.mxu0 %v8512
  %8558 = vmatpush1.bf16.msra.mxu0 %v8511
  %8559 = vmatprep.subr.bf16.mxu0 %v8515
  %8560 = vmatpush1.bf16.msra.mxu0 %v8514
  %8561 = vmatprep.subr.bf16.mxu0 %v8518
  %8562 = vmatpush1.bf16.msra.mxu0 %v8517
  %8563 = vmatprep.subr.bf16.mxu0 %v8521
  %8564 = vmatpush1.bf16.msra.mxu0 %v8520
  %8565 = vmatprep.subr.bf16.mxu0 %v8524
  %8566 = vmatpush1.bf16.msra.mxu0 %v8523
  %8567 = vmatprep.subr.bf16.mxu0 %v8527
  %8568 = vmatpush1.bf16.msra.mxu0 %v8526
  %8569 = vmatprep.subr.bf16.mxu0 0
  %8570 = vmatpush1.bf16.msra.mxu0 0
  %8571 = vmatprep.subr.bf16.mxu0 0
  %8572 = vmatpush1.bf16.msra.mxu0 0
  %8573 = vmatprep.subr.bf16.mxu0 0
  %8574 = vmatpush1.bf16.msra.mxu0 0
  %8575 = vmatprep.subr.bf16.mxu0 0
  %8576 = vmatpush1.bf16.msra.mxu0 0
  %8577 = vmatprep.subr.bf16.mxu0 0
  %8578 = vmatpush1.bf16.msra.mxu0 0
  %8579 = vmatprep.subr.bf16.mxu0 0
  %8580 = vmatpush1.bf16.msra.mxu0 0
  %8581 = vmatprep.subr.bf16.mxu0 0
  %8582 = vmatpush1.bf16.msra.mxu0 0
  %8583 = vmatprep.subr.bf16.mxu0 0
  %8584 = vmatpush1.bf16.msra.mxu0 0
  %8585 = vmatprep.mubr.bf16.mxu0 0
  %8586 = vmatmul.mubr.bf16.gmra.mrb[0].mxu0 %v8282
  %v8587 = vpop.f32.mrb[0].mxu0
  %v8588 = vadd.f32 %v58, %v8587
  %v8589 = vpop.f32.mrb[0].mxu0
  %v8590 = vadd.f32 %v59, %v8589
  %v8591 = vpop.f32.mrb[0].mxu0
  %v8592 = vpop.f32.mrb[0].mxu0
  %8593 = vdwg.mxu0
  %8594 = vmatprep.subr.bf16.mxu0 0
  %8595 = vmatpush1.bf16.msra.mxu0 %v8507
  %8596 = vmatprep.subr.bf16.mxu0 0
  %8597 = vmatpush1.bf16.msra.mxu0 %v8510
  %8598 = vmatprep.subr.bf16.mxu0 0
  %8599 = vmatpush1.bf16.msra.mxu0 %v8513
  %8600 = vmatprep.subr.bf16.mxu0 0
  %8601 = vmatpush1.bf16.msra.mxu0 %v8516
  %8602 = vmatprep.subr.bf16.mxu0 0
  %8603 = vmatpush1.bf16.msra.mxu0 %v8519
  %8604 = vmatprep.subr.bf16.mxu0 0
  %8605 = vmatpush1.bf16.msra.mxu0 %v8522
  %8606 = vmatprep.subr.bf16.mxu0 0
  %8607 = vmatpush1.bf16.msra.mxu0 %v8525
  %8608 = vmatprep.subr.bf16.mxu0 0
  %8609 = vmatpush1.bf16.msra.mxu0 %v8528
  %8610 = vmatprep.subr.bf16.mxu0 0
  %8611 = vmatpush1.bf16.msra.mxu0 0
  %8612 = vmatprep.subr.bf16.mxu0 0
  %8613 = vmatpush1.bf16.msra.mxu0 0
  %8614 = vmatprep.subr.bf16.mxu0 0
  %8615 = vmatpush1.bf16.msra.mxu0 0
  %8616 = vmatprep.subr.bf16.mxu0 0
  %8617 = vmatpush1.bf16.msra.mxu0 0
  %8618 = vmatprep.subr.bf16.mxu0 0
  %8619 = vmatpush1.bf16.msra.mxu0 0
  %8620 = vmatprep.subr.bf16.mxu0 0
  %8621 = vmatpush1.bf16.msra.mxu0 0
  %8622 = vmatprep.subr.bf16.mxu0 0
  %8623 = vmatpush1.bf16.msra.mxu0 0
  %8624 = vmatprep.subr.bf16.mxu0 0
  %8625 = vmatpush1.bf16.msra.mxu0 0
  %8626 = vmatprep.mubr.bf16.mxu0 0
  %8627 = vmatmul.mubr.bf16.gmra.mrb[0].mxu0 %v8282
  %v8628 = vpop.f32.mrb[0].mxu0
  %v8629 = vadd.f32 %v60, %v8628
  %v8630 = vpop.f32.mrb[0].mxu0
  %v8631 = vpop.f32.mrb[0].mxu0
  %v8632 = vpop.f32.mrb[0].mxu0
  %8633 = vdwg.mxu0
  %v8634 = vadd.f32 %v8390, %v8588
  %v8635 = vxor.u32 %v8634, 2147483648
  %v8636 = vmul.f32 %v8635, 1.442695
  %v8637 = vpow.pop %v8636
  %v8638 = vadd.f32 %v8637, 1.0
  %v8639 = vrcp.pop %v8638
  %v8640 = vmul.f32 1.0, %v8639
  %v8641 = vadd.f32 %v8391, %v8590
  %v8642 = vxor.u32 %v8641, 2147483648
  %v8643 = vmul.f32 %v8642, 1.442695
  %v8644 = vpow.pop %v8643
  %v8645 = vadd.f32 %v8644, 1.0
  %v8646 = vrcp.pop %v8645
  %v8647 = vmul.f32 1.0, %v8646
  %v8648 = vmul.f32 %v8640, %v8629
  %v8649 = vadd.f32 %v8392, %v8648
  %v8650 = vtanh.pop %v8649
  %v8651 = vsub.f32 1.0, %v8647
  %v8652 = vmul.f32 %v8651, %v8650
  %v8653 = vmul.f32 %v8647, %v8279
  %v8654 = vadd.f32 %v8652, %v8653
  %s8655 = scalar_lea.vmem %s17, 48
  %8656 = vst [vmem:[%s8655] sm:$0xff] %v8654
  %v8657 = vpack.c.bf16 %v8654, %v8654
  %v8658 = vld [vmem:[%s13] sm:$0xf]
  %v8659 = vld [vmem:[%s13 + $0x4] sm:$0xf]
  %v8660 = vld [vmem:[%s13 + $0x8] sm:$0xf]
  %v8661 = vld [vmem:[%s13 + $0xc] sm:$0xf]
  %v8662 = vld [vmem:[%s13 + $0x10] sm:$0xf]
  %v8663 = vld [vmem:[%s13 + $0x14] sm:$0xf]
  %v8664 = vld [vmem:[%s13 + $0x18] sm:$0xf]
  %v8665 = vld [vmem:[%s13 + $0x1c] sm:$0xf]
  %v8666 = vld [vmem:[%s13 + $0x20] sm:$0xf]
  %v8667 = vld [vmem:[%s13 + $0x24] sm:$0xf]
  %v8668 = vld [vmem:[%s13 + $0x28] sm:$0xf]
  %v8669 = vld [vmem:[%s13 + $0x2c] sm:$0xf]
  %v8670 = vld [vmem:[%s13 + $0x30] sm:$0xf]
  %v8671 = vld [vmem:[%s13 + $0x34] sm:$0xf]
  %v8672 = vld [vmem:[%s13 + $0x38] sm:$0xf]
  %v8673 = vld [vmem:[%s13 + $0x3c] sm:$0xf]
  %v8690 = vunpack.c.l.b16 %v8658
  %v8691 = vunpack.c.l.b16 %v8659
  %v8692 = vunpack.c.l.b16 %v8660
  %v8693 = vunpack.c.l.b16 %v8661
  %v8694 = vunpack.c.l.b16 %v8662
  %v8695 = vunpack.c.l.b16 %v8663
  %v8696 = vunpack.c.l.b16 %v8664
  %v8697 = vunpack.c.l.b16 %v8665
  %v8698 = vunpack.c.l.b16 %v8666
  %v8699 = vunpack.c.l.b16 %v8667
  %v8700 = vunpack.c.l.b16 %v8668
  %v8701 = vunpack.c.l.b16 %v8669
  %v8702 = vunpack.c.l.b16 %v8670
  %v8703 = vunpack.c.l.b16 %v8671
  %v8704 = vunpack.c.l.b16 %v8672
  %v8705 = vunpack.c.l.b16 %v8673
  %v8706 = vpack.c.b16 %v8691, %v8690
  %v8707 = vpack.c.b16 %v8693, %v8692
  %v8708 = vpack.c.b16 %v8695, %v8694
  %v8709 = vpack.c.b16 %v8697, %v8696
  %v8710 = vpack.c.b16 %v8699, %v8698
  %v8711 = vpack.c.b16 %v8701, %v8700
  %v8712 = vpack.c.b16 %v8703, %v8702
  %v8713 = vpack.c.b16 %v8705, %v8704
  %8722 = vmatprep.subr.bf16.mxu0 0
  %8723 = vmatpush1.bf16.msra.mxu0 %v8706
  %8724 = vmatprep.subr.bf16.mxu0 0
  %8725 = vmatpush1.bf16.msra.mxu0 %v8707
  %8726 = vmatprep.subr.bf16.mxu0 0
  %8727 = vmatpush1.bf16.msra.mxu0 %v8708
  %8728 = vmatprep.subr.bf16.mxu0 0
  %8729 = vmatpush1.bf16.msra.mxu0 %v8709
  %8730 = vmatprep.subr.bf16.mxu0 0
  %8731 = vmatpush1.bf16.msra.mxu0 %v8710
  %8732 = vmatprep.subr.bf16.mxu0 0
  %8733 = vmatpush1.bf16.msra.mxu0 %v8711
  %8734 = vmatprep.subr.bf16.mxu0 0
  %8735 = vmatpush1.bf16.msra.mxu0 %v8712
  %8736 = vmatprep.subr.bf16.mxu0 0
  %8737 = vmatpush1.bf16.msra.mxu0 %v8713
  %8738 = vmatprep.subr.bf16.mxu0 0
  %8739 = vmatpush1.bf16.msra.mxu0 0
  %8740 = vmatprep.subr.bf16.mxu0 0
  %8741 = vmatpush1.bf16.msra.mxu0 0
  %8742 = vmatprep.subr.bf16.mxu0 0
  %8743 = vmatpush1.bf16.msra.mxu0 0
  %8744 = vmatprep.subr.bf16.mxu0 0
  %8745 = vmatpush1.bf16.msra.mxu0 0
  %8746 = vmatprep.subr.bf16.mxu0 0
  %8747 = vmatpush1.bf16.msra.mxu0 0
  %8748 = vmatprep.subr.bf16.mxu0 0
  %8749 = vmatpush1.bf16.msra.mxu0 0
  %8750 = vmatprep.subr.bf16.mxu0 0
  %8751 = vmatpush1.bf16.msra.mxu0 0
  %8752 = vmatprep.subr.bf16.mxu0 0
  %8753 = vmatpush1.bf16.msra.mxu0 0
  %8754 = vmatprep.mubr.bf16.mxu0 0
  %8755 = vmatmul.mubr.bf16.gmra.mrb[0].mxu0 %v8657
  %v8756 = vpop.f32.mrb[0].mxu0
  %v8757 = vadd.f32 %v61, %v8756
  %v8758 = vpop.f32.mrb[0].mxu0
  %v8759 = vpop.f32.mrb[0].mxu0
  %v8760 = vpop.f32.mrb[0].mxu0
  %8761 = vdwg.mxu0
  %s8762 = scalar_lea.vmem %s18, 48
  %8763 = vst [vmem:[%s8762] sm:$0xff] %v8757
  // Predicated region
  $region62: #{generator_forward.1} parent=0 // pred_check
    _
  $region63: #{generator_forward.1} parent=0 // pred_check_branch
    %8765 = sbr.rel (0) target = $region65
  $region64: #{generator_forward.1} parent=0 // pred_region
    _
  $region65: #{generator_forward.1} parent=0 // pred_fallthru
    _
  // Predicated region
  $region66: #{generator_forward.1} parent=0 // pred_check
    _
  $region67: #{generator_forward.1} parent=0 // pred_check_branch
    %8767 = sbr.rel (0) target = $region69
  $region68: #{generator_forward.1} parent=0 // pred_region
    _
  $region69: #{generator_forward.1} parent=0 // pred_fallthru
    _
  // Predicated region
  $region70: #{generator_forward.1} parent=0 // pred_check
    _
  $region71: #{generator_forward.1} parent=0 // pred_check_branch
    %8769 = sbr.rel (0) target = $region73
  $region72: #{generator_forward.1} parent=0 // pred_region
    _
  $region73: #{generator_forward.1} parent=0 // pred_fallthru
    _
  // Predicated region
  $region74: #{generator_forward.1} parent=0 // pred_check
    _
  $region75: #{generator_forward.1} parent=0 // pred_check_branch
    %8771 = sbr.rel (0) target = $region77
  $region76: #{generator_forward.1} parent=0 // pred_region
    _
  $region77: #{generator_forward.1} parent=0 // pred_fallthru
    _
  // Predicated region
  $region78: #{generator_forward.1} parent=0 // pred_check
    _
  $region79: #{generator_forward.1} parent=0 // pred_check_branch
    %8773 = sbr.rel (0) target = $region81
  $region80: #{generator_forward.1} parent=0 // pred_region
    _
  $region81: #{generator_forward.1} parent=0 // pred_fallthru
    _
  // Predicated region
  $region82: #{generator_forward.1} parent=0 // pred_check
    _
  $region83: #{generator_forward.1} parent=0 // pred_check_branch
    %8775 = sbr.rel (0) target = $region85
  $region84: #{generator_forward.1} parent=0 // pred_region
    _
  $region85: #{generator_forward.1} parent=0 // pred_fallthru
    _
  // Predicated region
  $region86: #{generator_forward.1} parent=0 // pred_check
    _
  $region87: #{generator_forward.1} parent=0 // pred_check_branch
    %8777 = sbr.rel (0) target = $region89
  $region88: #{generator_forward.1} parent=0 // pred_region
    _
  $region89: #{generator_forward.1} parent=0 // pred_fallthru
    _
  // Predicated region
  $region90: #{generator_forward.1} parent=0 // pred_check
    _
  $region91: #{generator_forward.1} parent=0 // pred_check_branch
    %8779 = sbr.rel (0) target = $region93
  $region92: #{generator_forward.1} parent=0 // pred_region
    _
  $region93: #{generator_forward.1} parent=0 // pred_fallthru
    _

</llo_original>
